<compile_context>
chip_gen: v5e
topology: v5e:2x2
jax: 0.10.0
libtpu: 0.0.40
codegen_flags: <defaults>
</compile_context>

<pallas_src>
import functools
import numpy as np
import jax
import jax.numpy as jnp
from jax import lax
from jax.experimental import pallas as pl
from jax.experimental.pallas import tpu as pltpu


def _upsample_matrix(out_size, in_size):
    """1-D bilinear interpolation matrix with align_corners=True."""
    A = np.zeros((out_size, in_size), dtype=np.float32)
    for i in range(out_size):
        s = 0.0 if out_size == 1 else i * (in_size - 1) / (out_size - 1)
        s0 = int(np.floor(s))
        s1 = min(s0 + 1, in_size - 1)
        w1 = float(s - s0)
        A[i, s0] += 1.0 - w1
        A[i, s1] += w1
    return A


def _vmem_limit_bytes():
    """Generation-aware VMEM budget: ~3/4 of physical (48 MiB on v7x), capped at 96 MiB."""
    cap = 128 * 1024 * 1024
    try:
        cap = int(getattr(pltpu.get_tpu_info(), "vmem_capacity_bytes", cap))
    except Exception:
        pass
    return int(min(96 * 1024 * 1024, max(32 * 1024 * 1024, (cap * 3) // 4)))


@functools.lru_cache(maxsize=None)
def _roll_is_jnp_compatible(n_rows, n_cols, shift):
    """Pin pltpu.roll's rotation direction against jnp.roll with a one-off compiled probe.

    The 3x3-conv tap shifts use sublane rolls; if pltpu.roll is unavailable or rotates the
    other way on this backend/version, the kernel falls back to the (proven) zero-fill
    concatenate shift, so it can never silently miscompute.
    """
    try:
        x = np.arange(n_rows * n_cols, dtype=np.float32).reshape(n_rows, n_cols)

        def probe(x_ref, o_ref):
            o_ref[...] = pltpu.roll(x_ref[...], shift=shift, axis=0)

        y = pl.pallas_call(
            probe, out_shape=jax.ShapeDtypeStruct((n_rows, n_cols), jnp.float32))(jnp.asarray(x))
        y = np.asarray(jax.block_until_ready(y))
        return bool(np.array_equal(y, np.roll(x, shift, axis=0)))
    except Exception:
        return False


def _aligned_kernel(low_ref, high_ref, mup_ref, e_ref, f_ref, base_ref, mask_ref,
                    w_pre_low_ref, w_pre_hup_ref, w_gate_hi_ref, out_ref,
                    *, H_l, W_l, H_h, W_h, use_roll):
    f32, bf16 = jnp.float32, jnp.bfloat16
    P = H_l * W_l

    low = low_ref[0]        # (P, Cp) bf16
    high = high_ref[0]      # (Q, Cp) bf16  ORIGINAL high-level feature

    def shift_rows(y, off):
        # result[p, :] = y[p + off, :]; rows with p + off out of range are zeroed by the
        # hoisted tap masks (roll path) / by the zero fill itself (fallback path).
        if off == 0:
            return y
        if use_roll:
            return pltpu.roll(y, shift=(-off) % P, axis=0)
        n = y.shape[1]
        if off > 0:
            return jnp.concatenate([y[off:, :], jnp.zeros((off, n), y.dtype)], axis=0)
        return jnp.concatenate([jnp.zeros((-off, n), y.dtype), y[:off, :]], axis=0)

    def conv3x3_accumulate(tap_cols, n_out):
        # tap_cols: (P, 9*n_out) f32 fused tap-matmul result, tap-major column blocks.
        # Returns the 3x3 conv (padding=1, zeros) as (P, n_out).
        acc = None
        for dy in (-1, 0, 1):
            for dx in (-1, 0, 1):
                t = (dy + 1) * 3 + (dx + 1)
                y = tap_cols[:, t * n_out:(t + 1) * n_out]
                if not (dy == 0 and dx == 0):
                    y = shift_rows(y, dy * W_l + dx) * mask_ref[:, t:t + 1]
                acc = y if acc is None else acc + y
        return acc

    # ---- bilinear upsample (align_corners=True): constant sampling matrix, one bf16 matmul.
    #      down_h is folded into w_pre_hup, so this consumes the ORIGINAL high slab. ----
    h_up = jnp.dot(mup_ref[...], high, preferred_element_type=f32)              # (P, Cp) f32

    # ---- flow_make (both branches) + flow_gate low branch: two fused tap matmuls,
    #      one shared shift/mask/accumulate pass ----
    pre_taps = (jnp.dot(low, w_pre_low_ref[...], preferred_element_type=f32) +
                jnp.dot(h_up.astype(bf16), w_pre_hup_ref[...],
                        preferred_element_type=f32))                            # (P, 27)
    pre = conv3x3_accumulate(pre_taps, 3)          # (P, 3) = [flow_x, flow_y, gate_low_logit]

    # ---- flow_warp of the ORIGINAL high feature:
    #      grid_sample, bilinear, zeros padding, align_corners=False (coord math in f32) ----
    gx = base_ref[:, 0:1] + pre[:, 0:1] * (1.0 / W_l)
    gy = base_ref[:, 1:2] + pre[:, 1:2] * (1.0 / H_l)
    ix = ((gx + 1.0) * W_h - 1.0) * 0.5
    iy = ((gy + 1.0) * H_h - 1.0) * 0.5
    ix0f = jnp.floor(ix)
    iy0f = jnp.floor(iy)
    wx1 = ix - ix0f
    wy1 = iy - iy0f
    ix0 = ix0f.astype(jnp.int32)
    iy0 = iy0f.astype(jnp.int32)

    # per-axis bilinear weights; out-of-range taps never match an id -> zeros padding
    y_ids = lax.broadcasted_iota(jnp.int32, (P, H_h), 1)
    x_ids = lax.broadcasted_iota(jnp.int32, (P, W_h), 1)
    yw = (y_ids == iy0).astype(f32) * (1.0 - wy1) + (y_ids == iy0 + 1).astype(f32) * wy1
    xw = (x_ids == ix0).astype(f32) * (1.0 - wx1) + (x_ids == ix0 + 1).astype(f32) * wx1

    # separable (P, Q) sampling matrix: expand the per-axis weights with the constant bf16
    # 0/1 matrices E/F on the MXU, combine on the VPU, apply as one bf16 matmul.
    r_exp = jnp.dot(yw.astype(bf16), e_ref[...], preferred_element_type=f32)    # (P, Q)
    c_exp = jnp.dot(xw.astype(bf16), f_ref[...], preferred_element_type=f32)    # (P, Q)
    warped = jnp.dot((r_exp * c_exp).astype(bf16), high,
                     preferred_element_type=f32)                                # (P, Cp) f32

    # ---- flow_gate high branch on the warped feature, sigmoid gate, output ----
    gate_taps = jnp.dot(warped.astype(bf16), w_gate_hi_ref[...],
                        preferred_element_type=f32)                             # (P, 9)
    gate_logit = conv3x3_accumulate(gate_taps, 1) + pre[:, 2:3]                 # (P, 1)
    gate = jax.nn.sigmoid(gate_logit)

    out_ref[0] = (gate * warped).astype(out_ref.dtype)


def aligned_module_forward(low_nchw, high_nchw, params):
    N, C, H_l, W_l = low_nchw.shape
    Nh, Ch, H_h, W_h = high_nchw.shape
    assert N == Nh and Ch == C, "module requires inplane == outplane"
    P, Q = H_l * W_l, H_h * W_h
    Cp = max(128, ((C + 127) // 128) * 128)   # lane-dense channel padding
    f32, bf16 = jnp.float32, jnp.bfloat16

    def pad_ch(x):
        pad = Cp - x.shape[-1]
        return x if pad == 0 else jnp.pad(x, [(0, 0)] * (x.ndim - 1) + [(0, pad)])

    # glue: NCHW -> flattened channels-last, channel-padded, bf16 slabs (halves HBM/VMEM bytes;
    # every matmul accumulates in f32 and all coordinate math stays f32)
    low = pad_ch(jnp.transpose(low_nchw, (0, 2, 3, 1)).reshape(N, P, C)).astype(bf16)
    high = pad_ch(jnp.transpose(high_nchw, (0, 2, 3, 1)).reshape(N, Q, C)).astype(bf16)

    # ---- batch-invariant constants, built once on the host ----
    # bilinear upsample (align_corners=True) sampling matrix = kron of the 1-D matrices
    m_up = jnp.asarray(np.kron(_upsample_matrix(H_l, H_h), _upsample_matrix(W_l, W_h)),
                       dtype=bf16)                                                 # (P, Q)
    # 0/1 expansion matrices for the separable warp sampling matrix
    qs = np.arange(Q)
    E = jnp.asarray(qs[None, :] // W_h == np.arange(H_h)[:, None], dtype=bf16)     # (H_h, Q)
    F = jnp.asarray(qs[None, :] % W_h == np.arange(W_h)[:, None], dtype=bf16)      # (W_h, Q)
    # base sampling grid of flow_warp (x, y) and 3x3 tap validity masks (zero padding)
    rows = np.arange(P) // W_l
    cols = np.arange(P) % W_l
    base_xy = jnp.asarray(np.stack(
        [-1.0 + 2.0 * cols / max(W_l - 1, 1),
         -1.0 + 2.0 * rows / max(H_l - 1, 1)], axis=1), dtype=f32)                 # (P, 2)
    masks = np.zeros((P, 9), np.float32)
    for t, (dy, dx) in enumerate((dy, dx) for dy in (-1, 0, 1) for dx in (-1, 0, 1)):
        masks[:, t] = ((rows + dy >= 0) & (rows + dy < H_l) &
                       (cols + dx >= 0) & (cols + dx < W_l))
    tap_masks = jnp.asarray(masks)                                                 # (P, 9)

    # ---- 3x3 conv weights: 1x1 down convs folded in, taps fused column-wise (tap-major) ----
    w_dl = params["down_l"][:, :, 0, 0].astype(f32).T        # (C, C): x @ w_dl == down_l(x)
    w_dh = params["down_h"][:, :, 0, 0].astype(f32).T
    W_fm = params["flow_make"].astype(f32)                    # (2, 2C, 3, 3)
    W_fg = params["flow_gate"].astype(f32)                    # (1, 2C, 3, 3)
    low_cols, hup_cols, gate_cols = [], [], []
    for ky in range(3):
        for kx in range(3):
            # per tap: [flow_x, flow_y, gate] on the low branch; [flow_x, flow_y, 0] on the
            # upsampled-high branch (same column layout -> one shared shift/mask pass)
            low_cols.append(w_dl @ jnp.concatenate(
                [W_fm[:, C:, ky, kx].T, W_fg[:, C:, ky, kx].T], axis=1))            # (C, 3)
            hup_cols.append(jnp.concatenate(
                [w_dh @ W_fm[:, :C, ky, kx].T, jnp.zeros((C, 1), f32)], axis=1))    # (C, 3)
            gate_cols.append(W_fg[:, :C, ky, kx].T)                                 # (C, 1)
    pad_rows = lambda w: jnp.pad(w, ((0, Cp - C), (0, 0))).astype(bf16)
    w_pre_low = pad_rows(jnp.concatenate(low_cols, axis=1))     # (Cp, 27)
    w_pre_hup = pad_rows(jnp.concatenate(hup_cols, axis=1))     # (Cp, 27)
    w_gate_hi = pad_rows(jnp.concatenate(gate_cols, axis=1))    # (Cp, 9)

    use_roll = (_roll_is_jnp_compatible(P, 3, (W_l + 1) % P) and
                _roll_is_jnp_compatible(P, 1, (W_l + 1) % P))
    kernel = functools.partial(_aligned_kernel, H_l=H_l, W_l=W_l, H_h=H_h, W_h=W_h,
                               use_roll=use_roll)

    out_flat = pl.pallas_call(
        kernel,
        out_shape=jax.ShapeDtypeStruct((N, P, Cp), low_nchw.dtype),
        grid_spec=pltpu.PrefetchScalarGridSpec(
            num_scalar_prefetch=0,
            grid=(N,),
            in_specs=[
                pl.BlockSpec((1, P, Cp), lambda b: (b, 0, 0)),   # low slab (bf16)
                pl.BlockSpec((1, Q, Cp), lambda b: (b, 0, 0)),   # high slab (bf16)
                # batch-invariant constants: constant index_map -> fetched once, reused
                pl.BlockSpec((P, Q), lambda b: (0, 0)),          # upsample sampling matrix
                pl.BlockSpec((H_h, Q), lambda b: (0, 0)),        # row expansion (E)
                pl.BlockSpec((W_h, Q), lambda b: (0, 0)),        # col expansion (F)
                pl.BlockSpec((P, 2), lambda b: (0, 0)),          # base warp grid (x, y)
                pl.BlockSpec((P, 9), lambda b: (0, 0)),          # 3x3 tap validity masks
                pl.BlockSpec((Cp, 27), lambda b: (0, 0)),        # low-branch fused taps (down_l folded)
                pl.BlockSpec((Cp, 27), lambda b: (0, 0)),        # upsampled-high fused taps (down_h folded)
                pl.BlockSpec((Cp, 9), lambda b: (0, 0)),         # warped-high gate taps
            ],
            out_specs=pl.BlockSpec((1, P, Cp), lambda b: (b, 0, 0)),
        ),
        compiler_params=pltpu.CompilerParams(
            dimension_semantics=("parallel",),
            vmem_limit_bytes=_vmem_limit_bytes()),
    )(low, high, m_up, E, F, base_xy, tap_masks, w_pre_low, w_pre_hup, w_gate_hi)

    # glue: drop channel padding, back to PyTorch NCHW
    out = out_flat[:, :, :C].reshape(N, H_l, W_l, C)
    return jnp.transpose(out, (0, 3, 1, 2))


def reference_forward(low_nchw, high_nchw, params):
    """Pure-JAX (f32) mirror of the PyTorch forward, for a consistency check."""
    N, C, H_l, W_l = low_nchw.shape
    _, _, H_h, W_h = high_nchw.shape

    def conv(x, w, pad):
        return lax.conv_general_dilated(
            x, w, window_strides=(1, 1), padding=[(pad, pad), (pad, pad)],
            dimension_numbers=("NCHW", "OIHW", "NCHW"))

    low_d = conv(low_nchw, params["down_l"], 0)
    high_d = conv(high_nchw, params["down_h"], 0)

    A_h = jnp.asarray(_upsample_matrix(H_l, H_h))
    A_w = jnp.asarray(_upsample_matrix(W_l, W_h))
    up = jnp.einsum("ik,nckw->nciw", A_h, high_d)
    up = jnp.einsum("jl,ncil->ncij", A_w, up)

    flow = conv(jnp.concatenate([up, low_d], axis=1), params["flow_make"], 1)

    xs = jnp.linspace(-1.0, 1.0, W_l)
    ys = jnp.linspace(-1.0, 1.0, H_l)
    gx = xs[None, None, :] + flow[:, 0] / W_l
    gy = ys[None, :, None] + flow[:, 1] / H_l

    ix = ((gx + 1.0) * W_h - 1.0) / 2.0
    iy = ((gy + 1.0) * H_h - 1.0) / 2.0
    ix0 = jnp.floor(ix)
    iy0 = jnp.floor(iy)
    wx1 = ix - ix0
    wy1 = iy - iy0
    ix0i = ix0.astype(jnp.int32)
    iy0i = iy0.astype(jnp.int32)

    high_flat = high_nchw.reshape(N, C, H_h * W_h)

    def sample(yi, xi, w):
        valid = ((xi >= 0) & (xi < W_h) & (yi >= 0) & (yi < H_h)).astype(high_nchw.dtype)
        idx = jnp.clip(yi, 0, H_h - 1) * W_h + jnp.clip(xi, 0, W_h - 1)
        idx = jnp.broadcast_to(idx.reshape(N, 1, -1), (N, C, H_l * W_l))
        vals = jnp.take_along_axis(high_flat, idx, axis=2).reshape(N, C, H_l, W_l)
        return vals * (w * valid)[:, None]

    warped = (sample(iy0i, ix0i, (1 - wy1) * (1 - wx1)) +
              sample(iy0i, ix0i + 1, (1 - wy1) * wx1) +
              sample(iy0i + 1, ix0i, wy1 * (1 - wx1)) +
              sample(iy0i + 1, ix0i + 1, wy1 * wx1))

    gate = jax.nn.sigmoid(conv(jnp.concatenate([warped, low_d], axis=1),
                               params["flow_gate"], 1))
    return gate * warped


if __name__ == "__main__":
    key = jax.random.PRNGKey(0)
    k1, k2, k3, k4, k5, k6 = jax.random.split(key, 6)

    N, C = 2, 4                 # inplane == outplane
    H_l = W_l = 16              # low-level feature spatial size (output size)
    H_h = W_h = 8               # high-level feature spatial size

    low = jax.random.normal(k1, (N, C, H_l, W_l), dtype=jnp.float32)
    high = jax.random.normal(k2, (N, C, H_h, W_h), dtype=jnp.float32)

    # deterministic synthetic parameters (PyTorch weight layouts)
    params = {
        "down_h": 0.3 * jax.random.normal(k3, (C, C, 1, 1), dtype=jnp.float32),
        "down_l": 0.3 * jax.random.normal(k4, (C, C, 1, 1), dtype=jnp.float32),
        "flow_make": 0.3 * jax.random.normal(k5, (2, 2 * C, 3, 3), dtype=jnp.float32),
        "flow_gate": 0.3 * jax.random.normal(k6, (1, 2 * C, 3, 3), dtype=jnp.float32),
    }

    out = jax.block_until_ready(aligned_module_forward(low, high, params))
    assert out.shape == (N, C, H_l, W_l)

    ref = jax.block_until_ready(reference_forward(low, high, params))
    # All matmul operands (slabs, sampling matrices, folded tap weights) are bf16 with f32
    # accumulation and f32 coordinate math -> slightly looser tolerance than a pure-f32 kernel.
    np.testing.assert_allclose(np.asarray(out), np.asarray(ref),
                               rtol=5e-2, atol=7e-2)
    print("KERNEL_OK")
</pallas_src>

<mosaic_0001>
module attributes {stable_mosaic.version = 11 : i64} {
  func.func @probe(%arg0: memref<256x3xf32, #tpu.memory_space<vmem>>, %arg1: memref<256x3xf32, #tpu.memory_space<vmem>>) attributes {dimension_semantics = [], scalar_prefetch = 0 : i64, scratch_operands = 0 : i64, tpu.core_type = #tpu.core_type<tc>} {
    %c0 = arith.constant 0 : index
    %c0_0 = arith.constant 0 : index
    %0 = vector.load %arg0[%c0, %c0_0] : memref<256x3xf32, #tpu.memory_space<vmem>>, vector<256x3xf32>
    %c17_i32 = arith.constant 17 : i32
    %1 = tpu.dynamic_rotate %0 by %c17_i32 dim 0 : vector<256x3xf32>, i32 -> vector<256x3xf32>
    %c0_1 = arith.constant 0 : index
    %c0_2 = arith.constant 0 : index
    %2 = vector.load %arg1[%c0_1, %c0_2] : memref<256x3xf32, #tpu.memory_space<vmem>>, vector<256x3xf32>
    tpu.vector_store %arg1[%c0_1, %c0_2], %1 {strides = array<i32>} : memref<256x3xf32, #tpu.memory_space<vmem>>, vector<256x3xf32>,
    return
  }
}

module attributes {stable_mosaic.version = 11 : i64} {
  func.func @_aligned_kernel(%arg0: i32, %arg1: memref<1x256x128xbf16, #tpu.memory_space<vmem>>, %arg2: memref<1x64x128xbf16, #tpu.memory_space<vmem>>, %arg3: memref<256x64xbf16, #tpu.memory_space<vmem>>, %arg4: memref<8x64xbf16, #tpu.memory_space<vmem>>, %arg5: memref<8x64xbf16, #tpu.memory_space<vmem>>, %arg6: memref<256x2xf32, #tpu.memory_space<vmem>>, %arg7: memref<256x9xf32, #tpu.memory_space<vmem>>, %arg8: memref<128x27xbf16, #tpu.memory_space<vmem>>, %arg9: memref<128x27xbf16, #tpu.memory_space<vmem>>, %arg10: memref<128x9xbf16, #tpu.memory_space<vmem>>, %arg11: memref<1x256x128xf32, #tpu.memory_space<vmem>>) attributes {dimension_semantics = [#tpu.dimension_semantics<parallel>], iteration_bounds = array<i64: 2>, scalar_prefetch = 0 : i64, scratch_operands = 0 : i64, tpu.core_type = #tpu.core_type<tc>, window_params = [{transform_indices = @transform_0, window_bounds = array<i64: 1, 256, 128>}, {transform_indices = @transform_1, window_bounds = array<i64: 1, 64, 128>}, {pipeline_mode = #tpu.pipeline_mode<synchronous>, transform_indices = @transform_2, window_bounds = array<i64: 256, 64>}, {pipeline_mode = #tpu.pipeline_mode<synchronous>, transform_indices = @transform_3, window_bounds = array<i64: 8, 64>}, {pipeline_mode = #tpu.pipeline_mode<synchronous>, transform_indices = @transform_4, window_bounds = array<i64: 8, 64>}, {pipeline_mode = #tpu.pipeline_mode<synchronous>, transform_indices = @transform_5, window_bounds = array<i64: 256, 2>}, {pipeline_mode = #tpu.pipeline_mode<synchronous>, transform_indices = @transform_6, window_bounds = array<i64: 256, 9>}, {pipeline_mode = #tpu.pipeline_mode<synchronous>, transform_indices = @transform_7, window_bounds = array<i64: 128, 27>}, {pipeline_mode = #tpu.pipeline_mode<synchronous>, transform_indices = @transform_8, window_bounds = array<i64: 128, 27>}, {pipeline_mode = #tpu.pipeline_mode<synchronous>, transform_indices = @transform_9, window_bounds = array<i64: 128, 9>}, {transform_indices = @transform_10, window_bounds = array<i64: 1, 256, 128>}]} {
    %c0 = arith.constant 0 : index
    %c0_0 = arith.constant 0 : index
    %c0_1 = arith.constant 0 : index
    %0 = vector.load %arg1[%c0, %c0_0, %c0_1] : memref<1x256x128xbf16, #tpu.memory_space<vmem>>, vector<1x256x128xbf16>
    %1 = vector.shape_cast %0 : vector<1x256x128xbf16> to vector<256x128xbf16>
    %c0_2 = arith.constant 0 : index
    %c0_3 = arith.constant 0 : index
    %c0_4 = arith.constant 0 : index
    %2 = vector.load %arg2[%c0_2, %c0_3, %c0_4] : memref<1x64x128xbf16, #tpu.memory_space<vmem>>, vector<1x64x128xbf16>
    %3 = vector.shape_cast %2 : vector<1x64x128xbf16> to vector<64x128xbf16>
    %c0_5 = arith.constant 0 : index
    %c0_6 = arith.constant 0 : index
    %4 = vector.load %arg3[%c0_5, %c0_6] : memref<256x64xbf16, #tpu.memory_space<vmem>>, vector<256x64xbf16>
    %cst = arith.constant dense<0.000000e+00> : vector<256x128xf32>
    %5 = tpu.matmul %4, %3, %cst {dimension_numbers = #tpu.dot_dimension_numbers<[1], [0], [0], [1], [0, 0, 1, 1], [], []>} : vector<256x64xbf16>, vector<64x128xbf16>, vector<256x128xf32> -> vector<256x128xf32>
    %c0_7 = arith.constant 0 : index
    %c0_8 = arith.constant 0 : index
    %6 = vector.load %arg8[%c0_7, %c0_8] : memref<128x27xbf16, #tpu.memory_space<vmem>>, vector<128x27xbf16>
    %cst_9 = arith.constant dense<0.000000e+00> : vector<256x27xf32>
    %7 = tpu.matmul %1, %6, %cst_9 {dimension_numbers = #tpu.dot_dimension_numbers<[1], [0], [0], [1], [0, 0, 1, 1], [], []>} : vector<256x128xbf16>, vector<128x27xbf16>, vector<256x27xf32> -> vector<256x27xf32>
    %8 = arith.truncf %5 : vector<256x128xf32> to vector<256x128xbf16>
    %c0_10 = arith.constant 0 : index
    %c0_11 = arith.constant 0 : index
    %9 = vector.load %arg9[%c0_10, %c0_11] : memref<128x27xbf16, #tpu.memory_space<vmem>>, vector<128x27xbf16>
    %cst_12 = arith.constant dense<0.000000e+00> : vector<256x27xf32>
    %10 = tpu.matmul %8, %9, %cst_12 {dimension_numbers = #tpu.dot_dimension_numbers<[1], [0], [0], [1], [0, 0, 1, 1], [], []>} : vector<256x128xbf16>, vector<128x27xbf16>, vector<256x27xf32> -> vector<256x27xf32>
    %11 = arith.addf %7, %10 : vector<256x27xf32>
    %12 = vector.extract_strided_slice %11 {offsets = [0, 0], sizes = [256, 3], strides = [1, 1]} : vector<256x27xf32> to vector<256x3xf32>
    %cst_13 = arith.constant 0.000000e+00 : f32
    %13 = vector.broadcast %cst_13 : f32 to vector<17x3xf32>
    %14 = vector.extract_strided_slice %12 {offsets = [0, 0], sizes = [239, 3], strides = [1, 1]} : vector<256x3xf32> to vector<239x3xf32>
    %15 = tpu.concatenate %13, %14 in 0 : vector<17x3xf32>, vector<239x3xf32> -> vector<256x3xf32>
    %c0_14 = arith.constant 0 : index
    %c0_15 = arith.constant 0 : index
    %16 = vector.load %arg7[%c0_14, %c0_15] : memref<256x9xf32, #tpu.memory_space<vmem>>, vector<256x1xf32>
    %17 = vector.broadcast %16 : vector<256x1xf32> to vector<256x3xf32>
    %18 = arith.mulf %15, %17 : vector<256x3xf32>
    %19 = vector.extract_strided_slice %11 {offsets = [0, 3], sizes = [256, 3], strides = [1, 1]} : vector<256x27xf32> to vector<256x3xf32>
    %cst_16 = arith.constant 0.000000e+00 : f32
    %20 = vector.broadcast %cst_16 : f32 to vector<16x3xf32>
    %21 = vector.extract_strided_slice %19 {offsets = [0, 0], sizes = [240, 3], strides = [1, 1]} : vector<256x3xf32> to vector<240x3xf32>
    %22 = tpu.concatenate %20, %21 in 0 : vector<16x3xf32>, vector<240x3xf32> -> vector<256x3xf32>
    %c0_17 = arith.constant 0 : index
    %c1 = arith.constant 1 : index
    %23 = vector.load %arg7[%c0_17, %c1] : memref<256x9xf32, #tpu.memory_space<vmem>>, vector<256x1xf32>
    %24 = vector.broadcast %23 : vector<256x1xf32> to vector<256x3xf32>
    %25 = arith.mulf %22, %24 : vector<256x3xf32>
    %26 = arith.addf %18, %25 : vector<256x3xf32>
    %27 = vector.extract_strided_slice %11 {offsets = [0, 6], sizes = [256, 3], strides = [1, 1]} : vector<256x27xf32> to vector<256x3xf32>
    %cst_18 = arith.constant 0.000000e+00 : f32
    %28 = vector.broadcast %cst_18 : f32 to vector<15x3xf32>
    %29 = vector.extract_strided_slice %27 {offsets = [0, 0], sizes = [241, 3], strides = [1, 1]} : vector<256x3xf32> to vector<241x3xf32>
    %30 = tpu.concatenate %28, %29 in 0 : vector<15x3xf32>, vector<241x3xf32> -> vector<256x3xf32>
    %c0_19 = arith.constant 0 : index
    %c2 = arith.constant 2 : index
    %31 = vector.load %arg7[%c0_19, %c2] : memref<256x9xf32, #tpu.memory_space<vmem>>, vector<256x1xf32>
    %32 = vector.broadcast %31 : vector<256x1xf32> to vector<256x3xf32>
    %33 = arith.mulf %30, %32 : vector<256x3xf32>
    %34 = arith.addf %26, %33 : vector<256x3xf32>
    %35 = vector.extract_strided_slice %11 {offsets = [0, 9], sizes = [256, 3], strides = [1, 1]} : vector<256x27xf32> to vector<256x3xf32>
    %cst_20 = arith.constant 0.000000e+00 : f32
    %36 = vector.broadcast %cst_20 : f32 to vector<1x3xf32>
    %37 = vector.extract_strided_slice %35 {offsets = [0, 0], sizes = [255, 3], strides = [1, 1]} : vector<256x3xf32> to vector<255x3xf32>
    %38 = tpu.concatenate %36, %37 in 0 : vector<1x3xf32>, vector<255x3xf32> -> vector<256x3xf32>
    %c0_21 = arith.constant 0 : index
    %c3 = arith.constant 3 : index
    %39 = vector.load %arg7[%c0_21, %c3] : memref<256x9xf32, #tpu.memory_space<vmem>>, vector<256x1xf32>
    %40 = vector.broadcast %39 : vector<256x1xf32> to vector<256x3xf32>
    %41 = arith.mulf %38, %40 : vector<256x3xf32>
    %42 = arith.addf %34, %41 : vector<256x3xf32>
    %43 = vector.extract_strided_slice %11 {offsets = [0, 12], sizes = [256, 3], strides = [1, 1]} : vector<256x27xf32> to vector<256x3xf32>
    %44 = arith.addf %42, %43 : vector<256x3xf32>
    %45 = vector.extract_strided_slice %11 {offsets = [0, 15], sizes = [256, 3], strides = [1, 1]} : vector<256x27xf32> to vector<256x3xf32>
    %46 = vector.extract_strided_slice %45 {offsets = [1, 0], sizes = [255, 3], strides = [1, 1]} : vector<256x3xf32> to vector<255x3xf32>
    %cst_22 = arith.constant 0.000000e+00 : f32
    %47 = vector.broadcast %cst_22 : f32 to vector<1x3xf32>
    %48 = tpu.concatenate %46, %47 in 0 : vector<255x3xf32>, vector<1x3xf32> -> vector<256x3xf32>
    %c0_23 = arith.constant 0 : index
    %c5 = arith.constant 5 : index
    %49 = vector.load %arg7[%c0_23, %c5] : memref<256x9xf32, #tpu.memory_space<vmem>>, vector<256x1xf32>
    %50 = vector.broadcast %49 : vector<256x1xf32> to vector<256x3xf32>
    %51 = arith.mulf %48, %50 : vector<256x3xf32>
    %52 = arith.addf %44, %51 : vector<256x3xf32>
    %53 = vector.extract_strided_slice %11 {offsets = [0, 18], sizes = [256, 3], strides = [1, 1]} : vector<256x27xf32> to vector<256x3xf32>
    %54 = vector.extract_strided_slice %53 {offsets = [15, 0], sizes = [241, 3], strides = [1, 1]} : vector<256x3xf32> to vector<241x3xf32>
    %cst_24 = arith.constant 0.000000e+00 : f32
    %55 = vector.broadcast %cst_24 : f32 to vector<15x3xf32>
    %56 = tpu.concatenate %54, %55 in 0 : vector<241x3xf32>, vector<15x3xf32> -> vector<256x3xf32>
    %c0_25 = arith.constant 0 : index
    %c6 = arith.constant 6 : index
    %57 = vector.load %arg7[%c0_25, %c6] : memref<256x9xf32, #tpu.memory_space<vmem>>, vector<256x1xf32>
    %58 = vector.broadcast %57 : vector<256x1xf32> to vector<256x3xf32>
    %59 = arith.mulf %56, %58 : vector<256x3xf32>
    %60 = arith.addf %52, %59 : vector<256x3xf32>
    %61 = vector.extract_strided_slice %11 {offsets = [0, 21], sizes = [256, 3], strides = [1, 1]} : vector<256x27xf32> to vector<256x3xf32>
    %62 = vector.extract_strided_slice %61 {offsets = [16, 0], sizes = [240, 3], strides = [1, 1]} : vector<256x3xf32> to vector<240x3xf32>
    %cst_26 = arith.constant 0.000000e+00 : f32
    %63 = vector.broadcast %cst_26 : f32 to vector<16x3xf32>
    %64 = tpu.concatenate %62, %63 in 0 : vector<240x3xf32>, vector<16x3xf32> -> vector<256x3xf32>
    %c0_27 = arith.constant 0 : index
    %c7 = arith.constant 7 : index
    %65 = vector.load %arg7[%c0_27, %c7] : memref<256x9xf32, #tpu.memory_space<vmem>>, vector<256x1xf32>
    %66 = vector.broadcast %65 : vector<256x1xf32> to vector<256x3xf32>
    %67 = arith.mulf %64, %66 : vector<256x3xf32>
    %68 = arith.addf %60, %67 : vector<256x3xf32>
    %69 = vector.extract_strided_slice %11 {offsets = [0, 24], sizes = [256, 3], strides = [1, 1]} : vector<256x27xf32> to vector<256x3xf32>
    %70 = vector.extract_strided_slice %69 {offsets = [17, 0], sizes = [239, 3], strides = [1, 1]} : vector<256x3xf32> to vector<239x3xf32>
    %cst_28 = arith.constant 0.000000e+00 : f32
    %71 = vector.broadcast %cst_28 : f32 to vector<17x3xf32>
    %72 = tpu.concatenate %70, %71 in 0 : vector<239x3xf32>, vector<17x3xf32> -> vector<256x3xf32>
    %c0_29 = arith.constant 0 : index
    %c8 = arith.constant 8 : index
    %73 = vector.load %arg7[%c0_29, %c8] : memref<256x9xf32, #tpu.memory_space<vmem>>, vector<256x1xf32>
    %74 = vector.broadcast %73 : vector<256x1xf32> to vector<256x3xf32>
    %75 = arith.mulf %72, %74 : vector<256x3xf32>
    %76 = arith.addf %68, %75 : vector<256x3xf32>
    %c0_30 = arith.constant 0 : index
    %c0_31 = arith.constant 0 : index
    %77 = vector.load %arg6[%c0_30, %c0_31] : memref<256x2xf32, #tpu.memory_space<vmem>>, vector<256x1xf32>
    %78 = vector.extract_strided_slice %76 {offsets = [0, 0], sizes = [256, 1], strides = [1, 1]} : vector<256x3xf32> to vector<256x1xf32>
    %cst_32 = arith.constant 6.250000e-02 : f32
    %79 = vector.broadcast %cst_32 : f32 to vector<256x1xf32>
    %80 = arith.mulf %78, %79 : vector<256x1xf32>
    %81 = arith.addf %77, %80 : vector<256x1xf32>
    %c0_33 = arith.constant 0 : index
    %c1_34 = arith.constant 1 : index
    %82 = vector.load %arg6[%c0_33, %c1_34] : memref<256x2xf32, #tpu.memory_space<vmem>>, vector<256x1xf32>
    %83 = vector.extract_strided_slice %76 {offsets = [0, 1], sizes = [256, 1], strides = [1, 1]} : vector<256x3xf32> to vector<256x1xf32>
    %cst_35 = arith.constant 6.250000e-02 : f32
    %84 = vector.broadcast %cst_35 : f32 to vector<256x1xf32>
    %85 = arith.mulf %83, %84 : vector<256x1xf32>
    %86 = arith.addf %82, %85 : vector<256x1xf32>
    %cst_36 = arith.constant 1.000000e+00 : f32
    %87 = vector.broadcast %cst_36 : f32 to vector<256x1xf32>
    %88 = arith.addf %81, %87 : vector<256x1xf32>
    %cst_37 = arith.constant 8.000000e+00 : f32
    %89 = vector.broadcast %cst_37 : f32 to vector<256x1xf32>
    %90 = arith.mulf %88, %89 : vector<256x1xf32>
    %cst_38 = arith.constant 1.000000e+00 : f32
    %91 = vector.broadcast %cst_38 : f32 to vector<256x1xf32>
    %92 = arith.subf %90, %91 : vector<256x1xf32>
    %cst_39 = arith.constant 5.000000e-01 : f32
    %93 = vector.broadcast %cst_39 : f32 to vector<256x1xf32>
    %94 = arith.mulf %92, %93 : vector<256x1xf32>
    %cst_40 = arith.constant 1.000000e+00 : f32
    %95 = vector.broadcast %cst_40 : f32 to vector<256x1xf32>
    %96 = arith.addf %86, %95 : vector<256x1xf32>
    %cst_41 = arith.constant 8.000000e+00 : f32
    %97 = vector.broadcast %cst_41 : f32 to vector<256x1xf32>
    %98 = arith.mulf %96, %97 : vector<256x1xf32>
    %cst_42 = arith.constant 1.000000e+00 : f32
    %99 = vector.broadcast %cst_42 : f32 to vector<256x1xf32>
    %100 = arith.subf %98, %99 : vector<256x1xf32>
    %cst_43 = arith.constant 5.000000e-01 : f32
    %101 = vector.broadcast %cst_43 : f32 to vector<256x1xf32>
    %102 = arith.mulf %100, %101 : vector<256x1xf32>
    %103 = math.floor %94 : vector<256x1xf32>
    %104 = math.floor %102 : vector<256x1xf32>
    %105 = arith.subf %94, %103 : vector<256x1xf32>
    %106 = arith.subf %102, %104 : vector<256x1xf32>
    %107 = arith.fptosi %103 : vector<256x1xf32> to vector<256x1xi32>
    %108 = arith.fptosi %104 : vector<256x1xf32> to vector<256x1xi32>
    %109 = tpu.iota {dimensions = array<i32: 1>} : vector<256x8xi32>
    %110 = tpu.iota {dimensions = array<i32: 1>} : vector<256x8xi32>
    %111 = vector.broadcast %108 : vector<256x1xi32> to vector<256x8xi32>
    %112 = arith.cmpi eq, %109, %111 : vector<256x8xi32>
    %113 = arith.extui %112 : vector<256x8xi1> to vector<256x8xi32>
    %114 = arith.sitofp %113 : vector<256x8xi32> to vector<256x8xf32>
    %cst_44 = arith.constant 1.000000e+00 : f32
    %115 = vector.broadcast %cst_44 : f32 to vector<256x1xf32>
    %116 = arith.subf %115, %106 : vector<256x1xf32>
    %117 = vector.broadcast %116 : vector<256x1xf32> to vector<256x8xf32>
    %118 = arith.mulf %114, %117 : vector<256x8xf32>
    %c1_i32 = arith.constant 1 : i32
    %119 = vector.broadcast %c1_i32 : i32 to vector<256x1xi32>
    %120 = arith.addi %108, %119 : vector<256x1xi32>
    %121 = vector.broadcast %120 : vector<256x1xi32> to vector<256x8xi32>
    %122 = arith.cmpi eq, %109, %121 : vector<256x8xi32>
    %123 = arith.extui %122 : vector<256x8xi1> to vector<256x8xi32>
    %124 = arith.sitofp %123 : vector<256x8xi32> to vector<256x8xf32>
    %125 = vector.broadcast %106 : vector<256x1xf32> to vector<256x8xf32>
    %126 = arith.mulf %124, %125 : vector<256x8xf32>
    %127 = arith.addf %118, %126 : vector<256x8xf32>
    %128 = vector.broadcast %107 : vector<256x1xi32> to vector<256x8xi32>
    %129 = arith.cmpi eq, %110, %128 : vector<256x8xi32>
    %130 = arith.extui %129 : vector<256x8xi1> to vector<256x8xi32>
    %131 = arith.sitofp %130 : vector<256x8xi32> to vector<256x8xf32>
    %cst_45 = arith.constant 1.000000e+00 : f32
    %132 = vector.broadcast %cst_45 : f32 to vector<256x1xf32>
    %133 = arith.subf %132, %105 : vector<256x1xf32>
    %134 = vector.broadcast %133 : vector<256x1xf32> to vector<256x8xf32>
    %135 = arith.mulf %131, %134 : vector<256x8xf32>
    %c1_i32_46 = arith.constant 1 : i32
    %136 = vector.broadcast %c1_i32_46 : i32 to vector<256x1xi32>
    %137 = arith.addi %107, %136 : vector<256x1xi32>
    %138 = vector.broadcast %137 : vector<256x1xi32> to vector<256x8xi32>
    %139 = arith.cmpi eq, %110, %138 : vector<256x8xi32>
    %140 = arith.extui %139 : vector<256x8xi1> to vector<256x8xi32>
    %141 = arith.sitofp %140 : vector<256x8xi32> to vector<256x8xf32>
    %142 = vector.broadcast %105 : vector<256x1xf32> to vector<256x8xf32>
    %143 = arith.mulf %141, %142 : vector<256x8xf32>
    %144 = arith.addf %135, %143 : vector<256x8xf32>
    %145 = arith.truncf %127 : vector<256x8xf32> to vector<256x8xbf16>
    %c0_47 = arith.constant 0 : index
    %c0_48 = arith.constant 0 : index
    %146 = vector.load %arg4[%c0_47, %c0_48] : memref<8x64xbf16, #tpu.memory_space<vmem>>, vector<8x64xbf16>
    %cst_49 = arith.constant dense<0.000000e+00> : vector<256x64xf32>
    %147 = tpu.matmul %145, %146, %cst_49 {dimension_numbers = #tpu.dot_dimension_numbers<[1], [0], [0], [1], [0, 0, 1, 1], [], []>} : vector<256x8xbf16>, vector<8x64xbf16>, vector<256x64xf32> -> vector<256x64xf32>
    %148 = arith.truncf %144 : vector<256x8xf32> to vector<256x8xbf16>
    %c0_50 = arith.constant 0 : index
    %c0_51 = arith.constant 0 : index
    %149 = vector.load %arg5[%c0_50, %c0_51] : memref<8x64xbf16, #tpu.memory_space<vmem>>, vector<8x64xbf16>
    %cst_52 = arith.constant dense<0.000000e+00> : vector<256x64xf32>
    %150 = tpu.matmul %148, %149, %cst_52 {dimension_numbers = #tpu.dot_dimension_numbers<[1], [0], [0], [1], [0, 0, 1, 1], [], []>} : vector<256x8xbf16>, vector<8x64xbf16>, vector<256x64xf32> -> vector<256x64xf32>
    %151 = arith.mulf %147, %150 : vector<256x64xf32>
    %152 = arith.truncf %151 : vector<256x64xf32> to vector<256x64xbf16>
    %cst_53 = arith.constant dense<0.000000e+00> : vector<256x128xf32>
    %153 = tpu.matmul %152, %3, %cst_53 {dimension_numbers = #tpu.dot_dimension_numbers<[1], [0], [0], [1], [0, 0, 1, 1], [], []>} : vector<256x64xbf16>, vector<64x128xbf16>, vector<256x128xf32> -> vector<256x128xf32>
    %154 = arith.truncf %153 : vector<256x128xf32> to vector<256x128xbf16>
    %c0_54 = arith.constant 0 : index
    %c0_55 = arith.constant 0 : index
    %155 = vector.load %arg10[%c0_54, %c0_55] : memref<128x9xbf16, #tpu.memory_space<vmem>>, vector<128x9xbf16>
    %cst_56 = arith.constant dense<0.000000e+00> : vector<256x9xf32>
    %156 = tpu.matmul %154, %155, %cst_56 {dimension_numbers = #tpu.dot_dimension_numbers<[1], [0], [0], [1], [0, 0, 1, 1], [], []>} : vector<256x128xbf16>, vector<128x9xbf16>, vector<256x9xf32> -> vector<256x9xf32>
    %157 = vector.extract_strided_slice %156 {offsets = [0, 0], sizes = [256, 1], strides = [1, 1]} : vector<256x9xf32> to vector<256x1xf32>
    %cst_57 = arith.constant 0.000000e+00 : f32
    %158 = vector.broadcast %cst_57 : f32 to vector<17x1xf32>
    %159 = vector.extract_strided_slice %157 {offsets = [0, 0], sizes = [239, 1], strides = [1, 1]} : vector<256x1xf32> to vector<239x1xf32>
    %160 = tpu.concatenate %158, %159 in 0 : vector<17x1xf32>, vector<239x1xf32> -> vector<256x1xf32>
    %c0_58 = arith.constant 0 : index
    %c0_59 = arith.constant 0 : index
    %161 = vector.load %arg7[%c0_58, %c0_59] : memref<256x9xf32, #tpu.memory_space<vmem>>, vector<256x1xf32>
    %162 = arith.mulf %160, %161 : vector<256x1xf32>
    %163 = vector.extract_strided_slice %156 {offsets = [0, 1], sizes = [256, 1], strides = [1, 1]} : vector<256x9xf32> to vector<256x1xf32>
    %cst_60 = arith.constant 0.000000e+00 : f32
    %164 = vector.broadcast %cst_60 : f32 to vector<16x1xf32>
    %165 = vector.extract_strided_slice %163 {offsets = [0, 0], sizes = [240, 1], strides = [1, 1]} : vector<256x1xf32> to vector<240x1xf32>
    %166 = tpu.concatenate %164, %165 in 0 : vector<16x1xf32>, vector<240x1xf32> -> vector<256x1xf32>
    %c0_61 = arith.constant 0 : index
    %c1_62 = arith.constant 1 : index
    %167 = vector.load %arg7[%c0_61, %c1_62] : memref<256x9xf32, #tpu.memory_space<vmem>>, vector<256x1xf32>
    %168 = arith.mulf %166, %167 : vector<256x1xf32>
    %169 = arith.addf %162, %168 : vector<256x1xf32>
    %170 = vector.extract_strided_slice %156 {offsets = [0, 2], sizes = [256, 1], strides = [1, 1]} : vector<256x9xf32> to vector<256x1xf32>
    %cst_63 = arith.constant 0.000000e+00 : f32
    %171 = vector.broadcast %cst_63 : f32 to vector<15x1xf32>
    %172 = vector.extract_strided_slice %170 {offsets = [0, 0], sizes = [241, 1], strides = [1, 1]} : vector<256x1xf32> to vector<241x1xf32>
    %173 = tpu.concatenate %171, %172 in 0 : vector<15x1xf32>, vector<241x1xf32> -> vector<256x1xf32>
    %c0_64 = arith.constant 0 : index
    %c2_65 = arith.constant 2 : index
    %174 = vector.load %arg7[%c0_64, %c2_65] : memref<256x9xf32, #tpu.memory_space<vmem>>, vector<256x1xf32>
    %175 = arith.mulf %173, %174 : vector<256x1xf32>
    %176 = arith.addf %169, %175 : vector<256x1xf32>
    %177 = vector.extract_strided_slice %156 {offsets = [0, 3], sizes = [256, 1], strides = [1, 1]} : vector<256x9xf32> to vector<256x1xf32>
    %cst_66 = arith.constant 0.000000e+00 : f32
    %178 = vector.broadcast %cst_66 : f32 to vector<1x1xf32>
    %179 = vector.extract_strided_slice %177 {offsets = [0, 0], sizes = [255, 1], strides = [1, 1]} : vector<256x1xf32> to vector<255x1xf32>
    %180 = tpu.concatenate %178, %179 in 0 : vector<1x1xf32>, vector<255x1xf32> -> vector<256x1xf32>
    %c0_67 = arith.constant 0 : index
    %c3_68 = arith.constant 3 : index
    %181 = vector.load %arg7[%c0_67, %c3_68] : memref<256x9xf32, #tpu.memory_space<vmem>>, vector<256x1xf32>
    %182 = arith.mulf %180, %181 : vector<256x1xf32>
    %183 = arith.addf %176, %182 : vector<256x1xf32>
    %184 = vector.extract_strided_slice %156 {offsets = [0, 4], sizes = [256, 1], strides = [1, 1]} : vector<256x9xf32> to vector<256x1xf32>
    %185 = arith.addf %183, %184 : vector<256x1xf32>
    %186 = vector.extract_strided_slice %156 {offsets = [0, 5], sizes = [256, 1], strides = [1, 1]} : vector<256x9xf32> to vector<256x1xf32>
    %187 = vector.extract_strided_slice %186 {offsets = [1, 0], sizes = [255, 1], strides = [1, 1]} : vector<256x1xf32> to vector<255x1xf32>
    %cst_69 = arith.constant 0.000000e+00 : f32
    %188 = vector.broadcast %cst_69 : f32 to vector<1x1xf32>
    %189 = tpu.concatenate %187, %188 in 0 : vector<255x1xf32>, vector<1x1xf32> -> vector<256x1xf32>
    %c0_70 = arith.constant 0 : index
    %c5_71 = arith.constant 5 : index
    %190 = vector.load %arg7[%c0_70, %c5_71] : memref<256x9xf32, #tpu.memory_space<vmem>>, vector<256x1xf32>
    %191 = arith.mulf %189, %190 : vector<256x1xf32>
    %192 = arith.addf %185, %191 : vector<256x1xf32>
    %193 = vector.extract_strided_slice %156 {offsets = [0, 6], sizes = [256, 1], strides = [1, 1]} : vector<256x9xf32> to vector<256x1xf32>
    %194 = vector.extract_strided_slice %193 {offsets = [15, 0], sizes = [241, 1], strides = [1, 1]} : vector<256x1xf32> to vector<241x1xf32>
    %cst_72 = arith.constant 0.000000e+00 : f32
    %195 = vector.broadcast %cst_72 : f32 to vector<15x1xf32>
    %196 = tpu.concatenate %194, %195 in 0 : vector<241x1xf32>, vector<15x1xf32> -> vector<256x1xf32>
    %c0_73 = arith.constant 0 : index
    %c6_74 = arith.constant 6 : index
    %197 = vector.load %arg7[%c0_73, %c6_74] : memref<256x9xf32, #tpu.memory_space<vmem>>, vector<256x1xf32>
    %198 = arith.mulf %196, %197 : vector<256x1xf32>
    %199 = arith.addf %192, %198 : vector<256x1xf32>
    %200 = vector.extract_strided_slice %156 {offsets = [0, 7], sizes = [256, 1], strides = [1, 1]} : vector<256x9xf32> to vector<256x1xf32>
    %201 = vector.extract_strided_slice %200 {offsets = [16, 0], sizes = [240, 1], strides = [1, 1]} : vector<256x1xf32> to vector<240x1xf32>
    %cst_75 = arith.constant 0.000000e+00 : f32
    %202 = vector.broadcast %cst_75 : f32 to vector<16x1xf32>
    %203 = tpu.concatenate %201, %202 in 0 : vector<240x1xf32>, vector<16x1xf32> -> vector<256x1xf32>
    %c0_76 = arith.constant 0 : index
    %c7_77 = arith.constant 7 : index
    %204 = vector.load %arg7[%c0_76, %c7_77] : memref<256x9xf32, #tpu.memory_space<vmem>>, vector<256x1xf32>
    %205 = arith.mulf %203, %204 : vector<256x1xf32>
    %206 = arith.addf %199, %205 : vector<256x1xf32>
    %207 = vector.extract_strided_slice %156 {offsets = [0, 8], sizes = [256, 1], strides = [1, 1]} : vector<256x9xf32> to vector<256x1xf32>
    %208 = vector.extract_strided_slice %207 {offsets = [17, 0], sizes = [239, 1], strides = [1, 1]} : vector<256x1xf32> to vector<239x1xf32>
    %cst_78 = arith.constant 0.000000e+00 : f32
    %209 = vector.broadcast %cst_78 : f32 to vector<17x1xf32>
    %210 = tpu.concatenate %208, %209 in 0 : vector<239x1xf32>, vector<17x1xf32> -> vector<256x1xf32>
    %c0_79 = arith.constant 0 : index
    %c8_80 = arith.constant 8 : index
    %211 = vector.load %arg7[%c0_79, %c8_80] : memref<256x9xf32, #tpu.memory_space<vmem>>, vector<256x1xf32>
    %212 = arith.mulf %210, %211 : vector<256x1xf32>
    %213 = arith.addf %206, %212 : vector<256x1xf32>
    %214 = vector.extract_strided_slice %76 {offsets = [0, 2], sizes = [256, 1], strides = [1, 1]} : vector<256x3xf32> to vector<256x1xf32>
    %215 = arith.addf %213, %214 : vector<256x1xf32>
    %216 = arith.negf %215 : vector<256x1xf32>
    %217 = math.exp %216 : vector<256x1xf32>
    %cst_81 = arith.constant 1.000000e+00 : f32
    %218 = vector.broadcast %cst_81 : f32 to vector<256x1xf32>
    %219 = arith.addf %218, %217 : vector<256x1xf32>
    %220 = arith.divf %218, %219 : vector<256x1xf32>
    %221 = vector.broadcast %220 : vector<256x1xf32> to vector<256x128xf32>
    %222 = arith.mulf %221, %153 : vector<256x128xf32>
    %c0_82 = arith.constant 0 : index
    %c0_83 = arith.constant 0 : index
    %c0_84 = arith.constant 0 : index
    %223 = vector.load %arg11[%c0_82, %c0_83, %c0_84] : memref<1x256x128xf32, #tpu.memory_space<vmem>>, vector<1x256x128xf32>
    %224 = vector.shape_cast %223 : vector<1x256x128xf32> to vector<256x128xf32>
    %225 = vector.shape_cast %222 : vector<256x128xf32> to vector<1x256x128xf32>
    tpu.vector_store %arg11[%c0_82, %c0_83, %c0_84], %225 {strides = array<i32>} : memref<1x256x128xf32, #tpu.memory_space<vmem>>, vector<1x256x128xf32>,
    return
  }
  func.func @transform_0(%arg0: i32) -> (i32, i32, i32) {
    %c0_i32 = arith.constant 0 : i32
    %c0_i32_0 = arith.constant 0 : i32
    %c0_i32_1 = arith.constant 0 : i32
    return %arg0, %c0_i32, %c0_i32_0 : i32, i32, i32
  }
  func.func @transform_1(%arg0: i32) -> (i32, i32, i32) {
    %c0_i32 = arith.constant 0 : i32
    %c0_i32_0 = arith.constant 0 : i32
    %c0_i32_1 = arith.constant 0 : i32
    return %arg0, %c0_i32, %c0_i32_0 : i32, i32, i32
  }
  func.func @transform_2(%arg0: i32) -> (i32, i32) {
    %c0_i32 = arith.constant 0 : i32
    %c0_i32_0 = arith.constant 0 : i32
    %c0_i32_1 = arith.constant 0 : i32
    return %c0_i32, %c0_i32_0 : i32, i32
  }
  func.func @transform_3(%arg0: i32) -> (i32, i32) {
    %c0_i32 = arith.constant 0 : i32
    %c0_i32_0 = arith.constant 0 : i32
    %c0_i32_1 = arith.constant 0 : i32
    return %c0_i32, %c0_i32_0 : i32, i32
  }
  func.func @transform_4(%arg0: i32) -> (i32, i32) {
    %c0_i32 = arith.constant 0 : i32
    %c0_i32_0 = arith.constant 0 : i32
    %c0_i32_1 = arith.constant 0 : i32
    return %c0_i32, %c0_i32_0 : i32, i32
  }
  func.func @transform_5(%arg0: i32) -> (i32, i32) {
    %c0_i32 = arith.constant 0 : i32
    %c0_i32_0 = arith.constant 0 : i32
    %c0_i32_1 = arith.constant 0 : i32
    return %c0_i32, %c0_i32_0 : i32, i32
  }
  func.func @transform_6(%arg0: i32) -> (i32, i32) {
    %c0_i32 = arith.constant 0 : i32
    %c0_i32_0 = arith.constant 0 : i32
    %c0_i32_1 = arith.constant 0 : i32
    return %c0_i32, %c0_i32_0 : i32, i32
  }
  func.func @transform_7(%arg0: i32) -> (i32, i32) {
    %c0_i32 = arith.constant 0 : i32
    %c0_i32_0 = arith.constant 0 : i32
    %c0_i32_1 = arith.constant 0 : i32
    return %c0_i32, %c0_i32_0 : i32, i32
  }
  func.func @transform_8(%arg0: i32) -> (i32, i32) {
    %c0_i32 = arith.constant 0 : i32
    %c0_i32_0 = arith.constant 0 : i32
    %c0_i32_1 = arith.constant 0 : i32
    return %c0_i32, %c0_i32_0 : i32, i32
  }
  func.func @transform_9(%arg0: i32) -> (i32, i32) {
    %c0_i32 = arith.constant 0 : i32
    %c0_i32_0 = arith.constant 0 : i32
    %c0_i32_1 = arith.constant 0 : i32
    return %c0_i32, %c0_i32_0 : i32, i32
  }
  func.func @transform_10(%arg0: i32) -> (i32, i32, i32) {
    %c0_i32 = arith.constant 0 : i32
    %c0_i32_0 = arith.constant 0 : i32
    %c0_i32_1 = arith.constant 0 : i32
    return %arg0, %c0_i32, %c0_i32_0 : i32, i32, i32
  }
}

</mosaic_0001>

<llo_original>
// kernel: tpu_custom_call.1
$region0: #{tpu_custom_call.1}
  #allocation0 [shape = 'u32[]', space=smem, size = 0x4, offset = 0x4, fixed_abs, tag = 'smem constant byte address 0x4 - core index']
  #allocation1 [shape = 'u32[72,128]{1,0:T(1,128)}', space=vmem, size = 0x9000, scoped, tag = 'internal scratch']
  %s0 = inlined_call_operand.vmem [shape: f32[256,3], index: 0, kind: input, shape index: {}]
  %s1 = inlined_call_operand.vmem [shape: f32[256,3], index: 1, kind: output, shape index: {}]
  %s2 = sld [smem:[#allocation0]]
  $region14: #{tpu_custom_call.1} parent=0
    _
  %s4 = ssub.s32 1, %s2
  %s5 = scalar_select 0, %s4, %s2
  // Predicated region
  $region2: #{tpu_custom_call.1} parent=0 // pred_check
    _
  $region3: #{tpu_custom_call.1} parent=0 // pred_check_branch
    %7 = sbr.rel (0) target = $region5
  $region4: #{tpu_custom_call.1} parent=0 // pred_region
    _
  $region5: #{tpu_custom_call.1} parent=0 // pred_fallthru
    _
  %v8 = vld [vmem:[%s0] sm:$0xff]
  %v9 = vld [vmem:[%s0 + $0x8] sm:$0xff]
  %v10 = vld [vmem:[%s0 + $0x10] sm:$0xff]
  %v11 = vld [vmem:[%s0 + $0x18] sm:$0xff]
  %v12 = vld [vmem:[%s0 + $0x20] sm:$0xff]
  %v13 = vld [vmem:[%s0 + $0x28] sm:$0xff]
  %v14 = vld [vmem:[%s0 + $0x30] sm:$0xff]
  %v15 = vld [vmem:[%s0 + $0x38] sm:$0xff]
  %v16 = vld [vmem:[%s0 + $0x40] sm:$0xff]
  %v17 = vld [vmem:[%s0 + $0x48] sm:$0xff]
  %v18 = vld [vmem:[%s0 + $0x50] sm:$0xff]
  %v19 = vld [vmem:[%s0 + $0x58] sm:$0xff]
  %v20 = vld [vmem:[%s0 + $0x60] sm:$0xff]
  %v21 = vld [vmem:[%s0 + $0x68] sm:$0xff]
  %v22 = vld [vmem:[%s0 + $0x70] sm:$0xff]
  %v23 = vld [vmem:[%s0 + $0x78] sm:$0xff]
  %v24 = vld [vmem:[%s0 + $0x80] sm:$0xff]
  %v25 = vld [vmem:[%s0 + $0x88] sm:$0xff]
  %v26 = vld [vmem:[%s0 + $0x90] sm:$0xff]
  %v27 = vld [vmem:[%s0 + $0x98] sm:$0xff]
  %v28 = vld [vmem:[%s0 + $0xa0] sm:$0xff]
  %v29 = vld [vmem:[%s0 + $0xa8] sm:$0xff]
  %v30 = vld [vmem:[%s0 + $0xb0] sm:$0xff]
  %v31 = vld [vmem:[%s0 + $0xb8] sm:$0xff]
  %v32 = vld [vmem:[%s0 + $0xc0] sm:$0xff]
  %v33 = vld [vmem:[%s0 + $0xc8] sm:$0xff]
  %v34 = vld [vmem:[%s0 + $0xd0] sm:$0xff]
  %v35 = vld [vmem:[%s0 + $0xd8] sm:$0xff]
  %v36 = vld [vmem:[%s0 + $0xe0] sm:$0xff]
  %v37 = vld [vmem:[%s0 + $0xe8] sm:$0xff]
  %v38 = vld [vmem:[%s0 + $0xf0] sm:$0xff]
  %v39 = vld [vmem:[%s0 + $0xf8] sm:$0xff]
  %v40 = vrot.slane %v8, 7
  %v41 = vrot.slane %v9, 7
  %v42 = vrot.slane %v10, 7
  %v43 = vrot.slane %v11, 7
  %v44 = vrot.slane %v12, 7
  %v45 = vrot.slane %v13, 7
  %v46 = vrot.slane %v14, 7
  %v47 = vrot.slane %v15, 7
  %v48 = vrot.slane %v16, 7
  %v49 = vrot.slane %v17, 7
  %v50 = vrot.slane %v18, 7
  %v51 = vrot.slane %v19, 7
  %v52 = vrot.slane %v20, 7
  %v53 = vrot.slane %v21, 7
  %v54 = vrot.slane %v22, 7
  %v55 = vrot.slane %v23, 7
  %v56 = vrot.slane %v24, 7
  %v57 = vrot.slane %v25, 7
  %v58 = vrot.slane %v26, 7
  %v59 = vrot.slane %v27, 7
  %v60 = vrot.slane %v28, 7
  %v61 = vrot.slane %v29, 7
  %v62 = vrot.slane %v30, 7
  %v63 = vrot.slane %v31, 7
  %v64 = vrot.slane %v32, 7
  %v65 = vrot.slane %v33, 7
  %v66 = vrot.slane %v34, 7
  %v67 = vrot.slane %v35, 7
  %v68 = vrot.slane %v36, 7
  %v69 = vrot.slane %v37, 7
  %v70 = vrot.slane %v38, 7
  %v71 = vrot.slane %v39, 7
  %v72 = vlaneseq
  %v73 = vshrl.u32 %v72, 7
  %vm74 = vcmp.lt.s32.totalorder %v73, 1
  %v75 = vsel %vm74, %v70, %v71
  %v76 = vsel %vm74, %v69, %v70
  %v77 = vsel %vm74, %v68, %v69
  %v78 = vsel %vm74, %v67, %v68
  %v79 = vsel %vm74, %v66, %v67
  %v80 = vsel %vm74, %v65, %v66
  %v81 = vsel %vm74, %v64, %v65
  %v82 = vsel %vm74, %v63, %v64
  %v83 = vsel %vm74, %v62, %v63
  %v84 = vsel %vm74, %v61, %v62
  %v85 = vsel %vm74, %v60, %v61
  %v86 = vsel %vm74, %v59, %v60
  %v87 = vsel %vm74, %v58, %v59
  %v88 = vsel %vm74, %v57, %v58
  %v89 = vsel %vm74, %v56, %v57
  %v90 = vsel %vm74, %v55, %v56
  %v91 = vsel %vm74, %v54, %v55
  %v92 = vsel %vm74, %v53, %v54
  %v93 = vsel %vm74, %v52, %v53
  %v94 = vsel %vm74, %v51, %v52
  %v95 = vsel %vm74, %v50, %v51
  %v96 = vsel %vm74, %v49, %v50
  %v97 = vsel %vm74, %v48, %v49
  %v98 = vsel %vm74, %v47, %v48
  %v99 = vsel %vm74, %v46, %v47
  %v100 = vsel %vm74, %v45, %v46
  %v101 = vsel %vm74, %v44, %v45
  %v102 = vsel %vm74, %v43, %v44
  %v103 = vsel %vm74, %v42, %v43
  %v104 = vsel %vm74, %v41, %v42
  %v105 = vsel %vm74, %v40, %v41
  %v106 = vsel %vm74, %v71, %v40
  %vm107 = vcmask 23552
  %108 = vst.msk [vmem:[%s1] sm:$0xff] %vm107, %v76
  %109 = vst.msk [vmem:[%s1 + $0x8] sm:$0xff] %vm107, %v75
  %110 = vst.msk [vmem:[%s1 + $0x10] sm:$0xff] %vm107, %v106
  %111 = vst.msk [vmem:[%s1 + $0x18] sm:$0xff] %vm107, %v105
  %112 = vst.msk [vmem:[%s1 + $0x20] sm:$0xff] %vm107, %v104
  %113 = vst.msk [vmem:[%s1 + $0x28] sm:$0xff] %vm107, %v103
  %114 = vst.msk [vmem:[%s1 + $0x30] sm:$0xff] %vm107, %v102
  %115 = vst.msk [vmem:[%s1 + $0x38] sm:$0xff] %vm107, %v101
  %116 = vst.msk [vmem:[%s1 + $0x40] sm:$0xff] %vm107, %v100
  %117 = vst.msk [vmem:[%s1 + $0x48] sm:$0xff] %vm107, %v99
  %118 = vst.msk [vmem:[%s1 + $0x50] sm:$0xff] %vm107, %v98
  %119 = vst.msk [vmem:[%s1 + $0x58] sm:$0xff] %vm107, %v97
  %120 = vst.msk [vmem:[%s1 + $0x60] sm:$0xff] %vm107, %v96
  %121 = vst.msk [vmem:[%s1 + $0x68] sm:$0xff] %vm107, %v95
  %122 = vst.msk [vmem:[%s1 + $0x70] sm:$0xff] %vm107, %v94
  %123 = vst.msk [vmem:[%s1 + $0x78] sm:$0xff] %vm107, %v93
  %124 = vst.msk [vmem:[%s1 + $0x80] sm:$0xff] %vm107, %v92
  %125 = vst.msk [vmem:[%s1 + $0x88] sm:$0xff] %vm107, %v91
  %126 = vst.msk [vmem:[%s1 + $0x90] sm:$0xff] %vm107, %v90
  %127 = vst.msk [vmem:[%s1 + $0x98] sm:$0xff] %vm107, %v89
  %128 = vst.msk [vmem:[%s1 + $0xa0] sm:$0xff] %vm107, %v88
  %129 = vst.msk [vmem:[%s1 + $0xa8] sm:$0xff] %vm107, %v87
  %130 = vst.msk [vmem:[%s1 + $0xb0] sm:$0xff] %vm107, %v86
  %131 = vst.msk [vmem:[%s1 + $0xb8] sm:$0xff] %vm107, %v85
  %132 = vst.msk [vmem:[%s1 + $0xc0] sm:$0xff] %vm107, %v84
  %133 = vst.msk [vmem:[%s1 + $0xc8] sm:$0xff] %vm107, %v83
  %134 = vst.msk [vmem:[%s1 + $0xd0] sm:$0xff] %vm107, %v82
  %135 = vst.msk [vmem:[%s1 + $0xd8] sm:$0xff] %vm107, %v81
  %136 = vst.msk [vmem:[%s1 + $0xe0] sm:$0xff] %vm107, %v80
  %137 = vst.msk [vmem:[%s1 + $0xe8] sm:$0xff] %vm107, %v79
  %138 = vst.msk [vmem:[%s1 + $0xf0] sm:$0xff] %vm107, %v78
  %139 = vst.msk [vmem:[%s1 + $0xf8] sm:$0xff] %vm107, %v77
  // Predicated region
  $region6: #{tpu_custom_call.1} parent=0 // pred_check
    _
  $region7: #{tpu_custom_call.1} parent=0 // pred_check_branch
    %141 = sbr.rel (0) target = $region9
  $region8: #{tpu_custom_call.1} parent=0 // pred_region
    _
  $region9: #{tpu_custom_call.1} parent=0 // pred_fallthru
    _
  // Predicated region
  $region10: #{tpu_custom_call.1} parent=0 // pred_check
    _
  $region11: #{tpu_custom_call.1} parent=0 // pred_check_branch
    %143 = sbr.rel (0) target = $region13
  $region12: #{tpu_custom_call.1} parent=0 // pred_region
    _
  $region13: #{tpu_custom_call.1} parent=0 // pred_fallthru
    _

// kernel: tpu_custom_call.1
$region0: #{tpu_custom_call.1}
  #allocation0 [shape = 'u32[]', space=smem, size = 0x4, offset = 0x4, fixed_abs, tag = 'smem constant byte address 0x4 - core index']
  #allocation1 [shape = 'u32[72,128]{1,0:T(1,128)}', space=vmem, size = 0x9000, scoped, tag = 'internal scratch']
  %s0 = inlined_call_operand.vmem [shape: bf16[2,256,128], index: 0, kind: input, shape index: {}]
  %s1 = inlined_call_operand.vmem [shape: bf16[2,64,128], index: 1, kind: input, shape index: {}]
  %s2 = inlined_call_operand.vmem [shape: bf16[256,64], index: 2, kind: input, shape index: {}]
  %s3 = inlined_call_operand.vmem [shape: bf16[8,64], index: 3, kind: input, shape index: {}]
  %s4 = inlined_call_operand.vmem [shape: bf16[8,64], index: 4, kind: input, shape index: {}]
  %s5 = inlined_call_operand.vmem [shape: f32[256,2], index: 5, kind: input, shape index: {}]
  %s6 = inlined_call_operand.vmem [shape: f32[256,9], index: 6, kind: input, shape index: {}]
  %s7 = inlined_call_operand.vmem [shape: bf16[128,27], index: 7, kind: input, shape index: {}]
  %s8 = inlined_call_operand.vmem [shape: bf16[128,27], index: 8, kind: input, shape index: {}]
  %s9 = inlined_call_operand.vmem [shape: bf16[128,9], index: 9, kind: input, shape index: {}]
  %s10 = inlined_call_operand.hbm [shape: f32[2,256,128], index: 10, kind: output, shape index: {}]
  %s11 = sld [smem:[#allocation0]]
  $region73: #{tpu_custom_call.1} parent=0
    _
  %s13 = ssub.s32 1, %s11
  %s14 = scalar_select 0, %s13, %s11
  $region1: #{tpu_custom_call.1} parent=0
    #allocation2 [shape = 'u8[262144]{0}', space=vmem, size = 0x40000, scoped, tag = 'output window, operand 0']
    #allocation3 [shape = 's32[2]{0}', space=sflag, size = 0x8, scoped, tag = 'scoped memory for tpu_custom_call.1']
    %15 = vsyncpa [#allocation3], 0
    %s16 = scalar_lea.sflag [#allocation3], 1
    %17 = vsyncpa %s16, 0
    loop: start=0, step=1, limit=4
    $region2: #{tpu_custom_call.1} parent=1 // loop_pre_header
      _
    $region3: #{tpu_custom_call.1} parent=1 // loop_header
      %s19 = sphi 0, %s23
      %p20 = scmp.ge.s32.totalorder %s19, 4
      %s29 = sphi 0, %s31
      %s32 = sphi 0, %s29
      %s33 = sphi 0, %s32
      %s49 = sphi 0, %s33
      %s55 = sphi 0, %s57
      %s58 = sphi 0, %s55
      %s59 = sphi 0, %s58
      %s75 = sphi 0, %s59
      %s79 = sphi 0, %s79
      %s81 = sphi 0, %s79
      %s82 = sphi 0, %s81
      %s96 = sphi 0, %s82
      %s100 = sphi 0, %s100
      %s102 = sphi 0, %s100
      %s103 = sphi 0, %s102
      %s117 = sphi 0, %s103
      %s121 = sphi 0, %s121
      %s123 = sphi 0, %s121
      %s124 = sphi 0, %s123
      %s138 = sphi 0, %s124
      %s142 = sphi 0, %s142
      %s144 = sphi 0, %s142
      %s145 = sphi 0, %s144
      %s159 = sphi 0, %s145
      %s163 = sphi 0, %s163
      %s165 = sphi 0, %s163
      %s166 = sphi 0, %s165
      %s180 = sphi 0, %s166
      %s184 = sphi 0, %s184
      %s186 = sphi 0, %s184
      %s187 = sphi 0, %s186
      %s201 = sphi 0, %s187
      %s205 = sphi 0, %s205
      %s207 = sphi 0, %s205
      %s208 = sphi 0, %s207
      %s222 = sphi 0, %s208
      %s226 = sphi 0, %s226
      %s228 = sphi 0, %s226
      %s229 = sphi 0, %s228
      %s243 = sphi 0, %s229
      %s249 = sphi 0, %s251
      %s252 = sphi 0, %s249
      %s253 = sphi 0, %s252
      %s269 = sphi 0, %s253
    $region4: #{tpu_custom_call.1} parent=1 // loop_header_branch
      %22 = sbr.rel (%p20) target = $region8
    $region5: #{tpu_custom_call.1} parent=1 // loop_body
      %s24 = ssub.s32 %s19, 1
      %s25 = ssub.s32 %s19, 2
      %s26 = sadd.s32 %s19, 1
      %s27 = ssub.s32 %s19, %s26
      %p28 = scmp.eq.s32.totalorder %s27, 0
      %s30 = sadd.s32 %s29, 1
      %s31 = scalar_select %p28, %s29, %s30
      %p34 = pneg %p28
      %p35 = scmp.eq.s32.totalorder %s19, 1
      %p36 = por %p34, %p35
      %p37 = scmp.ne.s32.totalorder %s29, %s32
      %p38 = scmp.eq.s32.totalorder %s19, 0
      %p39 = por %p37, %p38
      %p40 = scmp.ne.s32.totalorder %s29, %s32
      %p41 = scmp.eq.s32.totalorder %s24, 1
      %p42 = por %p40, %p41
      %p43 = scmp.ne.s32.totalorder %s32, %s33
      %p44 = scmp.eq.s32.totalorder %s24, 0
      %p45 = por %p43, %p44
      %p46 = scmp.ne.s32.totalorder %s32, %s33
      %p47 = scmp.eq.s32.totalorder %s25, 1
      %p48 = por %p46, %p47
      %p50 = scmp.ne.s32.totalorder %s33, %s49
      %p51 = scmp.eq.s32.totalorder %s25, 0
      %p52 = por %p50, %p51
      %s53 = ssub.s32 %s19, %s26
      %p54 = scmp.eq.s32.totalorder %s53, 0
      %s56 = sadd.s32 %s55, 1
      %s57 = scalar_select %p54, %s55, %s56
      %p60 = pneg %p54
      %p61 = scmp.eq.s32.totalorder %s19, 1
      %p62 = por %p60, %p61
      %p63 = scmp.ne.s32.totalorder %s55, %s58
      %p64 = scmp.eq.s32.totalorder %s19, 0
      %p65 = por %p63, %p64
      %p66 = scmp.ne.s32.totalorder %s55, %s58
      %p67 = scmp.eq.s32.totalorder %s24, 1
      %p68 = por %p66, %p67
      %p69 = scmp.ne.s32.totalorder %s58, %s59
      %p70 = scmp.eq.s32.totalorder %s24, 0
      %p71 = por %p69, %p70
      %p72 = scmp.ne.s32.totalorder %s58, %s59
      %p73 = scmp.eq.s32.totalorder %s25, 1
      %p74 = por %p72, %p73
      %p76 = scmp.ne.s32.totalorder %s59, %s75
      %p77 = scmp.eq.s32.totalorder %s25, 0
      %p78 = por %p76, %p77
      %s80 = sadd.s32 %s79, 1
      %p83 = scmp.eq.s32.totalorder %s19, 1
      %p84 = scmp.ne.s32.totalorder %s79, %s81
      %p85 = scmp.eq.s32.totalorder %s19, 0
      %p86 = por %p84, %p85
      %p87 = scmp.ne.s32.totalorder %s79, %s81
      %p88 = scmp.eq.s32.totalorder %s24, 1
      %p89 = por %p87, %p88
      %p90 = scmp.ne.s32.totalorder %s81, %s82
      %p91 = scmp.eq.s32.totalorder %s24, 0
      %p92 = por %p90, %p91
      %p93 = scmp.ne.s32.totalorder %s81, %s82
      %p94 = scmp.eq.s32.totalorder %s25, 1
      %p95 = por %p93, %p94
      %p97 = scmp.ne.s32.totalorder %s82, %s96
      %p98 = scmp.eq.s32.totalorder %s25, 0
      %p99 = por %p97, %p98
      %s101 = sadd.s32 %s100, 1
      %p104 = scmp.eq.s32.totalorder %s19, 1
      %p105 = scmp.ne.s32.totalorder %s100, %s102
      %p106 = scmp.eq.s32.totalorder %s19, 0
      %p107 = por %p105, %p106
      %p108 = scmp.ne.s32.totalorder %s100, %s102
      %p109 = scmp.eq.s32.totalorder %s24, 1
      %p110 = por %p108, %p109
      %p111 = scmp.ne.s32.totalorder %s102, %s103
      %p112 = scmp.eq.s32.totalorder %s24, 0
      %p113 = por %p111, %p112
      %p114 = scmp.ne.s32.totalorder %s102, %s103
      %p115 = scmp.eq.s32.totalorder %s25, 1
      %p116 = por %p114, %p115
      %p118 = scmp.ne.s32.totalorder %s103, %s117
      %p119 = scmp.eq.s32.totalorder %s25, 0
      %p120 = por %p118, %p119
      %s122 = sadd.s32 %s121, 1
      %p125 = scmp.eq.s32.totalorder %s19, 1
      %p126 = scmp.ne.s32.totalorder %s121, %s123
      %p127 = scmp.eq.s32.totalorder %s19, 0
      %p128 = por %p126, %p127
      %p129 = scmp.ne.s32.totalorder %s121, %s123
      %p130 = scmp.eq.s32.totalorder %s24, 1
      %p131 = por %p129, %p130
      %p132 = scmp.ne.s32.totalorder %s123, %s124
      %p133 = scmp.eq.s32.totalorder %s24, 0
      %p134 = por %p132, %p133
      %p135 = scmp.ne.s32.totalorder %s123, %s124
      %p136 = scmp.eq.s32.totalorder %s25, 1
      %p137 = por %p135, %p136
      %p139 = scmp.ne.s32.totalorder %s124, %s138
      %p140 = scmp.eq.s32.totalorder %s25, 0
      %p141 = por %p139, %p140
      %s143 = sadd.s32 %s142, 1
      %p146 = scmp.eq.s32.totalorder %s19, 1
      %p147 = scmp.ne.s32.totalorder %s142, %s144
      %p148 = scmp.eq.s32.totalorder %s19, 0
      %p149 = por %p147, %p148
      %p150 = scmp.ne.s32.totalorder %s142, %s144
      %p151 = scmp.eq.s32.totalorder %s24, 1
      %p152 = por %p150, %p151
      %p153 = scmp.ne.s32.totalorder %s144, %s145
      %p154 = scmp.eq.s32.totalorder %s24, 0
      %p155 = por %p153, %p154
      %p156 = scmp.ne.s32.totalorder %s144, %s145
      %p157 = scmp.eq.s32.totalorder %s25, 1
      %p158 = por %p156, %p157
      %p160 = scmp.ne.s32.totalorder %s145, %s159
      %p161 = scmp.eq.s32.totalorder %s25, 0
      %p162 = por %p160, %p161
      %s164 = sadd.s32 %s163, 1
      %p167 = scmp.eq.s32.totalorder %s19, 1
      %p168 = scmp.ne.s32.totalorder %s163, %s165
      %p169 = scmp.eq.s32.totalorder %s19, 0
      %p170 = por %p168, %p169
      %p171 = scmp.ne.s32.totalorder %s163, %s165
      %p172 = scmp.eq.s32.totalorder %s24, 1
      %p173 = por %p171, %p172
      %p174 = scmp.ne.s32.totalorder %s165, %s166
      %p175 = scmp.eq.s32.totalorder %s24, 0
      %p176 = por %p174, %p175
      %p177 = scmp.ne.s32.totalorder %s165, %s166
      %p178 = scmp.eq.s32.totalorder %s25, 1
      %p179 = por %p177, %p178
      %p181 = scmp.ne.s32.totalorder %s166, %s180
      %p182 = scmp.eq.s32.totalorder %s25, 0
      %p183 = por %p181, %p182
      %s185 = sadd.s32 %s184, 1
      %p188 = scmp.eq.s32.totalorder %s19, 1
      %p189 = scmp.ne.s32.totalorder %s184, %s186
      %p190 = scmp.eq.s32.totalorder %s19, 0
      %p191 = por %p189, %p190
      %p192 = scmp.ne.s32.totalorder %s184, %s186
      %p193 = scmp.eq.s32.totalorder %s24, 1
      %p194 = por %p192, %p193
      %p195 = scmp.ne.s32.totalorder %s186, %s187
      %p196 = scmp.eq.s32.totalorder %s24, 0
      %p197 = por %p195, %p196
      %p198 = scmp.ne.s32.totalorder %s186, %s187
      %p199 = scmp.eq.s32.totalorder %s25, 1
      %p200 = por %p198, %p199
      %p202 = scmp.ne.s32.totalorder %s187, %s201
      %p203 = scmp.eq.s32.totalorder %s25, 0
      %p204 = por %p202, %p203
      %s206 = sadd.s32 %s205, 1
      %p209 = scmp.eq.s32.totalorder %s19, 1
      %p210 = scmp.ne.s32.totalorder %s205, %s207
      %p211 = scmp.eq.s32.totalorder %s19, 0
      %p212 = por %p210, %p211
      %p213 = scmp.ne.s32.totalorder %s205, %s207
      %p214 = scmp.eq.s32.totalorder %s24, 1
      %p215 = por %p213, %p214
      %p216 = scmp.ne.s32.totalorder %s207, %s208
      %p217 = scmp.eq.s32.totalorder %s24, 0
      %p218 = por %p216, %p217
      %p219 = scmp.ne.s32.totalorder %s207, %s208
      %p220 = scmp.eq.s32.totalorder %s25, 1
      %p221 = por %p219, %p220
      %p223 = scmp.ne.s32.totalorder %s208, %s222
      %p224 = scmp.eq.s32.totalorder %s25, 0
      %p225 = por %p223, %p224
      %s227 = sadd.s32 %s226, 1
      %p230 = scmp.eq.s32.totalorder %s19, 1
      %p231 = scmp.ne.s32.totalorder %s226, %s228
      %p232 = scmp.eq.s32.totalorder %s19, 0
      %p233 = por %p231, %p232
      %p234 = scmp.ne.s32.totalorder %s226, %s228
      %p235 = scmp.eq.s32.totalorder %s24, 1
      %p236 = por %p234, %p235
      %p237 = scmp.ne.s32.totalorder %s228, %s229
      %p238 = scmp.eq.s32.totalorder %s24, 0
      %p239 = por %p237, %p238
      %p240 = scmp.ne.s32.totalorder %s228, %s229
      %p241 = scmp.eq.s32.totalorder %s25, 1
      %p242 = por %p240, %p241
      %p244 = scmp.ne.s32.totalorder %s229, %s243
      %p245 = scmp.eq.s32.totalorder %s25, 0
      %p246 = por %p244, %p245
      %s247 = ssub.s32 %s19, %s26
      %p248 = scmp.eq.s32.totalorder %s247, 0
      %s250 = sadd.s32 %s249, 1
      %s251 = scalar_select %p248, %s249, %s250
      %p254 = pneg %p248
      %p255 = scmp.eq.s32.totalorder %s19, 1
      %p256 = por %p254, %p255
      %p257 = scmp.ne.s32.totalorder %s249, %s252
      %p258 = scmp.eq.s32.totalorder %s19, 0
      %p259 = por %p257, %p258
      %p260 = scmp.ne.s32.totalorder %s249, %s252
      %p261 = scmp.eq.s32.totalorder %s24, 1
      %p262 = por %p260, %p261
      %p263 = scmp.ne.s32.totalorder %s252, %s253
      %p264 = scmp.eq.s32.totalorder %s24, 0
      %p265 = por %p263, %p264
      %p266 = scmp.ne.s32.totalorder %s252, %s253
      %p267 = scmp.eq.s32.totalorder %s25, 1
      %p268 = por %p266, %p267
      %p270 = scmp.ne.s32.totalorder %s253, %s269
      %p271 = scmp.eq.s32.totalorder %s25, 0
      %p272 = por %p270, %p271
      %p273 = scmp.le.s32.totalorder 1, %s19
      %p274 = scmp.lt.s32.totalorder %s19, 3
      %p275 = pnand %p273, %p274
      %p276 = pneg %p275
      // Predicated region
      $region9: #{tpu_custom_call.1} parent=5 // pred_check
        _
      $region10: #{tpu_custom_call.1} parent=5 // pred_check_branch
        %278 = sbr.rel (%p275) target = $region12
      $region11: #{tpu_custom_call.1} parent=5 // pred_region
        %s279 = ssub.s32 %s19, 1
        // Predicated region
        $region13: #{tpu_custom_call.1} parent=11 // pred_check
          %p280 = pneg %p92
        $region14: #{tpu_custom_call.1} parent=11 // pred_check_branch
          %282 = sbr.rel (%p280) target = $region16
        $region15: #{tpu_custom_call.1} parent=11 // pred_region
          _
        $region16: #{tpu_custom_call.1} parent=11 // pred_fallthru
          _
        // Predicated region
        $region17: #{tpu_custom_call.1} parent=11 // pred_check
          %p283 = pneg %p113
        $region18: #{tpu_custom_call.1} parent=11 // pred_check_branch
          %285 = sbr.rel (%p283) target = $region20
        $region19: #{tpu_custom_call.1} parent=11 // pred_region
          _
        $region20: #{tpu_custom_call.1} parent=11 // pred_fallthru
          _
        // Predicated region
        $region21: #{tpu_custom_call.1} parent=11 // pred_check
          %p286 = pneg %p134
        $region22: #{tpu_custom_call.1} parent=11 // pred_check_branch
          %288 = sbr.rel (%p286) target = $region24
        $region23: #{tpu_custom_call.1} parent=11 // pred_region
          _
        $region24: #{tpu_custom_call.1} parent=11 // pred_fallthru
          _
        // Predicated region
        $region25: #{tpu_custom_call.1} parent=11 // pred_check
          %p289 = pneg %p155
        $region26: #{tpu_custom_call.1} parent=11 // pred_check_branch
          %291 = sbr.rel (%p289) target = $region28
        $region27: #{tpu_custom_call.1} parent=11 // pred_region
          _
        $region28: #{tpu_custom_call.1} parent=11 // pred_fallthru
          _
        // Predicated region
        $region29: #{tpu_custom_call.1} parent=11 // pred_check
          %p292 = pneg %p176
        $region30: #{tpu_custom_call.1} parent=11 // pred_check_branch
          %294 = sbr.rel (%p292) target = $region32
        $region31: #{tpu_custom_call.1} parent=11 // pred_region
          _
        $region32: #{tpu_custom_call.1} parent=11 // pred_fallthru
          _
        // Predicated region
        $region33: #{tpu_custom_call.1} parent=11 // pred_check
          %p295 = pneg %p197
        $region34: #{tpu_custom_call.1} parent=11 // pred_check_branch
          %297 = sbr.rel (%p295) target = $region36
        $region35: #{tpu_custom_call.1} parent=11 // pred_region
          _
        $region36: #{tpu_custom_call.1} parent=11 // pred_fallthru
          _
        // Predicated region
        $region37: #{tpu_custom_call.1} parent=11 // pred_check
          %p298 = pneg %p218
        $region38: #{tpu_custom_call.1} parent=11 // pred_check_branch
          %300 = sbr.rel (%p298) target = $region40
        $region39: #{tpu_custom_call.1} parent=11 // pred_region
          _
        $region40: #{tpu_custom_call.1} parent=11 // pred_fallthru
          _
        // Predicated region
        $region41: #{tpu_custom_call.1} parent=11 // pred_check
          %p301 = pneg %p239
        $region42: #{tpu_custom_call.1} parent=11 // pred_check_branch
          %303 = sbr.rel (%p301) target = $region44
        $region43: #{tpu_custom_call.1} parent=11 // pred_region
          _
        $region44: #{tpu_custom_call.1} parent=11 // pred_fallthru
          _
      $region12: #{tpu_custom_call.1} parent=5 // pred_fallthru
        _
      %p304 = scmp.lt.s32.totalorder %s19, 2
      // Predicated region
      $region45: #{tpu_custom_call.1} parent=5 // pred_check
        %p305 = pneg %p304
      $region46: #{tpu_custom_call.1} parent=5 // pred_check_branch
        %307 = sbr.rel (%p305) target = $region48
      $region47: #{tpu_custom_call.1} parent=5 // pred_region
        // Predicated region
        $region49: #{tpu_custom_call.1} parent=47 // pred_check
          %p308 = pneg %p39
        $region50: #{tpu_custom_call.1} parent=47 // pred_check_branch
          %310 = sbr.rel (%p308) target = $region52
        $region51: #{tpu_custom_call.1} parent=47 // pred_region
          %p311 = scmp.lt.s32.totalorder %s19, 1
          %s312 = scalar_select %p311, %s19, 1
          %s313 = smul.addr %s312, 32
          %s314 = smul.addr %s313, 4
          %s315 = scalar_lea.vmem %s0, %s314
        $region52: #{tpu_custom_call.1} parent=47 // pred_fallthru
          _
        // Predicated region
        $region53: #{tpu_custom_call.1} parent=47 // pred_check
          %p316 = pneg %p65
        $region54: #{tpu_custom_call.1} parent=47 // pred_check_branch
          %318 = sbr.rel (%p316) target = $region56
        $region55: #{tpu_custom_call.1} parent=47 // pred_region
          %p319 = scmp.lt.s32.totalorder %s19, 1
          %s320 = scalar_select %p319, %s19, 1
          %s321 = smul.addr %s320, 8
          %s322 = smul.addr %s321, 4
          %s323 = scalar_lea.vmem %s1, %s322
        $region56: #{tpu_custom_call.1} parent=47 // pred_fallthru
          _
      $region48: #{tpu_custom_call.1} parent=5 // pred_fallthru
        _
      %p324 = scmp.le.s32.totalorder 1, %s19
      %p325 = scmp.lt.s32.totalorder %s19, 3
      %p326 = pnand %p324, %p325
      %p327 = pneg %p326
      // Predicated region
      $region57: #{tpu_custom_call.1} parent=5 // pred_check
        _
      $region58: #{tpu_custom_call.1} parent=5 // pred_check_branch
        %329 = sbr.rel (%p326) target = $region60
      $region59: #{tpu_custom_call.1} parent=5 // pred_region
        %s330 = ssub.s32 %s19, 1
        %p331 = scmp.lt.s32.totalorder %s24, 1
        %s332 = scalar_select %p331, %s24, 1
        %s333 = smul.addr %s332, 32
        %s334 = smul.addr %s333, 4
        %s335 = scalar_lea.vmem %s0, %s334
        %p336 = pneg %p45
        %p337 = pneg %p42
        %p338 = scmp.lt.s32.totalorder %s24, 1
        %s339 = scalar_select %p338, %s24, 1
        %s340 = smul.addr %s339, 8
        %s341 = smul.addr %s340, 4
        %s342 = scalar_lea.vmem %s1, %s341
        %p343 = pneg %p71
        %p344 = pneg %p68
        %p345 = pneg %p92
        %p346 = pneg %p89
        %p347 = pneg %p113
        %p348 = pneg %p110
        %p349 = pneg %p134
        %p350 = pneg %p131
        %p351 = pneg %p155
        %p352 = pneg %p152
        %p353 = pneg %p176
        %p354 = pneg %p173
        %p355 = pneg %p197
        %p356 = pneg %p194
        %p357 = pneg %p218
        %p358 = pneg %p215
        %p359 = pneg %p239
        %p360 = pneg %p236
        %p361 = pneg %p265
        %p362 = pneg %p262
        %s363 = sand.u32 %s252, 1
        %s364 = scalar_lea.sflag [#allocation3], %s363
        %s365 = sand.u32 %s252, 1
        %s366 = smul.addr %s365, 256
        %s367 = scalar_lea.vmem [#allocation2], %s366
        %p368 = scmp.lt.s32.totalorder %s24, 1
        %s369 = scalar_select %p368, %s24, 1
        %s370 = smul.addr %s369, 32
        %s371 = smul.addr %s370, 4
        %s372 = scalar_lea.vmem %s0, %s371
        %p373 = scmp.lt.s32.totalorder %s24, 1
        %s374 = scalar_select %p373, %s24, 1
        %s375 = smul.addr %s374, 8
        %s376 = smul.addr %s375, 4
        %s377 = scalar_lea.vmem %s1, %s376
        %v379 = vld [vmem:[%s372] sm:$0xf]
        %v380 = vld [vmem:[%s372 + $0x4] sm:$0xf]
        %v381 = vld [vmem:[%s372 + $0x8] sm:$0xf]
        %v382 = vld [vmem:[%s372 + $0xc] sm:$0xf]
        %v383 = vld [vmem:[%s372 + $0x10] sm:$0xf]
        %v384 = vld [vmem:[%s372 + $0x14] sm:$0xf]
        %v385 = vld [vmem:[%s372 + $0x18] sm:$0xf]
        %v386 = vld [vmem:[%s372 + $0x1c] sm:$0xf]
        %v387 = vld [vmem:[%s372 + $0x20] sm:$0xf]
        %v388 = vld [vmem:[%s372 + $0x24] sm:$0xf]
        %v389 = vld [vmem:[%s372 + $0x28] sm:$0xf]
        %v390 = vld [vmem:[%s372 + $0x2c] sm:$0xf]
        %v391 = vld [vmem:[%s372 + $0x30] sm:$0xf]
        %v392 = vld [vmem:[%s372 + $0x34] sm:$0xf]
        %v393 = vld [vmem:[%s372 + $0x38] sm:$0xf]
        %v394 = vld [vmem:[%s372 + $0x3c] sm:$0xf]
        %v395 = vld [vmem:[%s372 + $0x40] sm:$0xf]
        %v396 = vld [vmem:[%s372 + $0x44] sm:$0xf]
        %v397 = vld [vmem:[%s372 + $0x48] sm:$0xf]
        %v398 = vld [vmem:[%s372 + $0x4c] sm:$0xf]
        %v399 = vld [vmem:[%s372 + $0x50] sm:$0xf]
        %v400 = vld [vmem:[%s372 + $0x54] sm:$0xf]
        %v401 = vld [vmem:[%s372 + $0x58] sm:$0xf]
        %v402 = vld [vmem:[%s372 + $0x5c] sm:$0xf]
        %v403 = vld [vmem:[%s372 + $0x60] sm:$0xf]
        %v404 = vld [vmem:[%s372 + $0x64] sm:$0xf]
        %v405 = vld [vmem:[%s372 + $0x68] sm:$0xf]
        %v406 = vld [vmem:[%s372 + $0x6c] sm:$0xf]
        %v407 = vld [vmem:[%s372 + $0x70] sm:$0xf]
        %v408 = vld [vmem:[%s372 + $0x74] sm:$0xf]
        %v409 = vld [vmem:[%s372 + $0x78] sm:$0xf]
        %v410 = vld [vmem:[%s372 + $0x7c] sm:$0xf]
        %v411 = vld [vmem:[%s377] sm:$0xf]
        %v412 = vld [vmem:[%s377 + $0x4] sm:$0xf]
        %v413 = vld [vmem:[%s377 + $0x8] sm:$0xf]
        %v414 = vld [vmem:[%s377 + $0xc] sm:$0xf]
        %v415 = vld [vmem:[%s377 + $0x10] sm:$0xf]
        %v416 = vld [vmem:[%s377 + $0x14] sm:$0xf]
        %v417 = vld [vmem:[%s377 + $0x18] sm:$0xf]
        %v418 = vld [vmem:[%s377 + $0x1c] sm:$0xf]
        %v419 = vld [vmem:[%s2] sm:$0xf]
        %v420 = vld [vmem:[%s2 + $0x4] sm:$0xf]
        %v421 = vld [vmem:[%s2 + $0x8] sm:$0xf]
        %v422 = vld [vmem:[%s2 + $0xc] sm:$0xf]
        %v423 = vld [vmem:[%s2 + $0x10] sm:$0xf]
        %v424 = vld [vmem:[%s2 + $0x14] sm:$0xf]
        %v425 = vld [vmem:[%s2 + $0x18] sm:$0xf]
        %v426 = vld [vmem:[%s2 + $0x1c] sm:$0xf]
        %v427 = vld [vmem:[%s2 + $0x20] sm:$0xf]
        %v428 = vld [vmem:[%s2 + $0x24] sm:$0xf]
        %v429 = vld [vmem:[%s2 + $0x28] sm:$0xf]
        %v430 = vld [vmem:[%s2 + $0x2c] sm:$0xf]
        %v431 = vld [vmem:[%s2 + $0x30] sm:$0xf]
        %v432 = vld [vmem:[%s2 + $0x34] sm:$0xf]
        %v433 = vld [vmem:[%s2 + $0x38] sm:$0xf]
        %v434 = vld [vmem:[%s2 + $0x3c] sm:$0xf]
        %v435 = vld [vmem:[%s2 + $0x40] sm:$0xf]
        %v436 = vld [vmem:[%s2 + $0x44] sm:$0xf]
        %v437 = vld [vmem:[%s2 + $0x48] sm:$0xf]
        %v438 = vld [vmem:[%s2 + $0x4c] sm:$0xf]
        %v439 = vld [vmem:[%s2 + $0x50] sm:$0xf]
        %v440 = vld [vmem:[%s2 + $0x54] sm:$0xf]
        %v441 = vld [vmem:[%s2 + $0x58] sm:$0xf]
        %v442 = vld [vmem:[%s2 + $0x5c] sm:$0xf]
        %v443 = vld [vmem:[%s2 + $0x60] sm:$0xf]
        %v444 = vld [vmem:[%s2 + $0x64] sm:$0xf]
        %v445 = vld [vmem:[%s2 + $0x68] sm:$0xf]
        %v446 = vld [vmem:[%s2 + $0x6c] sm:$0xf]
        %v447 = vld [vmem:[%s2 + $0x70] sm:$0xf]
        %v448 = vld [vmem:[%s2 + $0x74] sm:$0xf]
        %v449 = vld [vmem:[%s2 + $0x78] sm:$0xf]
        %v450 = vld [vmem:[%s2 + $0x7c] sm:$0xf]
        %v483 = vunpack.c.l.b16 %v419
        %v484 = vunpack.c.l.b16 %v420
        %v485 = vunpack.c.l.b16 %v421
        %v486 = vunpack.c.l.b16 %v422
        %v487 = vunpack.c.l.b16 %v423
        %v488 = vunpack.c.l.b16 %v424
        %v489 = vunpack.c.l.b16 %v425
        %v490 = vunpack.c.l.b16 %v426
        %v491 = vunpack.c.l.b16 %v427
        %v492 = vunpack.c.l.b16 %v428
        %v493 = vunpack.c.l.b16 %v429
        %v494 = vunpack.c.l.b16 %v430
        %v495 = vunpack.c.l.b16 %v431
        %v496 = vunpack.c.l.b16 %v432
        %v497 = vunpack.c.l.b16 %v433
        %v498 = vunpack.c.l.b16 %v434
        %v499 = vunpack.c.l.b16 %v435
        %v500 = vunpack.c.l.b16 %v436
        %v501 = vunpack.c.l.b16 %v437
        %v502 = vunpack.c.l.b16 %v438
        %v503 = vunpack.c.l.b16 %v439
        %v504 = vunpack.c.l.b16 %v440
        %v505 = vunpack.c.l.b16 %v441
        %v506 = vunpack.c.l.b16 %v442
        %v507 = vunpack.c.l.b16 %v443
        %v508 = vunpack.c.l.b16 %v444
        %v509 = vunpack.c.l.b16 %v445
        %v510 = vunpack.c.l.b16 %v446
        %v511 = vunpack.c.l.b16 %v447
        %v512 = vunpack.c.l.b16 %v448
        %v513 = vunpack.c.l.b16 %v449
        %v514 = vunpack.c.l.b16 %v450
        %v515 = vpack.c.b16 %v484, %v483
        %v516 = vpack.c.b16 %v486, %v485
        %v517 = vpack.c.b16 %v488, %v487
        %v518 = vpack.c.b16 %v490, %v489
        %v519 = vpack.c.b16 %v492, %v491
        %v520 = vpack.c.b16 %v494, %v493
        %v521 = vpack.c.b16 %v496, %v495
        %v522 = vpack.c.b16 %v498, %v497
        %v523 = vpack.c.b16 %v500, %v499
        %v524 = vpack.c.b16 %v502, %v501
        %v525 = vpack.c.b16 %v504, %v503
        %v526 = vpack.c.b16 %v506, %v505
        %v527 = vpack.c.b16 %v508, %v507
        %v528 = vpack.c.b16 %v510, %v509
        %v529 = vpack.c.b16 %v512, %v511
        %v530 = vpack.c.b16 %v514, %v513
        %v539 = vunpack.c.l.b16 %v411
        %v540 = vunpack.c.l.b16 %v412
        %v541 = vunpack.c.l.b16 %v413
        %v542 = vunpack.c.l.b16 %v414
        %v543 = vunpack.c.l.b16 %v415
        %v544 = vunpack.c.l.b16 %v416
        %v545 = vunpack.c.l.b16 %v417
        %v546 = vunpack.c.l.b16 %v418
        %v547 = vpack.c.b16 %v540, %v539
        %v548 = vpack.c.b16 %v542, %v541
        %v549 = vpack.c.b16 %v544, %v543
        %v550 = vpack.c.b16 %v546, %v545
        %vm555 = vcmask 523264
        %v557 = vsel %vm555, %v515, 0
        %v560 = vsel %vm555, %v516, 0
        %v563 = vsel %vm555, %v517, 0
        %v566 = vsel %vm555, %v518, 0
        %v569 = vsel %vm555, %v519, 0
        %v572 = vsel %vm555, %v520, 0
        %v575 = vsel %vm555, %v521, 0
        %v578 = vsel %vm555, %v522, 0
        %v581 = vsel %vm555, %v523, 0
        %v584 = vsel %vm555, %v524, 0
        %v587 = vsel %vm555, %v525, 0
        %v590 = vsel %vm555, %v526, 0
        %v593 = vsel %vm555, %v527, 0
        %v596 = vsel %vm555, %v528, 0
        %v599 = vsel %vm555, %v529, 0
        %v602 = vsel %vm555, %v530, 0
        %604 = vmatpush.bf16.msra.mxu0 0
        %605 = vmatpush.bf16.msra.mxu0 0
        %606 = vmatpush.bf16.msra.mxu0 0
        %607 = vmatpush.bf16.msra.mxu0 0
        %608 = vmatpush.bf16.msra.mxu0 %v550
        %609 = vmatpush.bf16.msra.mxu0 %v549
        %610 = vmatpush.bf16.msra.mxu0 %v548
        %611 = vmatpush.bf16.msra.mxu0 %v547
        %612 = vmatmul.bf16.gmra.mxu0 %v557
        %v613 = vpop.f32.mrf.mxu0
        %v614 = vadd.f32 0.0, %v613
        %v615 = vpop.f32.mrf.mxu0
        %v616 = vadd.f32 0.0, %v615
        %617 = vmatmul.bf16.gmra.mxu0 %v560
        %v618 = vpop.f32.mrf.mxu0
        %v619 = vadd.f32 0.0, %v618
        %v620 = vpop.f32.mrf.mxu0
        %v621 = vadd.f32 0.0, %v620
        %622 = vmatmul.bf16.gmra.mxu0 %v563
        %v623 = vpop.f32.mrf.mxu0
        %v624 = vadd.f32 0.0, %v623
        %v625 = vpop.f32.mrf.mxu0
        %v626 = vadd.f32 0.0, %v625
        %627 = vmatmul.bf16.gmra.mxu0 %v566
        %v628 = vpop.f32.mrf.mxu0
        %v629 = vadd.f32 0.0, %v628
        %v630 = vpop.f32.mrf.mxu0
        %v631 = vadd.f32 0.0, %v630
        %632 = vmatmul.bf16.gmra.mxu0 %v569
        %v633 = vpop.f32.mrf.mxu0
        %v634 = vadd.f32 0.0, %v633
        %v635 = vpop.f32.mrf.mxu0
        %v636 = vadd.f32 0.0, %v635
        %637 = vmatmul.bf16.gmra.mxu0 %v572
        %v638 = vpop.f32.mrf.mxu0
        %v639 = vadd.f32 0.0, %v638
        %v640 = vpop.f32.mrf.mxu0
        %v641 = vadd.f32 0.0, %v640
        %642 = vmatmul.bf16.gmra.mxu0 %v575
        %v643 = vpop.f32.mrf.mxu0
        %v644 = vadd.f32 0.0, %v643
        %v645 = vpop.f32.mrf.mxu0
        %v646 = vadd.f32 0.0, %v645
        %647 = vmatmul.bf16.gmra.mxu0 %v578
        %v648 = vpop.f32.mrf.mxu0
        %v649 = vadd.f32 0.0, %v648
        %v650 = vpop.f32.mrf.mxu0
        %v651 = vadd.f32 0.0, %v650
        %652 = vmatmul.bf16.gmra.mxu0 %v581
        %v653 = vpop.f32.mrf.mxu0
        %v654 = vadd.f32 0.0, %v653
        %v655 = vpop.f32.mrf.mxu0
        %v656 = vadd.f32 0.0, %v655
        %657 = vmatmul.bf16.gmra.mxu0 %v584
        %v658 = vpop.f32.mrf.mxu0
        %v659 = vadd.f32 0.0, %v658
        %v660 = vpop.f32.mrf.mxu0
        %v661 = vadd.f32 0.0, %v660
        %662 = vmatmul.bf16.gmra.mxu0 %v587
        %v663 = vpop.f32.mrf.mxu0
        %v664 = vadd.f32 0.0, %v663
        %v665 = vpop.f32.mrf.mxu0
        %v666 = vadd.f32 0.0, %v665
        %667 = vmatmul.bf16.gmra.mxu0 %v590
        %v668 = vpop.f32.mrf.mxu0
        %v669 = vadd.f32 0.0, %v668
        %v670 = vpop.f32.mrf.mxu0
        %v671 = vadd.f32 0.0, %v670
        %672 = vmatmul.bf16.gmra.mxu0 %v593
        %v673 = vpop.f32.mrf.mxu0
        %v674 = vadd.f32 0.0, %v673
        %v675 = vpop.f32.mrf.mxu0
        %v676 = vadd.f32 0.0, %v675
        %677 = vmatmul.bf16.gmra.mxu0 %v596
        %v678 = vpop.f32.mrf.mxu0
        %v679 = vadd.f32 0.0, %v678
        %v680 = vpop.f32.mrf.mxu0
        %v681 = vadd.f32 0.0, %v680
        %682 = vmatmul.bf16.gmra.mxu0 %v599
        %v683 = vpop.f32.mrf.mxu0
        %v684 = vadd.f32 0.0, %v683
        %v685 = vpop.f32.mrf.mxu0
        %v686 = vadd.f32 0.0, %v685
        %687 = vmatmul.bf16.gmra.mxu0 %v602
        %v688 = vpop.f32.mrf.mxu0
        %v689 = vadd.f32 0.0, %v688
        %v690 = vpop.f32.mrf.mxu0
        %v691 = vadd.f32 0.0, %v690
        %692 = vdwg.mxu0
        %v693 = vld [vmem:[%s7] sm:$0xf]
        %v694 = vld [vmem:[%s7 + $0x4] sm:$0xf]
        %v695 = vld [vmem:[%s7 + $0x8] sm:$0xf]
        %v696 = vld [vmem:[%s7 + $0xc] sm:$0xf]
        %v697 = vld [vmem:[%s7 + $0x10] sm:$0xf]
        %v698 = vld [vmem:[%s7 + $0x14] sm:$0xf]
        %v699 = vld [vmem:[%s7 + $0x18] sm:$0xf]
        %v700 = vld [vmem:[%s7 + $0x1c] sm:$0xf]
        %v701 = vld [vmem:[%s7 + $0x20] sm:$0xf]
        %v702 = vld [vmem:[%s7 + $0x24] sm:$0xf]
        %v703 = vld [vmem:[%s7 + $0x28] sm:$0xf]
        %v704 = vld [vmem:[%s7 + $0x2c] sm:$0xf]
        %v705 = vld [vmem:[%s7 + $0x30] sm:$0xf]
        %v706 = vld [vmem:[%s7 + $0x34] sm:$0xf]
        %v707 = vld [vmem:[%s7 + $0x38] sm:$0xf]
        %v708 = vld [vmem:[%s7 + $0x3c] sm:$0xf]
        %v709 = vpack.c.bf16 %v616, %v614
        %v710 = vpack.c.bf16 %v621, %v619
        %v711 = vpack.c.bf16 %v626, %v624
        %v712 = vpack.c.bf16 %v631, %v629
        %v713 = vpack.c.bf16 %v636, %v634
        %v714 = vpack.c.bf16 %v641, %v639
        %v715 = vpack.c.bf16 %v646, %v644
        %v716 = vpack.c.bf16 %v651, %v649
        %v717 = vpack.c.bf16 %v656, %v654
        %v718 = vpack.c.bf16 %v661, %v659
        %v719 = vpack.c.bf16 %v666, %v664
        %v720 = vpack.c.bf16 %v671, %v669
        %v721 = vpack.c.bf16 %v676, %v674
        %v722 = vpack.c.bf16 %v681, %v679
        %v723 = vpack.c.bf16 %v686, %v684
        %v724 = vpack.c.bf16 %v691, %v689
        %v725 = vld [vmem:[%s8] sm:$0xf]
        %v726 = vld [vmem:[%s8 + $0x4] sm:$0xf]
        %v727 = vld [vmem:[%s8 + $0x8] sm:$0xf]
        %v728 = vld [vmem:[%s8 + $0xc] sm:$0xf]
        %v729 = vld [vmem:[%s8 + $0x10] sm:$0xf]
        %v730 = vld [vmem:[%s8 + $0x14] sm:$0xf]
        %v731 = vld [vmem:[%s8 + $0x18] sm:$0xf]
        %v732 = vld [vmem:[%s8 + $0x1c] sm:$0xf]
        %v733 = vld [vmem:[%s8 + $0x20] sm:$0xf]
        %v734 = vld [vmem:[%s8 + $0x24] sm:$0xf]
        %v735 = vld [vmem:[%s8 + $0x28] sm:$0xf]
        %v736 = vld [vmem:[%s8 + $0x2c] sm:$0xf]
        %v737 = vld [vmem:[%s8 + $0x30] sm:$0xf]
        %v738 = vld [vmem:[%s8 + $0x34] sm:$0xf]
        %v739 = vld [vmem:[%s8 + $0x38] sm:$0xf]
        %v740 = vld [vmem:[%s8 + $0x3c] sm:$0xf]
        %v757 = vunpack.c.l.b16 %v725
        %v758 = vunpack.c.l.b16 %v726
        %v759 = vunpack.c.l.b16 %v727
        %v760 = vunpack.c.l.b16 %v728
        %v761 = vunpack.c.l.b16 %v729
        %v762 = vunpack.c.l.b16 %v730
        %v763 = vunpack.c.l.b16 %v731
        %v764 = vunpack.c.l.b16 %v732
        %v765 = vunpack.c.l.b16 %v733
        %v766 = vunpack.c.l.b16 %v734
        %v767 = vunpack.c.l.b16 %v735
        %v768 = vunpack.c.l.b16 %v736
        %v769 = vunpack.c.l.b16 %v737
        %v770 = vunpack.c.l.b16 %v738
        %v771 = vunpack.c.l.b16 %v739
        %v772 = vunpack.c.l.b16 %v740
        %v773 = vpack.c.b16 %v758, %v757
        %v774 = vpack.c.b16 %v760, %v759
        %v775 = vpack.c.b16 %v762, %v761
        %v776 = vpack.c.b16 %v764, %v763
        %v777 = vpack.c.b16 %v766, %v765
        %v778 = vpack.c.b16 %v768, %v767
        %v779 = vpack.c.b16 %v770, %v769
        %v780 = vpack.c.b16 %v772, %v771
        %789 = vmatpush.bf16.msra.mxu0 %v780
        %790 = vmatpush.bf16.msra.mxu0 %v779
        %791 = vmatpush.bf16.msra.mxu0 %v778
        %792 = vmatpush.bf16.msra.mxu0 %v777
        %793 = vmatpush.bf16.msra.mxu0 %v776
        %794 = vmatpush.bf16.msra.mxu0 %v775
        %795 = vmatpush.bf16.msra.mxu0 %v774
        %796 = vmatpush.bf16.msra.mxu0 %v773
        %797 = vmatmul.bf16.gmra.mxu0 %v709
        %v798 = vpop.f32.mrf.mxu0
        %v799 = vadd.f32 0.0, %v798
        %v800 = vpop.f32.mrf.mxu0
        %v801 = vadd.f32 0.0, %v800
        %802 = vmatmul.bf16.gmra.mxu0 %v710
        %v803 = vpop.f32.mrf.mxu0
        %v804 = vadd.f32 0.0, %v803
        %v805 = vpop.f32.mrf.mxu0
        %v806 = vadd.f32 0.0, %v805
        %807 = vmatmul.bf16.gmra.mxu0 %v711
        %v808 = vpop.f32.mrf.mxu0
        %v809 = vadd.f32 0.0, %v808
        %v810 = vpop.f32.mrf.mxu0
        %v811 = vadd.f32 0.0, %v810
        %812 = vmatmul.bf16.gmra.mxu0 %v712
        %v813 = vpop.f32.mrf.mxu0
        %v814 = vadd.f32 0.0, %v813
        %v815 = vpop.f32.mrf.mxu0
        %v816 = vadd.f32 0.0, %v815
        %817 = vmatmul.bf16.gmra.mxu0 %v713
        %v818 = vpop.f32.mrf.mxu0
        %v819 = vadd.f32 0.0, %v818
        %v820 = vpop.f32.mrf.mxu0
        %v821 = vadd.f32 0.0, %v820
        %822 = vmatmul.bf16.gmra.mxu0 %v714
        %v823 = vpop.f32.mrf.mxu0
        %v824 = vadd.f32 0.0, %v823
        %v825 = vpop.f32.mrf.mxu0
        %v826 = vadd.f32 0.0, %v825
        %827 = vmatmul.bf16.gmra.mxu0 %v715
        %v828 = vpop.f32.mrf.mxu0
        %v829 = vadd.f32 0.0, %v828
        %v830 = vpop.f32.mrf.mxu0
        %v831 = vadd.f32 0.0, %v830
        %832 = vmatmul.bf16.gmra.mxu0 %v716
        %v833 = vpop.f32.mrf.mxu0
        %v834 = vadd.f32 0.0, %v833
        %v835 = vpop.f32.mrf.mxu0
        %v836 = vadd.f32 0.0, %v835
        %837 = vmatmul.bf16.gmra.mxu0 %v717
        %v838 = vpop.f32.mrf.mxu0
        %v839 = vadd.f32 0.0, %v838
        %v840 = vpop.f32.mrf.mxu0
        %v841 = vadd.f32 0.0, %v840
        %842 = vmatmul.bf16.gmra.mxu0 %v718
        %v843 = vpop.f32.mrf.mxu0
        %v844 = vadd.f32 0.0, %v843
        %v845 = vpop.f32.mrf.mxu0
        %v846 = vadd.f32 0.0, %v845
        %847 = vmatmul.bf16.gmra.mxu0 %v719
        %v848 = vpop.f32.mrf.mxu0
        %v849 = vadd.f32 0.0, %v848
        %v850 = vpop.f32.mrf.mxu0
        %v851 = vadd.f32 0.0, %v850
        %852 = vmatmul.bf16.gmra.mxu0 %v720
        %v853 = vpop.f32.mrf.mxu0
        %v854 = vadd.f32 0.0, %v853
        %v855 = vpop.f32.mrf.mxu0
        %v856 = vadd.f32 0.0, %v855
        %857 = vmatmul.bf16.gmra.mxu0 %v721
        %v858 = vpop.f32.mrf.mxu0
        %v859 = vadd.f32 0.0, %v858
        %v860 = vpop.f32.mrf.mxu0
        %v861 = vadd.f32 0.0, %v860
        %862 = vmatmul.bf16.gmra.mxu0 %v722
        %v863 = vpop.f32.mrf.mxu0
        %v864 = vadd.f32 0.0, %v863
        %v865 = vpop.f32.mrf.mxu0
        %v866 = vadd.f32 0.0, %v865
        %867 = vmatmul.bf16.gmra.mxu0 %v723
        %v868 = vpop.f32.mrf.mxu0
        %v869 = vadd.f32 0.0, %v868
        %v870 = vpop.f32.mrf.mxu0
        %v871 = vadd.f32 0.0, %v870
        %872 = vmatmul.bf16.gmra.mxu0 %v724
        %v873 = vpop.f32.mrf.mxu0
        %v874 = vadd.f32 0.0, %v873
        %v875 = vpop.f32.mrf.mxu0
        %v876 = vadd.f32 0.0, %v875
        %877 = vdwg.mxu0
        %v910 = vunpack.c.l.b16 %v379
        %v911 = vunpack.c.l.b16 %v380
        %v912 = vunpack.c.l.b16 %v381
        %v913 = vunpack.c.l.b16 %v382
        %v914 = vunpack.c.l.b16 %v383
        %v915 = vunpack.c.l.b16 %v384
        %v916 = vunpack.c.l.b16 %v385
        %v917 = vunpack.c.l.b16 %v386
        %v918 = vunpack.c.l.b16 %v387
        %v919 = vunpack.c.l.b16 %v388
        %v920 = vunpack.c.l.b16 %v389
        %v921 = vunpack.c.l.b16 %v390
        %v922 = vunpack.c.l.b16 %v391
        %v923 = vunpack.c.l.b16 %v392
        %v924 = vunpack.c.l.b16 %v393
        %v925 = vunpack.c.l.b16 %v394
        %v926 = vunpack.c.l.b16 %v395
        %v927 = vunpack.c.l.b16 %v396
        %v928 = vunpack.c.l.b16 %v397
        %v929 = vunpack.c.l.b16 %v398
        %v930 = vunpack.c.l.b16 %v399
        %v931 = vunpack.c.l.b16 %v400
        %v932 = vunpack.c.l.b16 %v401
        %v933 = vunpack.c.l.b16 %v402
        %v934 = vunpack.c.l.b16 %v403
        %v935 = vunpack.c.l.b16 %v404
        %v936 = vunpack.c.l.b16 %v405
        %v937 = vunpack.c.l.b16 %v406
        %v938 = vunpack.c.l.b16 %v407
        %v939 = vunpack.c.l.b16 %v408
        %v940 = vunpack.c.l.b16 %v409
        %v941 = vunpack.c.l.b16 %v410
        %v942 = vpack.c.b16 %v911, %v910
        %v943 = vpack.c.b16 %v913, %v912
        %v944 = vpack.c.b16 %v915, %v914
        %v945 = vpack.c.b16 %v917, %v916
        %v946 = vpack.c.b16 %v919, %v918
        %v947 = vpack.c.b16 %v921, %v920
        %v948 = vpack.c.b16 %v923, %v922
        %v949 = vpack.c.b16 %v925, %v924
        %v950 = vpack.c.b16 %v927, %v926
        %v951 = vpack.c.b16 %v929, %v928
        %v952 = vpack.c.b16 %v931, %v930
        %v953 = vpack.c.b16 %v933, %v932
        %v954 = vpack.c.b16 %v935, %v934
        %v955 = vpack.c.b16 %v937, %v936
        %v956 = vpack.c.b16 %v939, %v938
        %v957 = vpack.c.b16 %v941, %v940
        %v990 = vunpack.c.l.b16 %v693
        %v991 = vunpack.c.l.b16 %v694
        %v992 = vunpack.c.l.b16 %v695
        %v993 = vunpack.c.l.b16 %v696
        %v994 = vunpack.c.l.b16 %v697
        %v995 = vunpack.c.l.b16 %v698
        %v996 = vunpack.c.l.b16 %v699
        %v997 = vunpack.c.l.b16 %v700
        %v998 = vunpack.c.l.b16 %v701
        %v999 = vunpack.c.l.b16 %v702
        %v1000 = vunpack.c.l.b16 %v703
        %v1001 = vunpack.c.l.b16 %v704
        %v1002 = vunpack.c.l.b16 %v705
        %v1003 = vunpack.c.l.b16 %v706
        %v1004 = vunpack.c.l.b16 %v707
        %v1005 = vunpack.c.l.b16 %v708
        %v1006 = vpack.c.b16 %v991, %v990
        %v1007 = vpack.c.b16 %v993, %v992
        %v1008 = vpack.c.b16 %v995, %v994
        %v1009 = vpack.c.b16 %v997, %v996
        %v1010 = vpack.c.b16 %v999, %v998
        %v1011 = vpack.c.b16 %v1001, %v1000
        %v1012 = vpack.c.b16 %v1003, %v1002
        %v1013 = vpack.c.b16 %v1005, %v1004
        %1022 = vmatpush.bf16.msra.mxu0 %v1013
        %1023 = vmatpush.bf16.msra.mxu0 %v1012
        %1024 = vmatpush.bf16.msra.mxu0 %v1011
        %1025 = vmatpush.bf16.msra.mxu0 %v1010
        %1026 = vmatpush.bf16.msra.mxu0 %v1009
        %1027 = vmatpush.bf16.msra.mxu0 %v1008
        %1028 = vmatpush.bf16.msra.mxu0 %v1007
        %1029 = vmatpush.bf16.msra.mxu0 %v1006
        %1030 = vmatmul.bf16.gmra.mxu0 %v942
        %v1031 = vpop.f32.mrf.mxu0
        %v1032 = vadd.f32 %v799, %v1031
        %v1033 = vpop.f32.mrf.mxu0
        %v1034 = vadd.f32 %v801, %v1033
        %1035 = vmatmul.bf16.gmra.mxu0 %v943
        %v1036 = vpop.f32.mrf.mxu0
        %v1037 = vadd.f32 %v804, %v1036
        %v1038 = vpop.f32.mrf.mxu0
        %v1039 = vadd.f32 %v806, %v1038
        %1040 = vmatmul.bf16.gmra.mxu0 %v944
        %v1041 = vpop.f32.mrf.mxu0
        %v1042 = vadd.f32 %v809, %v1041
        %v1043 = vpop.f32.mrf.mxu0
        %v1044 = vadd.f32 %v811, %v1043
        %1045 = vmatmul.bf16.gmra.mxu0 %v945
        %v1046 = vpop.f32.mrf.mxu0
        %v1047 = vadd.f32 %v814, %v1046
        %v1048 = vpop.f32.mrf.mxu0
        %v1049 = vadd.f32 %v816, %v1048
        %1050 = vmatmul.bf16.gmra.mxu0 %v946
        %v1051 = vpop.f32.mrf.mxu0
        %v1052 = vadd.f32 %v819, %v1051
        %v1053 = vpop.f32.mrf.mxu0
        %v1054 = vadd.f32 %v821, %v1053
        %1055 = vmatmul.bf16.gmra.mxu0 %v947
        %v1056 = vpop.f32.mrf.mxu0
        %v1057 = vadd.f32 %v824, %v1056
        %v1058 = vpop.f32.mrf.mxu0
        %v1059 = vadd.f32 %v826, %v1058
        %1060 = vmatmul.bf16.gmra.mxu0 %v948
        %v1061 = vpop.f32.mrf.mxu0
        %v1062 = vadd.f32 %v829, %v1061
        %v1063 = vpop.f32.mrf.mxu0
        %v1064 = vadd.f32 %v831, %v1063
        %1065 = vmatmul.bf16.gmra.mxu0 %v949
        %v1066 = vpop.f32.mrf.mxu0
        %v1067 = vadd.f32 %v834, %v1066
        %v1068 = vpop.f32.mrf.mxu0
        %v1069 = vadd.f32 %v836, %v1068
        %1070 = vmatmul.bf16.gmra.mxu0 %v950
        %v1071 = vpop.f32.mrf.mxu0
        %v1072 = vadd.f32 %v839, %v1071
        %v1073 = vpop.f32.mrf.mxu0
        %v1074 = vadd.f32 %v841, %v1073
        %1075 = vmatmul.bf16.gmra.mxu0 %v951
        %v1076 = vpop.f32.mrf.mxu0
        %v1077 = vadd.f32 %v844, %v1076
        %v1078 = vpop.f32.mrf.mxu0
        %v1079 = vadd.f32 %v846, %v1078
        %1080 = vmatmul.bf16.gmra.mxu0 %v952
        %v1081 = vpop.f32.mrf.mxu0
        %v1082 = vadd.f32 %v849, %v1081
        %v1083 = vpop.f32.mrf.mxu0
        %v1084 = vadd.f32 %v851, %v1083
        %1085 = vmatmul.bf16.gmra.mxu0 %v953
        %v1086 = vpop.f32.mrf.mxu0
        %v1087 = vadd.f32 %v854, %v1086
        %v1088 = vpop.f32.mrf.mxu0
        %v1089 = vadd.f32 %v856, %v1088
        %1090 = vmatmul.bf16.gmra.mxu0 %v954
        %v1091 = vpop.f32.mrf.mxu0
        %v1092 = vadd.f32 %v859, %v1091
        %v1093 = vpop.f32.mrf.mxu0
        %v1094 = vadd.f32 %v861, %v1093
        %1095 = vmatmul.bf16.gmra.mxu0 %v955
        %v1096 = vpop.f32.mrf.mxu0
        %v1097 = vadd.f32 %v864, %v1096
        %v1098 = vpop.f32.mrf.mxu0
        %v1099 = vadd.f32 %v866, %v1098
        %1100 = vmatmul.bf16.gmra.mxu0 %v956
        %v1101 = vpop.f32.mrf.mxu0
        %v1102 = vadd.f32 %v869, %v1101
        %v1103 = vpop.f32.mrf.mxu0
        %v1104 = vadd.f32 %v871, %v1103
        %1105 = vmatmul.bf16.gmra.mxu0 %v957
        %v1106 = vpop.f32.mrf.mxu0
        %v1107 = vadd.f32 %v874, %v1106
        %v1108 = vpop.f32.mrf.mxu0
        %v1109 = vadd.f32 %v876, %v1108
        %1110 = vdwg.mxu0
        %vm1141 = vcmask 1040384
        %v1142 = vrot.slane %v1032, 7
        %v1143 = vrot.slane %v1034, 7
        %v1144 = vsel %vm1141, %v1142, %v1143
        %v1145 = vrot.slane %v1037, 7
        %v1146 = vsel %vm1141, %v1143, %v1145
        %v1147 = vrot.slane %v1039, 7
        %v1148 = vsel %vm1141, %v1145, %v1147
        %v1149 = vrot.slane %v1042, 7
        %v1150 = vsel %vm1141, %v1147, %v1149
        %v1151 = vrot.slane %v1044, 7
        %v1152 = vsel %vm1141, %v1149, %v1151
        %v1153 = vrot.slane %v1047, 7
        %v1154 = vsel %vm1141, %v1151, %v1153
        %v1155 = vrot.slane %v1049, 7
        %v1156 = vsel %vm1141, %v1153, %v1155
        %v1157 = vrot.slane %v1052, 7
        %v1158 = vsel %vm1141, %v1155, %v1157
        %v1159 = vrot.slane %v1054, 7
        %v1160 = vsel %vm1141, %v1157, %v1159
        %v1161 = vrot.slane %v1057, 7
        %v1162 = vsel %vm1141, %v1159, %v1161
        %v1163 = vrot.slane %v1059, 7
        %v1164 = vsel %vm1141, %v1161, %v1163
        %v1165 = vrot.slane %v1062, 7
        %v1166 = vsel %vm1141, %v1163, %v1165
        %v1167 = vrot.slane %v1064, 7
        %v1168 = vsel %vm1141, %v1165, %v1167
        %v1169 = vrot.slane %v1067, 7
        %v1170 = vsel %vm1141, %v1167, %v1169
        %v1171 = vrot.slane %v1069, 7
        %v1172 = vsel %vm1141, %v1169, %v1171
        %v1173 = vrot.slane %v1072, 7
        %v1174 = vsel %vm1141, %v1171, %v1173
        %v1175 = vrot.slane %v1074, 7
        %v1176 = vsel %vm1141, %v1173, %v1175
        %v1177 = vrot.slane %v1077, 7
        %v1178 = vsel %vm1141, %v1175, %v1177
        %v1179 = vrot.slane %v1079, 7
        %v1180 = vsel %vm1141, %v1177, %v1179
        %v1181 = vrot.slane %v1082, 7
        %v1182 = vsel %vm1141, %v1179, %v1181
        %v1183 = vrot.slane %v1084, 7
        %v1184 = vsel %vm1141, %v1181, %v1183
        %v1185 = vrot.slane %v1087, 7
        %v1186 = vsel %vm1141, %v1183, %v1185
        %v1187 = vrot.slane %v1089, 7
        %v1188 = vsel %vm1141, %v1185, %v1187
        %v1189 = vrot.slane %v1092, 7
        %v1190 = vsel %vm1141, %v1187, %v1189
        %v1191 = vrot.slane %v1094, 7
        %v1192 = vsel %vm1141, %v1189, %v1191
        %v1193 = vrot.slane %v1097, 7
        %v1194 = vsel %vm1141, %v1191, %v1193
        %v1195 = vrot.slane %v1099, 7
        %v1196 = vsel %vm1141, %v1193, %v1195
        %v1197 = vrot.slane %v1102, 7
        %v1198 = vsel %vm1141, %v1195, %v1197
        %v1199 = vrot.slane %v1104, 7
        %v1200 = vsel %vm1141, %v1197, %v1199
        %v1231 = vsel %vm1141, 0.0, %v1142
        %v1232 = vld [vmem:[%s6] sm:$0xff]
        %v1233 = vld [vmem:[%s6 + $0x8] sm:$0xff]
        %v1234 = vld [vmem:[%s6 + $0x10] sm:$0xff]
        %v1235 = vld [vmem:[%s6 + $0x18] sm:$0xff]
        %v1236 = vld [vmem:[%s6 + $0x20] sm:$0xff]
        %v1237 = vld [vmem:[%s6 + $0x28] sm:$0xff]
        %v1238 = vld [vmem:[%s6 + $0x30] sm:$0xff]
        %v1239 = vld [vmem:[%s6 + $0x38] sm:$0xff]
        %v1240 = vld [vmem:[%s6 + $0x40] sm:$0xff]
        %v1241 = vld [vmem:[%s6 + $0x48] sm:$0xff]
        %v1242 = vld [vmem:[%s6 + $0x50] sm:$0xff]
        %v1243 = vld [vmem:[%s6 + $0x58] sm:$0xff]
        %v1244 = vld [vmem:[%s6 + $0x60] sm:$0xff]
        %v1245 = vld [vmem:[%s6 + $0x68] sm:$0xff]
        %v1246 = vld [vmem:[%s6 + $0x70] sm:$0xff]
        %v1247 = vld [vmem:[%s6 + $0x78] sm:$0xff]
        %v1248 = vld [vmem:[%s6 + $0x80] sm:$0xff]
        %v1249 = vld [vmem:[%s6 + $0x88] sm:$0xff]
        %v1250 = vld [vmem:[%s6 + $0x90] sm:$0xff]
        %v1251 = vld [vmem:[%s6 + $0x98] sm:$0xff]
        %v1252 = vld [vmem:[%s6 + $0xa0] sm:$0xff]
        %v1253 = vld [vmem:[%s6 + $0xa8] sm:$0xff]
        %v1254 = vld [vmem:[%s6 + $0xb0] sm:$0xff]
        %v1255 = vld [vmem:[%s6 + $0xb8] sm:$0xff]
        %v1256 = vld [vmem:[%s6 + $0xc0] sm:$0xff]
        %v1257 = vld [vmem:[%s6 + $0xc8] sm:$0xff]
        %v1258 = vld [vmem:[%s6 + $0xd0] sm:$0xff]
        %v1259 = vld [vmem:[%s6 + $0xd8] sm:$0xff]
        %v1260 = vld [vmem:[%s6 + $0xe0] sm:$0xff]
        %v1261 = vld [vmem:[%s6 + $0xe8] sm:$0xff]
        %v1262 = vld [vmem:[%s6 + $0xf0] sm:$0xff]
        %v1263 = vld [vmem:[%s6 + $0xf8] sm:$0xff]
        %1265 = vset.pattern.permute.xlu0 0
        %1266 = vperm.xlu0 %1265, %v1232
        %v1267 = vpop.permute.xlu0 %1266
        %1270 = vset.pattern.permute.xlu0 0
        %1271 = vperm.xlu0 %1270, %v1233
        %v1272 = vpop.permute.xlu0 %1271
        %1275 = vset.pattern.permute.xlu0 0
        %1276 = vperm.xlu0 %1275, %v1234
        %v1277 = vpop.permute.xlu0 %1276
        %1280 = vset.pattern.permute.xlu0 0
        %1281 = vperm.xlu0 %1280, %v1235
        %v1282 = vpop.permute.xlu0 %1281
        %1285 = vset.pattern.permute.xlu0 0
        %1286 = vperm.xlu0 %1285, %v1236
        %v1287 = vpop.permute.xlu0 %1286
        %1290 = vset.pattern.permute.xlu0 0
        %1291 = vperm.xlu0 %1290, %v1237
        %v1292 = vpop.permute.xlu0 %1291
        %1295 = vset.pattern.permute.xlu0 0
        %1296 = vperm.xlu0 %1295, %v1238
        %v1297 = vpop.permute.xlu0 %1296
        %1300 = vset.pattern.permute.xlu0 0
        %1301 = vperm.xlu0 %1300, %v1239
        %v1302 = vpop.permute.xlu0 %1301
        %1305 = vset.pattern.permute.xlu0 0
        %1306 = vperm.xlu0 %1305, %v1240
        %v1307 = vpop.permute.xlu0 %1306
        %1310 = vset.pattern.permute.xlu0 0
        %1311 = vperm.xlu0 %1310, %v1241
        %v1312 = vpop.permute.xlu0 %1311
        %1315 = vset.pattern.permute.xlu0 0
        %1316 = vperm.xlu0 %1315, %v1242
        %v1317 = vpop.permute.xlu0 %1316
        %1320 = vset.pattern.permute.xlu0 0
        %1321 = vperm.xlu0 %1320, %v1243
        %v1322 = vpop.permute.xlu0 %1321
        %1325 = vset.pattern.permute.xlu0 0
        %1326 = vperm.xlu0 %1325, %v1244
        %v1327 = vpop.permute.xlu0 %1326
        %1330 = vset.pattern.permute.xlu0 0
        %1331 = vperm.xlu0 %1330, %v1245
        %v1332 = vpop.permute.xlu0 %1331
        %1335 = vset.pattern.permute.xlu0 0
        %1336 = vperm.xlu0 %1335, %v1246
        %v1337 = vpop.permute.xlu0 %1336
        %1340 = vset.pattern.permute.xlu0 0
        %1341 = vperm.xlu0 %1340, %v1247
        %v1342 = vpop.permute.xlu0 %1341
        %1345 = vset.pattern.permute.xlu0 0
        %1346 = vperm.xlu0 %1345, %v1248
        %v1347 = vpop.permute.xlu0 %1346
        %1350 = vset.pattern.permute.xlu0 0
        %1351 = vperm.xlu0 %1350, %v1249
        %v1352 = vpop.permute.xlu0 %1351
        %1355 = vset.pattern.permute.xlu0 0
        %1356 = vperm.xlu0 %1355, %v1250
        %v1357 = vpop.permute.xlu0 %1356
        %1360 = vset.pattern.permute.xlu0 0
        %1361 = vperm.xlu0 %1360, %v1251
        %v1362 = vpop.permute.xlu0 %1361
        %1365 = vset.pattern.permute.xlu0 0
        %1366 = vperm.xlu0 %1365, %v1252
        %v1367 = vpop.permute.xlu0 %1366
        %1370 = vset.pattern.permute.xlu0 0
        %1371 = vperm.xlu0 %1370, %v1253
        %v1372 = vpop.permute.xlu0 %1371
        %1375 = vset.pattern.permute.xlu0 0
        %1376 = vperm.xlu0 %1375, %v1254
        %v1377 = vpop.permute.xlu0 %1376
        %1380 = vset.pattern.permute.xlu0 0
        %1381 = vperm.xlu0 %1380, %v1255
        %v1382 = vpop.permute.xlu0 %1381
        %1385 = vset.pattern.permute.xlu0 0
        %1386 = vperm.xlu0 %1385, %v1256
        %v1387 = vpop.permute.xlu0 %1386
        %1390 = vset.pattern.permute.xlu0 0
        %1391 = vperm.xlu0 %1390, %v1257
        %v1392 = vpop.permute.xlu0 %1391
        %1395 = vset.pattern.permute.xlu0 0
        %1396 = vperm.xlu0 %1395, %v1258
        %v1397 = vpop.permute.xlu0 %1396
        %1400 = vset.pattern.permute.xlu0 0
        %1401 = vperm.xlu0 %1400, %v1259
        %v1402 = vpop.permute.xlu0 %1401
        %1405 = vset.pattern.permute.xlu0 0
        %1406 = vperm.xlu0 %1405, %v1260
        %v1407 = vpop.permute.xlu0 %1406
        %1410 = vset.pattern.permute.xlu0 0
        %1411 = vperm.xlu0 %1410, %v1261
        %v1412 = vpop.permute.xlu0 %1411
        %1415 = vset.pattern.permute.xlu0 0
        %1416 = vperm.xlu0 %1415, %v1262
        %v1417 = vpop.permute.xlu0 %1416
        %1420 = vset.pattern.permute.xlu0 0
        %1421 = vperm.xlu0 %1420, %v1263
        %v1422 = vpop.permute.xlu0 %1421
        %v1424 = vmul.f32 %v1267, 0.0
        %v1425 = vmul.f32 %v1272, 0.0
        %v1426 = vmul.f32 %v1231, %v1277
        %v1427 = vmul.f32 %v1144, %v1282
        %v1428 = vmul.f32 %v1146, %v1287
        %v1429 = vmul.f32 %v1148, %v1292
        %v1430 = vmul.f32 %v1150, %v1297
        %v1431 = vmul.f32 %v1152, %v1302
        %v1432 = vmul.f32 %v1154, %v1307
        %v1433 = vmul.f32 %v1156, %v1312
        %v1434 = vmul.f32 %v1158, %v1317
        %v1435 = vmul.f32 %v1160, %v1322
        %v1436 = vmul.f32 %v1162, %v1327
        %v1437 = vmul.f32 %v1164, %v1332
        %v1438 = vmul.f32 %v1166, %v1337
        %v1439 = vmul.f32 %v1168, %v1342
        %v1440 = vmul.f32 %v1170, %v1347
        %v1441 = vmul.f32 %v1172, %v1352
        %v1442 = vmul.f32 %v1174, %v1357
        %v1443 = vmul.f32 %v1176, %v1362
        %v1444 = vmul.f32 %v1178, %v1367
        %v1445 = vmul.f32 %v1180, %v1372
        %v1446 = vmul.f32 %v1182, %v1377
        %v1447 = vmul.f32 %v1184, %v1382
        %v1448 = vmul.f32 %v1186, %v1387
        %v1449 = vmul.f32 %v1188, %v1392
        %v1450 = vmul.f32 %v1190, %v1397
        %v1451 = vmul.f32 %v1192, %v1402
        %v1452 = vmul.f32 %v1194, %v1407
        %v1453 = vmul.f32 %v1196, %v1412
        %v1454 = vmul.f32 %v1198, %v1417
        %v1455 = vmul.f32 %v1200, %v1422
        %1456 = vrot.lane.b32.xlu0 %v1032, 125
        %v1457 = vpop.permute.xlu0 %1456
        %1458 = vrot.lane.b32.xlu0 %v1034, 125
        %v1459 = vpop.permute.xlu0 %1458
        %1460 = vrot.lane.b32.xlu0 %v1037, 125
        %v1461 = vpop.permute.xlu0 %1460
        %1462 = vrot.lane.b32.xlu0 %v1039, 125
        %v1463 = vpop.permute.xlu0 %1462
        %1464 = vrot.lane.b32.xlu0 %v1042, 125
        %v1465 = vpop.permute.xlu0 %1464
        %1466 = vrot.lane.b32.xlu0 %v1044, 125
        %v1467 = vpop.permute.xlu0 %1466
        %1468 = vrot.lane.b32.xlu0 %v1047, 125
        %v1469 = vpop.permute.xlu0 %1468
        %1470 = vrot.lane.b32.xlu0 %v1049, 125
        %v1471 = vpop.permute.xlu0 %1470
        %1472 = vrot.lane.b32.xlu0 %v1052, 125
        %v1473 = vpop.permute.xlu0 %1472
        %1474 = vrot.lane.b32.xlu0 %v1054, 125
        %v1475 = vpop.permute.xlu0 %1474
        %1476 = vrot.lane.b32.xlu0 %v1057, 125
        %v1477 = vpop.permute.xlu0 %1476
        %1478 = vrot.lane.b32.xlu0 %v1059, 125
        %v1479 = vpop.permute.xlu0 %1478
        %1480 = vrot.lane.b32.xlu0 %v1062, 125
        %v1481 = vpop.permute.xlu0 %1480
        %1482 = vrot.lane.b32.xlu0 %v1064, 125
        %v1483 = vpop.permute.xlu0 %1482
        %1484 = vrot.lane.b32.xlu0 %v1067, 125
        %v1485 = vpop.permute.xlu0 %1484
        %1486 = vrot.lane.b32.xlu0 %v1069, 125
        %v1487 = vpop.permute.xlu0 %1486
        %1488 = vrot.lane.b32.xlu0 %v1072, 125
        %v1489 = vpop.permute.xlu0 %1488
        %1490 = vrot.lane.b32.xlu0 %v1074, 125
        %v1491 = vpop.permute.xlu0 %1490
        %1492 = vrot.lane.b32.xlu0 %v1077, 125
        %v1493 = vpop.permute.xlu0 %1492
        %1494 = vrot.lane.b32.xlu0 %v1079, 125
        %v1495 = vpop.permute.xlu0 %1494
        %1496 = vrot.lane.b32.xlu0 %v1082, 125
        %v1497 = vpop.permute.xlu0 %1496
        %1498 = vrot.lane.b32.xlu0 %v1084, 125
        %v1499 = vpop.permute.xlu0 %1498
        %1500 = vrot.lane.b32.xlu0 %v1087, 125
        %v1501 = vpop.permute.xlu0 %1500
        %1502 = vrot.lane.b32.xlu0 %v1089, 125
        %v1503 = vpop.permute.xlu0 %1502
        %1504 = vrot.lane.b32.xlu0 %v1092, 125
        %v1505 = vpop.permute.xlu0 %1504
        %1506 = vrot.lane.b32.xlu0 %v1094, 125
        %v1507 = vpop.permute.xlu0 %1506
        %1508 = vrot.lane.b32.xlu0 %v1097, 125
        %v1509 = vpop.permute.xlu0 %1508
        %1510 = vrot.lane.b32.xlu0 %v1099, 125
        %v1511 = vpop.permute.xlu0 %1510
        %1512 = vrot.lane.b32.xlu0 %v1102, 125
        %v1513 = vpop.permute.xlu0 %1512
        %1514 = vrot.lane.b32.xlu0 %v1104, 125
        %v1515 = vpop.permute.xlu0 %1514
        %1546 = vset.pattern.permute.xlu0 1
        %1547 = vperm.xlu0 %1546, %v1232
        %v1548 = vpop.permute.xlu0 %1547
        %1550 = vset.pattern.permute.xlu0 1
        %1551 = vperm.xlu0 %1550, %v1233
        %v1552 = vpop.permute.xlu0 %1551
        %1554 = vset.pattern.permute.xlu0 1
        %1555 = vperm.xlu0 %1554, %v1234
        %v1556 = vpop.permute.xlu0 %1555
        %1558 = vset.pattern.permute.xlu0 1
        %1559 = vperm.xlu0 %1558, %v1235
        %v1560 = vpop.permute.xlu0 %1559
        %1562 = vset.pattern.permute.xlu0 1
        %1563 = vperm.xlu0 %1562, %v1236
        %v1564 = vpop.permute.xlu0 %1563
        %1566 = vset.pattern.permute.xlu0 1
        %1567 = vperm.xlu0 %1566, %v1237
        %v1568 = vpop.permute.xlu0 %1567
        %1570 = vset.pattern.permute.xlu0 1
        %1571 = vperm.xlu0 %1570, %v1238
        %v1572 = vpop.permute.xlu0 %1571
        %1574 = vset.pattern.permute.xlu0 1
        %1575 = vperm.xlu0 %1574, %v1239
        %v1576 = vpop.permute.xlu0 %1575
        %1578 = vset.pattern.permute.xlu0 1
        %1579 = vperm.xlu0 %1578, %v1240
        %v1580 = vpop.permute.xlu0 %1579
        %1582 = vset.pattern.permute.xlu0 1
        %1583 = vperm.xlu0 %1582, %v1241
        %v1584 = vpop.permute.xlu0 %1583
        %1586 = vset.pattern.permute.xlu0 1
        %1587 = vperm.xlu0 %1586, %v1242
        %v1588 = vpop.permute.xlu0 %1587
        %1590 = vset.pattern.permute.xlu0 1
        %1591 = vperm.xlu0 %1590, %v1243
        %v1592 = vpop.permute.xlu0 %1591
        %1594 = vset.pattern.permute.xlu0 1
        %1595 = vperm.xlu0 %1594, %v1244
        %v1596 = vpop.permute.xlu0 %1595
        %1598 = vset.pattern.permute.xlu0 1
        %1599 = vperm.xlu0 %1598, %v1245
        %v1600 = vpop.permute.xlu0 %1599
        %1602 = vset.pattern.permute.xlu0 1
        %1603 = vperm.xlu0 %1602, %v1246
        %v1604 = vpop.permute.xlu0 %1603
        %1606 = vset.pattern.permute.xlu0 1
        %1607 = vperm.xlu0 %1606, %v1247
        %v1608 = vpop.permute.xlu0 %1607
        %1610 = vset.pattern.permute.xlu0 1
        %1611 = vperm.xlu0 %1610, %v1248
        %v1612 = vpop.permute.xlu0 %1611
        %1614 = vset.pattern.permute.xlu0 1
        %1615 = vperm.xlu0 %1614, %v1249
        %v1616 = vpop.permute.xlu0 %1615
        %1618 = vset.pattern.permute.xlu0 1
        %1619 = vperm.xlu0 %1618, %v1250
        %v1620 = vpop.permute.xlu0 %1619
        %1622 = vset.pattern.permute.xlu0 1
        %1623 = vperm.xlu0 %1622, %v1251
        %v1624 = vpop.permute.xlu0 %1623
        %1626 = vset.pattern.permute.xlu0 1
        %1627 = vperm.xlu0 %1626, %v1252
        %v1628 = vpop.permute.xlu0 %1627
        %1630 = vset.pattern.permute.xlu0 1
        %1631 = vperm.xlu0 %1630, %v1253
        %v1632 = vpop.permute.xlu0 %1631
        %1634 = vset.pattern.permute.xlu0 1
        %1635 = vperm.xlu0 %1634, %v1254
        %v1636 = vpop.permute.xlu0 %1635
        %1638 = vset.pattern.permute.xlu0 1
        %1639 = vperm.xlu0 %1638, %v1255
        %v1640 = vpop.permute.xlu0 %1639
        %1642 = vset.pattern.permute.xlu0 1
        %1643 = vperm.xlu0 %1642, %v1256
        %v1644 = vpop.permute.xlu0 %1643
        %1646 = vset.pattern.permute.xlu0 1
        %1647 = vperm.xlu0 %1646, %v1257
        %v1648 = vpop.permute.xlu0 %1647
        %1650 = vset.pattern.permute.xlu0 1
        %1651 = vperm.xlu0 %1650, %v1258
        %v1652 = vpop.permute.xlu0 %1651
        %1654 = vset.pattern.permute.xlu0 1
        %1655 = vperm.xlu0 %1654, %v1259
        %v1656 = vpop.permute.xlu0 %1655
        %1658 = vset.pattern.permute.xlu0 1
        %1659 = vperm.xlu0 %1658, %v1260
        %v1660 = vpop.permute.xlu0 %1659
        %1662 = vset.pattern.permute.xlu0 1
        %1663 = vperm.xlu0 %1662, %v1261
        %v1664 = vpop.permute.xlu0 %1663
        %1666 = vset.pattern.permute.xlu0 1
        %1667 = vperm.xlu0 %1666, %v1262
        %v1668 = vpop.permute.xlu0 %1667
        %1670 = vset.pattern.permute.xlu0 1
        %1671 = vperm.xlu0 %1670, %v1263
        %v1672 = vpop.permute.xlu0 %1671
        %v1674 = vmul.f32 %v1548, 0.0
        %v1675 = vmul.f32 %v1552, 0.0
        %v1676 = vmul.f32 %v1457, %v1556
        %v1677 = vmul.f32 %v1459, %v1560
        %v1678 = vmul.f32 %v1461, %v1564
        %v1679 = vmul.f32 %v1463, %v1568
        %v1680 = vmul.f32 %v1465, %v1572
        %v1681 = vmul.f32 %v1467, %v1576
        %v1682 = vmul.f32 %v1469, %v1580
        %v1683 = vmul.f32 %v1471, %v1584
        %v1684 = vmul.f32 %v1473, %v1588
        %v1685 = vmul.f32 %v1475, %v1592
        %v1686 = vmul.f32 %v1477, %v1596
        %v1687 = vmul.f32 %v1479, %v1600
        %v1688 = vmul.f32 %v1481, %v1604
        %v1689 = vmul.f32 %v1483, %v1608
        %v1690 = vmul.f32 %v1485, %v1612
        %v1691 = vmul.f32 %v1487, %v1616
        %v1692 = vmul.f32 %v1489, %v1620
        %v1693 = vmul.f32 %v1491, %v1624
        %v1694 = vmul.f32 %v1493, %v1628
        %v1695 = vmul.f32 %v1495, %v1632
        %v1696 = vmul.f32 %v1497, %v1636
        %v1697 = vmul.f32 %v1499, %v1640
        %v1698 = vmul.f32 %v1501, %v1644
        %v1699 = vmul.f32 %v1503, %v1648
        %v1700 = vmul.f32 %v1505, %v1652
        %v1701 = vmul.f32 %v1507, %v1656
        %v1702 = vmul.f32 %v1509, %v1660
        %v1703 = vmul.f32 %v1511, %v1664
        %v1704 = vmul.f32 %v1513, %v1668
        %v1705 = vmul.f32 %v1515, %v1672
        %v1706 = vadd.f32 %v1424, %v1674
        %v1707 = vadd.f32 %v1425, %v1675
        %v1708 = vadd.f32 %v1426, %v1676
        %v1709 = vadd.f32 %v1427, %v1677
        %v1710 = vadd.f32 %v1428, %v1678
        %v1711 = vadd.f32 %v1429, %v1679
        %v1712 = vadd.f32 %v1430, %v1680
        %v1713 = vadd.f32 %v1431, %v1681
        %v1714 = vadd.f32 %v1432, %v1682
        %v1715 = vadd.f32 %v1433, %v1683
        %v1716 = vadd.f32 %v1434, %v1684
        %v1717 = vadd.f32 %v1435, %v1685
        %v1718 = vadd.f32 %v1436, %v1686
        %v1719 = vadd.f32 %v1437, %v1687
        %v1720 = vadd.f32 %v1438, %v1688
        %v1721 = vadd.f32 %v1439, %v1689
        %v1722 = vadd.f32 %v1440, %v1690
        %v1723 = vadd.f32 %v1441, %v1691
        %v1724 = vadd.f32 %v1442, %v1692
        %v1725 = vadd.f32 %v1443, %v1693
        %v1726 = vadd.f32 %v1444, %v1694
        %v1727 = vadd.f32 %v1445, %v1695
        %v1728 = vadd.f32 %v1446, %v1696
        %v1729 = vadd.f32 %v1447, %v1697
        %v1730 = vadd.f32 %v1448, %v1698
        %v1731 = vadd.f32 %v1449, %v1699
        %v1732 = vadd.f32 %v1450, %v1700
        %v1733 = vadd.f32 %v1451, %v1701
        %v1734 = vadd.f32 %v1452, %v1702
        %v1735 = vadd.f32 %v1453, %v1703
        %v1736 = vadd.f32 %v1454, %v1704
        %v1737 = vadd.f32 %v1455, %v1705
        %vm1739 = vcmask 1046528
        %v1740 = vrot.slane %v1032, 1
        %v1741 = vrot.slane %v1034, 1
        %v1742 = vsel %vm1739, %v1740, %v1741
        %v1743 = vrot.slane %v1037, 1
        %v1744 = vsel %vm1739, %v1741, %v1743
        %v1745 = vrot.slane %v1039, 1
        %v1746 = vsel %vm1739, %v1743, %v1745
        %v1747 = vrot.slane %v1042, 1
        %v1748 = vsel %vm1739, %v1745, %v1747
        %v1749 = vrot.slane %v1044, 1
        %v1750 = vsel %vm1739, %v1747, %v1749
        %v1751 = vrot.slane %v1047, 1
        %v1752 = vsel %vm1739, %v1749, %v1751
        %v1753 = vrot.slane %v1049, 1
        %v1754 = vsel %vm1739, %v1751, %v1753
        %v1755 = vrot.slane %v1052, 1
        %v1756 = vsel %vm1739, %v1753, %v1755
        %v1757 = vrot.slane %v1054, 1
        %v1758 = vsel %vm1739, %v1755, %v1757
        %v1759 = vrot.slane %v1057, 1
        %v1760 = vsel %vm1739, %v1757, %v1759
        %v1761 = vrot.slane %v1059, 1
        %v1762 = vsel %vm1739, %v1759, %v1761
        %v1763 = vrot.slane %v1062, 1
        %v1764 = vsel %vm1739, %v1761, %v1763
        %v1765 = vrot.slane %v1064, 1
        %v1766 = vsel %vm1739, %v1763, %v1765
        %v1767 = vrot.slane %v1067, 1
        %v1768 = vsel %vm1739, %v1765, %v1767
        %v1769 = vrot.slane %v1069, 1
        %v1770 = vsel %vm1739, %v1767, %v1769
        %v1771 = vrot.slane %v1072, 1
        %v1772 = vsel %vm1739, %v1769, %v1771
        %v1773 = vrot.slane %v1074, 1
        %v1774 = vsel %vm1739, %v1771, %v1773
        %v1775 = vrot.slane %v1077, 1
        %v1776 = vsel %vm1739, %v1773, %v1775
        %v1777 = vrot.slane %v1079, 1
        %v1778 = vsel %vm1739, %v1775, %v1777
        %v1779 = vrot.slane %v1082, 1
        %v1780 = vsel %vm1739, %v1777, %v1779
        %v1781 = vrot.slane %v1084, 1
        %v1782 = vsel %vm1739, %v1779, %v1781
        %v1783 = vrot.slane %v1087, 1
        %v1784 = vsel %vm1739, %v1781, %v1783
        %v1785 = vrot.slane %v1089, 1
        %v1786 = vsel %vm1739, %v1783, %v1785
        %v1787 = vrot.slane %v1092, 1
        %v1788 = vsel %vm1739, %v1785, %v1787
        %v1789 = vrot.slane %v1094, 1
        %v1790 = vsel %vm1739, %v1787, %v1789
        %v1791 = vrot.slane %v1097, 1
        %v1792 = vsel %vm1739, %v1789, %v1791
        %v1793 = vrot.slane %v1099, 1
        %v1794 = vsel %vm1739, %v1791, %v1793
        %v1795 = vrot.slane %v1102, 1
        %v1796 = vsel %vm1739, %v1793, %v1795
        %v1797 = vrot.slane %v1104, 1
        %v1798 = vsel %vm1739, %v1795, %v1797
        %v1799 = vrot.slane %v1107, 1
        %v1800 = vsel %vm1739, %v1797, %v1799
        %1801 = vrot.lane.b32.xlu0 %v1740, 122
        %v1802 = vpop.permute.xlu0 %1801
        %1803 = vrot.lane.b32.xlu0 %v1742, 122
        %v1804 = vpop.permute.xlu0 %1803
        %1805 = vrot.lane.b32.xlu0 %v1744, 122
        %v1806 = vpop.permute.xlu0 %1805
        %1807 = vrot.lane.b32.xlu0 %v1746, 122
        %v1808 = vpop.permute.xlu0 %1807
        %1809 = vrot.lane.b32.xlu0 %v1748, 122
        %v1810 = vpop.permute.xlu0 %1809
        %1811 = vrot.lane.b32.xlu0 %v1750, 122
        %v1812 = vpop.permute.xlu0 %1811
        %1813 = vrot.lane.b32.xlu0 %v1752, 122
        %v1814 = vpop.permute.xlu0 %1813
        %1815 = vrot.lane.b32.xlu0 %v1754, 122
        %v1816 = vpop.permute.xlu0 %1815
        %1817 = vrot.lane.b32.xlu0 %v1756, 122
        %v1818 = vpop.permute.xlu0 %1817
        %1819 = vrot.lane.b32.xlu0 %v1758, 122
        %v1820 = vpop.permute.xlu0 %1819
        %1821 = vrot.lane.b32.xlu0 %v1760, 122
        %v1822 = vpop.permute.xlu0 %1821
        %1823 = vrot.lane.b32.xlu0 %v1762, 122
        %v1824 = vpop.permute.xlu0 %1823
        %1825 = vrot.lane.b32.xlu0 %v1764, 122
        %v1826 = vpop.permute.xlu0 %1825
        %1827 = vrot.lane.b32.xlu0 %v1766, 122
        %v1828 = vpop.permute.xlu0 %1827
        %1829 = vrot.lane.b32.xlu0 %v1768, 122
        %v1830 = vpop.permute.xlu0 %1829
        %1831 = vrot.lane.b32.xlu0 %v1770, 122
        %v1832 = vpop.permute.xlu0 %1831
        %1833 = vrot.lane.b32.xlu0 %v1772, 122
        %v1834 = vpop.permute.xlu0 %1833
        %1835 = vrot.lane.b32.xlu0 %v1774, 122
        %v1836 = vpop.permute.xlu0 %1835
        %1837 = vrot.lane.b32.xlu0 %v1776, 122
        %v1838 = vpop.permute.xlu0 %1837
        %1839 = vrot.lane.b32.xlu0 %v1778, 122
        %v1840 = vpop.permute.xlu0 %1839
        %1841 = vrot.lane.b32.xlu0 %v1780, 122
        %v1842 = vpop.permute.xlu0 %1841
        %1843 = vrot.lane.b32.xlu0 %v1782, 122
        %v1844 = vpop.permute.xlu0 %1843
        %1845 = vrot.lane.b32.xlu0 %v1784, 122
        %v1846 = vpop.permute.xlu0 %1845
        %1847 = vrot.lane.b32.xlu0 %v1786, 122
        %v1848 = vpop.permute.xlu0 %1847
        %1849 = vrot.lane.b32.xlu0 %v1788, 122
        %v1850 = vpop.permute.xlu0 %1849
        %1851 = vrot.lane.b32.xlu0 %v1790, 122
        %v1852 = vpop.permute.xlu0 %1851
        %1853 = vrot.lane.b32.xlu0 %v1792, 122
        %v1854 = vpop.permute.xlu0 %1853
        %1855 = vrot.lane.b32.xlu0 %v1794, 122
        %v1856 = vpop.permute.xlu0 %1855
        %1857 = vrot.lane.b32.xlu0 %v1796, 122
        %v1858 = vpop.permute.xlu0 %1857
        %1859 = vrot.lane.b32.xlu0 %v1798, 122
        %v1860 = vpop.permute.xlu0 %1859
        %1861 = vrot.lane.b32.xlu0 %v1800, 122
        %v1862 = vpop.permute.xlu0 %1861
        %v1894 = vsel %vm1739, 0.0, %v1802
        %1895 = vset.pattern.permute.xlu0 2
        %1896 = vperm.xlu0 %1895, %v1232
        %v1897 = vpop.permute.xlu0 %1896
        %1899 = vset.pattern.permute.xlu0 2
        %1900 = vperm.xlu0 %1899, %v1233
        %v1901 = vpop.permute.xlu0 %1900
        %1903 = vset.pattern.permute.xlu0 2
        %1904 = vperm.xlu0 %1903, %v1234
        %v1905 = vpop.permute.xlu0 %1904
        %1907 = vset.pattern.permute.xlu0 2
        %1908 = vperm.xlu0 %1907, %v1235
        %v1909 = vpop.permute.xlu0 %1908
        %1911 = vset.pattern.permute.xlu0 2
        %1912 = vperm.xlu0 %1911, %v1236
        %v1913 = vpop.permute.xlu0 %1912
        %1915 = vset.pattern.permute.xlu0 2
        %1916 = vperm.xlu0 %1915, %v1237
        %v1917 = vpop.permute.xlu0 %1916
        %1919 = vset.pattern.permute.xlu0 2
        %1920 = vperm.xlu0 %1919, %v1238
        %v1921 = vpop.permute.xlu0 %1920
        %1923 = vset.pattern.permute.xlu0 2
        %1924 = vperm.xlu0 %1923, %v1239
        %v1925 = vpop.permute.xlu0 %1924
        %1927 = vset.pattern.permute.xlu0 2
        %1928 = vperm.xlu0 %1927, %v1240
        %v1929 = vpop.permute.xlu0 %1928
        %1931 = vset.pattern.permute.xlu0 2
        %1932 = vperm.xlu0 %1931, %v1241
        %v1933 = vpop.permute.xlu0 %1932
        %1935 = vset.pattern.permute.xlu0 2
        %1936 = vperm.xlu0 %1935, %v1242
        %v1937 = vpop.permute.xlu0 %1936
        %1939 = vset.pattern.permute.xlu0 2
        %1940 = vperm.xlu0 %1939, %v1243
        %v1941 = vpop.permute.xlu0 %1940
        %1943 = vset.pattern.permute.xlu0 2
        %1944 = vperm.xlu0 %1943, %v1244
        %v1945 = vpop.permute.xlu0 %1944
        %1947 = vset.pattern.permute.xlu0 2
        %1948 = vperm.xlu0 %1947, %v1245
        %v1949 = vpop.permute.xlu0 %1948
        %1951 = vset.pattern.permute.xlu0 2
        %1952 = vperm.xlu0 %1951, %v1246
        %v1953 = vpop.permute.xlu0 %1952
        %1955 = vset.pattern.permute.xlu0 2
        %1956 = vperm.xlu0 %1955, %v1247
        %v1957 = vpop.permute.xlu0 %1956
        %1959 = vset.pattern.permute.xlu0 2
        %1960 = vperm.xlu0 %1959, %v1248
        %v1961 = vpop.permute.xlu0 %1960
        %1963 = vset.pattern.permute.xlu0 2
        %1964 = vperm.xlu0 %1963, %v1249
        %v1965 = vpop.permute.xlu0 %1964
        %1967 = vset.pattern.permute.xlu0 2
        %1968 = vperm.xlu0 %1967, %v1250
        %v1969 = vpop.permute.xlu0 %1968
        %1971 = vset.pattern.permute.xlu0 2
        %1972 = vperm.xlu0 %1971, %v1251
        %v1973 = vpop.permute.xlu0 %1972
        %1975 = vset.pattern.permute.xlu0 2
        %1976 = vperm.xlu0 %1975, %v1252
        %v1977 = vpop.permute.xlu0 %1976
        %1979 = vset.pattern.permute.xlu0 2
        %1980 = vperm.xlu0 %1979, %v1253
        %v1981 = vpop.permute.xlu0 %1980
        %1983 = vset.pattern.permute.xlu0 2
        %1984 = vperm.xlu0 %1983, %v1254
        %v1985 = vpop.permute.xlu0 %1984
        %1987 = vset.pattern.permute.xlu0 2
        %1988 = vperm.xlu0 %1987, %v1255
        %v1989 = vpop.permute.xlu0 %1988
        %1991 = vset.pattern.permute.xlu0 2
        %1992 = vperm.xlu0 %1991, %v1256
        %v1993 = vpop.permute.xlu0 %1992
        %1995 = vset.pattern.permute.xlu0 2
        %1996 = vperm.xlu0 %1995, %v1257
        %v1997 = vpop.permute.xlu0 %1996
        %1999 = vset.pattern.permute.xlu0 2
        %2000 = vperm.xlu0 %1999, %v1258
        %v2001 = vpop.permute.xlu0 %2000
        %2003 = vset.pattern.permute.xlu0 2
        %2004 = vperm.xlu0 %2003, %v1259
        %v2005 = vpop.permute.xlu0 %2004
        %2007 = vset.pattern.permute.xlu0 2
        %2008 = vperm.xlu0 %2007, %v1260
        %v2009 = vpop.permute.xlu0 %2008
        %2011 = vset.pattern.permute.xlu0 2
        %2012 = vperm.xlu0 %2011, %v1261
        %v2013 = vpop.permute.xlu0 %2012
        %2015 = vset.pattern.permute.xlu0 2
        %2016 = vperm.xlu0 %2015, %v1262
        %v2017 = vpop.permute.xlu0 %2016
        %2019 = vset.pattern.permute.xlu0 2
        %2020 = vperm.xlu0 %2019, %v1263
        %v2021 = vpop.permute.xlu0 %2020
        %v2023 = vmul.f32 %v1897, 0.0
        %v2024 = vmul.f32 %v1894, %v1901
        %v2025 = vmul.f32 %v1804, %v1905
        %v2026 = vmul.f32 %v1806, %v1909
        %v2027 = vmul.f32 %v1808, %v1913
        %v2028 = vmul.f32 %v1810, %v1917
        %v2029 = vmul.f32 %v1812, %v1921
        %v2030 = vmul.f32 %v1814, %v1925
        %v2031 = vmul.f32 %v1816, %v1929
        %v2032 = vmul.f32 %v1818, %v1933
        %v2033 = vmul.f32 %v1820, %v1937
        %v2034 = vmul.f32 %v1822, %v1941
        %v2035 = vmul.f32 %v1824, %v1945
        %v2036 = vmul.f32 %v1826, %v1949
        %v2037 = vmul.f32 %v1828, %v1953
        %v2038 = vmul.f32 %v1830, %v1957
        %v2039 = vmul.f32 %v1832, %v1961
        %v2040 = vmul.f32 %v1834, %v1965
        %v2041 = vmul.f32 %v1836, %v1969
        %v2042 = vmul.f32 %v1838, %v1973
        %v2043 = vmul.f32 %v1840, %v1977
        %v2044 = vmul.f32 %v1842, %v1981
        %v2045 = vmul.f32 %v1844, %v1985
        %v2046 = vmul.f32 %v1846, %v1989
        %v2047 = vmul.f32 %v1848, %v1993
        %v2048 = vmul.f32 %v1850, %v1997
        %v2049 = vmul.f32 %v1852, %v2001
        %v2050 = vmul.f32 %v1854, %v2005
        %v2051 = vmul.f32 %v1856, %v2009
        %v2052 = vmul.f32 %v1858, %v2013
        %v2053 = vmul.f32 %v1860, %v2017
        %v2054 = vmul.f32 %v1862, %v2021
        %v2055 = vadd.f32 %v1706, %v2023
        %v2056 = vadd.f32 %v1707, %v2024
        %v2057 = vadd.f32 %v1708, %v2025
        %v2058 = vadd.f32 %v1709, %v2026
        %v2059 = vadd.f32 %v1710, %v2027
        %v2060 = vadd.f32 %v1711, %v2028
        %v2061 = vadd.f32 %v1712, %v2029
        %v2062 = vadd.f32 %v1713, %v2030
        %v2063 = vadd.f32 %v1714, %v2031
        %v2064 = vadd.f32 %v1715, %v2032
        %v2065 = vadd.f32 %v1716, %v2033
        %v2066 = vadd.f32 %v1717, %v2034
        %v2067 = vadd.f32 %v1718, %v2035
        %v2068 = vadd.f32 %v1719, %v2036
        %v2069 = vadd.f32 %v1720, %v2037
        %v2070 = vadd.f32 %v1721, %v2038
        %v2071 = vadd.f32 %v1722, %v2039
        %v2072 = vadd.f32 %v1723, %v2040
        %v2073 = vadd.f32 %v1724, %v2041
        %v2074 = vadd.f32 %v1725, %v2042
        %v2075 = vadd.f32 %v1726, %v2043
        %v2076 = vadd.f32 %v1727, %v2044
        %v2077 = vadd.f32 %v1728, %v2045
        %v2078 = vadd.f32 %v1729, %v2046
        %v2079 = vadd.f32 %v1730, %v2047
        %v2080 = vadd.f32 %v1731, %v2048
        %v2081 = vadd.f32 %v1732, %v2049
        %v2082 = vadd.f32 %v1733, %v2050
        %v2083 = vadd.f32 %v1734, %v2051
        %v2084 = vadd.f32 %v1735, %v2052
        %v2085 = vadd.f32 %v1736, %v2053
        %v2086 = vadd.f32 %v1737, %v2054
        %v2088 = vrot.slane %v1107, 7
        %v2089 = vsel %vm1141, %v1199, %v2088
        %v2090 = vrot.slane %v1109, 7
        %v2091 = vsel %vm1141, %v2088, %v2090
        %2092 = vrot.lane.b32.xlu0 %v1142, 119
        %v2093 = vpop.permute.xlu0 %2092
        %2094 = vrot.lane.b32.xlu0 %v1144, 119
        %v2095 = vpop.permute.xlu0 %2094
        %2096 = vrot.lane.b32.xlu0 %v1146, 119
        %v2097 = vpop.permute.xlu0 %2096
        %2098 = vrot.lane.b32.xlu0 %v1148, 119
        %v2099 = vpop.permute.xlu0 %2098
        %2100 = vrot.lane.b32.xlu0 %v1150, 119
        %v2101 = vpop.permute.xlu0 %2100
        %2102 = vrot.lane.b32.xlu0 %v1152, 119
        %v2103 = vpop.permute.xlu0 %2102
        %2104 = vrot.lane.b32.xlu0 %v1154, 119
        %v2105 = vpop.permute.xlu0 %2104
        %2106 = vrot.lane.b32.xlu0 %v1156, 119
        %v2107 = vpop.permute.xlu0 %2106
        %2108 = vrot.lane.b32.xlu0 %v1158, 119
        %v2109 = vpop.permute.xlu0 %2108
        %2110 = vrot.lane.b32.xlu0 %v1160, 119
        %v2111 = vpop.permute.xlu0 %2110
        %2112 = vrot.lane.b32.xlu0 %v1162, 119
        %v2113 = vpop.permute.xlu0 %2112
        %2114 = vrot.lane.b32.xlu0 %v1164, 119
        %v2115 = vpop.permute.xlu0 %2114
        %2116 = vrot.lane.b32.xlu0 %v1166, 119
        %v2117 = vpop.permute.xlu0 %2116
        %2118 = vrot.lane.b32.xlu0 %v1168, 119
        %v2119 = vpop.permute.xlu0 %2118
        %2120 = vrot.lane.b32.xlu0 %v1170, 119
        %v2121 = vpop.permute.xlu0 %2120
        %2122 = vrot.lane.b32.xlu0 %v1172, 119
        %v2123 = vpop.permute.xlu0 %2122
        %2124 = vrot.lane.b32.xlu0 %v1174, 119
        %v2125 = vpop.permute.xlu0 %2124
        %2126 = vrot.lane.b32.xlu0 %v1176, 119
        %v2127 = vpop.permute.xlu0 %2126
        %2128 = vrot.lane.b32.xlu0 %v1178, 119
        %v2129 = vpop.permute.xlu0 %2128
        %2130 = vrot.lane.b32.xlu0 %v1180, 119
        %v2131 = vpop.permute.xlu0 %2130
        %2132 = vrot.lane.b32.xlu0 %v1182, 119
        %v2133 = vpop.permute.xlu0 %2132
        %2134 = vrot.lane.b32.xlu0 %v1184, 119
        %v2135 = vpop.permute.xlu0 %2134
        %2136 = vrot.lane.b32.xlu0 %v1186, 119
        %v2137 = vpop.permute.xlu0 %2136
        %2138 = vrot.lane.b32.xlu0 %v1188, 119
        %v2139 = vpop.permute.xlu0 %2138
        %2140 = vrot.lane.b32.xlu0 %v1190, 119
        %v2141 = vpop.permute.xlu0 %2140
        %2142 = vrot.lane.b32.xlu0 %v1192, 119
        %v2143 = vpop.permute.xlu0 %2142
        %2144 = vrot.lane.b32.xlu0 %v1194, 119
        %v2145 = vpop.permute.xlu0 %2144
        %2146 = vrot.lane.b32.xlu0 %v1196, 119
        %v2147 = vpop.permute.xlu0 %2146
        %2148 = vrot.lane.b32.xlu0 %v1198, 119
        %v2149 = vpop.permute.xlu0 %2148
        %2150 = vrot.lane.b32.xlu0 %v1200, 119
        %v2151 = vpop.permute.xlu0 %2150
        %2152 = vrot.lane.b32.xlu0 %v2089, 119
        %v2153 = vpop.permute.xlu0 %2152
        %2154 = vrot.lane.b32.xlu0 %v2091, 119
        %v2155 = vpop.permute.xlu0 %2154
        %v2188 = vsel %vm1141, 0.0, %v2093
        %2189 = vset.pattern.permute.xlu0 3
        %2190 = vperm.xlu0 %2189, %v1232
        %v2191 = vpop.permute.xlu0 %2190
        %2193 = vset.pattern.permute.xlu0 3
        %2194 = vperm.xlu0 %2193, %v1233
        %v2195 = vpop.permute.xlu0 %2194
        %2197 = vset.pattern.permute.xlu0 3
        %2198 = vperm.xlu0 %2197, %v1234
        %v2199 = vpop.permute.xlu0 %2198
        %2201 = vset.pattern.permute.xlu0 3
        %2202 = vperm.xlu0 %2201, %v1235
        %v2203 = vpop.permute.xlu0 %2202
        %2205 = vset.pattern.permute.xlu0 3
        %2206 = vperm.xlu0 %2205, %v1236
        %v2207 = vpop.permute.xlu0 %2206
        %2209 = vset.pattern.permute.xlu0 3
        %2210 = vperm.xlu0 %2209, %v1237
        %v2211 = vpop.permute.xlu0 %2210
        %2213 = vset.pattern.permute.xlu0 3
        %2214 = vperm.xlu0 %2213, %v1238
        %v2215 = vpop.permute.xlu0 %2214
        %2217 = vset.pattern.permute.xlu0 3
        %2218 = vperm.xlu0 %2217, %v1239
        %v2219 = vpop.permute.xlu0 %2218
        %2221 = vset.pattern.permute.xlu0 3
        %2222 = vperm.xlu0 %2221, %v1240
        %v2223 = vpop.permute.xlu0 %2222
        %2225 = vset.pattern.permute.xlu0 3
        %2226 = vperm.xlu0 %2225, %v1241
        %v2227 = vpop.permute.xlu0 %2226
        %2229 = vset.pattern.permute.xlu0 3
        %2230 = vperm.xlu0 %2229, %v1242
        %v2231 = vpop.permute.xlu0 %2230
        %2233 = vset.pattern.permute.xlu0 3
        %2234 = vperm.xlu0 %2233, %v1243
        %v2235 = vpop.permute.xlu0 %2234
        %2237 = vset.pattern.permute.xlu0 3
        %2238 = vperm.xlu0 %2237, %v1244
        %v2239 = vpop.permute.xlu0 %2238
        %2241 = vset.pattern.permute.xlu0 3
        %2242 = vperm.xlu0 %2241, %v1245
        %v2243 = vpop.permute.xlu0 %2242
        %2245 = vset.pattern.permute.xlu0 3
        %2246 = vperm.xlu0 %2245, %v1246
        %v2247 = vpop.permute.xlu0 %2246
        %2249 = vset.pattern.permute.xlu0 3
        %2250 = vperm.xlu0 %2249, %v1247
        %v2251 = vpop.permute.xlu0 %2250
        %2253 = vset.pattern.permute.xlu0 3
        %2254 = vperm.xlu0 %2253, %v1248
        %v2255 = vpop.permute.xlu0 %2254
        %2257 = vset.pattern.permute.xlu0 3
        %2258 = vperm.xlu0 %2257, %v1249
        %v2259 = vpop.permute.xlu0 %2258
        %2261 = vset.pattern.permute.xlu0 3
        %2262 = vperm.xlu0 %2261, %v1250
        %v2263 = vpop.permute.xlu0 %2262
        %2265 = vset.pattern.permute.xlu0 3
        %2266 = vperm.xlu0 %2265, %v1251
        %v2267 = vpop.permute.xlu0 %2266
        %2269 = vset.pattern.permute.xlu0 3
        %2270 = vperm.xlu0 %2269, %v1252
        %v2271 = vpop.permute.xlu0 %2270
        %2273 = vset.pattern.permute.xlu0 3
        %2274 = vperm.xlu0 %2273, %v1253
        %v2275 = vpop.permute.xlu0 %2274
        %2277 = vset.pattern.permute.xlu0 3
        %2278 = vperm.xlu0 %2277, %v1254
        %v2279 = vpop.permute.xlu0 %2278
        %2281 = vset.pattern.permute.xlu0 3
        %2282 = vperm.xlu0 %2281, %v1255
        %v2283 = vpop.permute.xlu0 %2282
        %2285 = vset.pattern.permute.xlu0 3
        %2286 = vperm.xlu0 %2285, %v1256
        %v2287 = vpop.permute.xlu0 %2286
        %2289 = vset.pattern.permute.xlu0 3
        %2290 = vperm.xlu0 %2289, %v1257
        %v2291 = vpop.permute.xlu0 %2290
        %2293 = vset.pattern.permute.xlu0 3
        %2294 = vperm.xlu0 %2293, %v1258
        %v2295 = vpop.permute.xlu0 %2294
        %2297 = vset.pattern.permute.xlu0 3
        %2298 = vperm.xlu0 %2297, %v1259
        %v2299 = vpop.permute.xlu0 %2298
        %2301 = vset.pattern.permute.xlu0 3
        %2302 = vperm.xlu0 %2301, %v1260
        %v2303 = vpop.permute.xlu0 %2302
        %2305 = vset.pattern.permute.xlu0 3
        %2306 = vperm.xlu0 %2305, %v1261
        %v2307 = vpop.permute.xlu0 %2306
        %2309 = vset.pattern.permute.xlu0 3
        %2310 = vperm.xlu0 %2309, %v1262
        %v2311 = vpop.permute.xlu0 %2310
        %2313 = vset.pattern.permute.xlu0 3
        %2314 = vperm.xlu0 %2313, %v1263
        %v2315 = vpop.permute.xlu0 %2314
        %v2317 = vmul.f32 %v2188, %v2191
        %v2318 = vmul.f32 %v2095, %v2195
        %v2319 = vmul.f32 %v2097, %v2199
        %v2320 = vmul.f32 %v2099, %v2203
        %v2321 = vmul.f32 %v2101, %v2207
        %v2322 = vmul.f32 %v2103, %v2211
        %v2323 = vmul.f32 %v2105, %v2215
        %v2324 = vmul.f32 %v2107, %v2219
        %v2325 = vmul.f32 %v2109, %v2223
        %v2326 = vmul.f32 %v2111, %v2227
        %v2327 = vmul.f32 %v2113, %v2231
        %v2328 = vmul.f32 %v2115, %v2235
        %v2329 = vmul.f32 %v2117, %v2239
        %v2330 = vmul.f32 %v2119, %v2243
        %v2331 = vmul.f32 %v2121, %v2247
        %v2332 = vmul.f32 %v2123, %v2251
        %v2333 = vmul.f32 %v2125, %v2255
        %v2334 = vmul.f32 %v2127, %v2259
        %v2335 = vmul.f32 %v2129, %v2263
        %v2336 = vmul.f32 %v2131, %v2267
        %v2337 = vmul.f32 %v2133, %v2271
        %v2338 = vmul.f32 %v2135, %v2275
        %v2339 = vmul.f32 %v2137, %v2279
        %v2340 = vmul.f32 %v2139, %v2283
        %v2341 = vmul.f32 %v2141, %v2287
        %v2342 = vmul.f32 %v2143, %v2291
        %v2343 = vmul.f32 %v2145, %v2295
        %v2344 = vmul.f32 %v2147, %v2299
        %v2345 = vmul.f32 %v2149, %v2303
        %v2346 = vmul.f32 %v2151, %v2307
        %v2347 = vmul.f32 %v2153, %v2311
        %v2348 = vmul.f32 %v2155, %v2315
        %v2349 = vadd.f32 %v2055, %v2317
        %v2350 = vadd.f32 %v2056, %v2318
        %v2351 = vadd.f32 %v2057, %v2319
        %v2352 = vadd.f32 %v2058, %v2320
        %v2353 = vadd.f32 %v2059, %v2321
        %v2354 = vadd.f32 %v2060, %v2322
        %v2355 = vadd.f32 %v2061, %v2323
        %v2356 = vadd.f32 %v2062, %v2324
        %v2357 = vadd.f32 %v2063, %v2325
        %v2358 = vadd.f32 %v2064, %v2326
        %v2359 = vadd.f32 %v2065, %v2327
        %v2360 = vadd.f32 %v2066, %v2328
        %v2361 = vadd.f32 %v2067, %v2329
        %v2362 = vadd.f32 %v2068, %v2330
        %v2363 = vadd.f32 %v2069, %v2331
        %v2364 = vadd.f32 %v2070, %v2332
        %v2365 = vadd.f32 %v2071, %v2333
        %v2366 = vadd.f32 %v2072, %v2334
        %v2367 = vadd.f32 %v2073, %v2335
        %v2368 = vadd.f32 %v2074, %v2336
        %v2369 = vadd.f32 %v2075, %v2337
        %v2370 = vadd.f32 %v2076, %v2338
        %v2371 = vadd.f32 %v2077, %v2339
        %v2372 = vadd.f32 %v2078, %v2340
        %v2373 = vadd.f32 %v2079, %v2341
        %v2374 = vadd.f32 %v2080, %v2342
        %v2375 = vadd.f32 %v2081, %v2343
        %v2376 = vadd.f32 %v2082, %v2344
        %v2377 = vadd.f32 %v2083, %v2345
        %v2378 = vadd.f32 %v2084, %v2346
        %v2379 = vadd.f32 %v2085, %v2347
        %v2380 = vadd.f32 %v2086, %v2348
        %2381 = vrot.lane.b32.xlu0 %v1032, 116
        %v2382 = vpop.permute.xlu0 %2381
        %2383 = vrot.lane.b32.xlu0 %v1034, 116
        %v2384 = vpop.permute.xlu0 %2383
        %2385 = vrot.lane.b32.xlu0 %v1037, 116
        %v2386 = vpop.permute.xlu0 %2385
        %2387 = vrot.lane.b32.xlu0 %v1039, 116
        %v2388 = vpop.permute.xlu0 %2387
        %2389 = vrot.lane.b32.xlu0 %v1042, 116
        %v2390 = vpop.permute.xlu0 %2389
        %2391 = vrot.lane.b32.xlu0 %v1044, 116
        %v2392 = vpop.permute.xlu0 %2391
        %2393 = vrot.lane.b32.xlu0 %v1047, 116
        %v2394 = vpop.permute.xlu0 %2393
        %2395 = vrot.lane.b32.xlu0 %v1049, 116
        %v2396 = vpop.permute.xlu0 %2395
        %2397 = vrot.lane.b32.xlu0 %v1052, 116
        %v2398 = vpop.permute.xlu0 %2397
        %2399 = vrot.lane.b32.xlu0 %v1054, 116
        %v2400 = vpop.permute.xlu0 %2399
        %2401 = vrot.lane.b32.xlu0 %v1057, 116
        %v2402 = vpop.permute.xlu0 %2401
        %2403 = vrot.lane.b32.xlu0 %v1059, 116
        %v2404 = vpop.permute.xlu0 %2403
        %2405 = vrot.lane.b32.xlu0 %v1062, 116
        %v2406 = vpop.permute.xlu0 %2405
        %2407 = vrot.lane.b32.xlu0 %v1064, 116
        %v2408 = vpop.permute.xlu0 %2407
        %2409 = vrot.lane.b32.xlu0 %v1067, 116
        %v2410 = vpop.permute.xlu0 %2409
        %2411 = vrot.lane.b32.xlu0 %v1069, 116
        %v2412 = vpop.permute.xlu0 %2411
        %2413 = vrot.lane.b32.xlu0 %v1072, 116
        %v2414 = vpop.permute.xlu0 %2413
        %2415 = vrot.lane.b32.xlu0 %v1074, 116
        %v2416 = vpop.permute.xlu0 %2415
        %2417 = vrot.lane.b32.xlu0 %v1077, 116
        %v2418 = vpop.permute.xlu0 %2417
        %2419 = vrot.lane.b32.xlu0 %v1079, 116
        %v2420 = vpop.permute.xlu0 %2419
        %2421 = vrot.lane.b32.xlu0 %v1082, 116
        %v2422 = vpop.permute.xlu0 %2421
        %2423 = vrot.lane.b32.xlu0 %v1084, 116
        %v2424 = vpop.permute.xlu0 %2423
        %2425 = vrot.lane.b32.xlu0 %v1087, 116
        %v2426 = vpop.permute.xlu0 %2425
        %2427 = vrot.lane.b32.xlu0 %v1089, 116
        %v2428 = vpop.permute.xlu0 %2427
        %2429 = vrot.lane.b32.xlu0 %v1092, 116
        %v2430 = vpop.permute.xlu0 %2429
        %2431 = vrot.lane.b32.xlu0 %v1094, 116
        %v2432 = vpop.permute.xlu0 %2431
        %2433 = vrot.lane.b32.xlu0 %v1097, 116
        %v2434 = vpop.permute.xlu0 %2433
        %2435 = vrot.lane.b32.xlu0 %v1099, 116
        %v2436 = vpop.permute.xlu0 %2435
        %2437 = vrot.lane.b32.xlu0 %v1102, 116
        %v2438 = vpop.permute.xlu0 %2437
        %2439 = vrot.lane.b32.xlu0 %v1104, 116
        %v2440 = vpop.permute.xlu0 %2439
        %2441 = vrot.lane.b32.xlu0 %v1107, 116
        %v2442 = vpop.permute.xlu0 %2441
        %2443 = vrot.lane.b32.xlu0 %v1109, 116
        %v2444 = vpop.permute.xlu0 %2443
        %v2477 = vadd.f32 %v2349, %v2382
        %v2478 = vadd.f32 %v2350, %v2384
        %v2479 = vadd.f32 %v2351, %v2386
        %v2480 = vadd.f32 %v2352, %v2388
        %v2481 = vadd.f32 %v2353, %v2390
        %v2482 = vadd.f32 %v2354, %v2392
        %v2483 = vadd.f32 %v2355, %v2394
        %v2484 = vadd.f32 %v2356, %v2396
        %v2485 = vadd.f32 %v2357, %v2398
        %v2486 = vadd.f32 %v2358, %v2400
        %v2487 = vadd.f32 %v2359, %v2402
        %v2488 = vadd.f32 %v2360, %v2404
        %v2489 = vadd.f32 %v2361, %v2406
        %v2490 = vadd.f32 %v2362, %v2408
        %v2491 = vadd.f32 %v2363, %v2410
        %v2492 = vadd.f32 %v2364, %v2412
        %v2493 = vadd.f32 %v2365, %v2414
        %v2494 = vadd.f32 %v2366, %v2416
        %v2495 = vadd.f32 %v2367, %v2418
        %v2496 = vadd.f32 %v2368, %v2420
        %v2497 = vadd.f32 %v2369, %v2422
        %v2498 = vadd.f32 %v2370, %v2424
        %v2499 = vadd.f32 %v2371, %v2426
        %v2500 = vadd.f32 %v2372, %v2428
        %v2501 = vadd.f32 %v2373, %v2430
        %v2502 = vadd.f32 %v2374, %v2432
        %v2503 = vadd.f32 %v2375, %v2434
        %v2504 = vadd.f32 %v2376, %v2436
        %v2505 = vadd.f32 %v2377, %v2438
        %v2506 = vadd.f32 %v2378, %v2440
        %v2507 = vadd.f32 %v2379, %v2442
        %v2508 = vadd.f32 %v2380, %v2444
        %v2509 = vrot.slane %v1109, 1
        %v2510 = vsel %vm1739, %v1799, %v2509
        %v2543 = vsel %vm1739, %v2509, 0.0
        %2544 = vset.pattern.permute.xlu0 5
        %2545 = vperm.xlu0 %2544, %v1232
        %v2546 = vpop.permute.xlu0 %2545
        %2548 = vset.pattern.permute.xlu0 5
        %2549 = vperm.xlu0 %2548, %v1233
        %v2550 = vpop.permute.xlu0 %2549
        %2552 = vset.pattern.permute.xlu0 5
        %2553 = vperm.xlu0 %2552, %v1234
        %v2554 = vpop.permute.xlu0 %2553
        %2556 = vset.pattern.permute.xlu0 5
        %2557 = vperm.xlu0 %2556, %v1235
        %v2558 = vpop.permute.xlu0 %2557
        %2560 = vset.pattern.permute.xlu0 5
        %2561 = vperm.xlu0 %2560, %v1236
        %v2562 = vpop.permute.xlu0 %2561
        %2564 = vset.pattern.permute.xlu0 5
        %2565 = vperm.xlu0 %2564, %v1237
        %v2566 = vpop.permute.xlu0 %2565
        %2568 = vset.pattern.permute.xlu0 5
        %2569 = vperm.xlu0 %2568, %v1238
        %v2570 = vpop.permute.xlu0 %2569
        %2572 = vset.pattern.permute.xlu0 5
        %2573 = vperm.xlu0 %2572, %v1239
        %v2574 = vpop.permute.xlu0 %2573
        %2576 = vset.pattern.permute.xlu0 5
        %2577 = vperm.xlu0 %2576, %v1240
        %v2578 = vpop.permute.xlu0 %2577
        %2580 = vset.pattern.permute.xlu0 5
        %2581 = vperm.xlu0 %2580, %v1241
        %v2582 = vpop.permute.xlu0 %2581
        %2584 = vset.pattern.permute.xlu0 5
        %2585 = vperm.xlu0 %2584, %v1242
        %v2586 = vpop.permute.xlu0 %2585
        %2588 = vset.pattern.permute.xlu0 5
        %2589 = vperm.xlu0 %2588, %v1243
        %v2590 = vpop.permute.xlu0 %2589
        %2592 = vset.pattern.permute.xlu0 5
        %2593 = vperm.xlu0 %2592, %v1244
        %v2594 = vpop.permute.xlu0 %2593
        %2596 = vset.pattern.permute.xlu0 5
        %2597 = vperm.xlu0 %2596, %v1245
        %v2598 = vpop.permute.xlu0 %2597
        %2600 = vset.pattern.permute.xlu0 5
        %2601 = vperm.xlu0 %2600, %v1246
        %v2602 = vpop.permute.xlu0 %2601
        %2604 = vset.pattern.permute.xlu0 5
        %2605 = vperm.xlu0 %2604, %v1247
        %v2606 = vpop.permute.xlu0 %2605
        %2608 = vset.pattern.permute.xlu0 5
        %2609 = vperm.xlu0 %2608, %v1248
        %v2610 = vpop.permute.xlu0 %2609
        %2612 = vset.pattern.permute.xlu0 5
        %2613 = vperm.xlu0 %2612, %v1249
        %v2614 = vpop.permute.xlu0 %2613
        %2616 = vset.pattern.permute.xlu0 5
        %2617 = vperm.xlu0 %2616, %v1250
        %v2618 = vpop.permute.xlu0 %2617
        %2620 = vset.pattern.permute.xlu0 5
        %2621 = vperm.xlu0 %2620, %v1251
        %v2622 = vpop.permute.xlu0 %2621
        %2624 = vset.pattern.permute.xlu0 5
        %2625 = vperm.xlu0 %2624, %v1252
        %v2626 = vpop.permute.xlu0 %2625
        %2628 = vset.pattern.permute.xlu0 5
        %2629 = vperm.xlu0 %2628, %v1253
        %v2630 = vpop.permute.xlu0 %2629
        %2632 = vset.pattern.permute.xlu0 5
        %2633 = vperm.xlu0 %2632, %v1254
        %v2634 = vpop.permute.xlu0 %2633
        %2636 = vset.pattern.permute.xlu0 5
        %2637 = vperm.xlu0 %2636, %v1255
        %v2638 = vpop.permute.xlu0 %2637
        %2640 = vset.pattern.permute.xlu0 5
        %2641 = vperm.xlu0 %2640, %v1256
        %v2642 = vpop.permute.xlu0 %2641
        %2644 = vset.pattern.permute.xlu0 5
        %2645 = vperm.xlu0 %2644, %v1257
        %v2646 = vpop.permute.xlu0 %2645
        %2648 = vset.pattern.permute.xlu0 5
        %2649 = vperm.xlu0 %2648, %v1258
        %v2650 = vpop.permute.xlu0 %2649
        %2652 = vset.pattern.permute.xlu0 5
        %2653 = vperm.xlu0 %2652, %v1259
        %v2654 = vpop.permute.xlu0 %2653
        %2656 = vset.pattern.permute.xlu0 5
        %2657 = vperm.xlu0 %2656, %v1260
        %v2658 = vpop.permute.xlu0 %2657
        %2660 = vset.pattern.permute.xlu0 5
        %2661 = vperm.xlu0 %2660, %v1261
        %v2662 = vpop.permute.xlu0 %2661
        %2664 = vset.pattern.permute.xlu0 5
        %2665 = vperm.xlu0 %2664, %v1262
        %v2666 = vpop.permute.xlu0 %2665
        %2668 = vset.pattern.permute.xlu0 5
        %2669 = vperm.xlu0 %2668, %v1263
        %v2670 = vpop.permute.xlu0 %2669
        %v2672 = vmul.f32 %v1742, %v2546
        %v2673 = vmul.f32 %v1744, %v2550
        %v2674 = vmul.f32 %v1746, %v2554
        %v2675 = vmul.f32 %v1748, %v2558
        %v2676 = vmul.f32 %v1750, %v2562
        %v2677 = vmul.f32 %v1752, %v2566
        %v2678 = vmul.f32 %v1754, %v2570
        %v2679 = vmul.f32 %v1756, %v2574
        %v2680 = vmul.f32 %v1758, %v2578
        %v2681 = vmul.f32 %v1760, %v2582
        %v2682 = vmul.f32 %v1762, %v2586
        %v2683 = vmul.f32 %v1764, %v2590
        %v2684 = vmul.f32 %v1766, %v2594
        %v2685 = vmul.f32 %v1768, %v2598
        %v2686 = vmul.f32 %v1770, %v2602
        %v2687 = vmul.f32 %v1772, %v2606
        %v2688 = vmul.f32 %v1774, %v2610
        %v2689 = vmul.f32 %v1776, %v2614
        %v2690 = vmul.f32 %v1778, %v2618
        %v2691 = vmul.f32 %v1780, %v2622
        %v2692 = vmul.f32 %v1782, %v2626
        %v2693 = vmul.f32 %v1784, %v2630
        %v2694 = vmul.f32 %v1786, %v2634
        %v2695 = vmul.f32 %v1788, %v2638
        %v2696 = vmul.f32 %v1790, %v2642
        %v2697 = vmul.f32 %v1792, %v2646
        %v2698 = vmul.f32 %v1794, %v2650
        %v2699 = vmul.f32 %v1796, %v2654
        %v2700 = vmul.f32 %v1798, %v2658
        %v2701 = vmul.f32 %v1800, %v2662
        %v2702 = vmul.f32 %v2510, %v2666
        %v2703 = vmul.f32 %v2543, %v2670
        %2736 = vrot.lane.b32.xlu0 %v2672, 113
        %v2737 = vpop.permute.xlu0 %2736
        %2738 = vrot.lane.b32.xlu0 %v2673, 113
        %v2739 = vpop.permute.xlu0 %2738
        %2740 = vrot.lane.b32.xlu0 %v2674, 113
        %v2741 = vpop.permute.xlu0 %2740
        %2742 = vrot.lane.b32.xlu0 %v2675, 113
        %v2743 = vpop.permute.xlu0 %2742
        %2744 = vrot.lane.b32.xlu0 %v2676, 113
        %v2745 = vpop.permute.xlu0 %2744
        %2746 = vrot.lane.b32.xlu0 %v2677, 113
        %v2747 = vpop.permute.xlu0 %2746
        %2748 = vrot.lane.b32.xlu0 %v2678, 113
        %v2749 = vpop.permute.xlu0 %2748
        %2750 = vrot.lane.b32.xlu0 %v2679, 113
        %v2751 = vpop.permute.xlu0 %2750
        %2752 = vrot.lane.b32.xlu0 %v2680, 113
        %v2753 = vpop.permute.xlu0 %2752
        %2754 = vrot.lane.b32.xlu0 %v2681, 113
        %v2755 = vpop.permute.xlu0 %2754
        %2756 = vrot.lane.b32.xlu0 %v2682, 113
        %v2757 = vpop.permute.xlu0 %2756
        %2758 = vrot.lane.b32.xlu0 %v2683, 113
        %v2759 = vpop.permute.xlu0 %2758
        %2760 = vrot.lane.b32.xlu0 %v2684, 113
        %v2761 = vpop.permute.xlu0 %2760
        %2762 = vrot.lane.b32.xlu0 %v2685, 113
        %v2763 = vpop.permute.xlu0 %2762
        %2764 = vrot.lane.b32.xlu0 %v2686, 113
        %v2765 = vpop.permute.xlu0 %2764
        %2766 = vrot.lane.b32.xlu0 %v2687, 113
        %v2767 = vpop.permute.xlu0 %2766
        %2768 = vrot.lane.b32.xlu0 %v2688, 113
        %v2769 = vpop.permute.xlu0 %2768
        %2770 = vrot.lane.b32.xlu0 %v2689, 113
        %v2771 = vpop.permute.xlu0 %2770
        %2772 = vrot.lane.b32.xlu0 %v2690, 113
        %v2773 = vpop.permute.xlu0 %2772
        %2774 = vrot.lane.b32.xlu0 %v2691, 113
        %v2775 = vpop.permute.xlu0 %2774
        %2776 = vrot.lane.b32.xlu0 %v2692, 113
        %v2777 = vpop.permute.xlu0 %2776
        %2778 = vrot.lane.b32.xlu0 %v2693, 113
        %v2779 = vpop.permute.xlu0 %2778
        %2780 = vrot.lane.b32.xlu0 %v2694, 113
        %v2781 = vpop.permute.xlu0 %2780
        %2782 = vrot.lane.b32.xlu0 %v2695, 113
        %v2783 = vpop.permute.xlu0 %2782
        %2784 = vrot.lane.b32.xlu0 %v2696, 113
        %v2785 = vpop.permute.xlu0 %2784
        %2786 = vrot.lane.b32.xlu0 %v2697, 113
        %v2787 = vpop.permute.xlu0 %2786
        %2788 = vrot.lane.b32.xlu0 %v2698, 113
        %v2789 = vpop.permute.xlu0 %2788
        %2790 = vrot.lane.b32.xlu0 %v2699, 113
        %v2791 = vpop.permute.xlu0 %2790
        %2792 = vrot.lane.b32.xlu0 %v2700, 113
        %v2793 = vpop.permute.xlu0 %2792
        %2794 = vrot.lane.b32.xlu0 %v2701, 113
        %v2795 = vpop.permute.xlu0 %2794
        %2796 = vrot.lane.b32.xlu0 %v2702, 113
        %v2797 = vpop.permute.xlu0 %2796
        %2798 = vrot.lane.b32.xlu0 %v2703, 113
        %v2799 = vpop.permute.xlu0 %2798
        %v2832 = vadd.f32 %v2477, %v2737
        %v2833 = vadd.f32 %v2478, %v2739
        %v2834 = vadd.f32 %v2479, %v2741
        %v2835 = vadd.f32 %v2480, %v2743
        %v2836 = vadd.f32 %v2481, %v2745
        %v2837 = vadd.f32 %v2482, %v2747
        %v2838 = vadd.f32 %v2483, %v2749
        %v2839 = vadd.f32 %v2484, %v2751
        %v2840 = vadd.f32 %v2485, %v2753
        %v2841 = vadd.f32 %v2486, %v2755
        %v2842 = vadd.f32 %v2487, %v2757
        %v2843 = vadd.f32 %v2488, %v2759
        %v2844 = vadd.f32 %v2489, %v2761
        %v2845 = vadd.f32 %v2490, %v2763
        %v2846 = vadd.f32 %v2491, %v2765
        %v2847 = vadd.f32 %v2492, %v2767
        %v2848 = vadd.f32 %v2493, %v2769
        %v2849 = vadd.f32 %v2494, %v2771
        %v2850 = vadd.f32 %v2495, %v2773
        %v2851 = vadd.f32 %v2496, %v2775
        %v2852 = vadd.f32 %v2497, %v2777
        %v2853 = vadd.f32 %v2498, %v2779
        %v2854 = vadd.f32 %v2499, %v2781
        %v2855 = vadd.f32 %v2500, %v2783
        %v2856 = vadd.f32 %v2501, %v2785
        %v2857 = vadd.f32 %v2502, %v2787
        %v2858 = vadd.f32 %v2503, %v2789
        %v2859 = vadd.f32 %v2504, %v2791
        %v2860 = vadd.f32 %v2505, %v2793
        %v2861 = vadd.f32 %v2506, %v2795
        %v2862 = vadd.f32 %v2507, %v2797
        %v2863 = vadd.f32 %v2508, %v2799
        %v2867 = vsel %vm1141, %v2090, 0.0
        %2868 = vset.pattern.permute.xlu0 6
        %2869 = vperm.xlu0 %2868, %v1232
        %v2870 = vpop.permute.xlu0 %2869
        %2872 = vset.pattern.permute.xlu0 6
        %2873 = vperm.xlu0 %2872, %v1233
        %v2874 = vpop.permute.xlu0 %2873
        %2876 = vset.pattern.permute.xlu0 6
        %2877 = vperm.xlu0 %2876, %v1234
        %v2878 = vpop.permute.xlu0 %2877
        %2880 = vset.pattern.permute.xlu0 6
        %2881 = vperm.xlu0 %2880, %v1235
        %v2882 = vpop.permute.xlu0 %2881
        %2884 = vset.pattern.permute.xlu0 6
        %2885 = vperm.xlu0 %2884, %v1236
        %v2886 = vpop.permute.xlu0 %2885
        %2888 = vset.pattern.permute.xlu0 6
        %2889 = vperm.xlu0 %2888, %v1237
        %v2890 = vpop.permute.xlu0 %2889
        %2892 = vset.pattern.permute.xlu0 6
        %2893 = vperm.xlu0 %2892, %v1238
        %v2894 = vpop.permute.xlu0 %2893
        %2896 = vset.pattern.permute.xlu0 6
        %2897 = vperm.xlu0 %2896, %v1239
        %v2898 = vpop.permute.xlu0 %2897
        %2900 = vset.pattern.permute.xlu0 6
        %2901 = vperm.xlu0 %2900, %v1240
        %v2902 = vpop.permute.xlu0 %2901
        %2904 = vset.pattern.permute.xlu0 6
        %2905 = vperm.xlu0 %2904, %v1241
        %v2906 = vpop.permute.xlu0 %2905
        %2908 = vset.pattern.permute.xlu0 6
        %2909 = vperm.xlu0 %2908, %v1242
        %v2910 = vpop.permute.xlu0 %2909
        %2912 = vset.pattern.permute.xlu0 6
        %2913 = vperm.xlu0 %2912, %v1243
        %v2914 = vpop.permute.xlu0 %2913
        %2916 = vset.pattern.permute.xlu0 6
        %2917 = vperm.xlu0 %2916, %v1244
        %v2918 = vpop.permute.xlu0 %2917
        %2920 = vset.pattern.permute.xlu0 6
        %2921 = vperm.xlu0 %2920, %v1245
        %v2922 = vpop.permute.xlu0 %2921
        %2924 = vset.pattern.permute.xlu0 6
        %2925 = vperm.xlu0 %2924, %v1246
        %v2926 = vpop.permute.xlu0 %2925
        %2928 = vset.pattern.permute.xlu0 6
        %2929 = vperm.xlu0 %2928, %v1247
        %v2930 = vpop.permute.xlu0 %2929
        %2932 = vset.pattern.permute.xlu0 6
        %2933 = vperm.xlu0 %2932, %v1248
        %v2934 = vpop.permute.xlu0 %2933
        %2936 = vset.pattern.permute.xlu0 6
        %2937 = vperm.xlu0 %2936, %v1249
        %v2938 = vpop.permute.xlu0 %2937
        %2940 = vset.pattern.permute.xlu0 6
        %2941 = vperm.xlu0 %2940, %v1250
        %v2942 = vpop.permute.xlu0 %2941
        %2944 = vset.pattern.permute.xlu0 6
        %2945 = vperm.xlu0 %2944, %v1251
        %v2946 = vpop.permute.xlu0 %2945
        %2948 = vset.pattern.permute.xlu0 6
        %2949 = vperm.xlu0 %2948, %v1252
        %v2950 = vpop.permute.xlu0 %2949
        %2952 = vset.pattern.permute.xlu0 6
        %2953 = vperm.xlu0 %2952, %v1253
        %v2954 = vpop.permute.xlu0 %2953
        %2956 = vset.pattern.permute.xlu0 6
        %2957 = vperm.xlu0 %2956, %v1254
        %v2958 = vpop.permute.xlu0 %2957
        %2960 = vset.pattern.permute.xlu0 6
        %2961 = vperm.xlu0 %2960, %v1255
        %v2962 = vpop.permute.xlu0 %2961
        %2964 = vset.pattern.permute.xlu0 6
        %2965 = vperm.xlu0 %2964, %v1256
        %v2966 = vpop.permute.xlu0 %2965
        %2968 = vset.pattern.permute.xlu0 6
        %2969 = vperm.xlu0 %2968, %v1257
        %v2970 = vpop.permute.xlu0 %2969
        %2972 = vset.pattern.permute.xlu0 6
        %2973 = vperm.xlu0 %2972, %v1258
        %v2974 = vpop.permute.xlu0 %2973
        %2976 = vset.pattern.permute.xlu0 6
        %2977 = vperm.xlu0 %2976, %v1259
        %v2978 = vpop.permute.xlu0 %2977
        %2980 = vset.pattern.permute.xlu0 6
        %2981 = vperm.xlu0 %2980, %v1260
        %v2982 = vpop.permute.xlu0 %2981
        %2984 = vset.pattern.permute.xlu0 6
        %2985 = vperm.xlu0 %2984, %v1261
        %v2986 = vpop.permute.xlu0 %2985
        %2988 = vset.pattern.permute.xlu0 6
        %2989 = vperm.xlu0 %2988, %v1262
        %v2990 = vpop.permute.xlu0 %2989
        %2992 = vset.pattern.permute.xlu0 6
        %2993 = vperm.xlu0 %2992, %v1263
        %v2994 = vpop.permute.xlu0 %2993
        %v2996 = vmul.f32 %v1146, %v2870
        %v2997 = vmul.f32 %v1148, %v2874
        %v2998 = vmul.f32 %v1150, %v2878
        %v2999 = vmul.f32 %v1152, %v2882
        %v3000 = vmul.f32 %v1154, %v2886
        %v3001 = vmul.f32 %v1156, %v2890
        %v3002 = vmul.f32 %v1158, %v2894
        %v3003 = vmul.f32 %v1160, %v2898
        %v3004 = vmul.f32 %v1162, %v2902
        %v3005 = vmul.f32 %v1164, %v2906
        %v3006 = vmul.f32 %v1166, %v2910
        %v3007 = vmul.f32 %v1168, %v2914
        %v3008 = vmul.f32 %v1170, %v2918
        %v3009 = vmul.f32 %v1172, %v2922
        %v3010 = vmul.f32 %v1174, %v2926
        %v3011 = vmul.f32 %v1176, %v2930
        %v3012 = vmul.f32 %v1178, %v2934
        %v3013 = vmul.f32 %v1180, %v2938
        %v3014 = vmul.f32 %v1182, %v2942
        %v3015 = vmul.f32 %v1184, %v2946
        %v3016 = vmul.f32 %v1186, %v2950
        %v3017 = vmul.f32 %v1188, %v2954
        %v3018 = vmul.f32 %v1190, %v2958
        %v3019 = vmul.f32 %v1192, %v2962
        %v3020 = vmul.f32 %v1194, %v2966
        %v3021 = vmul.f32 %v1196, %v2970
        %v3022 = vmul.f32 %v1198, %v2974
        %v3023 = vmul.f32 %v1200, %v2978
        %v3024 = vmul.f32 %v2089, %v2982
        %v3025 = vmul.f32 %v2091, %v2986
        %v3026 = vmul.f32 %v2867, %v2990
        %v3027 = vmul.f32 %v2994, 0.0
        %3060 = vrot.lane.b32.xlu0 %v2996, 110
        %v3061 = vpop.permute.xlu0 %3060
        %3062 = vrot.lane.b32.xlu0 %v2997, 110
        %v3063 = vpop.permute.xlu0 %3062
        %3064 = vrot.lane.b32.xlu0 %v2998, 110
        %v3065 = vpop.permute.xlu0 %3064
        %3066 = vrot.lane.b32.xlu0 %v2999, 110
        %v3067 = vpop.permute.xlu0 %3066
        %3068 = vrot.lane.b32.xlu0 %v3000, 110
        %v3069 = vpop.permute.xlu0 %3068
        %3070 = vrot.lane.b32.xlu0 %v3001, 110
        %v3071 = vpop.permute.xlu0 %3070
        %3072 = vrot.lane.b32.xlu0 %v3002, 110
        %v3073 = vpop.permute.xlu0 %3072
        %3074 = vrot.lane.b32.xlu0 %v3003, 110
        %v3075 = vpop.permute.xlu0 %3074
        %3076 = vrot.lane.b32.xlu0 %v3004, 110
        %v3077 = vpop.permute.xlu0 %3076
        %3078 = vrot.lane.b32.xlu0 %v3005, 110
        %v3079 = vpop.permute.xlu0 %3078
        %3080 = vrot.lane.b32.xlu0 %v3006, 110
        %v3081 = vpop.permute.xlu0 %3080
        %3082 = vrot.lane.b32.xlu0 %v3007, 110
        %v3083 = vpop.permute.xlu0 %3082
        %3084 = vrot.lane.b32.xlu0 %v3008, 110
        %v3085 = vpop.permute.xlu0 %3084
        %3086 = vrot.lane.b32.xlu0 %v3009, 110
        %v3087 = vpop.permute.xlu0 %3086
        %3088 = vrot.lane.b32.xlu0 %v3010, 110
        %v3089 = vpop.permute.xlu0 %3088
        %3090 = vrot.lane.b32.xlu0 %v3011, 110
        %v3091 = vpop.permute.xlu0 %3090
        %3092 = vrot.lane.b32.xlu0 %v3012, 110
        %v3093 = vpop.permute.xlu0 %3092
        %3094 = vrot.lane.b32.xlu0 %v3013, 110
        %v3095 = vpop.permute.xlu0 %3094
        %3096 = vrot.lane.b32.xlu0 %v3014, 110
        %v3097 = vpop.permute.xlu0 %3096
        %3098 = vrot.lane.b32.xlu0 %v3015, 110
        %v3099 = vpop.permute.xlu0 %3098
        %3100 = vrot.lane.b32.xlu0 %v3016, 110
        %v3101 = vpop.permute.xlu0 %3100
        %3102 = vrot.lane.b32.xlu0 %v3017, 110
        %v3103 = vpop.permute.xlu0 %3102
        %3104 = vrot.lane.b32.xlu0 %v3018, 110
        %v3105 = vpop.permute.xlu0 %3104
        %3106 = vrot.lane.b32.xlu0 %v3019, 110
        %v3107 = vpop.permute.xlu0 %3106
        %3108 = vrot.lane.b32.xlu0 %v3020, 110
        %v3109 = vpop.permute.xlu0 %3108
        %3110 = vrot.lane.b32.xlu0 %v3021, 110
        %v3111 = vpop.permute.xlu0 %3110
        %3112 = vrot.lane.b32.xlu0 %v3022, 110
        %v3113 = vpop.permute.xlu0 %3112
        %3114 = vrot.lane.b32.xlu0 %v3023, 110
        %v3115 = vpop.permute.xlu0 %3114
        %3116 = vrot.lane.b32.xlu0 %v3024, 110
        %v3117 = vpop.permute.xlu0 %3116
        %3118 = vrot.lane.b32.xlu0 %v3025, 110
        %v3119 = vpop.permute.xlu0 %3118
        %3120 = vrot.lane.b32.xlu0 %v3026, 110
        %v3121 = vpop.permute.xlu0 %3120
        %3122 = vrot.lane.b32.xlu0 %v3027, 110
        %v3123 = vpop.permute.xlu0 %3122
        %v3156 = vadd.f32 %v2832, %v3061
        %v3157 = vadd.f32 %v2833, %v3063
        %v3158 = vadd.f32 %v2834, %v3065
        %v3159 = vadd.f32 %v2835, %v3067
        %v3160 = vadd.f32 %v2836, %v3069
        %v3161 = vadd.f32 %v2837, %v3071
        %v3162 = vadd.f32 %v2838, %v3073
        %v3163 = vadd.f32 %v2839, %v3075
        %v3164 = vadd.f32 %v2840, %v3077
        %v3165 = vadd.f32 %v2841, %v3079
        %v3166 = vadd.f32 %v2842, %v3081
        %v3167 = vadd.f32 %v2843, %v3083
        %v3168 = vadd.f32 %v2844, %v3085
        %v3169 = vadd.f32 %v2845, %v3087
        %v3170 = vadd.f32 %v2846, %v3089
        %v3171 = vadd.f32 %v2847, %v3091
        %v3172 = vadd.f32 %v2848, %v3093
        %v3173 = vadd.f32 %v2849, %v3095
        %v3174 = vadd.f32 %v2850, %v3097
        %v3175 = vadd.f32 %v2851, %v3099
        %v3176 = vadd.f32 %v2852, %v3101
        %v3177 = vadd.f32 %v2853, %v3103
        %v3178 = vadd.f32 %v2854, %v3105
        %v3179 = vadd.f32 %v2855, %v3107
        %v3180 = vadd.f32 %v2856, %v3109
        %v3181 = vadd.f32 %v2857, %v3111
        %v3182 = vadd.f32 %v2858, %v3113
        %v3183 = vadd.f32 %v2859, %v3115
        %v3184 = vadd.f32 %v2860, %v3117
        %v3185 = vadd.f32 %v2861, %v3119
        %v3186 = vadd.f32 %v2862, %v3121
        %v3187 = vadd.f32 %v2863, %v3123
        %3188 = vset.pattern.permute.xlu0 7
        %3189 = vperm.xlu0 %3188, %v1232
        %v3190 = vpop.permute.xlu0 %3189
        %3192 = vset.pattern.permute.xlu0 7
        %3193 = vperm.xlu0 %3192, %v1233
        %v3194 = vpop.permute.xlu0 %3193
        %3196 = vset.pattern.permute.xlu0 7
        %3197 = vperm.xlu0 %3196, %v1234
        %v3198 = vpop.permute.xlu0 %3197
        %3200 = vset.pattern.permute.xlu0 7
        %3201 = vperm.xlu0 %3200, %v1235
        %v3202 = vpop.permute.xlu0 %3201
        %3204 = vset.pattern.permute.xlu0 7
        %3205 = vperm.xlu0 %3204, %v1236
        %v3206 = vpop.permute.xlu0 %3205
        %3208 = vset.pattern.permute.xlu0 7
        %3209 = vperm.xlu0 %3208, %v1237
        %v3210 = vpop.permute.xlu0 %3209
        %3212 = vset.pattern.permute.xlu0 7
        %3213 = vperm.xlu0 %3212, %v1238
        %v3214 = vpop.permute.xlu0 %3213
        %3216 = vset.pattern.permute.xlu0 7
        %3217 = vperm.xlu0 %3216, %v1239
        %v3218 = vpop.permute.xlu0 %3217
        %3220 = vset.pattern.permute.xlu0 7
        %3221 = vperm.xlu0 %3220, %v1240
        %v3222 = vpop.permute.xlu0 %3221
        %3224 = vset.pattern.permute.xlu0 7
        %3225 = vperm.xlu0 %3224, %v1241
        %v3226 = vpop.permute.xlu0 %3225
        %3228 = vset.pattern.permute.xlu0 7
        %3229 = vperm.xlu0 %3228, %v1242
        %v3230 = vpop.permute.xlu0 %3229
        %3232 = vset.pattern.permute.xlu0 7
        %3233 = vperm.xlu0 %3232, %v1243
        %v3234 = vpop.permute.xlu0 %3233
        %3236 = vset.pattern.permute.xlu0 7
        %3237 = vperm.xlu0 %3236, %v1244
        %v3238 = vpop.permute.xlu0 %3237
        %3240 = vset.pattern.permute.xlu0 7
        %3241 = vperm.xlu0 %3240, %v1245
        %v3242 = vpop.permute.xlu0 %3241
        %3244 = vset.pattern.permute.xlu0 7
        %3245 = vperm.xlu0 %3244, %v1246
        %v3246 = vpop.permute.xlu0 %3245
        %3248 = vset.pattern.permute.xlu0 7
        %3249 = vperm.xlu0 %3248, %v1247
        %v3250 = vpop.permute.xlu0 %3249
        %3252 = vset.pattern.permute.xlu0 7
        %3253 = vperm.xlu0 %3252, %v1248
        %v3254 = vpop.permute.xlu0 %3253
        %3256 = vset.pattern.permute.xlu0 7
        %3257 = vperm.xlu0 %3256, %v1249
        %v3258 = vpop.permute.xlu0 %3257
        %3260 = vset.pattern.permute.xlu0 7
        %3261 = vperm.xlu0 %3260, %v1250
        %v3262 = vpop.permute.xlu0 %3261
        %3264 = vset.pattern.permute.xlu0 7
        %3265 = vperm.xlu0 %3264, %v1251
        %v3266 = vpop.permute.xlu0 %3265
        %3268 = vset.pattern.permute.xlu0 7
        %3269 = vperm.xlu0 %3268, %v1252
        %v3270 = vpop.permute.xlu0 %3269
        %3272 = vset.pattern.permute.xlu0 7
        %3273 = vperm.xlu0 %3272, %v1253
        %v3274 = vpop.permute.xlu0 %3273
        %3276 = vset.pattern.permute.xlu0 7
        %3277 = vperm.xlu0 %3276, %v1254
        %v3278 = vpop.permute.xlu0 %3277
        %3280 = vset.pattern.permute.xlu0 7
        %3281 = vperm.xlu0 %3280, %v1255
        %v3282 = vpop.permute.xlu0 %3281
        %3284 = vset.pattern.permute.xlu0 7
        %3285 = vperm.xlu0 %3284, %v1256
        %v3286 = vpop.permute.xlu0 %3285
        %3288 = vset.pattern.permute.xlu0 7
        %3289 = vperm.xlu0 %3288, %v1257
        %v3290 = vpop.permute.xlu0 %3289
        %3292 = vset.pattern.permute.xlu0 7
        %3293 = vperm.xlu0 %3292, %v1258
        %v3294 = vpop.permute.xlu0 %3293
        %3296 = vset.pattern.permute.xlu0 7
        %3297 = vperm.xlu0 %3296, %v1259
        %v3298 = vpop.permute.xlu0 %3297
        %3300 = vset.pattern.permute.xlu0 7
        %3301 = vperm.xlu0 %3300, %v1260
        %v3302 = vpop.permute.xlu0 %3301
        %3304 = vset.pattern.permute.xlu0 7
        %3305 = vperm.xlu0 %3304, %v1261
        %v3306 = vpop.permute.xlu0 %3305
        %3308 = vset.pattern.permute.xlu0 7
        %3309 = vperm.xlu0 %3308, %v1262
        %v3310 = vpop.permute.xlu0 %3309
        %3312 = vset.pattern.permute.xlu0 7
        %3313 = vperm.xlu0 %3312, %v1263
        %v3314 = vpop.permute.xlu0 %3313
        %v3316 = vmul.f32 %v1037, %v3190
        %v3317 = vmul.f32 %v1039, %v3194
        %v3318 = vmul.f32 %v1042, %v3198
        %v3319 = vmul.f32 %v1044, %v3202
        %v3320 = vmul.f32 %v1047, %v3206
        %v3321 = vmul.f32 %v1049, %v3210
        %v3322 = vmul.f32 %v1052, %v3214
        %v3323 = vmul.f32 %v1054, %v3218
        %v3324 = vmul.f32 %v1057, %v3222
        %v3325 = vmul.f32 %v1059, %v3226
        %v3326 = vmul.f32 %v1062, %v3230
        %v3327 = vmul.f32 %v1064, %v3234
        %v3328 = vmul.f32 %v1067, %v3238
        %v3329 = vmul.f32 %v1069, %v3242
        %v3330 = vmul.f32 %v1072, %v3246
        %v3331 = vmul.f32 %v1074, %v3250
        %v3332 = vmul.f32 %v1077, %v3254
        %v3333 = vmul.f32 %v1079, %v3258
        %v3334 = vmul.f32 %v1082, %v3262
        %v3335 = vmul.f32 %v1084, %v3266
        %v3336 = vmul.f32 %v1087, %v3270
        %v3337 = vmul.f32 %v1089, %v3274
        %v3338 = vmul.f32 %v1092, %v3278
        %v3339 = vmul.f32 %v1094, %v3282
        %v3340 = vmul.f32 %v1097, %v3286
        %v3341 = vmul.f32 %v1099, %v3290
        %v3342 = vmul.f32 %v1102, %v3294
        %v3343 = vmul.f32 %v1104, %v3298
        %v3344 = vmul.f32 %v1107, %v3302
        %v3345 = vmul.f32 %v1109, %v3306
        %v3346 = vmul.f32 %v3310, 0.0
        %v3347 = vmul.f32 %v3314, 0.0
        %3380 = vrot.lane.b32.xlu0 %v3316, 107
        %v3381 = vpop.permute.xlu0 %3380
        %3382 = vrot.lane.b32.xlu0 %v3317, 107
        %v3383 = vpop.permute.xlu0 %3382
        %3384 = vrot.lane.b32.xlu0 %v3318, 107
        %v3385 = vpop.permute.xlu0 %3384
        %3386 = vrot.lane.b32.xlu0 %v3319, 107
        %v3387 = vpop.permute.xlu0 %3386
        %3388 = vrot.lane.b32.xlu0 %v3320, 107
        %v3389 = vpop.permute.xlu0 %3388
        %3390 = vrot.lane.b32.xlu0 %v3321, 107
        %v3391 = vpop.permute.xlu0 %3390
        %3392 = vrot.lane.b32.xlu0 %v3322, 107
        %v3393 = vpop.permute.xlu0 %3392
        %3394 = vrot.lane.b32.xlu0 %v3323, 107
        %v3395 = vpop.permute.xlu0 %3394
        %3396 = vrot.lane.b32.xlu0 %v3324, 107
        %v3397 = vpop.permute.xlu0 %3396
        %3398 = vrot.lane.b32.xlu0 %v3325, 107
        %v3399 = vpop.permute.xlu0 %3398
        %3400 = vrot.lane.b32.xlu0 %v3326, 107
        %v3401 = vpop.permute.xlu0 %3400
        %3402 = vrot.lane.b32.xlu0 %v3327, 107
        %v3403 = vpop.permute.xlu0 %3402
        %3404 = vrot.lane.b32.xlu0 %v3328, 107
        %v3405 = vpop.permute.xlu0 %3404
        %3406 = vrot.lane.b32.xlu0 %v3329, 107
        %v3407 = vpop.permute.xlu0 %3406
        %3408 = vrot.lane.b32.xlu0 %v3330, 107
        %v3409 = vpop.permute.xlu0 %3408
        %3410 = vrot.lane.b32.xlu0 %v3331, 107
        %v3411 = vpop.permute.xlu0 %3410
        %3412 = vrot.lane.b32.xlu0 %v3332, 107
        %v3413 = vpop.permute.xlu0 %3412
        %3414 = vrot.lane.b32.xlu0 %v3333, 107
        %v3415 = vpop.permute.xlu0 %3414
        %3416 = vrot.lane.b32.xlu0 %v3334, 107
        %v3417 = vpop.permute.xlu0 %3416
        %3418 = vrot.lane.b32.xlu0 %v3335, 107
        %v3419 = vpop.permute.xlu0 %3418
        %3420 = vrot.lane.b32.xlu0 %v3336, 107
        %v3421 = vpop.permute.xlu0 %3420
        %3422 = vrot.lane.b32.xlu0 %v3337, 107
        %v3423 = vpop.permute.xlu0 %3422
        %3424 = vrot.lane.b32.xlu0 %v3338, 107
        %v3425 = vpop.permute.xlu0 %3424
        %3426 = vrot.lane.b32.xlu0 %v3339, 107
        %v3427 = vpop.permute.xlu0 %3426
        %3428 = vrot.lane.b32.xlu0 %v3340, 107
        %v3429 = vpop.permute.xlu0 %3428
        %3430 = vrot.lane.b32.xlu0 %v3341, 107
        %v3431 = vpop.permute.xlu0 %3430
        %3432 = vrot.lane.b32.xlu0 %v3342, 107
        %v3433 = vpop.permute.xlu0 %3432
        %3434 = vrot.lane.b32.xlu0 %v3343, 107
        %v3435 = vpop.permute.xlu0 %3434
        %3436 = vrot.lane.b32.xlu0 %v3344, 107
        %v3437 = vpop.permute.xlu0 %3436
        %3438 = vrot.lane.b32.xlu0 %v3345, 107
        %v3439 = vpop.permute.xlu0 %3438
        %3440 = vrot.lane.b32.xlu0 %v3346, 107
        %v3441 = vpop.permute.xlu0 %3440
        %3442 = vrot.lane.b32.xlu0 %v3347, 107
        %v3443 = vpop.permute.xlu0 %3442
        %v3476 = vadd.f32 %v3156, %v3381
        %v3477 = vadd.f32 %v3157, %v3383
        %v3478 = vadd.f32 %v3158, %v3385
        %v3479 = vadd.f32 %v3159, %v3387
        %v3480 = vadd.f32 %v3160, %v3389
        %v3481 = vadd.f32 %v3161, %v3391
        %v3482 = vadd.f32 %v3162, %v3393
        %v3483 = vadd.f32 %v3163, %v3395
        %v3484 = vadd.f32 %v3164, %v3397
        %v3485 = vadd.f32 %v3165, %v3399
        %v3486 = vadd.f32 %v3166, %v3401
        %v3487 = vadd.f32 %v3167, %v3403
        %v3488 = vadd.f32 %v3168, %v3405
        %v3489 = vadd.f32 %v3169, %v3407
        %v3490 = vadd.f32 %v3170, %v3409
        %v3491 = vadd.f32 %v3171, %v3411
        %v3492 = vadd.f32 %v3172, %v3413
        %v3493 = vadd.f32 %v3173, %v3415
        %v3494 = vadd.f32 %v3174, %v3417
        %v3495 = vadd.f32 %v3175, %v3419
        %v3496 = vadd.f32 %v3176, %v3421
        %v3497 = vadd.f32 %v3177, %v3423
        %v3498 = vadd.f32 %v3178, %v3425
        %v3499 = vadd.f32 %v3179, %v3427
        %v3500 = vadd.f32 %v3180, %v3429
        %v3501 = vadd.f32 %v3181, %v3431
        %v3502 = vadd.f32 %v3182, %v3433
        %v3503 = vadd.f32 %v3183, %v3435
        %v3504 = vadd.f32 %v3184, %v3437
        %v3505 = vadd.f32 %v3185, %v3439
        %v3506 = vadd.f32 %v3186, %v3441
        %v3507 = vadd.f32 %v3187, %v3443
        %3508 = vset.pattern.permute.xlu0 8
        %3509 = vperm.xlu0 %3508, %v1232
        %v3510 = vpop.permute.xlu0 %3509
        %3512 = vset.pattern.permute.xlu0 8
        %3513 = vperm.xlu0 %3512, %v1233
        %v3514 = vpop.permute.xlu0 %3513
        %3516 = vset.pattern.permute.xlu0 8
        %3517 = vperm.xlu0 %3516, %v1234
        %v3518 = vpop.permute.xlu0 %3517
        %3520 = vset.pattern.permute.xlu0 8
        %3521 = vperm.xlu0 %3520, %v1235
        %v3522 = vpop.permute.xlu0 %3521
        %3524 = vset.pattern.permute.xlu0 8
        %3525 = vperm.xlu0 %3524, %v1236
        %v3526 = vpop.permute.xlu0 %3525
        %3528 = vset.pattern.permute.xlu0 8
        %3529 = vperm.xlu0 %3528, %v1237
        %v3530 = vpop.permute.xlu0 %3529
        %3532 = vset.pattern.permute.xlu0 8
        %3533 = vperm.xlu0 %3532, %v1238
        %v3534 = vpop.permute.xlu0 %3533
        %3536 = vset.pattern.permute.xlu0 8
        %3537 = vperm.xlu0 %3536, %v1239
        %v3538 = vpop.permute.xlu0 %3537
        %3540 = vset.pattern.permute.xlu0 8
        %3541 = vperm.xlu0 %3540, %v1240
        %v3542 = vpop.permute.xlu0 %3541
        %3544 = vset.pattern.permute.xlu0 8
        %3545 = vperm.xlu0 %3544, %v1241
        %v3546 = vpop.permute.xlu0 %3545
        %3548 = vset.pattern.permute.xlu0 8
        %3549 = vperm.xlu0 %3548, %v1242
        %v3550 = vpop.permute.xlu0 %3549
        %3552 = vset.pattern.permute.xlu0 8
        %3553 = vperm.xlu0 %3552, %v1243
        %v3554 = vpop.permute.xlu0 %3553
        %3556 = vset.pattern.permute.xlu0 8
        %3557 = vperm.xlu0 %3556, %v1244
        %v3558 = vpop.permute.xlu0 %3557
        %3560 = vset.pattern.permute.xlu0 8
        %3561 = vperm.xlu0 %3560, %v1245
        %v3562 = vpop.permute.xlu0 %3561
        %3564 = vset.pattern.permute.xlu0 8
        %3565 = vperm.xlu0 %3564, %v1246
        %v3566 = vpop.permute.xlu0 %3565
        %3568 = vset.pattern.permute.xlu0 8
        %3569 = vperm.xlu0 %3568, %v1247
        %v3570 = vpop.permute.xlu0 %3569
        %3572 = vset.pattern.permute.xlu0 8
        %3573 = vperm.xlu0 %3572, %v1248
        %v3574 = vpop.permute.xlu0 %3573
        %3576 = vset.pattern.permute.xlu0 8
        %3577 = vperm.xlu0 %3576, %v1249
        %v3578 = vpop.permute.xlu0 %3577
        %3580 = vset.pattern.permute.xlu0 8
        %3581 = vperm.xlu0 %3580, %v1250
        %v3582 = vpop.permute.xlu0 %3581
        %3584 = vset.pattern.permute.xlu0 8
        %3585 = vperm.xlu0 %3584, %v1251
        %v3586 = vpop.permute.xlu0 %3585
        %3588 = vset.pattern.permute.xlu0 8
        %3589 = vperm.xlu0 %3588, %v1252
        %v3590 = vpop.permute.xlu0 %3589
        %3592 = vset.pattern.permute.xlu0 8
        %3593 = vperm.xlu0 %3592, %v1253
        %v3594 = vpop.permute.xlu0 %3593
        %3596 = vset.pattern.permute.xlu0 8
        %3597 = vperm.xlu0 %3596, %v1254
        %v3598 = vpop.permute.xlu0 %3597
        %3600 = vset.pattern.permute.xlu0 8
        %3601 = vperm.xlu0 %3600, %v1255
        %v3602 = vpop.permute.xlu0 %3601
        %3604 = vset.pattern.permute.xlu0 8
        %3605 = vperm.xlu0 %3604, %v1256
        %v3606 = vpop.permute.xlu0 %3605
        %3608 = vset.pattern.permute.xlu0 8
        %3609 = vperm.xlu0 %3608, %v1257
        %v3610 = vpop.permute.xlu0 %3609
        %3612 = vset.pattern.permute.xlu0 8
        %3613 = vperm.xlu0 %3612, %v1258
        %v3614 = vpop.permute.xlu0 %3613
        %3616 = vset.pattern.permute.xlu0 8
        %3617 = vperm.xlu0 %3616, %v1259
        %v3618 = vpop.permute.xlu0 %3617
        %3620 = vset.pattern.permute.xlu0 8
        %3621 = vperm.xlu0 %3620, %v1260
        %v3622 = vpop.permute.xlu0 %3621
        %3624 = vset.pattern.permute.xlu0 8
        %3625 = vperm.xlu0 %3624, %v1261
        %v3626 = vpop.permute.xlu0 %3625
        %3628 = vset.pattern.permute.xlu0 8
        %3629 = vperm.xlu0 %3628, %v1262
        %v3630 = vpop.permute.xlu0 %3629
        %3632 = vset.pattern.permute.xlu0 8
        %3633 = vperm.xlu0 %3632, %v1263
        %v3634 = vpop.permute.xlu0 %3633
        %v3636 = vmul.f32 %v1746, %v3510
        %v3637 = vmul.f32 %v1748, %v3514
        %v3638 = vmul.f32 %v1750, %v3518
        %v3639 = vmul.f32 %v1752, %v3522
        %v3640 = vmul.f32 %v1754, %v3526
        %v3641 = vmul.f32 %v1756, %v3530
        %v3642 = vmul.f32 %v1758, %v3534
        %v3643 = vmul.f32 %v1760, %v3538
        %v3644 = vmul.f32 %v1762, %v3542
        %v3645 = vmul.f32 %v1764, %v3546
        %v3646 = vmul.f32 %v1766, %v3550
        %v3647 = vmul.f32 %v1768, %v3554
        %v3648 = vmul.f32 %v1770, %v3558
        %v3649 = vmul.f32 %v1772, %v3562
        %v3650 = vmul.f32 %v1774, %v3566
        %v3651 = vmul.f32 %v1776, %v3570
        %v3652 = vmul.f32 %v1778, %v3574
        %v3653 = vmul.f32 %v1780, %v3578
        %v3654 = vmul.f32 %v1782, %v3582
        %v3655 = vmul.f32 %v1784, %v3586
        %v3656 = vmul.f32 %v1786, %v3590
        %v3657 = vmul.f32 %v1788, %v3594
        %v3658 = vmul.f32 %v1790, %v3598
        %v3659 = vmul.f32 %v1792, %v3602
        %v3660 = vmul.f32 %v1794, %v3606
        %v3661 = vmul.f32 %v1796, %v3610
        %v3662 = vmul.f32 %v1798, %v3614
        %v3663 = vmul.f32 %v1800, %v3618
        %v3664 = vmul.f32 %v2510, %v3622
        %v3665 = vmul.f32 %v2543, %v3626
        %v3666 = vmul.f32 %v3630, 0.0
        %v3667 = vmul.f32 %v3634, 0.0
        %3700 = vrot.lane.b32.xlu0 %v3636, 104
        %v3701 = vpop.permute.xlu0 %3700
        %3702 = vrot.lane.b32.xlu0 %v3637, 104
        %v3703 = vpop.permute.xlu0 %3702
        %3704 = vrot.lane.b32.xlu0 %v3638, 104
        %v3705 = vpop.permute.xlu0 %3704
        %3706 = vrot.lane.b32.xlu0 %v3639, 104
        %v3707 = vpop.permute.xlu0 %3706
        %3708 = vrot.lane.b32.xlu0 %v3640, 104
        %v3709 = vpop.permute.xlu0 %3708
        %3710 = vrot.lane.b32.xlu0 %v3641, 104
        %v3711 = vpop.permute.xlu0 %3710
        %3712 = vrot.lane.b32.xlu0 %v3642, 104
        %v3713 = vpop.permute.xlu0 %3712
        %3714 = vrot.lane.b32.xlu0 %v3643, 104
        %v3715 = vpop.permute.xlu0 %3714
        %3716 = vrot.lane.b32.xlu0 %v3644, 104
        %v3717 = vpop.permute.xlu0 %3716
        %3718 = vrot.lane.b32.xlu0 %v3645, 104
        %v3719 = vpop.permute.xlu0 %3718
        %3720 = vrot.lane.b32.xlu0 %v3646, 104
        %v3721 = vpop.permute.xlu0 %3720
        %3722 = vrot.lane.b32.xlu0 %v3647, 104
        %v3723 = vpop.permute.xlu0 %3722
        %3724 = vrot.lane.b32.xlu0 %v3648, 104
        %v3725 = vpop.permute.xlu0 %3724
        %3726 = vrot.lane.b32.xlu0 %v3649, 104
        %v3727 = vpop.permute.xlu0 %3726
        %3728 = vrot.lane.b32.xlu0 %v3650, 104
        %v3729 = vpop.permute.xlu0 %3728
        %3730 = vrot.lane.b32.xlu0 %v3651, 104
        %v3731 = vpop.permute.xlu0 %3730
        %3732 = vrot.lane.b32.xlu0 %v3652, 104
        %v3733 = vpop.permute.xlu0 %3732
        %3734 = vrot.lane.b32.xlu0 %v3653, 104
        %v3735 = vpop.permute.xlu0 %3734
        %3736 = vrot.lane.b32.xlu0 %v3654, 104
        %v3737 = vpop.permute.xlu0 %3736
        %3738 = vrot.lane.b32.xlu0 %v3655, 104
        %v3739 = vpop.permute.xlu0 %3738
        %3740 = vrot.lane.b32.xlu0 %v3656, 104
        %v3741 = vpop.permute.xlu0 %3740
        %3742 = vrot.lane.b32.xlu0 %v3657, 104
        %v3743 = vpop.permute.xlu0 %3742
        %3744 = vrot.lane.b32.xlu0 %v3658, 104
        %v3745 = vpop.permute.xlu0 %3744
        %3746 = vrot.lane.b32.xlu0 %v3659, 104
        %v3747 = vpop.permute.xlu0 %3746
        %3748 = vrot.lane.b32.xlu0 %v3660, 104
        %v3749 = vpop.permute.xlu0 %3748
        %3750 = vrot.lane.b32.xlu0 %v3661, 104
        %v3751 = vpop.permute.xlu0 %3750
        %3752 = vrot.lane.b32.xlu0 %v3662, 104
        %v3753 = vpop.permute.xlu0 %3752
        %3754 = vrot.lane.b32.xlu0 %v3663, 104
        %v3755 = vpop.permute.xlu0 %3754
        %3756 = vrot.lane.b32.xlu0 %v3664, 104
        %v3757 = vpop.permute.xlu0 %3756
        %3758 = vrot.lane.b32.xlu0 %v3665, 104
        %v3759 = vpop.permute.xlu0 %3758
        %3760 = vrot.lane.b32.xlu0 %v3666, 104
        %v3761 = vpop.permute.xlu0 %3760
        %3762 = vrot.lane.b32.xlu0 %v3667, 104
        %v3763 = vpop.permute.xlu0 %3762
        %v3796 = vadd.f32 %v3476, %v3701
        %v3797 = vadd.f32 %v3477, %v3703
        %v3798 = vadd.f32 %v3478, %v3705
        %v3799 = vadd.f32 %v3479, %v3707
        %v3800 = vadd.f32 %v3480, %v3709
        %v3801 = vadd.f32 %v3481, %v3711
        %v3802 = vadd.f32 %v3482, %v3713
        %v3803 = vadd.f32 %v3483, %v3715
        %v3804 = vadd.f32 %v3484, %v3717
        %v3805 = vadd.f32 %v3485, %v3719
        %v3806 = vadd.f32 %v3486, %v3721
        %v3807 = vadd.f32 %v3487, %v3723
        %v3808 = vadd.f32 %v3488, %v3725
        %v3809 = vadd.f32 %v3489, %v3727
        %v3810 = vadd.f32 %v3490, %v3729
        %v3811 = vadd.f32 %v3491, %v3731
        %v3812 = vadd.f32 %v3492, %v3733
        %v3813 = vadd.f32 %v3493, %v3735
        %v3814 = vadd.f32 %v3494, %v3737
        %v3815 = vadd.f32 %v3495, %v3739
        %v3816 = vadd.f32 %v3496, %v3741
        %v3817 = vadd.f32 %v3497, %v3743
        %v3818 = vadd.f32 %v3498, %v3745
        %v3819 = vadd.f32 %v3499, %v3747
        %v3820 = vadd.f32 %v3500, %v3749
        %v3821 = vadd.f32 %v3501, %v3751
        %v3822 = vadd.f32 %v3502, %v3753
        %v3823 = vadd.f32 %v3503, %v3755
        %v3824 = vadd.f32 %v3504, %v3757
        %v3825 = vadd.f32 %v3505, %v3759
        %v3826 = vadd.f32 %v3506, %v3761
        %v3827 = vadd.f32 %v3507, %v3763
        %v3828 = vld [vmem:[%s5] sm:$0xff]
        %v3829 = vld [vmem:[%s5 + $0x8] sm:$0xff]
        %v3830 = vld [vmem:[%s5 + $0x10] sm:$0xff]
        %v3831 = vld [vmem:[%s5 + $0x18] sm:$0xff]
        %v3832 = vld [vmem:[%s5 + $0x20] sm:$0xff]
        %v3833 = vld [vmem:[%s5 + $0x28] sm:$0xff]
        %v3834 = vld [vmem:[%s5 + $0x30] sm:$0xff]
        %v3835 = vld [vmem:[%s5 + $0x38] sm:$0xff]
        %v3836 = vld [vmem:[%s5 + $0x40] sm:$0xff]
        %v3837 = vld [vmem:[%s5 + $0x48] sm:$0xff]
        %v3838 = vld [vmem:[%s5 + $0x50] sm:$0xff]
        %v3839 = vld [vmem:[%s5 + $0x58] sm:$0xff]
        %v3840 = vld [vmem:[%s5 + $0x60] sm:$0xff]
        %v3841 = vld [vmem:[%s5 + $0x68] sm:$0xff]
        %v3842 = vld [vmem:[%s5 + $0x70] sm:$0xff]
        %v3843 = vld [vmem:[%s5 + $0x78] sm:$0xff]
        %v3844 = vld [vmem:[%s5 + $0x80] sm:$0xff]
        %v3845 = vld [vmem:[%s5 + $0x88] sm:$0xff]
        %v3846 = vld [vmem:[%s5 + $0x90] sm:$0xff]
        %v3847 = vld [vmem:[%s5 + $0x98] sm:$0xff]
        %v3848 = vld [vmem:[%s5 + $0xa0] sm:$0xff]
        %v3849 = vld [vmem:[%s5 + $0xa8] sm:$0xff]
        %v3850 = vld [vmem:[%s5 + $0xb0] sm:$0xff]
        %v3851 = vld [vmem:[%s5 + $0xb8] sm:$0xff]
        %v3852 = vld [vmem:[%s5 + $0xc0] sm:$0xff]
        %v3853 = vld [vmem:[%s5 + $0xc8] sm:$0xff]
        %v3854 = vld [vmem:[%s5 + $0xd0] sm:$0xff]
        %v3855 = vld [vmem:[%s5 + $0xd8] sm:$0xff]
        %v3856 = vld [vmem:[%s5 + $0xe0] sm:$0xff]
        %v3857 = vld [vmem:[%s5 + $0xe8] sm:$0xff]
        %v3858 = vld [vmem:[%s5 + $0xf0] sm:$0xff]
        %v3859 = vld [vmem:[%s5 + $0xf8] sm:$0xff]
        %v3860 = vmul.f32 %v3796, 0.0625
        %v3861 = vmul.f32 %v3797, 0.0625
        %v3862 = vmul.f32 %v3798, 0.0625
        %v3863 = vmul.f32 %v3799, 0.0625
        %v3864 = vmul.f32 %v3800, 0.0625
        %v3865 = vmul.f32 %v3801, 0.0625
        %v3866 = vmul.f32 %v3802, 0.0625
        %v3867 = vmul.f32 %v3803, 0.0625
        %v3868 = vmul.f32 %v3804, 0.0625
        %v3869 = vmul.f32 %v3805, 0.0625
        %v3870 = vmul.f32 %v3806, 0.0625
        %v3871 = vmul.f32 %v3807, 0.0625
        %v3872 = vmul.f32 %v3808, 0.0625
        %v3873 = vmul.f32 %v3809, 0.0625
        %v3874 = vmul.f32 %v3810, 0.0625
        %v3875 = vmul.f32 %v3811, 0.0625
        %v3876 = vmul.f32 %v3812, 0.0625
        %v3877 = vmul.f32 %v3813, 0.0625
        %v3878 = vmul.f32 %v3814, 0.0625
        %v3879 = vmul.f32 %v3815, 0.0625
        %v3880 = vmul.f32 %v3816, 0.0625
        %v3881 = vmul.f32 %v3817, 0.0625
        %v3882 = vmul.f32 %v3818, 0.0625
        %v3883 = vmul.f32 %v3819, 0.0625
        %v3884 = vmul.f32 %v3820, 0.0625
        %v3885 = vmul.f32 %v3821, 0.0625
        %v3886 = vmul.f32 %v3822, 0.0625
        %v3887 = vmul.f32 %v3823, 0.0625
        %v3888 = vmul.f32 %v3824, 0.0625
        %v3889 = vmul.f32 %v3825, 0.0625
        %v3890 = vmul.f32 %v3826, 0.0625
        %v3891 = vmul.f32 %v3827, 0.0625
        %v3892 = vadd.f32 %v3828, %v3860
        %v3893 = vadd.f32 %v3829, %v3861
        %v3894 = vadd.f32 %v3830, %v3862
        %v3895 = vadd.f32 %v3831, %v3863
        %v3896 = vadd.f32 %v3832, %v3864
        %v3897 = vadd.f32 %v3833, %v3865
        %v3898 = vadd.f32 %v3834, %v3866
        %v3899 = vadd.f32 %v3835, %v3867
        %v3900 = vadd.f32 %v3836, %v3868
        %v3901 = vadd.f32 %v3837, %v3869
        %v3902 = vadd.f32 %v3838, %v3870
        %v3903 = vadd.f32 %v3839, %v3871
        %v3904 = vadd.f32 %v3840, %v3872
        %v3905 = vadd.f32 %v3841, %v3873
        %v3906 = vadd.f32 %v3842, %v3874
        %v3907 = vadd.f32 %v3843, %v3875
        %v3908 = vadd.f32 %v3844, %v3876
        %v3909 = vadd.f32 %v3845, %v3877
        %v3910 = vadd.f32 %v3846, %v3878
        %v3911 = vadd.f32 %v3847, %v3879
        %v3912 = vadd.f32 %v3848, %v3880
        %v3913 = vadd.f32 %v3849, %v3881
        %v3914 = vadd.f32 %v3850, %v3882
        %v3915 = vadd.f32 %v3851, %v3883
        %v3916 = vadd.f32 %v3852, %v3884
        %v3917 = vadd.f32 %v3853, %v3885
        %v3918 = vadd.f32 %v3854, %v3886
        %v3919 = vadd.f32 %v3855, %v3887
        %v3920 = vadd.f32 %v3856, %v3888
        %v3921 = vadd.f32 %v3857, %v3889
        %v3922 = vadd.f32 %v3858, %v3890
        %v3923 = vadd.f32 %v3859, %v3891
        %v3924 = vadd.f32 %v3892, 1.0
        %v3925 = vadd.f32 %v3893, 1.0
        %v3926 = vadd.f32 %v3894, 1.0
        %v3927 = vadd.f32 %v3895, 1.0
        %v3928 = vadd.f32 %v3896, 1.0
        %v3929 = vadd.f32 %v3897, 1.0
        %v3930 = vadd.f32 %v3898, 1.0
        %v3931 = vadd.f32 %v3899, 1.0
        %v3932 = vadd.f32 %v3900, 1.0
        %v3933 = vadd.f32 %v3901, 1.0
        %v3934 = vadd.f32 %v3902, 1.0
        %v3935 = vadd.f32 %v3903, 1.0
        %v3936 = vadd.f32 %v3904, 1.0
        %v3937 = vadd.f32 %v3905, 1.0
        %v3938 = vadd.f32 %v3906, 1.0
        %v3939 = vadd.f32 %v3907, 1.0
        %v3940 = vadd.f32 %v3908, 1.0
        %v3941 = vadd.f32 %v3909, 1.0
        %v3942 = vadd.f32 %v3910, 1.0
        %v3943 = vadd.f32 %v3911, 1.0
        %v3944 = vadd.f32 %v3912, 1.0
        %v3945 = vadd.f32 %v3913, 1.0
        %v3946 = vadd.f32 %v3914, 1.0
        %v3947 = vadd.f32 %v3915, 1.0
        %v3948 = vadd.f32 %v3916, 1.0
        %v3949 = vadd.f32 %v3917, 1.0
        %v3950 = vadd.f32 %v3918, 1.0
        %v3951 = vadd.f32 %v3919, 1.0
        %v3952 = vadd.f32 %v3920, 1.0
        %v3953 = vadd.f32 %v3921, 1.0
        %v3954 = vadd.f32 %v3922, 1.0
        %v3955 = vadd.f32 %v3923, 1.0
        %v3956 = vmul.f32 %v3924, 8.0
        %v3957 = vmul.f32 %v3925, 8.0
        %v3958 = vmul.f32 %v3926, 8.0
        %v3959 = vmul.f32 %v3927, 8.0
        %v3960 = vmul.f32 %v3928, 8.0
        %v3961 = vmul.f32 %v3929, 8.0
        %v3962 = vmul.f32 %v3930, 8.0
        %v3963 = vmul.f32 %v3931, 8.0
        %v3964 = vmul.f32 %v3932, 8.0
        %v3965 = vmul.f32 %v3933, 8.0
        %v3966 = vmul.f32 %v3934, 8.0
        %v3967 = vmul.f32 %v3935, 8.0
        %v3968 = vmul.f32 %v3936, 8.0
        %v3969 = vmul.f32 %v3937, 8.0
        %v3970 = vmul.f32 %v3938, 8.0
        %v3971 = vmul.f32 %v3939, 8.0
        %v3972 = vmul.f32 %v3940, 8.0
        %v3973 = vmul.f32 %v3941, 8.0
        %v3974 = vmul.f32 %v3942, 8.0
        %v3975 = vmul.f32 %v3943, 8.0
        %v3976 = vmul.f32 %v3944, 8.0
        %v3977 = vmul.f32 %v3945, 8.0
        %v3978 = vmul.f32 %v3946, 8.0
        %v3979 = vmul.f32 %v3947, 8.0
        %v3980 = vmul.f32 %v3948, 8.0
        %v3981 = vmul.f32 %v3949, 8.0
        %v3982 = vmul.f32 %v3950, 8.0
        %v3983 = vmul.f32 %v3951, 8.0
        %v3984 = vmul.f32 %v3952, 8.0
        %v3985 = vmul.f32 %v3953, 8.0
        %v3986 = vmul.f32 %v3954, 8.0
        %v3987 = vmul.f32 %v3955, 8.0
        %v3988 = vsub.f32 %v3956, 1.0
        %v3989 = vsub.f32 %v3957, 1.0
        %v3990 = vsub.f32 %v3958, 1.0
        %v3991 = vsub.f32 %v3959, 1.0
        %v3992 = vsub.f32 %v3960, 1.0
        %v3993 = vsub.f32 %v3961, 1.0
        %v3994 = vsub.f32 %v3962, 1.0
        %v3995 = vsub.f32 %v3963, 1.0
        %v3996 = vsub.f32 %v3964, 1.0
        %v3997 = vsub.f32 %v3965, 1.0
        %v3998 = vsub.f32 %v3966, 1.0
        %v3999 = vsub.f32 %v3967, 1.0
        %v4000 = vsub.f32 %v3968, 1.0
        %v4001 = vsub.f32 %v3969, 1.0
        %v4002 = vsub.f32 %v3970, 1.0
        %v4003 = vsub.f32 %v3971, 1.0
        %v4004 = vsub.f32 %v3972, 1.0
        %v4005 = vsub.f32 %v3973, 1.0
        %v4006 = vsub.f32 %v3974, 1.0
        %v4007 = vsub.f32 %v3975, 1.0
        %v4008 = vsub.f32 %v3976, 1.0
        %v4009 = vsub.f32 %v3977, 1.0
        %v4010 = vsub.f32 %v3978, 1.0
        %v4011 = vsub.f32 %v3979, 1.0
        %v4012 = vsub.f32 %v3980, 1.0
        %v4013 = vsub.f32 %v3981, 1.0
        %v4014 = vsub.f32 %v3982, 1.0
        %v4015 = vsub.f32 %v3983, 1.0
        %v4016 = vsub.f32 %v3984, 1.0
        %v4017 = vsub.f32 %v3985, 1.0
        %v4018 = vsub.f32 %v3986, 1.0
        %v4019 = vsub.f32 %v3987, 1.0
        %v4020 = vmul.f32 %v3988, 0.5
        %v4021 = vmul.f32 %v3989, 0.5
        %v4022 = vmul.f32 %v3990, 0.5
        %v4023 = vmul.f32 %v3991, 0.5
        %v4024 = vmul.f32 %v3992, 0.5
        %v4025 = vmul.f32 %v3993, 0.5
        %v4026 = vmul.f32 %v3994, 0.5
        %v4027 = vmul.f32 %v3995, 0.5
        %v4028 = vmul.f32 %v3996, 0.5
        %v4029 = vmul.f32 %v3997, 0.5
        %v4030 = vmul.f32 %v3998, 0.5
        %v4031 = vmul.f32 %v3999, 0.5
        %v4032 = vmul.f32 %v4000, 0.5
        %v4033 = vmul.f32 %v4001, 0.5
        %v4034 = vmul.f32 %v4002, 0.5
        %v4035 = vmul.f32 %v4003, 0.5
        %v4036 = vmul.f32 %v4004, 0.5
        %v4037 = vmul.f32 %v4005, 0.5
        %v4038 = vmul.f32 %v4006, 0.5
        %v4039 = vmul.f32 %v4007, 0.5
        %v4040 = vmul.f32 %v4008, 0.5
        %v4041 = vmul.f32 %v4009, 0.5
        %v4042 = vmul.f32 %v4010, 0.5
        %v4043 = vmul.f32 %v4011, 0.5
        %v4044 = vmul.f32 %v4012, 0.5
        %v4045 = vmul.f32 %v4013, 0.5
        %v4046 = vmul.f32 %v4014, 0.5
        %v4047 = vmul.f32 %v4015, 0.5
        %v4048 = vmul.f32 %v4016, 0.5
        %v4049 = vmul.f32 %v4017, 0.5
        %v4050 = vmul.f32 %v4018, 0.5
        %v4051 = vmul.f32 %v4019, 0.5
        %v4052 = vfloor.f32 %v4020
        %v4053 = vfloor.f32 %v4021
        %v4054 = vfloor.f32 %v4022
        %v4055 = vfloor.f32 %v4023
        %v4056 = vfloor.f32 %v4024
        %v4057 = vfloor.f32 %v4025
        %v4058 = vfloor.f32 %v4026
        %v4059 = vfloor.f32 %v4027
        %v4060 = vfloor.f32 %v4028
        %v4061 = vfloor.f32 %v4029
        %v4062 = vfloor.f32 %v4030
        %v4063 = vfloor.f32 %v4031
        %v4064 = vfloor.f32 %v4032
        %v4065 = vfloor.f32 %v4033
        %v4066 = vfloor.f32 %v4034
        %v4067 = vfloor.f32 %v4035
        %v4068 = vfloor.f32 %v4036
        %v4069 = vfloor.f32 %v4037
        %v4070 = vfloor.f32 %v4038
        %v4071 = vfloor.f32 %v4039
        %v4072 = vfloor.f32 %v4040
        %v4073 = vfloor.f32 %v4041
        %v4074 = vfloor.f32 %v4042
        %v4075 = vfloor.f32 %v4043
        %v4076 = vfloor.f32 %v4044
        %v4077 = vfloor.f32 %v4045
        %v4078 = vfloor.f32 %v4046
        %v4079 = vfloor.f32 %v4047
        %v4080 = vfloor.f32 %v4048
        %v4081 = vfloor.f32 %v4049
        %v4082 = vfloor.f32 %v4050
        %v4083 = vfloor.f32 %v4051
        %v4084 = vsub.f32 %v4020, %v4052
        %v4085 = vsub.f32 %v4021, %v4053
        %v4086 = vsub.f32 %v4022, %v4054
        %v4087 = vsub.f32 %v4023, %v4055
        %v4088 = vsub.f32 %v4024, %v4056
        %v4089 = vsub.f32 %v4025, %v4057
        %v4090 = vsub.f32 %v4026, %v4058
        %v4091 = vsub.f32 %v4027, %v4059
        %v4092 = vsub.f32 %v4028, %v4060
        %v4093 = vsub.f32 %v4029, %v4061
        %v4094 = vsub.f32 %v4030, %v4062
        %v4095 = vsub.f32 %v4031, %v4063
        %v4096 = vsub.f32 %v4032, %v4064
        %v4097 = vsub.f32 %v4033, %v4065
        %v4098 = vsub.f32 %v4034, %v4066
        %v4099 = vsub.f32 %v4035, %v4067
        %v4100 = vsub.f32 %v4036, %v4068
        %v4101 = vsub.f32 %v4037, %v4069
        %v4102 = vsub.f32 %v4038, %v4070
        %v4103 = vsub.f32 %v4039, %v4071
        %v4104 = vsub.f32 %v4040, %v4072
        %v4105 = vsub.f32 %v4041, %v4073
        %v4106 = vsub.f32 %v4042, %v4074
        %v4107 = vsub.f32 %v4043, %v4075
        %v4108 = vsub.f32 %v4044, %v4076
        %v4109 = vsub.f32 %v4045, %v4077
        %v4110 = vsub.f32 %v4046, %v4078
        %v4111 = vsub.f32 %v4047, %v4079
        %v4112 = vsub.f32 %v4048, %v4080
        %v4113 = vsub.f32 %v4049, %v4081
        %v4114 = vsub.f32 %v4050, %v4082
        %v4115 = vsub.f32 %v4051, %v4083
        %v4116 = vcvt.f32.s32.to.zero.pseudo %v4052
        %v4117 = vcvt.f32.s32.to.zero.pseudo %v4053
        %v4118 = vcvt.f32.s32.to.zero.pseudo %v4054
        %v4119 = vcvt.f32.s32.to.zero.pseudo %v4055
        %v4120 = vcvt.f32.s32.to.zero.pseudo %v4056
        %v4121 = vcvt.f32.s32.to.zero.pseudo %v4057
        %v4122 = vcvt.f32.s32.to.zero.pseudo %v4058
        %v4123 = vcvt.f32.s32.to.zero.pseudo %v4059
        %v4124 = vcvt.f32.s32.to.zero.pseudo %v4060
        %v4125 = vcvt.f32.s32.to.zero.pseudo %v4061
        %v4126 = vcvt.f32.s32.to.zero.pseudo %v4062
        %v4127 = vcvt.f32.s32.to.zero.pseudo %v4063
        %v4128 = vcvt.f32.s32.to.zero.pseudo %v4064
        %v4129 = vcvt.f32.s32.to.zero.pseudo %v4065
        %v4130 = vcvt.f32.s32.to.zero.pseudo %v4066
        %v4131 = vcvt.f32.s32.to.zero.pseudo %v4067
        %v4132 = vcvt.f32.s32.to.zero.pseudo %v4068
        %v4133 = vcvt.f32.s32.to.zero.pseudo %v4069
        %v4134 = vcvt.f32.s32.to.zero.pseudo %v4070
        %v4135 = vcvt.f32.s32.to.zero.pseudo %v4071
        %v4136 = vcvt.f32.s32.to.zero.pseudo %v4072
        %v4137 = vcvt.f32.s32.to.zero.pseudo %v4073
        %v4138 = vcvt.f32.s32.to.zero.pseudo %v4074
        %v4139 = vcvt.f32.s32.to.zero.pseudo %v4075
        %v4140 = vcvt.f32.s32.to.zero.pseudo %v4076
        %v4141 = vcvt.f32.s32.to.zero.pseudo %v4077
        %v4142 = vcvt.f32.s32.to.zero.pseudo %v4078
        %v4143 = vcvt.f32.s32.to.zero.pseudo %v4079
        %v4144 = vcvt.f32.s32.to.zero.pseudo %v4080
        %v4145 = vcvt.f32.s32.to.zero.pseudo %v4081
        %v4146 = vcvt.f32.s32.to.zero.pseudo %v4082
        %v4147 = vcvt.f32.s32.to.zero.pseudo %v4083
        %v4148 = vlaneseq
        %v4149 = vand.u32 %v4148, 127
        %4150 = vset.pattern.permute.xlu0 1
        %4151 = vperm.xlu0 %4150, %v4116
        %v4152 = vpop.permute.xlu0 %4151
        %4153 = vset.pattern.permute.xlu0 1
        %4154 = vperm.xlu0 %4153, %v4117
        %v4155 = vpop.permute.xlu0 %4154
        %4156 = vset.pattern.permute.xlu0 1
        %4157 = vperm.xlu0 %4156, %v4118
        %v4158 = vpop.permute.xlu0 %4157
        %4159 = vset.pattern.permute.xlu0 1
        %4160 = vperm.xlu0 %4159, %v4119
        %v4161 = vpop.permute.xlu0 %4160
        %4162 = vset.pattern.permute.xlu0 1
        %4163 = vperm.xlu0 %4162, %v4120
        %v4164 = vpop.permute.xlu0 %4163
        %4165 = vset.pattern.permute.xlu0 1
        %4166 = vperm.xlu0 %4165, %v4121
        %v4167 = vpop.permute.xlu0 %4166
        %4168 = vset.pattern.permute.xlu0 1
        %4169 = vperm.xlu0 %4168, %v4122
        %v4170 = vpop.permute.xlu0 %4169
        %4171 = vset.pattern.permute.xlu0 1
        %4172 = vperm.xlu0 %4171, %v4123
        %v4173 = vpop.permute.xlu0 %4172
        %4174 = vset.pattern.permute.xlu0 1
        %4175 = vperm.xlu0 %4174, %v4124
        %v4176 = vpop.permute.xlu0 %4175
        %4177 = vset.pattern.permute.xlu0 1
        %4178 = vperm.xlu0 %4177, %v4125
        %v4179 = vpop.permute.xlu0 %4178
        %4180 = vset.pattern.permute.xlu0 1
        %4181 = vperm.xlu0 %4180, %v4126
        %v4182 = vpop.permute.xlu0 %4181
        %4183 = vset.pattern.permute.xlu0 1
        %4184 = vperm.xlu0 %4183, %v4127
        %v4185 = vpop.permute.xlu0 %4184
        %4186 = vset.pattern.permute.xlu0 1
        %4187 = vperm.xlu0 %4186, %v4128
        %v4188 = vpop.permute.xlu0 %4187
        %4189 = vset.pattern.permute.xlu0 1
        %4190 = vperm.xlu0 %4189, %v4129
        %v4191 = vpop.permute.xlu0 %4190
        %4192 = vset.pattern.permute.xlu0 1
        %4193 = vperm.xlu0 %4192, %v4130
        %v4194 = vpop.permute.xlu0 %4193
        %4195 = vset.pattern.permute.xlu0 1
        %4196 = vperm.xlu0 %4195, %v4131
        %v4197 = vpop.permute.xlu0 %4196
        %4198 = vset.pattern.permute.xlu0 1
        %4199 = vperm.xlu0 %4198, %v4132
        %v4200 = vpop.permute.xlu0 %4199
        %4201 = vset.pattern.permute.xlu0 1
        %4202 = vperm.xlu0 %4201, %v4133
        %v4203 = vpop.permute.xlu0 %4202
        %4204 = vset.pattern.permute.xlu0 1
        %4205 = vperm.xlu0 %4204, %v4134
        %v4206 = vpop.permute.xlu0 %4205
        %4207 = vset.pattern.permute.xlu0 1
        %4208 = vperm.xlu0 %4207, %v4135
        %v4209 = vpop.permute.xlu0 %4208
        %4210 = vset.pattern.permute.xlu0 1
        %4211 = vperm.xlu0 %4210, %v4136
        %v4212 = vpop.permute.xlu0 %4211
        %4213 = vset.pattern.permute.xlu0 1
        %4214 = vperm.xlu0 %4213, %v4137
        %v4215 = vpop.permute.xlu0 %4214
        %4216 = vset.pattern.permute.xlu0 1
        %4217 = vperm.xlu0 %4216, %v4138
        %v4218 = vpop.permute.xlu0 %4217
        %4219 = vset.pattern.permute.xlu0 1
        %4220 = vperm.xlu0 %4219, %v4139
        %v4221 = vpop.permute.xlu0 %4220
        %4222 = vset.pattern.permute.xlu0 1
        %4223 = vperm.xlu0 %4222, %v4140
        %v4224 = vpop.permute.xlu0 %4223
        %4225 = vset.pattern.permute.xlu0 1
        %4226 = vperm.xlu0 %4225, %v4141
        %v4227 = vpop.permute.xlu0 %4226
        %4228 = vset.pattern.permute.xlu0 1
        %4229 = vperm.xlu0 %4228, %v4142
        %v4230 = vpop.permute.xlu0 %4229
        %4231 = vset.pattern.permute.xlu0 1
        %4232 = vperm.xlu0 %4231, %v4143
        %v4233 = vpop.permute.xlu0 %4232
        %4234 = vset.pattern.permute.xlu0 1
        %4235 = vperm.xlu0 %4234, %v4144
        %v4236 = vpop.permute.xlu0 %4235
        %4237 = vset.pattern.permute.xlu0 1
        %4238 = vperm.xlu0 %4237, %v4145
        %v4239 = vpop.permute.xlu0 %4238
        %4240 = vset.pattern.permute.xlu0 1
        %4241 = vperm.xlu0 %4240, %v4146
        %v4242 = vpop.permute.xlu0 %4241
        %4243 = vset.pattern.permute.xlu0 1
        %4244 = vperm.xlu0 %4243, %v4147
        %v4245 = vpop.permute.xlu0 %4244
        %vm4246 = vcmp.eq.s32.totalorder %v4149, %v4152
        %vm4247 = vcmp.eq.s32.totalorder %v4149, %v4155
        %vm4248 = vcmp.eq.s32.totalorder %v4149, %v4158
        %vm4249 = vcmp.eq.s32.totalorder %v4149, %v4161
        %vm4250 = vcmp.eq.s32.totalorder %v4149, %v4164
        %vm4251 = vcmp.eq.s32.totalorder %v4149, %v4167
        %vm4252 = vcmp.eq.s32.totalorder %v4149, %v4170
        %vm4253 = vcmp.eq.s32.totalorder %v4149, %v4173
        %vm4254 = vcmp.eq.s32.totalorder %v4149, %v4176
        %vm4255 = vcmp.eq.s32.totalorder %v4149, %v4179
        %vm4256 = vcmp.eq.s32.totalorder %v4149, %v4182
        %vm4257 = vcmp.eq.s32.totalorder %v4149, %v4185
        %vm4258 = vcmp.eq.s32.totalorder %v4149, %v4188
        %vm4259 = vcmp.eq.s32.totalorder %v4149, %v4191
        %vm4260 = vcmp.eq.s32.totalorder %v4149, %v4194
        %vm4261 = vcmp.eq.s32.totalorder %v4149, %v4197
        %vm4262 = vcmp.eq.s32.totalorder %v4149, %v4200
        %vm4263 = vcmp.eq.s32.totalorder %v4149, %v4203
        %vm4264 = vcmp.eq.s32.totalorder %v4149, %v4206
        %vm4265 = vcmp.eq.s32.totalorder %v4149, %v4209
        %vm4266 = vcmp.eq.s32.totalorder %v4149, %v4212
        %vm4267 = vcmp.eq.s32.totalorder %v4149, %v4215
        %vm4268 = vcmp.eq.s32.totalorder %v4149, %v4218
        %vm4269 = vcmp.eq.s32.totalorder %v4149, %v4221
        %vm4270 = vcmp.eq.s32.totalorder %v4149, %v4224
        %vm4271 = vcmp.eq.s32.totalorder %v4149, %v4227
        %vm4272 = vcmp.eq.s32.totalorder %v4149, %v4230
        %vm4273 = vcmp.eq.s32.totalorder %v4149, %v4233
        %vm4274 = vcmp.eq.s32.totalorder %v4149, %v4236
        %vm4275 = vcmp.eq.s32.totalorder %v4149, %v4239
        %vm4276 = vcmp.eq.s32.totalorder %v4149, %v4242
        %vm4277 = vcmp.eq.s32.totalorder %v4149, %v4245
        %v4278 = vsel %vm4246, 1, 0
        %v4279 = vsel %vm4247, 1, 0
        %v4280 = vsel %vm4248, 1, 0
        %v4281 = vsel %vm4249, 1, 0
        %v4282 = vsel %vm4250, 1, 0
        %v4283 = vsel %vm4251, 1, 0
        %v4284 = vsel %vm4252, 1, 0
        %v4285 = vsel %vm4253, 1, 0
        %v4286 = vsel %vm4254, 1, 0
        %v4287 = vsel %vm4255, 1, 0
        %v4288 = vsel %vm4256, 1, 0
        %v4289 = vsel %vm4257, 1, 0
        %v4290 = vsel %vm4258, 1, 0
        %v4291 = vsel %vm4259, 1, 0
        %v4292 = vsel %vm4260, 1, 0
        %v4293 = vsel %vm4261, 1, 0
        %v4294 = vsel %vm4262, 1, 0
        %v4295 = vsel %vm4263, 1, 0
        %v4296 = vsel %vm4264, 1, 0
        %v4297 = vsel %vm4265, 1, 0
        %v4298 = vsel %vm4266, 1, 0
        %v4299 = vsel %vm4267, 1, 0
        %v4300 = vsel %vm4268, 1, 0
        %v4301 = vsel %vm4269, 1, 0
        %v4302 = vsel %vm4270, 1, 0
        %v4303 = vsel %vm4271, 1, 0
        %v4304 = vsel %vm4272, 1, 0
        %v4305 = vsel %vm4273, 1, 0
        %v4306 = vsel %vm4274, 1, 0
        %v4307 = vsel %vm4275, 1, 0
        %v4308 = vsel %vm4276, 1, 0
        %v4309 = vsel %vm4277, 1, 0
        %v4310 = vcvt.s32.f32 %v4278
        %v4311 = vcvt.s32.f32 %v4279
        %v4312 = vcvt.s32.f32 %v4280
        %v4313 = vcvt.s32.f32 %v4281
        %v4314 = vcvt.s32.f32 %v4282
        %v4315 = vcvt.s32.f32 %v4283
        %v4316 = vcvt.s32.f32 %v4284
        %v4317 = vcvt.s32.f32 %v4285
        %v4318 = vcvt.s32.f32 %v4286
        %v4319 = vcvt.s32.f32 %v4287
        %v4320 = vcvt.s32.f32 %v4288
        %v4321 = vcvt.s32.f32 %v4289
        %v4322 = vcvt.s32.f32 %v4290
        %v4323 = vcvt.s32.f32 %v4291
        %v4324 = vcvt.s32.f32 %v4292
        %v4325 = vcvt.s32.f32 %v4293
        %v4326 = vcvt.s32.f32 %v4294
        %v4327 = vcvt.s32.f32 %v4295
        %v4328 = vcvt.s32.f32 %v4296
        %v4329 = vcvt.s32.f32 %v4297
        %v4330 = vcvt.s32.f32 %v4298
        %v4331 = vcvt.s32.f32 %v4299
        %v4332 = vcvt.s32.f32 %v4300
        %v4333 = vcvt.s32.f32 %v4301
        %v4334 = vcvt.s32.f32 %v4302
        %v4335 = vcvt.s32.f32 %v4303
        %v4336 = vcvt.s32.f32 %v4304
        %v4337 = vcvt.s32.f32 %v4305
        %v4338 = vcvt.s32.f32 %v4306
        %v4339 = vcvt.s32.f32 %v4307
        %v4340 = vcvt.s32.f32 %v4308
        %v4341 = vcvt.s32.f32 %v4309
        %v4342 = vsub.f32 1.0, %v4084
        %v4343 = vsub.f32 1.0, %v4085
        %v4344 = vsub.f32 1.0, %v4086
        %v4345 = vsub.f32 1.0, %v4087
        %v4346 = vsub.f32 1.0, %v4088
        %v4347 = vsub.f32 1.0, %v4089
        %v4348 = vsub.f32 1.0, %v4090
        %v4349 = vsub.f32 1.0, %v4091
        %v4350 = vsub.f32 1.0, %v4092
        %v4351 = vsub.f32 1.0, %v4093
        %v4352 = vsub.f32 1.0, %v4094
        %v4353 = vsub.f32 1.0, %v4095
        %v4354 = vsub.f32 1.0, %v4096
        %v4355 = vsub.f32 1.0, %v4097
        %v4356 = vsub.f32 1.0, %v4098
        %v4357 = vsub.f32 1.0, %v4099
        %v4358 = vsub.f32 1.0, %v4100
        %v4359 = vsub.f32 1.0, %v4101
        %v4360 = vsub.f32 1.0, %v4102
        %v4361 = vsub.f32 1.0, %v4103
        %v4362 = vsub.f32 1.0, %v4104
        %v4363 = vsub.f32 1.0, %v4105
        %v4364 = vsub.f32 1.0, %v4106
        %v4365 = vsub.f32 1.0, %v4107
        %v4366 = vsub.f32 1.0, %v4108
        %v4367 = vsub.f32 1.0, %v4109
        %v4368 = vsub.f32 1.0, %v4110
        %v4369 = vsub.f32 1.0, %v4111
        %v4370 = vsub.f32 1.0, %v4112
        %v4371 = vsub.f32 1.0, %v4113
        %v4372 = vsub.f32 1.0, %v4114
        %v4373 = vsub.f32 1.0, %v4115
        %4375 = vset.pattern.permute.xlu0 1
        %4376 = vperm.xlu0 %4375, %v4342
        %v4377 = vpop.permute.xlu0 %4376
        %4380 = vset.pattern.permute.xlu0 1
        %4381 = vperm.xlu0 %4380, %v4343
        %v4382 = vpop.permute.xlu0 %4381
        %4385 = vset.pattern.permute.xlu0 1
        %4386 = vperm.xlu0 %4385, %v4344
        %v4387 = vpop.permute.xlu0 %4386
        %4390 = vset.pattern.permute.xlu0 1
        %4391 = vperm.xlu0 %4390, %v4345
        %v4392 = vpop.permute.xlu0 %4391
        %4395 = vset.pattern.permute.xlu0 1
        %4396 = vperm.xlu0 %4395, %v4346
        %v4397 = vpop.permute.xlu0 %4396
        %4400 = vset.pattern.permute.xlu0 1
        %4401 = vperm.xlu0 %4400, %v4347
        %v4402 = vpop.permute.xlu0 %4401
        %4405 = vset.pattern.permute.xlu0 1
        %4406 = vperm.xlu0 %4405, %v4348
        %v4407 = vpop.permute.xlu0 %4406
        %4410 = vset.pattern.permute.xlu0 1
        %4411 = vperm.xlu0 %4410, %v4349
        %v4412 = vpop.permute.xlu0 %4411
        %4415 = vset.pattern.permute.xlu0 1
        %4416 = vperm.xlu0 %4415, %v4350
        %v4417 = vpop.permute.xlu0 %4416
        %4420 = vset.pattern.permute.xlu0 1
        %4421 = vperm.xlu0 %4420, %v4351
        %v4422 = vpop.permute.xlu0 %4421
        %4425 = vset.pattern.permute.xlu0 1
        %4426 = vperm.xlu0 %4425, %v4352
        %v4427 = vpop.permute.xlu0 %4426
        %4430 = vset.pattern.permute.xlu0 1
        %4431 = vperm.xlu0 %4430, %v4353
        %v4432 = vpop.permute.xlu0 %4431
        %4435 = vset.pattern.permute.xlu0 1
        %4436 = vperm.xlu0 %4435, %v4354
        %v4437 = vpop.permute.xlu0 %4436
        %4440 = vset.pattern.permute.xlu0 1
        %4441 = vperm.xlu0 %4440, %v4355
        %v4442 = vpop.permute.xlu0 %4441
        %4445 = vset.pattern.permute.xlu0 1
        %4446 = vperm.xlu0 %4445, %v4356
        %v4447 = vpop.permute.xlu0 %4446
        %4450 = vset.pattern.permute.xlu0 1
        %4451 = vperm.xlu0 %4450, %v4357
        %v4452 = vpop.permute.xlu0 %4451
        %4455 = vset.pattern.permute.xlu0 1
        %4456 = vperm.xlu0 %4455, %v4358
        %v4457 = vpop.permute.xlu0 %4456
        %4460 = vset.pattern.permute.xlu0 1
        %4461 = vperm.xlu0 %4460, %v4359
        %v4462 = vpop.permute.xlu0 %4461
        %4465 = vset.pattern.permute.xlu0 1
        %4466 = vperm.xlu0 %4465, %v4360
        %v4467 = vpop.permute.xlu0 %4466
        %4470 = vset.pattern.permute.xlu0 1
        %4471 = vperm.xlu0 %4470, %v4361
        %v4472 = vpop.permute.xlu0 %4471
        %4475 = vset.pattern.permute.xlu0 1
        %4476 = vperm.xlu0 %4475, %v4362
        %v4477 = vpop.permute.xlu0 %4476
        %4480 = vset.pattern.permute.xlu0 1
        %4481 = vperm.xlu0 %4480, %v4363
        %v4482 = vpop.permute.xlu0 %4481
        %4485 = vset.pattern.permute.xlu0 1
        %4486 = vperm.xlu0 %4485, %v4364
        %v4487 = vpop.permute.xlu0 %4486
        %4490 = vset.pattern.permute.xlu0 1
        %4491 = vperm.xlu0 %4490, %v4365
        %v4492 = vpop.permute.xlu0 %4491
        %4495 = vset.pattern.permute.xlu0 1
        %4496 = vperm.xlu0 %4495, %v4366
        %v4497 = vpop.permute.xlu0 %4496
        %4500 = vset.pattern.permute.xlu0 1
        %4501 = vperm.xlu0 %4500, %v4367
        %v4502 = vpop.permute.xlu0 %4501
        %4505 = vset.pattern.permute.xlu0 1
        %4506 = vperm.xlu0 %4505, %v4368
        %v4507 = vpop.permute.xlu0 %4506
        %4510 = vset.pattern.permute.xlu0 1
        %4511 = vperm.xlu0 %4510, %v4369
        %v4512 = vpop.permute.xlu0 %4511
        %4515 = vset.pattern.permute.xlu0 1
        %4516 = vperm.xlu0 %4515, %v4370
        %v4517 = vpop.permute.xlu0 %4516
        %4520 = vset.pattern.permute.xlu0 1
        %4521 = vperm.xlu0 %4520, %v4371
        %v4522 = vpop.permute.xlu0 %4521
        %4525 = vset.pattern.permute.xlu0 1
        %4526 = vperm.xlu0 %4525, %v4372
        %v4527 = vpop.permute.xlu0 %4526
        %4530 = vset.pattern.permute.xlu0 1
        %4531 = vperm.xlu0 %4530, %v4373
        %v4532 = vpop.permute.xlu0 %4531
        %v4534 = vmul.f32 %v4310, %v4377
        %v4535 = vmul.f32 %v4311, %v4382
        %v4536 = vmul.f32 %v4312, %v4387
        %v4537 = vmul.f32 %v4313, %v4392
        %v4538 = vmul.f32 %v4314, %v4397
        %v4539 = vmul.f32 %v4315, %v4402
        %v4540 = vmul.f32 %v4316, %v4407
        %v4541 = vmul.f32 %v4317, %v4412
        %v4542 = vmul.f32 %v4318, %v4417
        %v4543 = vmul.f32 %v4319, %v4422
        %v4544 = vmul.f32 %v4320, %v4427
        %v4545 = vmul.f32 %v4321, %v4432
        %v4546 = vmul.f32 %v4322, %v4437
        %v4547 = vmul.f32 %v4323, %v4442
        %v4548 = vmul.f32 %v4324, %v4447
        %v4549 = vmul.f32 %v4325, %v4452
        %v4550 = vmul.f32 %v4326, %v4457
        %v4551 = vmul.f32 %v4327, %v4462
        %v4552 = vmul.f32 %v4328, %v4467
        %v4553 = vmul.f32 %v4329, %v4472
        %v4554 = vmul.f32 %v4330, %v4477
        %v4555 = vmul.f32 %v4331, %v4482
        %v4556 = vmul.f32 %v4332, %v4487
        %v4557 = vmul.f32 %v4333, %v4492
        %v4558 = vmul.f32 %v4334, %v4497
        %v4559 = vmul.f32 %v4335, %v4502
        %v4560 = vmul.f32 %v4336, %v4507
        %v4561 = vmul.f32 %v4337, %v4512
        %v4562 = vmul.f32 %v4338, %v4517
        %v4563 = vmul.f32 %v4339, %v4522
        %v4564 = vmul.f32 %v4340, %v4527
        %v4565 = vmul.f32 %v4341, %v4532
        %v4566 = vadd.s32 %v4116, 1
        %v4567 = vadd.s32 %v4117, 1
        %v4568 = vadd.s32 %v4118, 1
        %v4569 = vadd.s32 %v4119, 1
        %v4570 = vadd.s32 %v4120, 1
        %v4571 = vadd.s32 %v4121, 1
        %v4572 = vadd.s32 %v4122, 1
        %v4573 = vadd.s32 %v4123, 1
        %v4574 = vadd.s32 %v4124, 1
        %v4575 = vadd.s32 %v4125, 1
        %v4576 = vadd.s32 %v4126, 1
        %v4577 = vadd.s32 %v4127, 1
        %v4578 = vadd.s32 %v4128, 1
        %v4579 = vadd.s32 %v4129, 1
        %v4580 = vadd.s32 %v4130, 1
        %v4581 = vadd.s32 %v4131, 1
        %v4582 = vadd.s32 %v4132, 1
        %v4583 = vadd.s32 %v4133, 1
        %v4584 = vadd.s32 %v4134, 1
        %v4585 = vadd.s32 %v4135, 1
        %v4586 = vadd.s32 %v4136, 1
        %v4587 = vadd.s32 %v4137, 1
        %v4588 = vadd.s32 %v4138, 1
        %v4589 = vadd.s32 %v4139, 1
        %v4590 = vadd.s32 %v4140, 1
        %v4591 = vadd.s32 %v4141, 1
        %v4592 = vadd.s32 %v4142, 1
        %v4593 = vadd.s32 %v4143, 1
        %v4594 = vadd.s32 %v4144, 1
        %v4595 = vadd.s32 %v4145, 1
        %v4596 = vadd.s32 %v4146, 1
        %v4597 = vadd.s32 %v4147, 1
        %4598 = vset.pattern.permute.xlu0 1
        %4599 = vperm.xlu0 %4598, %v4566
        %v4600 = vpop.permute.xlu0 %4599
        %4601 = vset.pattern.permute.xlu0 1
        %4602 = vperm.xlu0 %4601, %v4567
        %v4603 = vpop.permute.xlu0 %4602
        %4604 = vset.pattern.permute.xlu0 1
        %4605 = vperm.xlu0 %4604, %v4568
        %v4606 = vpop.permute.xlu0 %4605
        %4607 = vset.pattern.permute.xlu0 1
        %4608 = vperm.xlu0 %4607, %v4569
        %v4609 = vpop.permute.xlu0 %4608
        %4610 = vset.pattern.permute.xlu0 1
        %4611 = vperm.xlu0 %4610, %v4570
        %v4612 = vpop.permute.xlu0 %4611
        %4613 = vset.pattern.permute.xlu0 1
        %4614 = vperm.xlu0 %4613, %v4571
        %v4615 = vpop.permute.xlu0 %4614
        %4616 = vset.pattern.permute.xlu0 1
        %4617 = vperm.xlu0 %4616, %v4572
        %v4618 = vpop.permute.xlu0 %4617
        %4619 = vset.pattern.permute.xlu0 1
        %4620 = vperm.xlu0 %4619, %v4573
        %v4621 = vpop.permute.xlu0 %4620
        %4622 = vset.pattern.permute.xlu0 1
        %4623 = vperm.xlu0 %4622, %v4574
        %v4624 = vpop.permute.xlu0 %4623
        %4625 = vset.pattern.permute.xlu0 1
        %4626 = vperm.xlu0 %4625, %v4575
        %v4627 = vpop.permute.xlu0 %4626
        %4628 = vset.pattern.permute.xlu0 1
        %4629 = vperm.xlu0 %4628, %v4576
        %v4630 = vpop.permute.xlu0 %4629
        %4631 = vset.pattern.permute.xlu0 1
        %4632 = vperm.xlu0 %4631, %v4577
        %v4633 = vpop.permute.xlu0 %4632
        %4634 = vset.pattern.permute.xlu0 1
        %4635 = vperm.xlu0 %4634, %v4578
        %v4636 = vpop.permute.xlu0 %4635
        %4637 = vset.pattern.permute.xlu0 1
        %4638 = vperm.xlu0 %4637, %v4579
        %v4639 = vpop.permute.xlu0 %4638
        %4640 = vset.pattern.permute.xlu0 1
        %4641 = vperm.xlu0 %4640, %v4580
        %v4642 = vpop.permute.xlu0 %4641
        %4643 = vset.pattern.permute.xlu0 1
        %4644 = vperm.xlu0 %4643, %v4581
        %v4645 = vpop.permute.xlu0 %4644
        %4646 = vset.pattern.permute.xlu0 1
        %4647 = vperm.xlu0 %4646, %v4582
        %v4648 = vpop.permute.xlu0 %4647
        %4649 = vset.pattern.permute.xlu0 1
        %4650 = vperm.xlu0 %4649, %v4583
        %v4651 = vpop.permute.xlu0 %4650
        %4652 = vset.pattern.permute.xlu0 1
        %4653 = vperm.xlu0 %4652, %v4584
        %v4654 = vpop.permute.xlu0 %4653
        %4655 = vset.pattern.permute.xlu0 1
        %4656 = vperm.xlu0 %4655, %v4585
        %v4657 = vpop.permute.xlu0 %4656
        %4658 = vset.pattern.permute.xlu0 1
        %4659 = vperm.xlu0 %4658, %v4586
        %v4660 = vpop.permute.xlu0 %4659
        %4661 = vset.pattern.permute.xlu0 1
        %4662 = vperm.xlu0 %4661, %v4587
        %v4663 = vpop.permute.xlu0 %4662
        %4664 = vset.pattern.permute.xlu0 1
        %4665 = vperm.xlu0 %4664, %v4588
        %v4666 = vpop.permute.xlu0 %4665
        %4667 = vset.pattern.permute.xlu0 1
        %4668 = vperm.xlu0 %4667, %v4589
        %v4669 = vpop.permute.xlu0 %4668
        %4670 = vset.pattern.permute.xlu0 1
        %4671 = vperm.xlu0 %4670, %v4590
        %v4672 = vpop.permute.xlu0 %4671
        %4673 = vset.pattern.permute.xlu0 1
        %4674 = vperm.xlu0 %4673, %v4591
        %v4675 = vpop.permute.xlu0 %4674
        %4676 = vset.pattern.permute.xlu0 1
        %4677 = vperm.xlu0 %4676, %v4592
        %v4678 = vpop.permute.xlu0 %4677
        %4679 = vset.pattern.permute.xlu0 1
        %4680 = vperm.xlu0 %4679, %v4593
        %v4681 = vpop.permute.xlu0 %4680
        %4682 = vset.pattern.permute.xlu0 1
        %4683 = vperm.xlu0 %4682, %v4594
        %v4684 = vpop.permute.xlu0 %4683
        %4685 = vset.pattern.permute.xlu0 1
        %4686 = vperm.xlu0 %4685, %v4595
        %v4687 = vpop.permute.xlu0 %4686
        %4688 = vset.pattern.permute.xlu0 1
        %4689 = vperm.xlu0 %4688, %v4596
        %v4690 = vpop.permute.xlu0 %4689
        %4691 = vset.pattern.permute.xlu0 1
        %4692 = vperm.xlu0 %4691, %v4597
        %v4693 = vpop.permute.xlu0 %4692
        %vm4694 = vcmp.eq.s32.totalorder %v4149, %v4600
        %vm4695 = vcmp.eq.s32.totalorder %v4149, %v4603
        %vm4696 = vcmp.eq.s32.totalorder %v4149, %v4606
        %vm4697 = vcmp.eq.s32.totalorder %v4149, %v4609
        %vm4698 = vcmp.eq.s32.totalorder %v4149, %v4612
        %vm4699 = vcmp.eq.s32.totalorder %v4149, %v4615
        %vm4700 = vcmp.eq.s32.totalorder %v4149, %v4618
        %vm4701 = vcmp.eq.s32.totalorder %v4149, %v4621
        %vm4702 = vcmp.eq.s32.totalorder %v4149, %v4624
        %vm4703 = vcmp.eq.s32.totalorder %v4149, %v4627
        %vm4704 = vcmp.eq.s32.totalorder %v4149, %v4630
        %vm4705 = vcmp.eq.s32.totalorder %v4149, %v4633
        %vm4706 = vcmp.eq.s32.totalorder %v4149, %v4636
        %vm4707 = vcmp.eq.s32.totalorder %v4149, %v4639
        %vm4708 = vcmp.eq.s32.totalorder %v4149, %v4642
        %vm4709 = vcmp.eq.s32.totalorder %v4149, %v4645
        %vm4710 = vcmp.eq.s32.totalorder %v4149, %v4648
        %vm4711 = vcmp.eq.s32.totalorder %v4149, %v4651
        %vm4712 = vcmp.eq.s32.totalorder %v4149, %v4654
        %vm4713 = vcmp.eq.s32.totalorder %v4149, %v4657
        %vm4714 = vcmp.eq.s32.totalorder %v4149, %v4660
        %vm4715 = vcmp.eq.s32.totalorder %v4149, %v4663
        %vm4716 = vcmp.eq.s32.totalorder %v4149, %v4666
        %vm4717 = vcmp.eq.s32.totalorder %v4149, %v4669
        %vm4718 = vcmp.eq.s32.totalorder %v4149, %v4672
        %vm4719 = vcmp.eq.s32.totalorder %v4149, %v4675
        %vm4720 = vcmp.eq.s32.totalorder %v4149, %v4678
        %vm4721 = vcmp.eq.s32.totalorder %v4149, %v4681
        %vm4722 = vcmp.eq.s32.totalorder %v4149, %v4684
        %vm4723 = vcmp.eq.s32.totalorder %v4149, %v4687
        %vm4724 = vcmp.eq.s32.totalorder %v4149, %v4690
        %vm4725 = vcmp.eq.s32.totalorder %v4149, %v4693
        %v4726 = vsel %vm4694, 1, 0
        %v4727 = vsel %vm4695, 1, 0
        %v4728 = vsel %vm4696, 1, 0
        %v4729 = vsel %vm4697, 1, 0
        %v4730 = vsel %vm4698, 1, 0
        %v4731 = vsel %vm4699, 1, 0
        %v4732 = vsel %vm4700, 1, 0
        %v4733 = vsel %vm4701, 1, 0
        %v4734 = vsel %vm4702, 1, 0
        %v4735 = vsel %vm4703, 1, 0
        %v4736 = vsel %vm4704, 1, 0
        %v4737 = vsel %vm4705, 1, 0
        %v4738 = vsel %vm4706, 1, 0
        %v4739 = vsel %vm4707, 1, 0
        %v4740 = vsel %vm4708, 1, 0
        %v4741 = vsel %vm4709, 1, 0
        %v4742 = vsel %vm4710, 1, 0
        %v4743 = vsel %vm4711, 1, 0
        %v4744 = vsel %vm4712, 1, 0
        %v4745 = vsel %vm4713, 1, 0
        %v4746 = vsel %vm4714, 1, 0
        %v4747 = vsel %vm4715, 1, 0
        %v4748 = vsel %vm4716, 1, 0
        %v4749 = vsel %vm4717, 1, 0
        %v4750 = vsel %vm4718, 1, 0
        %v4751 = vsel %vm4719, 1, 0
        %v4752 = vsel %vm4720, 1, 0
        %v4753 = vsel %vm4721, 1, 0
        %v4754 = vsel %vm4722, 1, 0
        %v4755 = vsel %vm4723, 1, 0
        %v4756 = vsel %vm4724, 1, 0
        %v4757 = vsel %vm4725, 1, 0
        %v4758 = vcvt.s32.f32 %v4726
        %v4759 = vcvt.s32.f32 %v4727
        %v4760 = vcvt.s32.f32 %v4728
        %v4761 = vcvt.s32.f32 %v4729
        %v4762 = vcvt.s32.f32 %v4730
        %v4763 = vcvt.s32.f32 %v4731
        %v4764 = vcvt.s32.f32 %v4732
        %v4765 = vcvt.s32.f32 %v4733
        %v4766 = vcvt.s32.f32 %v4734
        %v4767 = vcvt.s32.f32 %v4735
        %v4768 = vcvt.s32.f32 %v4736
        %v4769 = vcvt.s32.f32 %v4737
        %v4770 = vcvt.s32.f32 %v4738
        %v4771 = vcvt.s32.f32 %v4739
        %v4772 = vcvt.s32.f32 %v4740
        %v4773 = vcvt.s32.f32 %v4741
        %v4774 = vcvt.s32.f32 %v4742
        %v4775 = vcvt.s32.f32 %v4743
        %v4776 = vcvt.s32.f32 %v4744
        %v4777 = vcvt.s32.f32 %v4745
        %v4778 = vcvt.s32.f32 %v4746
        %v4779 = vcvt.s32.f32 %v4747
        %v4780 = vcvt.s32.f32 %v4748
        %v4781 = vcvt.s32.f32 %v4749
        %v4782 = vcvt.s32.f32 %v4750
        %v4783 = vcvt.s32.f32 %v4751
        %v4784 = vcvt.s32.f32 %v4752
        %v4785 = vcvt.s32.f32 %v4753
        %v4786 = vcvt.s32.f32 %v4754
        %v4787 = vcvt.s32.f32 %v4755
        %v4788 = vcvt.s32.f32 %v4756
        %v4789 = vcvt.s32.f32 %v4757
        %4791 = vset.pattern.permute.xlu0 1
        %4792 = vperm.xlu0 %4791, %v4084
        %v4793 = vpop.permute.xlu0 %4792
        %4796 = vset.pattern.permute.xlu0 1
        %4797 = vperm.xlu0 %4796, %v4085
        %v4798 = vpop.permute.xlu0 %4797
        %4801 = vset.pattern.permute.xlu0 1
        %4802 = vperm.xlu0 %4801, %v4086
        %v4803 = vpop.permute.xlu0 %4802
        %4806 = vset.pattern.permute.xlu0 1
        %4807 = vperm.xlu0 %4806, %v4087
        %v4808 = vpop.permute.xlu0 %4807
        %4811 = vset.pattern.permute.xlu0 1
        %4812 = vperm.xlu0 %4811, %v4088
        %v4813 = vpop.permute.xlu0 %4812
        %4816 = vset.pattern.permute.xlu0 1
        %4817 = vperm.xlu0 %4816, %v4089
        %v4818 = vpop.permute.xlu0 %4817
        %4821 = vset.pattern.permute.xlu0 1
        %4822 = vperm.xlu0 %4821, %v4090
        %v4823 = vpop.permute.xlu0 %4822
        %4826 = vset.pattern.permute.xlu0 1
        %4827 = vperm.xlu0 %4826, %v4091
        %v4828 = vpop.permute.xlu0 %4827
        %4831 = vset.pattern.permute.xlu0 1
        %4832 = vperm.xlu0 %4831, %v4092
        %v4833 = vpop.permute.xlu0 %4832
        %4836 = vset.pattern.permute.xlu0 1
        %4837 = vperm.xlu0 %4836, %v4093
        %v4838 = vpop.permute.xlu0 %4837
        %4841 = vset.pattern.permute.xlu0 1
        %4842 = vperm.xlu0 %4841, %v4094
        %v4843 = vpop.permute.xlu0 %4842
        %4846 = vset.pattern.permute.xlu0 1
        %4847 = vperm.xlu0 %4846, %v4095
        %v4848 = vpop.permute.xlu0 %4847
        %4851 = vset.pattern.permute.xlu0 1
        %4852 = vperm.xlu0 %4851, %v4096
        %v4853 = vpop.permute.xlu0 %4852
        %4856 = vset.pattern.permute.xlu0 1
        %4857 = vperm.xlu0 %4856, %v4097
        %v4858 = vpop.permute.xlu0 %4857
        %4861 = vset.pattern.permute.xlu0 1
        %4862 = vperm.xlu0 %4861, %v4098
        %v4863 = vpop.permute.xlu0 %4862
        %4866 = vset.pattern.permute.xlu0 1
        %4867 = vperm.xlu0 %4866, %v4099
        %v4868 = vpop.permute.xlu0 %4867
        %4871 = vset.pattern.permute.xlu0 1
        %4872 = vperm.xlu0 %4871, %v4100
        %v4873 = vpop.permute.xlu0 %4872
        %4876 = vset.pattern.permute.xlu0 1
        %4877 = vperm.xlu0 %4876, %v4101
        %v4878 = vpop.permute.xlu0 %4877
        %4881 = vset.pattern.permute.xlu0 1
        %4882 = vperm.xlu0 %4881, %v4102
        %v4883 = vpop.permute.xlu0 %4882
        %4886 = vset.pattern.permute.xlu0 1
        %4887 = vperm.xlu0 %4886, %v4103
        %v4888 = vpop.permute.xlu0 %4887
        %4891 = vset.pattern.permute.xlu0 1
        %4892 = vperm.xlu0 %4891, %v4104
        %v4893 = vpop.permute.xlu0 %4892
        %4896 = vset.pattern.permute.xlu0 1
        %4897 = vperm.xlu0 %4896, %v4105
        %v4898 = vpop.permute.xlu0 %4897
        %4901 = vset.pattern.permute.xlu0 1
        %4902 = vperm.xlu0 %4901, %v4106
        %v4903 = vpop.permute.xlu0 %4902
        %4906 = vset.pattern.permute.xlu0 1
        %4907 = vperm.xlu0 %4906, %v4107
        %v4908 = vpop.permute.xlu0 %4907
        %4911 = vset.pattern.permute.xlu0 1
        %4912 = vperm.xlu0 %4911, %v4108
        %v4913 = vpop.permute.xlu0 %4912
        %4916 = vset.pattern.permute.xlu0 1
        %4917 = vperm.xlu0 %4916, %v4109
        %v4918 = vpop.permute.xlu0 %4917
        %4921 = vset.pattern.permute.xlu0 1
        %4922 = vperm.xlu0 %4921, %v4110
        %v4923 = vpop.permute.xlu0 %4922
        %4926 = vset.pattern.permute.xlu0 1
        %4927 = vperm.xlu0 %4926, %v4111
        %v4928 = vpop.permute.xlu0 %4927
        %4931 = vset.pattern.permute.xlu0 1
        %4932 = vperm.xlu0 %4931, %v4112
        %v4933 = vpop.permute.xlu0 %4932
        %4936 = vset.pattern.permute.xlu0 1
        %4937 = vperm.xlu0 %4936, %v4113
        %v4938 = vpop.permute.xlu0 %4937
        %4941 = vset.pattern.permute.xlu0 1
        %4942 = vperm.xlu0 %4941, %v4114
        %v4943 = vpop.permute.xlu0 %4942
        %4946 = vset.pattern.permute.xlu0 1
        %4947 = vperm.xlu0 %4946, %v4115
        %v4948 = vpop.permute.xlu0 %4947
        %v4950 = vmul.f32 %v4758, %v4793
        %v4951 = vmul.f32 %v4759, %v4798
        %v4952 = vmul.f32 %v4760, %v4803
        %v4953 = vmul.f32 %v4761, %v4808
        %v4954 = vmul.f32 %v4762, %v4813
        %v4955 = vmul.f32 %v4763, %v4818
        %v4956 = vmul.f32 %v4764, %v4823
        %v4957 = vmul.f32 %v4765, %v4828
        %v4958 = vmul.f32 %v4766, %v4833
        %v4959 = vmul.f32 %v4767, %v4838
        %v4960 = vmul.f32 %v4768, %v4843
        %v4961 = vmul.f32 %v4769, %v4848
        %v4962 = vmul.f32 %v4770, %v4853
        %v4963 = vmul.f32 %v4771, %v4858
        %v4964 = vmul.f32 %v4772, %v4863
        %v4965 = vmul.f32 %v4773, %v4868
        %v4966 = vmul.f32 %v4774, %v4873
        %v4967 = vmul.f32 %v4775, %v4878
        %v4968 = vmul.f32 %v4776, %v4883
        %v4969 = vmul.f32 %v4777, %v4888
        %v4970 = vmul.f32 %v4778, %v4893
        %v4971 = vmul.f32 %v4779, %v4898
        %v4972 = vmul.f32 %v4780, %v4903
        %v4973 = vmul.f32 %v4781, %v4908
        %v4974 = vmul.f32 %v4782, %v4913
        %v4975 = vmul.f32 %v4783, %v4918
        %v4976 = vmul.f32 %v4784, %v4923
        %v4977 = vmul.f32 %v4785, %v4928
        %v4978 = vmul.f32 %v4786, %v4933
        %v4979 = vmul.f32 %v4787, %v4938
        %v4980 = vmul.f32 %v4788, %v4943
        %v4981 = vmul.f32 %v4789, %v4948
        %v4982 = vadd.f32 %v4534, %v4950
        %v4983 = vadd.f32 %v4535, %v4951
        %v4984 = vadd.f32 %v4536, %v4952
        %v4985 = vadd.f32 %v4537, %v4953
        %v4986 = vadd.f32 %v4538, %v4954
        %v4987 = vadd.f32 %v4539, %v4955
        %v4988 = vadd.f32 %v4540, %v4956
        %v4989 = vadd.f32 %v4541, %v4957
        %v4990 = vadd.f32 %v4542, %v4958
        %v4991 = vadd.f32 %v4543, %v4959
        %v4992 = vadd.f32 %v4544, %v4960
        %v4993 = vadd.f32 %v4545, %v4961
        %v4994 = vadd.f32 %v4546, %v4962
        %v4995 = vadd.f32 %v4547, %v4963
        %v4996 = vadd.f32 %v4548, %v4964
        %v4997 = vadd.f32 %v4549, %v4965
        %v4998 = vadd.f32 %v4550, %v4966
        %v4999 = vadd.f32 %v4551, %v4967
        %v5000 = vadd.f32 %v4552, %v4968
        %v5001 = vadd.f32 %v4553, %v4969
        %v5002 = vadd.f32 %v4554, %v4970
        %v5003 = vadd.f32 %v4555, %v4971
        %v5004 = vadd.f32 %v4556, %v4972
        %v5005 = vadd.f32 %v4557, %v4973
        %v5006 = vadd.f32 %v4558, %v4974
        %v5007 = vadd.f32 %v4559, %v4975
        %v5008 = vadd.f32 %v4560, %v4976
        %v5009 = vadd.f32 %v4561, %v4977
        %v5010 = vadd.f32 %v4562, %v4978
        %v5011 = vadd.f32 %v4563, %v4979
        %v5012 = vadd.f32 %v4564, %v4980
        %v5013 = vadd.f32 %v4565, %v4981
        %5014 = vset.pattern.permute.xlu0 0
        %5015 = vperm.xlu0 %5014, %v4116
        %v5016 = vpop.permute.xlu0 %5015
        %5017 = vset.pattern.permute.xlu0 0
        %5018 = vperm.xlu0 %5017, %v4117
        %v5019 = vpop.permute.xlu0 %5018
        %5020 = vset.pattern.permute.xlu0 0
        %5021 = vperm.xlu0 %5020, %v4118
        %v5022 = vpop.permute.xlu0 %5021
        %5023 = vset.pattern.permute.xlu0 0
        %5024 = vperm.xlu0 %5023, %v4119
        %v5025 = vpop.permute.xlu0 %5024
        %5026 = vset.pattern.permute.xlu0 0
        %5027 = vperm.xlu0 %5026, %v4120
        %v5028 = vpop.permute.xlu0 %5027
        %5029 = vset.pattern.permute.xlu0 0
        %5030 = vperm.xlu0 %5029, %v4121
        %v5031 = vpop.permute.xlu0 %5030
        %5032 = vset.pattern.permute.xlu0 0
        %5033 = vperm.xlu0 %5032, %v4122
        %v5034 = vpop.permute.xlu0 %5033
        %5035 = vset.pattern.permute.xlu0 0
        %5036 = vperm.xlu0 %5035, %v4123
        %v5037 = vpop.permute.xlu0 %5036
        %5038 = vset.pattern.permute.xlu0 0
        %5039 = vperm.xlu0 %5038, %v4124
        %v5040 = vpop.permute.xlu0 %5039
        %5041 = vset.pattern.permute.xlu0 0
        %5042 = vperm.xlu0 %5041, %v4125
        %v5043 = vpop.permute.xlu0 %5042
        %5044 = vset.pattern.permute.xlu0 0
        %5045 = vperm.xlu0 %5044, %v4126
        %v5046 = vpop.permute.xlu0 %5045
        %5047 = vset.pattern.permute.xlu0 0
        %5048 = vperm.xlu0 %5047, %v4127
        %v5049 = vpop.permute.xlu0 %5048
        %5050 = vset.pattern.permute.xlu0 0
        %5051 = vperm.xlu0 %5050, %v4128
        %v5052 = vpop.permute.xlu0 %5051
        %5053 = vset.pattern.permute.xlu0 0
        %5054 = vperm.xlu0 %5053, %v4129
        %v5055 = vpop.permute.xlu0 %5054
        %5056 = vset.pattern.permute.xlu0 0
        %5057 = vperm.xlu0 %5056, %v4130
        %v5058 = vpop.permute.xlu0 %5057
        %5059 = vset.pattern.permute.xlu0 0
        %5060 = vperm.xlu0 %5059, %v4131
        %v5061 = vpop.permute.xlu0 %5060
        %5062 = vset.pattern.permute.xlu0 0
        %5063 = vperm.xlu0 %5062, %v4132
        %v5064 = vpop.permute.xlu0 %5063
        %5065 = vset.pattern.permute.xlu0 0
        %5066 = vperm.xlu0 %5065, %v4133
        %v5067 = vpop.permute.xlu0 %5066
        %5068 = vset.pattern.permute.xlu0 0
        %5069 = vperm.xlu0 %5068, %v4134
        %v5070 = vpop.permute.xlu0 %5069
        %5071 = vset.pattern.permute.xlu0 0
        %5072 = vperm.xlu0 %5071, %v4135
        %v5073 = vpop.permute.xlu0 %5072
        %5074 = vset.pattern.permute.xlu0 0
        %5075 = vperm.xlu0 %5074, %v4136
        %v5076 = vpop.permute.xlu0 %5075
        %5077 = vset.pattern.permute.xlu0 0
        %5078 = vperm.xlu0 %5077, %v4137
        %v5079 = vpop.permute.xlu0 %5078
        %5080 = vset.pattern.permute.xlu0 0
        %5081 = vperm.xlu0 %5080, %v4138
        %v5082 = vpop.permute.xlu0 %5081
        %5083 = vset.pattern.permute.xlu0 0
        %5084 = vperm.xlu0 %5083, %v4139
        %v5085 = vpop.permute.xlu0 %5084
        %5086 = vset.pattern.permute.xlu0 0
        %5087 = vperm.xlu0 %5086, %v4140
        %v5088 = vpop.permute.xlu0 %5087
        %5089 = vset.pattern.permute.xlu0 0
        %5090 = vperm.xlu0 %5089, %v4141
        %v5091 = vpop.permute.xlu0 %5090
        %5092 = vset.pattern.permute.xlu0 0
        %5093 = vperm.xlu0 %5092, %v4142
        %v5094 = vpop.permute.xlu0 %5093
        %5095 = vset.pattern.permute.xlu0 0
        %5096 = vperm.xlu0 %5095, %v4143
        %v5097 = vpop.permute.xlu0 %5096
        %5098 = vset.pattern.permute.xlu0 0
        %5099 = vperm.xlu0 %5098, %v4144
        %v5100 = vpop.permute.xlu0 %5099
        %5101 = vset.pattern.permute.xlu0 0
        %5102 = vperm.xlu0 %5101, %v4145
        %v5103 = vpop.permute.xlu0 %5102
        %5104 = vset.pattern.permute.xlu0 0
        %5105 = vperm.xlu0 %5104, %v4146
        %v5106 = vpop.permute.xlu0 %5105
        %5107 = vset.pattern.permute.xlu0 0
        %5108 = vperm.xlu0 %5107, %v4147
        %v5109 = vpop.permute.xlu0 %5108
        %vm5110 = vcmp.eq.s32.totalorder %v4149, %v5016
        %vm5111 = vcmp.eq.s32.totalorder %v4149, %v5019
        %vm5112 = vcmp.eq.s32.totalorder %v4149, %v5022
        %vm5113 = vcmp.eq.s32.totalorder %v4149, %v5025
        %vm5114 = vcmp.eq.s32.totalorder %v4149, %v5028
        %vm5115 = vcmp.eq.s32.totalorder %v4149, %v5031
        %vm5116 = vcmp.eq.s32.totalorder %v4149, %v5034
        %vm5117 = vcmp.eq.s32.totalorder %v4149, %v5037
        %vm5118 = vcmp.eq.s32.totalorder %v4149, %v5040
        %vm5119 = vcmp.eq.s32.totalorder %v4149, %v5043
        %vm5120 = vcmp.eq.s32.totalorder %v4149, %v5046
        %vm5121 = vcmp.eq.s32.totalorder %v4149, %v5049
        %vm5122 = vcmp.eq.s32.totalorder %v4149, %v5052
        %vm5123 = vcmp.eq.s32.totalorder %v4149, %v5055
        %vm5124 = vcmp.eq.s32.totalorder %v4149, %v5058
        %vm5125 = vcmp.eq.s32.totalorder %v4149, %v5061
        %vm5126 = vcmp.eq.s32.totalorder %v4149, %v5064
        %vm5127 = vcmp.eq.s32.totalorder %v4149, %v5067
        %vm5128 = vcmp.eq.s32.totalorder %v4149, %v5070
        %vm5129 = vcmp.eq.s32.totalorder %v4149, %v5073
        %vm5130 = vcmp.eq.s32.totalorder %v4149, %v5076
        %vm5131 = vcmp.eq.s32.totalorder %v4149, %v5079
        %vm5132 = vcmp.eq.s32.totalorder %v4149, %v5082
        %vm5133 = vcmp.eq.s32.totalorder %v4149, %v5085
        %vm5134 = vcmp.eq.s32.totalorder %v4149, %v5088
        %vm5135 = vcmp.eq.s32.totalorder %v4149, %v5091
        %vm5136 = vcmp.eq.s32.totalorder %v4149, %v5094
        %vm5137 = vcmp.eq.s32.totalorder %v4149, %v5097
        %vm5138 = vcmp.eq.s32.totalorder %v4149, %v5100
        %vm5139 = vcmp.eq.s32.totalorder %v4149, %v5103
        %vm5140 = vcmp.eq.s32.totalorder %v4149, %v5106
        %vm5141 = vcmp.eq.s32.totalorder %v4149, %v5109
        %v5142 = vsel %vm5110, 1, 0
        %v5143 = vsel %vm5111, 1, 0
        %v5144 = vsel %vm5112, 1, 0
        %v5145 = vsel %vm5113, 1, 0
        %v5146 = vsel %vm5114, 1, 0
        %v5147 = vsel %vm5115, 1, 0
        %v5148 = vsel %vm5116, 1, 0
        %v5149 = vsel %vm5117, 1, 0
        %v5150 = vsel %vm5118, 1, 0
        %v5151 = vsel %vm5119, 1, 0
        %v5152 = vsel %vm5120, 1, 0
        %v5153 = vsel %vm5121, 1, 0
        %v5154 = vsel %vm5122, 1, 0
        %v5155 = vsel %vm5123, 1, 0
        %v5156 = vsel %vm5124, 1, 0
        %v5157 = vsel %vm5125, 1, 0
        %v5158 = vsel %vm5126, 1, 0
        %v5159 = vsel %vm5127, 1, 0
        %v5160 = vsel %vm5128, 1, 0
        %v5161 = vsel %vm5129, 1, 0
        %v5162 = vsel %vm5130, 1, 0
        %v5163 = vsel %vm5131, 1, 0
        %v5164 = vsel %vm5132, 1, 0
        %v5165 = vsel %vm5133, 1, 0
        %v5166 = vsel %vm5134, 1, 0
        %v5167 = vsel %vm5135, 1, 0
        %v5168 = vsel %vm5136, 1, 0
        %v5169 = vsel %vm5137, 1, 0
        %v5170 = vsel %vm5138, 1, 0
        %v5171 = vsel %vm5139, 1, 0
        %v5172 = vsel %vm5140, 1, 0
        %v5173 = vsel %vm5141, 1, 0
        %v5174 = vcvt.s32.f32 %v5142
        %v5175 = vcvt.s32.f32 %v5143
        %v5176 = vcvt.s32.f32 %v5144
        %v5177 = vcvt.s32.f32 %v5145
        %v5178 = vcvt.s32.f32 %v5146
        %v5179 = vcvt.s32.f32 %v5147
        %v5180 = vcvt.s32.f32 %v5148
        %v5181 = vcvt.s32.f32 %v5149
        %v5182 = vcvt.s32.f32 %v5150
        %v5183 = vcvt.s32.f32 %v5151
        %v5184 = vcvt.s32.f32 %v5152
        %v5185 = vcvt.s32.f32 %v5153
        %v5186 = vcvt.s32.f32 %v5154
        %v5187 = vcvt.s32.f32 %v5155
        %v5188 = vcvt.s32.f32 %v5156
        %v5189 = vcvt.s32.f32 %v5157
        %v5190 = vcvt.s32.f32 %v5158
        %v5191 = vcvt.s32.f32 %v5159
        %v5192 = vcvt.s32.f32 %v5160
        %v5193 = vcvt.s32.f32 %v5161
        %v5194 = vcvt.s32.f32 %v5162
        %v5195 = vcvt.s32.f32 %v5163
        %v5196 = vcvt.s32.f32 %v5164
        %v5197 = vcvt.s32.f32 %v5165
        %v5198 = vcvt.s32.f32 %v5166
        %v5199 = vcvt.s32.f32 %v5167
        %v5200 = vcvt.s32.f32 %v5168
        %v5201 = vcvt.s32.f32 %v5169
        %v5202 = vcvt.s32.f32 %v5170
        %v5203 = vcvt.s32.f32 %v5171
        %v5204 = vcvt.s32.f32 %v5172
        %v5205 = vcvt.s32.f32 %v5173
        %5206 = vset.pattern.permute.xlu0 0
        %5207 = vperm.xlu0 %5206, %v4342
        %v5208 = vpop.permute.xlu0 %5207
        %5210 = vset.pattern.permute.xlu0 0
        %5211 = vperm.xlu0 %5210, %v4343
        %v5212 = vpop.permute.xlu0 %5211
        %5214 = vset.pattern.permute.xlu0 0
        %5215 = vperm.xlu0 %5214, %v4344
        %v5216 = vpop.permute.xlu0 %5215
        %5218 = vset.pattern.permute.xlu0 0
        %5219 = vperm.xlu0 %5218, %v4345
        %v5220 = vpop.permute.xlu0 %5219
        %5222 = vset.pattern.permute.xlu0 0
        %5223 = vperm.xlu0 %5222, %v4346
        %v5224 = vpop.permute.xlu0 %5223
        %5226 = vset.pattern.permute.xlu0 0
        %5227 = vperm.xlu0 %5226, %v4347
        %v5228 = vpop.permute.xlu0 %5227
        %5230 = vset.pattern.permute.xlu0 0
        %5231 = vperm.xlu0 %5230, %v4348
        %v5232 = vpop.permute.xlu0 %5231
        %5234 = vset.pattern.permute.xlu0 0
        %5235 = vperm.xlu0 %5234, %v4349
        %v5236 = vpop.permute.xlu0 %5235
        %5238 = vset.pattern.permute.xlu0 0
        %5239 = vperm.xlu0 %5238, %v4350
        %v5240 = vpop.permute.xlu0 %5239
        %5242 = vset.pattern.permute.xlu0 0
        %5243 = vperm.xlu0 %5242, %v4351
        %v5244 = vpop.permute.xlu0 %5243
        %5246 = vset.pattern.permute.xlu0 0
        %5247 = vperm.xlu0 %5246, %v4352
        %v5248 = vpop.permute.xlu0 %5247
        %5250 = vset.pattern.permute.xlu0 0
        %5251 = vperm.xlu0 %5250, %v4353
        %v5252 = vpop.permute.xlu0 %5251
        %5254 = vset.pattern.permute.xlu0 0
        %5255 = vperm.xlu0 %5254, %v4354
        %v5256 = vpop.permute.xlu0 %5255
        %5258 = vset.pattern.permute.xlu0 0
        %5259 = vperm.xlu0 %5258, %v4355
        %v5260 = vpop.permute.xlu0 %5259
        %5262 = vset.pattern.permute.xlu0 0
        %5263 = vperm.xlu0 %5262, %v4356
        %v5264 = vpop.permute.xlu0 %5263
        %5266 = vset.pattern.permute.xlu0 0
        %5267 = vperm.xlu0 %5266, %v4357
        %v5268 = vpop.permute.xlu0 %5267
        %5270 = vset.pattern.permute.xlu0 0
        %5271 = vperm.xlu0 %5270, %v4358
        %v5272 = vpop.permute.xlu0 %5271
        %5274 = vset.pattern.permute.xlu0 0
        %5275 = vperm.xlu0 %5274, %v4359
        %v5276 = vpop.permute.xlu0 %5275
        %5278 = vset.pattern.permute.xlu0 0
        %5279 = vperm.xlu0 %5278, %v4360
        %v5280 = vpop.permute.xlu0 %5279
        %5282 = vset.pattern.permute.xlu0 0
        %5283 = vperm.xlu0 %5282, %v4361
        %v5284 = vpop.permute.xlu0 %5283
        %5286 = vset.pattern.permute.xlu0 0
        %5287 = vperm.xlu0 %5286, %v4362
        %v5288 = vpop.permute.xlu0 %5287
        %5290 = vset.pattern.permute.xlu0 0
        %5291 = vperm.xlu0 %5290, %v4363
        %v5292 = vpop.permute.xlu0 %5291
        %5294 = vset.pattern.permute.xlu0 0
        %5295 = vperm.xlu0 %5294, %v4364
        %v5296 = vpop.permute.xlu0 %5295
        %5298 = vset.pattern.permute.xlu0 0
        %5299 = vperm.xlu0 %5298, %v4365
        %v5300 = vpop.permute.xlu0 %5299
        %5302 = vset.pattern.permute.xlu0 0
        %5303 = vperm.xlu0 %5302, %v4366
        %v5304 = vpop.permute.xlu0 %5303
        %5306 = vset.pattern.permute.xlu0 0
        %5307 = vperm.xlu0 %5306, %v4367
        %v5308 = vpop.permute.xlu0 %5307
        %5310 = vset.pattern.permute.xlu0 0
        %5311 = vperm.xlu0 %5310, %v4368
        %v5312 = vpop.permute.xlu0 %5311
        %5314 = vset.pattern.permute.xlu0 0
        %5315 = vperm.xlu0 %5314, %v4369
        %v5316 = vpop.permute.xlu0 %5315
        %5318 = vset.pattern.permute.xlu0 0
        %5319 = vperm.xlu0 %5318, %v4370
        %v5320 = vpop.permute.xlu0 %5319
        %5322 = vset.pattern.permute.xlu0 0
        %5323 = vperm.xlu0 %5322, %v4371
        %v5324 = vpop.permute.xlu0 %5323
        %5326 = vset.pattern.permute.xlu0 0
        %5327 = vperm.xlu0 %5326, %v4372
        %v5328 = vpop.permute.xlu0 %5327
        %5330 = vset.pattern.permute.xlu0 0
        %5331 = vperm.xlu0 %5330, %v4373
        %v5332 = vpop.permute.xlu0 %5331
        %v5334 = vmul.f32 %v5174, %v5208
        %v5335 = vmul.f32 %v5175, %v5212
        %v5336 = vmul.f32 %v5176, %v5216
        %v5337 = vmul.f32 %v5177, %v5220
        %v5338 = vmul.f32 %v5178, %v5224
        %v5339 = vmul.f32 %v5179, %v5228
        %v5340 = vmul.f32 %v5180, %v5232
        %v5341 = vmul.f32 %v5181, %v5236
        %v5342 = vmul.f32 %v5182, %v5240
        %v5343 = vmul.f32 %v5183, %v5244
        %v5344 = vmul.f32 %v5184, %v5248
        %v5345 = vmul.f32 %v5185, %v5252
        %v5346 = vmul.f32 %v5186, %v5256
        %v5347 = vmul.f32 %v5187, %v5260
        %v5348 = vmul.f32 %v5188, %v5264
        %v5349 = vmul.f32 %v5189, %v5268
        %v5350 = vmul.f32 %v5190, %v5272
        %v5351 = vmul.f32 %v5191, %v5276
        %v5352 = vmul.f32 %v5192, %v5280
        %v5353 = vmul.f32 %v5193, %v5284
        %v5354 = vmul.f32 %v5194, %v5288
        %v5355 = vmul.f32 %v5195, %v5292
        %v5356 = vmul.f32 %v5196, %v5296
        %v5357 = vmul.f32 %v5197, %v5300
        %v5358 = vmul.f32 %v5198, %v5304
        %v5359 = vmul.f32 %v5199, %v5308
        %v5360 = vmul.f32 %v5200, %v5312
        %v5361 = vmul.f32 %v5201, %v5316
        %v5362 = vmul.f32 %v5202, %v5320
        %v5363 = vmul.f32 %v5203, %v5324
        %v5364 = vmul.f32 %v5204, %v5328
        %v5365 = vmul.f32 %v5205, %v5332
        %5366 = vset.pattern.permute.xlu0 0
        %5367 = vperm.xlu0 %5366, %v4566
        %v5368 = vpop.permute.xlu0 %5367
        %5369 = vset.pattern.permute.xlu0 0
        %5370 = vperm.xlu0 %5369, %v4567
        %v5371 = vpop.permute.xlu0 %5370
        %5372 = vset.pattern.permute.xlu0 0
        %5373 = vperm.xlu0 %5372, %v4568
        %v5374 = vpop.permute.xlu0 %5373
        %5375 = vset.pattern.permute.xlu0 0
        %5376 = vperm.xlu0 %5375, %v4569
        %v5377 = vpop.permute.xlu0 %5376
        %5378 = vset.pattern.permute.xlu0 0
        %5379 = vperm.xlu0 %5378, %v4570
        %v5380 = vpop.permute.xlu0 %5379
        %5381 = vset.pattern.permute.xlu0 0
        %5382 = vperm.xlu0 %5381, %v4571
        %v5383 = vpop.permute.xlu0 %5382
        %5384 = vset.pattern.permute.xlu0 0
        %5385 = vperm.xlu0 %5384, %v4572
        %v5386 = vpop.permute.xlu0 %5385
        %5387 = vset.pattern.permute.xlu0 0
        %5388 = vperm.xlu0 %5387, %v4573
        %v5389 = vpop.permute.xlu0 %5388
        %5390 = vset.pattern.permute.xlu0 0
        %5391 = vperm.xlu0 %5390, %v4574
        %v5392 = vpop.permute.xlu0 %5391
        %5393 = vset.pattern.permute.xlu0 0
        %5394 = vperm.xlu0 %5393, %v4575
        %v5395 = vpop.permute.xlu0 %5394
        %5396 = vset.pattern.permute.xlu0 0
        %5397 = vperm.xlu0 %5396, %v4576
        %v5398 = vpop.permute.xlu0 %5397
        %5399 = vset.pattern.permute.xlu0 0
        %5400 = vperm.xlu0 %5399, %v4577
        %v5401 = vpop.permute.xlu0 %5400
        %5402 = vset.pattern.permute.xlu0 0
        %5403 = vperm.xlu0 %5402, %v4578
        %v5404 = vpop.permute.xlu0 %5403
        %5405 = vset.pattern.permute.xlu0 0
        %5406 = vperm.xlu0 %5405, %v4579
        %v5407 = vpop.permute.xlu0 %5406
        %5408 = vset.pattern.permute.xlu0 0
        %5409 = vperm.xlu0 %5408, %v4580
        %v5410 = vpop.permute.xlu0 %5409
        %5411 = vset.pattern.permute.xlu0 0
        %5412 = vperm.xlu0 %5411, %v4581
        %v5413 = vpop.permute.xlu0 %5412
        %5414 = vset.pattern.permute.xlu0 0
        %5415 = vperm.xlu0 %5414, %v4582
        %v5416 = vpop.permute.xlu0 %5415
        %5417 = vset.pattern.permute.xlu0 0
        %5418 = vperm.xlu0 %5417, %v4583
        %v5419 = vpop.permute.xlu0 %5418
        %5420 = vset.pattern.permute.xlu0 0
        %5421 = vperm.xlu0 %5420, %v4584
        %v5422 = vpop.permute.xlu0 %5421
        %5423 = vset.pattern.permute.xlu0 0
        %5424 = vperm.xlu0 %5423, %v4585
        %v5425 = vpop.permute.xlu0 %5424
        %5426 = vset.pattern.permute.xlu0 0
        %5427 = vperm.xlu0 %5426, %v4586
        %v5428 = vpop.permute.xlu0 %5427
        %5429 = vset.pattern.permute.xlu0 0
        %5430 = vperm.xlu0 %5429, %v4587
        %v5431 = vpop.permute.xlu0 %5430
        %5432 = vset.pattern.permute.xlu0 0
        %5433 = vperm.xlu0 %5432, %v4588
        %v5434 = vpop.permute.xlu0 %5433
        %5435 = vset.pattern.permute.xlu0 0
        %5436 = vperm.xlu0 %5435, %v4589
        %v5437 = vpop.permute.xlu0 %5436
        %5438 = vset.pattern.permute.xlu0 0
        %5439 = vperm.xlu0 %5438, %v4590
        %v5440 = vpop.permute.xlu0 %5439
        %5441 = vset.pattern.permute.xlu0 0
        %5442 = vperm.xlu0 %5441, %v4591
        %v5443 = vpop.permute.xlu0 %5442
        %5444 = vset.pattern.permute.xlu0 0
        %5445 = vperm.xlu0 %5444, %v4592
        %v5446 = vpop.permute.xlu0 %5445
        %5447 = vset.pattern.permute.xlu0 0
        %5448 = vperm.xlu0 %5447, %v4593
        %v5449 = vpop.permute.xlu0 %5448
        %5450 = vset.pattern.permute.xlu0 0
        %5451 = vperm.xlu0 %5450, %v4594
        %v5452 = vpop.permute.xlu0 %5451
        %5453 = vset.pattern.permute.xlu0 0
        %5454 = vperm.xlu0 %5453, %v4595
        %v5455 = vpop.permute.xlu0 %5454
        %5456 = vset.pattern.permute.xlu0 0
        %5457 = vperm.xlu0 %5456, %v4596
        %v5458 = vpop.permute.xlu0 %5457
        %5459 = vset.pattern.permute.xlu0 0
        %5460 = vperm.xlu0 %5459, %v4597
        %v5461 = vpop.permute.xlu0 %5460
        %vm5462 = vcmp.eq.s32.totalorder %v4149, %v5368
        %vm5463 = vcmp.eq.s32.totalorder %v4149, %v5371
        %vm5464 = vcmp.eq.s32.totalorder %v4149, %v5374
        %vm5465 = vcmp.eq.s32.totalorder %v4149, %v5377
        %vm5466 = vcmp.eq.s32.totalorder %v4149, %v5380
        %vm5467 = vcmp.eq.s32.totalorder %v4149, %v5383
        %vm5468 = vcmp.eq.s32.totalorder %v4149, %v5386
        %vm5469 = vcmp.eq.s32.totalorder %v4149, %v5389
        %vm5470 = vcmp.eq.s32.totalorder %v4149, %v5392
        %vm5471 = vcmp.eq.s32.totalorder %v4149, %v5395
        %vm5472 = vcmp.eq.s32.totalorder %v4149, %v5398
        %vm5473 = vcmp.eq.s32.totalorder %v4149, %v5401
        %vm5474 = vcmp.eq.s32.totalorder %v4149, %v5404
        %vm5475 = vcmp.eq.s32.totalorder %v4149, %v5407
        %vm5476 = vcmp.eq.s32.totalorder %v4149, %v5410
        %vm5477 = vcmp.eq.s32.totalorder %v4149, %v5413
        %vm5478 = vcmp.eq.s32.totalorder %v4149, %v5416
        %vm5479 = vcmp.eq.s32.totalorder %v4149, %v5419
        %vm5480 = vcmp.eq.s32.totalorder %v4149, %v5422
        %vm5481 = vcmp.eq.s32.totalorder %v4149, %v5425
        %vm5482 = vcmp.eq.s32.totalorder %v4149, %v5428
        %vm5483 = vcmp.eq.s32.totalorder %v4149, %v5431
        %vm5484 = vcmp.eq.s32.totalorder %v4149, %v5434
        %vm5485 = vcmp.eq.s32.totalorder %v4149, %v5437
        %vm5486 = vcmp.eq.s32.totalorder %v4149, %v5440
        %vm5487 = vcmp.eq.s32.totalorder %v4149, %v5443
        %vm5488 = vcmp.eq.s32.totalorder %v4149, %v5446
        %vm5489 = vcmp.eq.s32.totalorder %v4149, %v5449
        %vm5490 = vcmp.eq.s32.totalorder %v4149, %v5452
        %vm5491 = vcmp.eq.s32.totalorder %v4149, %v5455
        %vm5492 = vcmp.eq.s32.totalorder %v4149, %v5458
        %vm5493 = vcmp.eq.s32.totalorder %v4149, %v5461
        %v5494 = vsel %vm5462, 1, 0
        %v5495 = vsel %vm5463, 1, 0
        %v5496 = vsel %vm5464, 1, 0
        %v5497 = vsel %vm5465, 1, 0
        %v5498 = vsel %vm5466, 1, 0
        %v5499 = vsel %vm5467, 1, 0
        %v5500 = vsel %vm5468, 1, 0
        %v5501 = vsel %vm5469, 1, 0
        %v5502 = vsel %vm5470, 1, 0
        %v5503 = vsel %vm5471, 1, 0
        %v5504 = vsel %vm5472, 1, 0
        %v5505 = vsel %vm5473, 1, 0
        %v5506 = vsel %vm5474, 1, 0
        %v5507 = vsel %vm5475, 1, 0
        %v5508 = vsel %vm5476, 1, 0
        %v5509 = vsel %vm5477, 1, 0
        %v5510 = vsel %vm5478, 1, 0
        %v5511 = vsel %vm5479, 1, 0
        %v5512 = vsel %vm5480, 1, 0
        %v5513 = vsel %vm5481, 1, 0
        %v5514 = vsel %vm5482, 1, 0
        %v5515 = vsel %vm5483, 1, 0
        %v5516 = vsel %vm5484, 1, 0
        %v5517 = vsel %vm5485, 1, 0
        %v5518 = vsel %vm5486, 1, 0
        %v5519 = vsel %vm5487, 1, 0
        %v5520 = vsel %vm5488, 1, 0
        %v5521 = vsel %vm5489, 1, 0
        %v5522 = vsel %vm5490, 1, 0
        %v5523 = vsel %vm5491, 1, 0
        %v5524 = vsel %vm5492, 1, 0
        %v5525 = vsel %vm5493, 1, 0
        %v5526 = vcvt.s32.f32 %v5494
        %v5527 = vcvt.s32.f32 %v5495
        %v5528 = vcvt.s32.f32 %v5496
        %v5529 = vcvt.s32.f32 %v5497
        %v5530 = vcvt.s32.f32 %v5498
        %v5531 = vcvt.s32.f32 %v5499
        %v5532 = vcvt.s32.f32 %v5500
        %v5533 = vcvt.s32.f32 %v5501
        %v5534 = vcvt.s32.f32 %v5502
        %v5535 = vcvt.s32.f32 %v5503
        %v5536 = vcvt.s32.f32 %v5504
        %v5537 = vcvt.s32.f32 %v5505
        %v5538 = vcvt.s32.f32 %v5506
        %v5539 = vcvt.s32.f32 %v5507
        %v5540 = vcvt.s32.f32 %v5508
        %v5541 = vcvt.s32.f32 %v5509
        %v5542 = vcvt.s32.f32 %v5510
        %v5543 = vcvt.s32.f32 %v5511
        %v5544 = vcvt.s32.f32 %v5512
        %v5545 = vcvt.s32.f32 %v5513
        %v5546 = vcvt.s32.f32 %v5514
        %v5547 = vcvt.s32.f32 %v5515
        %v5548 = vcvt.s32.f32 %v5516
        %v5549 = vcvt.s32.f32 %v5517
        %v5550 = vcvt.s32.f32 %v5518
        %v5551 = vcvt.s32.f32 %v5519
        %v5552 = vcvt.s32.f32 %v5520
        %v5553 = vcvt.s32.f32 %v5521
        %v5554 = vcvt.s32.f32 %v5522
        %v5555 = vcvt.s32.f32 %v5523
        %v5556 = vcvt.s32.f32 %v5524
        %v5557 = vcvt.s32.f32 %v5525
        %5558 = vset.pattern.permute.xlu0 0
        %5559 = vperm.xlu0 %5558, %v4084
        %v5560 = vpop.permute.xlu0 %5559
        %5562 = vset.pattern.permute.xlu0 0
        %5563 = vperm.xlu0 %5562, %v4085
        %v5564 = vpop.permute.xlu0 %5563
        %5566 = vset.pattern.permute.xlu0 0
        %5567 = vperm.xlu0 %5566, %v4086
        %v5568 = vpop.permute.xlu0 %5567
        %5570 = vset.pattern.permute.xlu0 0
        %5571 = vperm.xlu0 %5570, %v4087
        %v5572 = vpop.permute.xlu0 %5571
        %5574 = vset.pattern.permute.xlu0 0
        %5575 = vperm.xlu0 %5574, %v4088
        %v5576 = vpop.permute.xlu0 %5575
        %5578 = vset.pattern.permute.xlu0 0
        %5579 = vperm.xlu0 %5578, %v4089
        %v5580 = vpop.permute.xlu0 %5579
        %5582 = vset.pattern.permute.xlu0 0
        %5583 = vperm.xlu0 %5582, %v4090
        %v5584 = vpop.permute.xlu0 %5583
        %5586 = vset.pattern.permute.xlu0 0
        %5587 = vperm.xlu0 %5586, %v4091
        %v5588 = vpop.permute.xlu0 %5587
        %5590 = vset.pattern.permute.xlu0 0
        %5591 = vperm.xlu0 %5590, %v4092
        %v5592 = vpop.permute.xlu0 %5591
        %5594 = vset.pattern.permute.xlu0 0
        %5595 = vperm.xlu0 %5594, %v4093
        %v5596 = vpop.permute.xlu0 %5595
        %5598 = vset.pattern.permute.xlu0 0
        %5599 = vperm.xlu0 %5598, %v4094
        %v5600 = vpop.permute.xlu0 %5599
        %5602 = vset.pattern.permute.xlu0 0
        %5603 = vperm.xlu0 %5602, %v4095
        %v5604 = vpop.permute.xlu0 %5603
        %5606 = vset.pattern.permute.xlu0 0
        %5607 = vperm.xlu0 %5606, %v4096
        %v5608 = vpop.permute.xlu0 %5607
        %5610 = vset.pattern.permute.xlu0 0
        %5611 = vperm.xlu0 %5610, %v4097
        %v5612 = vpop.permute.xlu0 %5611
        %5614 = vset.pattern.permute.xlu0 0
        %5615 = vperm.xlu0 %5614, %v4098
        %v5616 = vpop.permute.xlu0 %5615
        %5618 = vset.pattern.permute.xlu0 0
        %5619 = vperm.xlu0 %5618, %v4099
        %v5620 = vpop.permute.xlu0 %5619
        %5622 = vset.pattern.permute.xlu0 0
        %5623 = vperm.xlu0 %5622, %v4100
        %v5624 = vpop.permute.xlu0 %5623
        %5626 = vset.pattern.permute.xlu0 0
        %5627 = vperm.xlu0 %5626, %v4101
        %v5628 = vpop.permute.xlu0 %5627
        %5630 = vset.pattern.permute.xlu0 0
        %5631 = vperm.xlu0 %5630, %v4102
        %v5632 = vpop.permute.xlu0 %5631
        %5634 = vset.pattern.permute.xlu0 0
        %5635 = vperm.xlu0 %5634, %v4103
        %v5636 = vpop.permute.xlu0 %5635
        %5638 = vset.pattern.permute.xlu0 0
        %5639 = vperm.xlu0 %5638, %v4104
        %v5640 = vpop.permute.xlu0 %5639
        %5642 = vset.pattern.permute.xlu0 0
        %5643 = vperm.xlu0 %5642, %v4105
        %v5644 = vpop.permute.xlu0 %5643
        %5646 = vset.pattern.permute.xlu0 0
        %5647 = vperm.xlu0 %5646, %v4106
        %v5648 = vpop.permute.xlu0 %5647
        %5650 = vset.pattern.permute.xlu0 0
        %5651 = vperm.xlu0 %5650, %v4107
        %v5652 = vpop.permute.xlu0 %5651
        %5654 = vset.pattern.permute.xlu0 0
        %5655 = vperm.xlu0 %5654, %v4108
        %v5656 = vpop.permute.xlu0 %5655
        %5658 = vset.pattern.permute.xlu0 0
        %5659 = vperm.xlu0 %5658, %v4109
        %v5660 = vpop.permute.xlu0 %5659
        %5662 = vset.pattern.permute.xlu0 0
        %5663 = vperm.xlu0 %5662, %v4110
        %v5664 = vpop.permute.xlu0 %5663
        %5666 = vset.pattern.permute.xlu0 0
        %5667 = vperm.xlu0 %5666, %v4111
        %v5668 = vpop.permute.xlu0 %5667
        %5670 = vset.pattern.permute.xlu0 0
        %5671 = vperm.xlu0 %5670, %v4112
        %v5672 = vpop.permute.xlu0 %5671
        %5674 = vset.pattern.permute.xlu0 0
        %5675 = vperm.xlu0 %5674, %v4113
        %v5676 = vpop.permute.xlu0 %5675
        %5678 = vset.pattern.permute.xlu0 0
        %5679 = vperm.xlu0 %5678, %v4114
        %v5680 = vpop.permute.xlu0 %5679
        %5682 = vset.pattern.permute.xlu0 0
        %5683 = vperm.xlu0 %5682, %v4115
        %v5684 = vpop.permute.xlu0 %5683
        %v5686 = vmul.f32 %v5526, %v5560
        %v5687 = vmul.f32 %v5527, %v5564
        %v5688 = vmul.f32 %v5528, %v5568
        %v5689 = vmul.f32 %v5529, %v5572
        %v5690 = vmul.f32 %v5530, %v5576
        %v5691 = vmul.f32 %v5531, %v5580
        %v5692 = vmul.f32 %v5532, %v5584
        %v5693 = vmul.f32 %v5533, %v5588
        %v5694 = vmul.f32 %v5534, %v5592
        %v5695 = vmul.f32 %v5535, %v5596
        %v5696 = vmul.f32 %v5536, %v5600
        %v5697 = vmul.f32 %v5537, %v5604
        %v5698 = vmul.f32 %v5538, %v5608
        %v5699 = vmul.f32 %v5539, %v5612
        %v5700 = vmul.f32 %v5540, %v5616
        %v5701 = vmul.f32 %v5541, %v5620
        %v5702 = vmul.f32 %v5542, %v5624
        %v5703 = vmul.f32 %v5543, %v5628
        %v5704 = vmul.f32 %v5544, %v5632
        %v5705 = vmul.f32 %v5545, %v5636
        %v5706 = vmul.f32 %v5546, %v5640
        %v5707 = vmul.f32 %v5547, %v5644
        %v5708 = vmul.f32 %v5548, %v5648
        %v5709 = vmul.f32 %v5549, %v5652
        %v5710 = vmul.f32 %v5550, %v5656
        %v5711 = vmul.f32 %v5551, %v5660
        %v5712 = vmul.f32 %v5552, %v5664
        %v5713 = vmul.f32 %v5553, %v5668
        %v5714 = vmul.f32 %v5554, %v5672
        %v5715 = vmul.f32 %v5555, %v5676
        %v5716 = vmul.f32 %v5556, %v5680
        %v5717 = vmul.f32 %v5557, %v5684
        %v5718 = vadd.f32 %v5334, %v5686
        %v5719 = vadd.f32 %v5335, %v5687
        %v5720 = vadd.f32 %v5336, %v5688
        %v5721 = vadd.f32 %v5337, %v5689
        %v5722 = vadd.f32 %v5338, %v5690
        %v5723 = vadd.f32 %v5339, %v5691
        %v5724 = vadd.f32 %v5340, %v5692
        %v5725 = vadd.f32 %v5341, %v5693
        %v5726 = vadd.f32 %v5342, %v5694
        %v5727 = vadd.f32 %v5343, %v5695
        %v5728 = vadd.f32 %v5344, %v5696
        %v5729 = vadd.f32 %v5345, %v5697
        %v5730 = vadd.f32 %v5346, %v5698
        %v5731 = vadd.f32 %v5347, %v5699
        %v5732 = vadd.f32 %v5348, %v5700
        %v5733 = vadd.f32 %v5349, %v5701
        %v5734 = vadd.f32 %v5350, %v5702
        %v5735 = vadd.f32 %v5351, %v5703
        %v5736 = vadd.f32 %v5352, %v5704
        %v5737 = vadd.f32 %v5353, %v5705
        %v5738 = vadd.f32 %v5354, %v5706
        %v5739 = vadd.f32 %v5355, %v5707
        %v5740 = vadd.f32 %v5356, %v5708
        %v5741 = vadd.f32 %v5357, %v5709
        %v5742 = vadd.f32 %v5358, %v5710
        %v5743 = vadd.f32 %v5359, %v5711
        %v5744 = vadd.f32 %v5360, %v5712
        %v5745 = vadd.f32 %v5361, %v5713
        %v5746 = vadd.f32 %v5362, %v5714
        %v5747 = vadd.f32 %v5363, %v5715
        %v5748 = vadd.f32 %v5364, %v5716
        %v5749 = vadd.f32 %v5365, %v5717
        %v5750 = vpack.c.bf16 %v4983, %v4982
        %v5751 = vpack.c.bf16 %v4985, %v4984
        %v5752 = vpack.c.bf16 %v4987, %v4986
        %v5753 = vpack.c.bf16 %v4989, %v4988
        %v5754 = vpack.c.bf16 %v4991, %v4990
        %v5755 = vpack.c.bf16 %v4993, %v4992
        %v5756 = vpack.c.bf16 %v4995, %v4994
        %v5757 = vpack.c.bf16 %v4997, %v4996
        %v5758 = vpack.c.bf16 %v4999, %v4998
        %v5759 = vpack.c.bf16 %v5001, %v5000
        %v5760 = vpack.c.bf16 %v5003, %v5002
        %v5761 = vpack.c.bf16 %v5005, %v5004
        %v5762 = vpack.c.bf16 %v5007, %v5006
        %v5763 = vpack.c.bf16 %v5009, %v5008
        %v5764 = vpack.c.bf16 %v5011, %v5010
        %v5765 = vpack.c.bf16 %v5013, %v5012
        %v5766 = vld [vmem:[%s3] sm:$0xf]
        %vm5767 = vcmask 64512
        %v5769 = vsel %vm5767, %v5750, 0
        %v5772 = vsel %vm5767, %v5751, 0
        %v5775 = vsel %vm5767, %v5752, 0
        %v5778 = vsel %vm5767, %v5753, 0
        %v5781 = vsel %vm5767, %v5754, 0
        %v5784 = vsel %vm5767, %v5755, 0
        %v5787 = vsel %vm5767, %v5756, 0
        %v5790 = vsel %vm5767, %v5757, 0
        %v5793 = vsel %vm5767, %v5758, 0
        %v5796 = vsel %vm5767, %v5759, 0
        %v5799 = vsel %vm5767, %v5760, 0
        %v5802 = vsel %vm5767, %v5761, 0
        %v5805 = vsel %vm5767, %v5762, 0
        %v5808 = vsel %vm5767, %v5763, 0
        %v5811 = vsel %vm5767, %v5764, 0
        %v5814 = vsel %vm5767, %v5765, 0
        %vm5816 = vcmask 1043456
        %v5818 = vsel %vm5816, %v5766, 0
        %5820 = vmatpush.bf16.msra.mxu0 0
        %5821 = vmatpush.bf16.msra.mxu0 0
        %5822 = vmatpush.bf16.msra.mxu0 0
        %5823 = vmatpush.bf16.msra.mxu0 0
        %5824 = vmatpush.bf16.msra.mxu0 0
        %5825 = vmatpush.bf16.msra.mxu0 0
        %5826 = vmatpush.bf16.msra.mxu0 0
        %5827 = vmatpush.bf16.msra.mxu0 %v5818
        %5828 = vmatmul.bf16.gmra.mxu0 %v5769
        %v5829 = vpop.f32.mrf.mxu0
        %v5830 = vadd.f32 0.0, %v5829
        %v5831 = vpop.f32.mrf.mxu0
        %v5832 = vadd.f32 0.0, %v5831
        %5833 = vmatmul.bf16.gmra.mxu0 %v5772
        %v5834 = vpop.f32.mrf.mxu0
        %v5835 = vadd.f32 0.0, %v5834
        %v5836 = vpop.f32.mrf.mxu0
        %v5837 = vadd.f32 0.0, %v5836
        %5838 = vmatmul.bf16.gmra.mxu0 %v5775
        %v5839 = vpop.f32.mrf.mxu0
        %v5840 = vadd.f32 0.0, %v5839
        %v5841 = vpop.f32.mrf.mxu0
        %v5842 = vadd.f32 0.0, %v5841
        %5843 = vmatmul.bf16.gmra.mxu0 %v5778
        %v5844 = vpop.f32.mrf.mxu0
        %v5845 = vadd.f32 0.0, %v5844
        %v5846 = vpop.f32.mrf.mxu0
        %v5847 = vadd.f32 0.0, %v5846
        %5848 = vmatmul.bf16.gmra.mxu0 %v5781
        %v5849 = vpop.f32.mrf.mxu0
        %v5850 = vadd.f32 0.0, %v5849
        %v5851 = vpop.f32.mrf.mxu0
        %v5852 = vadd.f32 0.0, %v5851
        %5853 = vmatmul.bf16.gmra.mxu0 %v5784
        %v5854 = vpop.f32.mrf.mxu0
        %v5855 = vadd.f32 0.0, %v5854
        %v5856 = vpop.f32.mrf.mxu0
        %v5857 = vadd.f32 0.0, %v5856
        %5858 = vmatmul.bf16.gmra.mxu0 %v5787
        %v5859 = vpop.f32.mrf.mxu0
        %v5860 = vadd.f32 0.0, %v5859
        %v5861 = vpop.f32.mrf.mxu0
        %v5862 = vadd.f32 0.0, %v5861
        %5863 = vmatmul.bf16.gmra.mxu0 %v5790
        %v5864 = vpop.f32.mrf.mxu0
        %v5865 = vadd.f32 0.0, %v5864
        %v5866 = vpop.f32.mrf.mxu0
        %v5867 = vadd.f32 0.0, %v5866
        %5868 = vmatmul.bf16.gmra.mxu0 %v5793
        %v5869 = vpop.f32.mrf.mxu0
        %v5870 = vadd.f32 0.0, %v5869
        %v5871 = vpop.f32.mrf.mxu0
        %v5872 = vadd.f32 0.0, %v5871
        %5873 = vmatmul.bf16.gmra.mxu0 %v5796
        %v5874 = vpop.f32.mrf.mxu0
        %v5875 = vadd.f32 0.0, %v5874
        %v5876 = vpop.f32.mrf.mxu0
        %v5877 = vadd.f32 0.0, %v5876
        %5878 = vmatmul.bf16.gmra.mxu0 %v5799
        %v5879 = vpop.f32.mrf.mxu0
        %v5880 = vadd.f32 0.0, %v5879
        %v5881 = vpop.f32.mrf.mxu0
        %v5882 = vadd.f32 0.0, %v5881
        %5883 = vmatmul.bf16.gmra.mxu0 %v5802
        %v5884 = vpop.f32.mrf.mxu0
        %v5885 = vadd.f32 0.0, %v5884
        %v5886 = vpop.f32.mrf.mxu0
        %v5887 = vadd.f32 0.0, %v5886
        %5888 = vmatmul.bf16.gmra.mxu0 %v5805
        %v5889 = vpop.f32.mrf.mxu0
        %v5890 = vadd.f32 0.0, %v5889
        %v5891 = vpop.f32.mrf.mxu0
        %v5892 = vadd.f32 0.0, %v5891
        %5893 = vmatmul.bf16.gmra.mxu0 %v5808
        %v5894 = vpop.f32.mrf.mxu0
        %v5895 = vadd.f32 0.0, %v5894
        %v5896 = vpop.f32.mrf.mxu0
        %v5897 = vadd.f32 0.0, %v5896
        %5898 = vmatmul.bf16.gmra.mxu0 %v5811
        %v5899 = vpop.f32.mrf.mxu0
        %v5900 = vadd.f32 0.0, %v5899
        %v5901 = vpop.f32.mrf.mxu0
        %v5902 = vadd.f32 0.0, %v5901
        %5903 = vmatmul.bf16.gmra.mxu0 %v5814
        %v5904 = vpop.f32.mrf.mxu0
        %v5905 = vadd.f32 0.0, %v5904
        %v5906 = vpop.f32.mrf.mxu0
        %v5907 = vadd.f32 0.0, %v5906
        %5908 = vdwg.mxu0
        %v5909 = vpack.c.bf16 %v5719, %v5718
        %v5910 = vpack.c.bf16 %v5721, %v5720
        %v5911 = vpack.c.bf16 %v5723, %v5722
        %v5912 = vpack.c.bf16 %v5725, %v5724
        %v5913 = vpack.c.bf16 %v5727, %v5726
        %v5914 = vpack.c.bf16 %v5729, %v5728
        %v5915 = vpack.c.bf16 %v5731, %v5730
        %v5916 = vpack.c.bf16 %v5733, %v5732
        %v5917 = vpack.c.bf16 %v5735, %v5734
        %v5918 = vpack.c.bf16 %v5737, %v5736
        %v5919 = vpack.c.bf16 %v5739, %v5738
        %v5920 = vpack.c.bf16 %v5741, %v5740
        %v5921 = vpack.c.bf16 %v5743, %v5742
        %v5922 = vpack.c.bf16 %v5745, %v5744
        %v5923 = vpack.c.bf16 %v5747, %v5746
        %v5924 = vpack.c.bf16 %v5749, %v5748
        %v5925 = vld [vmem:[%s4] sm:$0xf]
        %v5927 = vsel %vm5767, %v5909, 0
        %v5930 = vsel %vm5767, %v5910, 0
        %v5933 = vsel %vm5767, %v5911, 0
        %v5936 = vsel %vm5767, %v5912, 0
        %v5939 = vsel %vm5767, %v5913, 0
        %v5942 = vsel %vm5767, %v5914, 0
        %v5945 = vsel %vm5767, %v5915, 0
        %v5948 = vsel %vm5767, %v5916, 0
        %v5951 = vsel %vm5767, %v5917, 0
        %v5954 = vsel %vm5767, %v5918, 0
        %v5957 = vsel %vm5767, %v5919, 0
        %v5960 = vsel %vm5767, %v5920, 0
        %v5963 = vsel %vm5767, %v5921, 0
        %v5966 = vsel %vm5767, %v5922, 0
        %v5969 = vsel %vm5767, %v5923, 0
        %v5972 = vsel %vm5767, %v5924, 0
        %v5975 = vsel %vm5816, %v5925, 0
        %5977 = vmatpush.bf16.msra.mxu0 0
        %5978 = vmatpush.bf16.msra.mxu0 0
        %5979 = vmatpush.bf16.msra.mxu0 0
        %5980 = vmatpush.bf16.msra.mxu0 0
        %5981 = vmatpush.bf16.msra.mxu0 0
        %5982 = vmatpush.bf16.msra.mxu0 0
        %5983 = vmatpush.bf16.msra.mxu0 0
        %5984 = vmatpush.bf16.msra.mxu0 %v5975
        %5985 = vmatmul.bf16.gmra.mxu0 %v5927
        %v5986 = vpop.f32.mrf.mxu0
        %v5987 = vadd.f32 0.0, %v5986
        %v5988 = vpop.f32.mrf.mxu0
        %v5989 = vadd.f32 0.0, %v5988
        %5990 = vmatmul.bf16.gmra.mxu0 %v5930
        %v5991 = vpop.f32.mrf.mxu0
        %v5992 = vadd.f32 0.0, %v5991
        %v5993 = vpop.f32.mrf.mxu0
        %v5994 = vadd.f32 0.0, %v5993
        %5995 = vmatmul.bf16.gmra.mxu0 %v5933
        %v5996 = vpop.f32.mrf.mxu0
        %v5997 = vadd.f32 0.0, %v5996
        %v5998 = vpop.f32.mrf.mxu0
        %v5999 = vadd.f32 0.0, %v5998
        %6000 = vmatmul.bf16.gmra.mxu0 %v5936
        %v6001 = vpop.f32.mrf.mxu0
        %v6002 = vadd.f32 0.0, %v6001
        %v6003 = vpop.f32.mrf.mxu0
        %v6004 = vadd.f32 0.0, %v6003
        %6005 = vmatmul.bf16.gmra.mxu0 %v5939
        %v6006 = vpop.f32.mrf.mxu0
        %v6007 = vadd.f32 0.0, %v6006
        %v6008 = vpop.f32.mrf.mxu0
        %v6009 = vadd.f32 0.0, %v6008
        %6010 = vmatmul.bf16.gmra.mxu0 %v5942
        %v6011 = vpop.f32.mrf.mxu0
        %v6012 = vadd.f32 0.0, %v6011
        %v6013 = vpop.f32.mrf.mxu0
        %v6014 = vadd.f32 0.0, %v6013
        %6015 = vmatmul.bf16.gmra.mxu0 %v5945
        %v6016 = vpop.f32.mrf.mxu0
        %v6017 = vadd.f32 0.0, %v6016
        %v6018 = vpop.f32.mrf.mxu0
        %v6019 = vadd.f32 0.0, %v6018
        %6020 = vmatmul.bf16.gmra.mxu0 %v5948
        %v6021 = vpop.f32.mrf.mxu0
        %v6022 = vadd.f32 0.0, %v6021
        %v6023 = vpop.f32.mrf.mxu0
        %v6024 = vadd.f32 0.0, %v6023
        %6025 = vmatmul.bf16.gmra.mxu0 %v5951
        %v6026 = vpop.f32.mrf.mxu0
        %v6027 = vadd.f32 0.0, %v6026
        %v6028 = vpop.f32.mrf.mxu0
        %v6029 = vadd.f32 0.0, %v6028
        %6030 = vmatmul.bf16.gmra.mxu0 %v5954
        %v6031 = vpop.f32.mrf.mxu0
        %v6032 = vadd.f32 0.0, %v6031
        %v6033 = vpop.f32.mrf.mxu0
        %v6034 = vadd.f32 0.0, %v6033
        %6035 = vmatmul.bf16.gmra.mxu0 %v5957
        %v6036 = vpop.f32.mrf.mxu0
        %v6037 = vadd.f32 0.0, %v6036
        %v6038 = vpop.f32.mrf.mxu0
        %v6039 = vadd.f32 0.0, %v6038
        %6040 = vmatmul.bf16.gmra.mxu0 %v5960
        %v6041 = vpop.f32.mrf.mxu0
        %v6042 = vadd.f32 0.0, %v6041
        %v6043 = vpop.f32.mrf.mxu0
        %v6044 = vadd.f32 0.0, %v6043
        %6045 = vmatmul.bf16.gmra.mxu0 %v5963
        %v6046 = vpop.f32.mrf.mxu0
        %v6047 = vadd.f32 0.0, %v6046
        %v6048 = vpop.f32.mrf.mxu0
        %v6049 = vadd.f32 0.0, %v6048
        %6050 = vmatmul.bf16.gmra.mxu0 %v5966
        %v6051 = vpop.f32.mrf.mxu0
        %v6052 = vadd.f32 0.0, %v6051
        %v6053 = vpop.f32.mrf.mxu0
        %v6054 = vadd.f32 0.0, %v6053
        %6055 = vmatmul.bf16.gmra.mxu0 %v5969
        %v6056 = vpop.f32.mrf.mxu0
        %v6057 = vadd.f32 0.0, %v6056
        %v6058 = vpop.f32.mrf.mxu0
        %v6059 = vadd.f32 0.0, %v6058
        %6060 = vmatmul.bf16.gmra.mxu0 %v5972
        %v6061 = vpop.f32.mrf.mxu0
        %v6062 = vadd.f32 0.0, %v6061
        %v6063 = vpop.f32.mrf.mxu0
        %v6064 = vadd.f32 0.0, %v6063
        %6065 = vdwg.mxu0
        %v6066 = vmul.f32 %v5830, %v5987
        %v6067 = vmul.f32 %v5832, %v5989
        %v6068 = vmul.f32 %v5835, %v5992
        %v6069 = vmul.f32 %v5837, %v5994
        %v6070 = vmul.f32 %v5840, %v5997
        %v6071 = vmul.f32 %v5842, %v5999
        %v6072 = vmul.f32 %v5845, %v6002
        %v6073 = vmul.f32 %v5847, %v6004
        %v6074 = vmul.f32 %v5850, %v6007
        %v6075 = vmul.f32 %v5852, %v6009
        %v6076 = vmul.f32 %v5855, %v6012
        %v6077 = vmul.f32 %v5857, %v6014
        %v6078 = vmul.f32 %v5860, %v6017
        %v6079 = vmul.f32 %v5862, %v6019
        %v6080 = vmul.f32 %v5865, %v6022
        %v6081 = vmul.f32 %v5867, %v6024
        %v6082 = vmul.f32 %v5870, %v6027
        %v6083 = vmul.f32 %v5872, %v6029
        %v6084 = vmul.f32 %v5875, %v6032
        %v6085 = vmul.f32 %v5877, %v6034
        %v6086 = vmul.f32 %v5880, %v6037
        %v6087 = vmul.f32 %v5882, %v6039
        %v6088 = vmul.f32 %v5885, %v6042
        %v6089 = vmul.f32 %v5887, %v6044
        %v6090 = vmul.f32 %v5890, %v6047
        %v6091 = vmul.f32 %v5892, %v6049
        %v6092 = vmul.f32 %v5895, %v6052
        %v6093 = vmul.f32 %v5897, %v6054
        %v6094 = vmul.f32 %v5900, %v6057
        %v6095 = vmul.f32 %v5902, %v6059
        %v6096 = vmul.f32 %v5905, %v6062
        %v6097 = vmul.f32 %v5907, %v6064
        %v6098 = vpack.c.bf16 %v6067, %v6066
        %v6099 = vpack.c.bf16 %v6069, %v6068
        %v6100 = vpack.c.bf16 %v6071, %v6070
        %v6101 = vpack.c.bf16 %v6073, %v6072
        %v6102 = vpack.c.bf16 %v6075, %v6074
        %v6103 = vpack.c.bf16 %v6077, %v6076
        %v6104 = vpack.c.bf16 %v6079, %v6078
        %v6105 = vpack.c.bf16 %v6081, %v6080
        %v6106 = vpack.c.bf16 %v6083, %v6082
        %v6107 = vpack.c.bf16 %v6085, %v6084
        %v6108 = vpack.c.bf16 %v6087, %v6086
        %v6109 = vpack.c.bf16 %v6089, %v6088
        %v6110 = vpack.c.bf16 %v6091, %v6090
        %v6111 = vpack.c.bf16 %v6093, %v6092
        %v6112 = vpack.c.bf16 %v6095, %v6094
        %v6113 = vpack.c.bf16 %v6097, %v6096
        %v6115 = vsel %vm555, %v6098, 0
        %v6118 = vsel %vm555, %v6099, 0
        %v6121 = vsel %vm555, %v6100, 0
        %v6124 = vsel %vm555, %v6101, 0
        %v6127 = vsel %vm555, %v6102, 0
        %v6130 = vsel %vm555, %v6103, 0
        %v6133 = vsel %vm555, %v6104, 0
        %v6136 = vsel %vm555, %v6105, 0
        %v6139 = vsel %vm555, %v6106, 0
        %v6142 = vsel %vm555, %v6107, 0
        %v6145 = vsel %vm555, %v6108, 0
        %v6148 = vsel %vm555, %v6109, 0
        %v6151 = vsel %vm555, %v6110, 0
        %v6154 = vsel %vm555, %v6111, 0
        %v6157 = vsel %vm555, %v6112, 0
        %v6160 = vsel %vm555, %v6113, 0
        %6162 = vmatpush.bf16.msra.mxu0 0
        %6163 = vmatpush.bf16.msra.mxu0 0
        %6164 = vmatpush.bf16.msra.mxu0 0
        %6165 = vmatpush.bf16.msra.mxu0 0
        %6166 = vmatpush.bf16.msra.mxu0 %v550
        %6167 = vmatpush.bf16.msra.mxu0 %v549
        %6168 = vmatpush.bf16.msra.mxu0 %v548
        %6169 = vmatpush.bf16.msra.mxu0 %v547
        %6170 = vmatmul.bf16.gmra.mxu0 %v6115
        %v6171 = vpop.f32.mrf.mxu0
        %v6172 = vadd.f32 0.0, %v6171
        %v6173 = vpop.f32.mrf.mxu0
        %v6174 = vadd.f32 0.0, %v6173
        %6175 = vmatmul.bf16.gmra.mxu0 %v6118
        %v6176 = vpop.f32.mrf.mxu0
        %v6177 = vadd.f32 0.0, %v6176
        %v6178 = vpop.f32.mrf.mxu0
        %v6179 = vadd.f32 0.0, %v6178
        %6180 = vmatmul.bf16.gmra.mxu0 %v6121
        %v6181 = vpop.f32.mrf.mxu0
        %v6182 = vadd.f32 0.0, %v6181
        %v6183 = vpop.f32.mrf.mxu0
        %v6184 = vadd.f32 0.0, %v6183
        %6185 = vmatmul.bf16.gmra.mxu0 %v6124
        %v6186 = vpop.f32.mrf.mxu0
        %v6187 = vadd.f32 0.0, %v6186
        %v6188 = vpop.f32.mrf.mxu0
        %v6189 = vadd.f32 0.0, %v6188
        %6190 = vmatmul.bf16.gmra.mxu0 %v6127
        %v6191 = vpop.f32.mrf.mxu0
        %v6192 = vadd.f32 0.0, %v6191
        %v6193 = vpop.f32.mrf.mxu0
        %v6194 = vadd.f32 0.0, %v6193
        %6195 = vmatmul.bf16.gmra.mxu0 %v6130
        %v6196 = vpop.f32.mrf.mxu0
        %v6197 = vadd.f32 0.0, %v6196
        %v6198 = vpop.f32.mrf.mxu0
        %v6199 = vadd.f32 0.0, %v6198
        %6200 = vmatmul.bf16.gmra.mxu0 %v6133
        %v6201 = vpop.f32.mrf.mxu0
        %v6202 = vadd.f32 0.0, %v6201
        %v6203 = vpop.f32.mrf.mxu0
        %v6204 = vadd.f32 0.0, %v6203
        %6205 = vmatmul.bf16.gmra.mxu0 %v6136
        %v6206 = vpop.f32.mrf.mxu0
        %v6207 = vadd.f32 0.0, %v6206
        %v6208 = vpop.f32.mrf.mxu0
        %v6209 = vadd.f32 0.0, %v6208
        %6210 = vmatmul.bf16.gmra.mxu0 %v6139
        %v6211 = vpop.f32.mrf.mxu0
        %v6212 = vadd.f32 0.0, %v6211
        %v6213 = vpop.f32.mrf.mxu0
        %v6214 = vadd.f32 0.0, %v6213
        %6215 = vmatmul.bf16.gmra.mxu0 %v6142
        %v6216 = vpop.f32.mrf.mxu0
        %v6217 = vadd.f32 0.0, %v6216
        %v6218 = vpop.f32.mrf.mxu0
        %v6219 = vadd.f32 0.0, %v6218
        %6220 = vmatmul.bf16.gmra.mxu0 %v6145
        %v6221 = vpop.f32.mrf.mxu0
        %v6222 = vadd.f32 0.0, %v6221
        %v6223 = vpop.f32.mrf.mxu0
        %v6224 = vadd.f32 0.0, %v6223
        %6225 = vmatmul.bf16.gmra.mxu0 %v6148
        %v6226 = vpop.f32.mrf.mxu0
        %v6227 = vadd.f32 0.0, %v6226
        %v6228 = vpop.f32.mrf.mxu0
        %v6229 = vadd.f32 0.0, %v6228
        %6230 = vmatmul.bf16.gmra.mxu0 %v6151
        %v6231 = vpop.f32.mrf.mxu0
        %v6232 = vadd.f32 0.0, %v6231
        %v6233 = vpop.f32.mrf.mxu0
        %v6234 = vadd.f32 0.0, %v6233
        %6235 = vmatmul.bf16.gmra.mxu0 %v6154
        %v6236 = vpop.f32.mrf.mxu0
        %v6237 = vadd.f32 0.0, %v6236
        %v6238 = vpop.f32.mrf.mxu0
        %v6239 = vadd.f32 0.0, %v6238
        %6240 = vmatmul.bf16.gmra.mxu0 %v6157
        %v6241 = vpop.f32.mrf.mxu0
        %v6242 = vadd.f32 0.0, %v6241
        %v6243 = vpop.f32.mrf.mxu0
        %v6244 = vadd.f32 0.0, %v6243
        %6245 = vmatmul.bf16.gmra.mxu0 %v6160
        %v6246 = vpop.f32.mrf.mxu0
        %v6247 = vadd.f32 0.0, %v6246
        %v6248 = vpop.f32.mrf.mxu0
        %v6249 = vadd.f32 0.0, %v6248
        %6250 = vdwg.mxu0
        %v6251 = vpack.c.bf16 %v6174, %v6172
        %v6252 = vpack.c.bf16 %v6179, %v6177
        %v6253 = vpack.c.bf16 %v6184, %v6182
        %v6254 = vpack.c.bf16 %v6189, %v6187
        %v6255 = vpack.c.bf16 %v6194, %v6192
        %v6256 = vpack.c.bf16 %v6199, %v6197
        %v6257 = vpack.c.bf16 %v6204, %v6202
        %v6258 = vpack.c.bf16 %v6209, %v6207
        %v6259 = vpack.c.bf16 %v6214, %v6212
        %v6260 = vpack.c.bf16 %v6219, %v6217
        %v6261 = vpack.c.bf16 %v6224, %v6222
        %v6262 = vpack.c.bf16 %v6229, %v6227
        %v6263 = vpack.c.bf16 %v6234, %v6232
        %v6264 = vpack.c.bf16 %v6239, %v6237
        %v6265 = vpack.c.bf16 %v6244, %v6242
        %v6266 = vpack.c.bf16 %v6249, %v6247
        %v6267 = vld [vmem:[%s9] sm:$0xf]
        %v6268 = vld [vmem:[%s9 + $0x4] sm:$0xf]
        %v6269 = vld [vmem:[%s9 + $0x8] sm:$0xf]
        %v6270 = vld [vmem:[%s9 + $0xc] sm:$0xf]
        %v6271 = vld [vmem:[%s9 + $0x10] sm:$0xf]
        %v6272 = vld [vmem:[%s9 + $0x14] sm:$0xf]
        %v6273 = vld [vmem:[%s9 + $0x18] sm:$0xf]
        %v6274 = vld [vmem:[%s9 + $0x1c] sm:$0xf]
        %v6275 = vld [vmem:[%s9 + $0x20] sm:$0xf]
        %v6276 = vld [vmem:[%s9 + $0x24] sm:$0xf]
        %v6277 = vld [vmem:[%s9 + $0x28] sm:$0xf]
        %v6278 = vld [vmem:[%s9 + $0x2c] sm:$0xf]
        %v6279 = vld [vmem:[%s9 + $0x30] sm:$0xf]
        %v6280 = vld [vmem:[%s9 + $0x34] sm:$0xf]
        %v6281 = vld [vmem:[%s9 + $0x38] sm:$0xf]
        %v6282 = vld [vmem:[%s9 + $0x3c] sm:$0xf]
        %v6299 = vunpack.c.l.b16 %v6267
        %v6300 = vunpack.c.l.b16 %v6268
        %v6301 = vunpack.c.l.b16 %v6269
        %v6302 = vunpack.c.l.b16 %v6270
        %v6303 = vunpack.c.l.b16 %v6271
        %v6304 = vunpack.c.l.b16 %v6272
        %v6305 = vunpack.c.l.b16 %v6273
        %v6306 = vunpack.c.l.b16 %v6274
        %v6307 = vunpack.c.l.b16 %v6275
        %v6308 = vunpack.c.l.b16 %v6276
        %v6309 = vunpack.c.l.b16 %v6277
        %v6310 = vunpack.c.l.b16 %v6278
        %v6311 = vunpack.c.l.b16 %v6279
        %v6312 = vunpack.c.l.b16 %v6280
        %v6313 = vunpack.c.l.b16 %v6281
        %v6314 = vunpack.c.l.b16 %v6282
        %v6315 = vpack.c.b16 %v6300, %v6299
        %v6316 = vpack.c.b16 %v6302, %v6301
        %v6317 = vpack.c.b16 %v6304, %v6303
        %v6318 = vpack.c.b16 %v6306, %v6305
        %v6319 = vpack.c.b16 %v6308, %v6307
        %v6320 = vpack.c.b16 %v6310, %v6309
        %v6321 = vpack.c.b16 %v6312, %v6311
        %v6322 = vpack.c.b16 %v6314, %v6313
        %6331 = vmatpush.bf16.msra.mxu0 %v6322
        %6332 = vmatpush.bf16.msra.mxu0 %v6321
        %6333 = vmatpush.bf16.msra.mxu0 %v6320
        %6334 = vmatpush.bf16.msra.mxu0 %v6319
        %6335 = vmatpush.bf16.msra.mxu0 %v6318
        %6336 = vmatpush.bf16.msra.mxu0 %v6317
        %6337 = vmatpush.bf16.msra.mxu0 %v6316
        %6338 = vmatpush.bf16.msra.mxu0 %v6315
        %6339 = vmatmul.bf16.gmra.mxu0 %v6251
        %v6340 = vpop.f32.mrf.mxu0
        %v6341 = vadd.f32 0.0, %v6340
        %v6342 = vpop.f32.mrf.mxu0
        %v6343 = vadd.f32 0.0, %v6342
        %6344 = vmatmul.bf16.gmra.mxu0 %v6252
        %v6345 = vpop.f32.mrf.mxu0
        %v6346 = vadd.f32 0.0, %v6345
        %v6347 = vpop.f32.mrf.mxu0
        %v6348 = vadd.f32 0.0, %v6347
        %6349 = vmatmul.bf16.gmra.mxu0 %v6253
        %v6350 = vpop.f32.mrf.mxu0
        %v6351 = vadd.f32 0.0, %v6350
        %v6352 = vpop.f32.mrf.mxu0
        %v6353 = vadd.f32 0.0, %v6352
        %6354 = vmatmul.bf16.gmra.mxu0 %v6254
        %v6355 = vpop.f32.mrf.mxu0
        %v6356 = vadd.f32 0.0, %v6355
        %v6357 = vpop.f32.mrf.mxu0
        %v6358 = vadd.f32 0.0, %v6357
        %6359 = vmatmul.bf16.gmra.mxu0 %v6255
        %v6360 = vpop.f32.mrf.mxu0
        %v6361 = vadd.f32 0.0, %v6360
        %v6362 = vpop.f32.mrf.mxu0
        %v6363 = vadd.f32 0.0, %v6362
        %6364 = vmatmul.bf16.gmra.mxu0 %v6256
        %v6365 = vpop.f32.mrf.mxu0
        %v6366 = vadd.f32 0.0, %v6365
        %v6367 = vpop.f32.mrf.mxu0
        %v6368 = vadd.f32 0.0, %v6367
        %6369 = vmatmul.bf16.gmra.mxu0 %v6257
        %v6370 = vpop.f32.mrf.mxu0
        %v6371 = vadd.f32 0.0, %v6370
        %v6372 = vpop.f32.mrf.mxu0
        %v6373 = vadd.f32 0.0, %v6372
        %6374 = vmatmul.bf16.gmra.mxu0 %v6258
        %v6375 = vpop.f32.mrf.mxu0
        %v6376 = vadd.f32 0.0, %v6375
        %v6377 = vpop.f32.mrf.mxu0
        %v6378 = vadd.f32 0.0, %v6377
        %6379 = vmatmul.bf16.gmra.mxu0 %v6259
        %v6380 = vpop.f32.mrf.mxu0
        %v6381 = vadd.f32 0.0, %v6380
        %v6382 = vpop.f32.mrf.mxu0
        %v6383 = vadd.f32 0.0, %v6382
        %6384 = vmatmul.bf16.gmra.mxu0 %v6260
        %v6385 = vpop.f32.mrf.mxu0
        %v6386 = vadd.f32 0.0, %v6385
        %v6387 = vpop.f32.mrf.mxu0
        %v6388 = vadd.f32 0.0, %v6387
        %6389 = vmatmul.bf16.gmra.mxu0 %v6261
        %v6390 = vpop.f32.mrf.mxu0
        %v6391 = vadd.f32 0.0, %v6390
        %v6392 = vpop.f32.mrf.mxu0
        %v6393 = vadd.f32 0.0, %v6392
        %6394 = vmatmul.bf16.gmra.mxu0 %v6262
        %v6395 = vpop.f32.mrf.mxu0
        %v6396 = vadd.f32 0.0, %v6395
        %v6397 = vpop.f32.mrf.mxu0
        %v6398 = vadd.f32 0.0, %v6397
        %6399 = vmatmul.bf16.gmra.mxu0 %v6263
        %v6400 = vpop.f32.mrf.mxu0
        %v6401 = vadd.f32 0.0, %v6400
        %v6402 = vpop.f32.mrf.mxu0
        %v6403 = vadd.f32 0.0, %v6402
        %6404 = vmatmul.bf16.gmra.mxu0 %v6264
        %v6405 = vpop.f32.mrf.mxu0
        %v6406 = vadd.f32 0.0, %v6405
        %v6407 = vpop.f32.mrf.mxu0
        %v6408 = vadd.f32 0.0, %v6407
        %6409 = vmatmul.bf16.gmra.mxu0 %v6265
        %v6410 = vpop.f32.mrf.mxu0
        %v6411 = vadd.f32 0.0, %v6410
        %v6412 = vpop.f32.mrf.mxu0
        %v6413 = vadd.f32 0.0, %v6412
        %6414 = vmatmul.bf16.gmra.mxu0 %v6266
        %v6415 = vpop.f32.mrf.mxu0
        %v6416 = vadd.f32 0.0, %v6415
        %v6417 = vpop.f32.mrf.mxu0
        %v6418 = vadd.f32 0.0, %v6417
        %6419 = vdwg.mxu0
        %v6450 = vrot.slane %v6341, 7
        %v6451 = vrot.slane %v6343, 7
        %v6452 = vsel %vm1141, %v6450, %v6451
        %v6453 = vrot.slane %v6346, 7
        %v6454 = vsel %vm1141, %v6451, %v6453
        %v6455 = vrot.slane %v6348, 7
        %v6456 = vsel %vm1141, %v6453, %v6455
        %v6457 = vrot.slane %v6351, 7
        %v6458 = vsel %vm1141, %v6455, %v6457
        %v6459 = vrot.slane %v6353, 7
        %v6460 = vsel %vm1141, %v6457, %v6459
        %v6461 = vrot.slane %v6356, 7
        %v6462 = vsel %vm1141, %v6459, %v6461
        %v6463 = vrot.slane %v6358, 7
        %v6464 = vsel %vm1141, %v6461, %v6463
        %v6465 = vrot.slane %v6361, 7
        %v6466 = vsel %vm1141, %v6463, %v6465
        %v6467 = vrot.slane %v6363, 7
        %v6468 = vsel %vm1141, %v6465, %v6467
        %v6469 = vrot.slane %v6366, 7
        %v6470 = vsel %vm1141, %v6467, %v6469
        %v6471 = vrot.slane %v6368, 7
        %v6472 = vsel %vm1141, %v6469, %v6471
        %v6473 = vrot.slane %v6371, 7
        %v6474 = vsel %vm1141, %v6471, %v6473
        %v6475 = vrot.slane %v6373, 7
        %v6476 = vsel %vm1141, %v6473, %v6475
        %v6477 = vrot.slane %v6376, 7
        %v6478 = vsel %vm1141, %v6475, %v6477
        %v6479 = vrot.slane %v6378, 7
        %v6480 = vsel %vm1141, %v6477, %v6479
        %v6481 = vrot.slane %v6381, 7
        %v6482 = vsel %vm1141, %v6479, %v6481
        %v6483 = vrot.slane %v6383, 7
        %v6484 = vsel %vm1141, %v6481, %v6483
        %v6485 = vrot.slane %v6386, 7
        %v6486 = vsel %vm1141, %v6483, %v6485
        %v6487 = vrot.slane %v6388, 7
        %v6488 = vsel %vm1141, %v6485, %v6487
        %v6489 = vrot.slane %v6391, 7
        %v6490 = vsel %vm1141, %v6487, %v6489
        %v6491 = vrot.slane %v6393, 7
        %v6492 = vsel %vm1141, %v6489, %v6491
        %v6493 = vrot.slane %v6396, 7
        %v6494 = vsel %vm1141, %v6491, %v6493
        %v6495 = vrot.slane %v6398, 7
        %v6496 = vsel %vm1141, %v6493, %v6495
        %v6497 = vrot.slane %v6401, 7
        %v6498 = vsel %vm1141, %v6495, %v6497
        %v6499 = vrot.slane %v6403, 7
        %v6500 = vsel %vm1141, %v6497, %v6499
        %v6501 = vrot.slane %v6406, 7
        %v6502 = vsel %vm1141, %v6499, %v6501
        %v6503 = vrot.slane %v6408, 7
        %v6504 = vsel %vm1141, %v6501, %v6503
        %v6505 = vrot.slane %v6411, 7
        %v6506 = vsel %vm1141, %v6503, %v6505
        %v6507 = vrot.slane %v6413, 7
        %v6508 = vsel %vm1141, %v6505, %v6507
        %v6539 = vsel %vm1141, 0.0, %v6450
        %v6540 = vmul.f32 %v1232, 0.0
        %v6541 = vmul.f32 %v1233, 0.0
        %v6542 = vmul.f32 %v6539, %v1234
        %v6543 = vmul.f32 %v6452, %v1235
        %v6544 = vmul.f32 %v6454, %v1236
        %v6545 = vmul.f32 %v6456, %v1237
        %v6546 = vmul.f32 %v6458, %v1238
        %v6547 = vmul.f32 %v6460, %v1239
        %v6548 = vmul.f32 %v6462, %v1240
        %v6549 = vmul.f32 %v6464, %v1241
        %v6550 = vmul.f32 %v6466, %v1242
        %v6551 = vmul.f32 %v6468, %v1243
        %v6552 = vmul.f32 %v6470, %v1244
        %v6553 = vmul.f32 %v6472, %v1245
        %v6554 = vmul.f32 %v6474, %v1246
        %v6555 = vmul.f32 %v6476, %v1247
        %v6556 = vmul.f32 %v6478, %v1248
        %v6557 = vmul.f32 %v6480, %v1249
        %v6558 = vmul.f32 %v6482, %v1250
        %v6559 = vmul.f32 %v6484, %v1251
        %v6560 = vmul.f32 %v6486, %v1252
        %v6561 = vmul.f32 %v6488, %v1253
        %v6562 = vmul.f32 %v6490, %v1254
        %v6563 = vmul.f32 %v6492, %v1255
        %v6564 = vmul.f32 %v6494, %v1256
        %v6565 = vmul.f32 %v6496, %v1257
        %v6566 = vmul.f32 %v6498, %v1258
        %v6567 = vmul.f32 %v6500, %v1259
        %v6568 = vmul.f32 %v6502, %v1260
        %v6569 = vmul.f32 %v6504, %v1261
        %v6570 = vmul.f32 %v6506, %v1262
        %v6571 = vmul.f32 %v6508, %v1263
        %6572 = vrot.lane.b32.xlu0 %v6341, 127
        %v6573 = vpop.permute.xlu0 %6572
        %6574 = vrot.lane.b32.xlu0 %v6343, 127
        %v6575 = vpop.permute.xlu0 %6574
        %6576 = vrot.lane.b32.xlu0 %v6346, 127
        %v6577 = vpop.permute.xlu0 %6576
        %6578 = vrot.lane.b32.xlu0 %v6348, 127
        %v6579 = vpop.permute.xlu0 %6578
        %6580 = vrot.lane.b32.xlu0 %v6351, 127
        %v6581 = vpop.permute.xlu0 %6580
        %6582 = vrot.lane.b32.xlu0 %v6353, 127
        %v6583 = vpop.permute.xlu0 %6582
        %6584 = vrot.lane.b32.xlu0 %v6356, 127
        %v6585 = vpop.permute.xlu0 %6584
        %6586 = vrot.lane.b32.xlu0 %v6358, 127
        %v6587 = vpop.permute.xlu0 %6586
        %6588 = vrot.lane.b32.xlu0 %v6361, 127
        %v6589 = vpop.permute.xlu0 %6588
        %6590 = vrot.lane.b32.xlu0 %v6363, 127
        %v6591 = vpop.permute.xlu0 %6590
        %6592 = vrot.lane.b32.xlu0 %v6366, 127
        %v6593 = vpop.permute.xlu0 %6592
        %6594 = vrot.lane.b32.xlu0 %v6368, 127
        %v6595 = vpop.permute.xlu0 %6594
        %6596 = vrot.lane.b32.xlu0 %v6371, 127
        %v6597 = vpop.permute.xlu0 %6596
        %6598 = vrot.lane.b32.xlu0 %v6373, 127
        %v6599 = vpop.permute.xlu0 %6598
        %6600 = vrot.lane.b32.xlu0 %v6376, 127
        %v6601 = vpop.permute.xlu0 %6600
        %6602 = vrot.lane.b32.xlu0 %v6378, 127
        %v6603 = vpop.permute.xlu0 %6602
        %6604 = vrot.lane.b32.xlu0 %v6381, 127
        %v6605 = vpop.permute.xlu0 %6604
        %6606 = vrot.lane.b32.xlu0 %v6383, 127
        %v6607 = vpop.permute.xlu0 %6606
        %6608 = vrot.lane.b32.xlu0 %v6386, 127
        %v6609 = vpop.permute.xlu0 %6608
        %6610 = vrot.lane.b32.xlu0 %v6388, 127
        %v6611 = vpop.permute.xlu0 %6610
        %6612 = vrot.lane.b32.xlu0 %v6391, 127
        %v6613 = vpop.permute.xlu0 %6612
        %6614 = vrot.lane.b32.xlu0 %v6393, 127
        %v6615 = vpop.permute.xlu0 %6614
        %6616 = vrot.lane.b32.xlu0 %v6396, 127
        %v6617 = vpop.permute.xlu0 %6616
        %6618 = vrot.lane.b32.xlu0 %v6398, 127
        %v6619 = vpop.permute.xlu0 %6618
        %6620 = vrot.lane.b32.xlu0 %v6401, 127
        %v6621 = vpop.permute.xlu0 %6620
        %6622 = vrot.lane.b32.xlu0 %v6403, 127
        %v6623 = vpop.permute.xlu0 %6622
        %6624 = vrot.lane.b32.xlu0 %v6406, 127
        %v6625 = vpop.permute.xlu0 %6624
        %6626 = vrot.lane.b32.xlu0 %v6408, 127
        %v6627 = vpop.permute.xlu0 %6626
        %6628 = vrot.lane.b32.xlu0 %v6411, 127
        %v6629 = vpop.permute.xlu0 %6628
        %6630 = vrot.lane.b32.xlu0 %v6413, 127
        %v6631 = vpop.permute.xlu0 %6630
        %6662 = vrot.lane.b32.xlu0 %v1232, 127
        %v6663 = vpop.permute.xlu0 %6662
        %6664 = vrot.lane.b32.xlu0 %v1233, 127
        %v6665 = vpop.permute.xlu0 %6664
        %6666 = vrot.lane.b32.xlu0 %v1234, 127
        %v6667 = vpop.permute.xlu0 %6666
        %6668 = vrot.lane.b32.xlu0 %v1235, 127
        %v6669 = vpop.permute.xlu0 %6668
        %6670 = vrot.lane.b32.xlu0 %v1236, 127
        %v6671 = vpop.permute.xlu0 %6670
        %6672 = vrot.lane.b32.xlu0 %v1237, 127
        %v6673 = vpop.permute.xlu0 %6672
        %6674 = vrot.lane.b32.xlu0 %v1238, 127
        %v6675 = vpop.permute.xlu0 %6674
        %6676 = vrot.lane.b32.xlu0 %v1239, 127
        %v6677 = vpop.permute.xlu0 %6676
        %6678 = vrot.lane.b32.xlu0 %v1240, 127
        %v6679 = vpop.permute.xlu0 %6678
        %6680 = vrot.lane.b32.xlu0 %v1241, 127
        %v6681 = vpop.permute.xlu0 %6680
        %6682 = vrot.lane.b32.xlu0 %v1242, 127
        %v6683 = vpop.permute.xlu0 %6682
        %6684 = vrot.lane.b32.xlu0 %v1243, 127
        %v6685 = vpop.permute.xlu0 %6684
        %6686 = vrot.lane.b32.xlu0 %v1244, 127
        %v6687 = vpop.permute.xlu0 %6686
        %6688 = vrot.lane.b32.xlu0 %v1245, 127
        %v6689 = vpop.permute.xlu0 %6688
        %6690 = vrot.lane.b32.xlu0 %v1246, 127
        %v6691 = vpop.permute.xlu0 %6690
        %6692 = vrot.lane.b32.xlu0 %v1247, 127
        %v6693 = vpop.permute.xlu0 %6692
        %6694 = vrot.lane.b32.xlu0 %v1248, 127
        %v6695 = vpop.permute.xlu0 %6694
        %6696 = vrot.lane.b32.xlu0 %v1249, 127
        %v6697 = vpop.permute.xlu0 %6696
        %6698 = vrot.lane.b32.xlu0 %v1250, 127
        %v6699 = vpop.permute.xlu0 %6698
        %6700 = vrot.lane.b32.xlu0 %v1251, 127
        %v6701 = vpop.permute.xlu0 %6700
        %6702 = vrot.lane.b32.xlu0 %v1252, 127
        %v6703 = vpop.permute.xlu0 %6702
        %6704 = vrot.lane.b32.xlu0 %v1253, 127
        %v6705 = vpop.permute.xlu0 %6704
        %6706 = vrot.lane.b32.xlu0 %v1254, 127
        %v6707 = vpop.permute.xlu0 %6706
        %6708 = vrot.lane.b32.xlu0 %v1255, 127
        %v6709 = vpop.permute.xlu0 %6708
        %6710 = vrot.lane.b32.xlu0 %v1256, 127
        %v6711 = vpop.permute.xlu0 %6710
        %6712 = vrot.lane.b32.xlu0 %v1257, 127
        %v6713 = vpop.permute.xlu0 %6712
        %6714 = vrot.lane.b32.xlu0 %v1258, 127
        %v6715 = vpop.permute.xlu0 %6714
        %6716 = vrot.lane.b32.xlu0 %v1259, 127
        %v6717 = vpop.permute.xlu0 %6716
        %6718 = vrot.lane.b32.xlu0 %v1260, 127
        %v6719 = vpop.permute.xlu0 %6718
        %6720 = vrot.lane.b32.xlu0 %v1261, 127
        %v6721 = vpop.permute.xlu0 %6720
        %6722 = vrot.lane.b32.xlu0 %v1262, 127
        %v6723 = vpop.permute.xlu0 %6722
        %6724 = vrot.lane.b32.xlu0 %v1263, 127
        %v6725 = vpop.permute.xlu0 %6724
        %v6758 = vmul.f32 %v6663, 0.0
        %v6759 = vmul.f32 %v6665, 0.0
        %v6760 = vmul.f32 %v6573, %v6667
        %v6761 = vmul.f32 %v6575, %v6669
        %v6762 = vmul.f32 %v6577, %v6671
        %v6763 = vmul.f32 %v6579, %v6673
        %v6764 = vmul.f32 %v6581, %v6675
        %v6765 = vmul.f32 %v6583, %v6677
        %v6766 = vmul.f32 %v6585, %v6679
        %v6767 = vmul.f32 %v6587, %v6681
        %v6768 = vmul.f32 %v6589, %v6683
        %v6769 = vmul.f32 %v6591, %v6685
        %v6770 = vmul.f32 %v6593, %v6687
        %v6771 = vmul.f32 %v6595, %v6689
        %v6772 = vmul.f32 %v6597, %v6691
        %v6773 = vmul.f32 %v6599, %v6693
        %v6774 = vmul.f32 %v6601, %v6695
        %v6775 = vmul.f32 %v6603, %v6697
        %v6776 = vmul.f32 %v6605, %v6699
        %v6777 = vmul.f32 %v6607, %v6701
        %v6778 = vmul.f32 %v6609, %v6703
        %v6779 = vmul.f32 %v6611, %v6705
        %v6780 = vmul.f32 %v6613, %v6707
        %v6781 = vmul.f32 %v6615, %v6709
        %v6782 = vmul.f32 %v6617, %v6711
        %v6783 = vmul.f32 %v6619, %v6713
        %v6784 = vmul.f32 %v6621, %v6715
        %v6785 = vmul.f32 %v6623, %v6717
        %v6786 = vmul.f32 %v6625, %v6719
        %v6787 = vmul.f32 %v6627, %v6721
        %v6788 = vmul.f32 %v6629, %v6723
        %v6789 = vmul.f32 %v6631, %v6725
        %v6790 = vadd.f32 %v6540, %v6758
        %v6791 = vadd.f32 %v6541, %v6759
        %v6792 = vadd.f32 %v6542, %v6760
        %v6793 = vadd.f32 %v6543, %v6761
        %v6794 = vadd.f32 %v6544, %v6762
        %v6795 = vadd.f32 %v6545, %v6763
        %v6796 = vadd.f32 %v6546, %v6764
        %v6797 = vadd.f32 %v6547, %v6765
        %v6798 = vadd.f32 %v6548, %v6766
        %v6799 = vadd.f32 %v6549, %v6767
        %v6800 = vadd.f32 %v6550, %v6768
        %v6801 = vadd.f32 %v6551, %v6769
        %v6802 = vadd.f32 %v6552, %v6770
        %v6803 = vadd.f32 %v6553, %v6771
        %v6804 = vadd.f32 %v6554, %v6772
        %v6805 = vadd.f32 %v6555, %v6773
        %v6806 = vadd.f32 %v6556, %v6774
        %v6807 = vadd.f32 %v6557, %v6775
        %v6808 = vadd.f32 %v6558, %v6776
        %v6809 = vadd.f32 %v6559, %v6777
        %v6810 = vadd.f32 %v6560, %v6778
        %v6811 = vadd.f32 %v6561, %v6779
        %v6812 = vadd.f32 %v6562, %v6780
        %v6813 = vadd.f32 %v6563, %v6781
        %v6814 = vadd.f32 %v6564, %v6782
        %v6815 = vadd.f32 %v6565, %v6783
        %v6816 = vadd.f32 %v6566, %v6784
        %v6817 = vadd.f32 %v6567, %v6785
        %v6818 = vadd.f32 %v6568, %v6786
        %v6819 = vadd.f32 %v6569, %v6787
        %v6820 = vadd.f32 %v6570, %v6788
        %v6821 = vadd.f32 %v6571, %v6789
        %v6823 = vrot.slane %v6341, 1
        %v6824 = vrot.slane %v6343, 1
        %v6825 = vsel %vm1739, %v6823, %v6824
        %v6826 = vrot.slane %v6346, 1
        %v6827 = vsel %vm1739, %v6824, %v6826
        %v6828 = vrot.slane %v6348, 1
        %v6829 = vsel %vm1739, %v6826, %v6828
        %v6830 = vrot.slane %v6351, 1
        %v6831 = vsel %vm1739, %v6828, %v6830
        %v6832 = vrot.slane %v6353, 1
        %v6833 = vsel %vm1739, %v6830, %v6832
        %v6834 = vrot.slane %v6356, 1
        %v6835 = vsel %vm1739, %v6832, %v6834
        %v6836 = vrot.slane %v6358, 1
        %v6837 = vsel %vm1739, %v6834, %v6836
        %v6838 = vrot.slane %v6361, 1
        %v6839 = vsel %vm1739, %v6836, %v6838
        %v6840 = vrot.slane %v6363, 1
        %v6841 = vsel %vm1739, %v6838, %v6840
        %v6842 = vrot.slane %v6366, 1
        %v6843 = vsel %vm1739, %v6840, %v6842
        %v6844 = vrot.slane %v6368, 1
        %v6845 = vsel %vm1739, %v6842, %v6844
        %v6846 = vrot.slane %v6371, 1
        %v6847 = vsel %vm1739, %v6844, %v6846
        %v6848 = vrot.slane %v6373, 1
        %v6849 = vsel %vm1739, %v6846, %v6848
        %v6850 = vrot.slane %v6376, 1
        %v6851 = vsel %vm1739, %v6848, %v6850
        %v6852 = vrot.slane %v6378, 1
        %v6853 = vsel %vm1739, %v6850, %v6852
        %v6854 = vrot.slane %v6381, 1
        %v6855 = vsel %vm1739, %v6852, %v6854
        %v6856 = vrot.slane %v6383, 1
        %v6857 = vsel %vm1739, %v6854, %v6856
        %v6858 = vrot.slane %v6386, 1
        %v6859 = vsel %vm1739, %v6856, %v6858
        %v6860 = vrot.slane %v6388, 1
        %v6861 = vsel %vm1739, %v6858, %v6860
        %v6862 = vrot.slane %v6391, 1
        %v6863 = vsel %vm1739, %v6860, %v6862
        %v6864 = vrot.slane %v6393, 1
        %v6865 = vsel %vm1739, %v6862, %v6864
        %v6866 = vrot.slane %v6396, 1
        %v6867 = vsel %vm1739, %v6864, %v6866
        %v6868 = vrot.slane %v6398, 1
        %v6869 = vsel %vm1739, %v6866, %v6868
        %v6870 = vrot.slane %v6401, 1
        %v6871 = vsel %vm1739, %v6868, %v6870
        %v6872 = vrot.slane %v6403, 1
        %v6873 = vsel %vm1739, %v6870, %v6872
        %v6874 = vrot.slane %v6406, 1
        %v6875 = vsel %vm1739, %v6872, %v6874
        %v6876 = vrot.slane %v6408, 1
        %v6877 = vsel %vm1739, %v6874, %v6876
        %v6878 = vrot.slane %v6411, 1
        %v6879 = vsel %vm1739, %v6876, %v6878
        %v6880 = vrot.slane %v6413, 1
        %v6881 = vsel %vm1739, %v6878, %v6880
        %v6882 = vrot.slane %v6416, 1
        %v6883 = vsel %vm1739, %v6880, %v6882
        %6884 = vrot.lane.b32.xlu0 %v6823, 126
        %v6885 = vpop.permute.xlu0 %6884
        %6886 = vrot.lane.b32.xlu0 %v6825, 126
        %v6887 = vpop.permute.xlu0 %6886
        %6888 = vrot.lane.b32.xlu0 %v6827, 126
        %v6889 = vpop.permute.xlu0 %6888
        %6890 = vrot.lane.b32.xlu0 %v6829, 126
        %v6891 = vpop.permute.xlu0 %6890
        %6892 = vrot.lane.b32.xlu0 %v6831, 126
        %v6893 = vpop.permute.xlu0 %6892
        %6894 = vrot.lane.b32.xlu0 %v6833, 126
        %v6895 = vpop.permute.xlu0 %6894
        %6896 = vrot.lane.b32.xlu0 %v6835, 126
        %v6897 = vpop.permute.xlu0 %6896
        %6898 = vrot.lane.b32.xlu0 %v6837, 126
        %v6899 = vpop.permute.xlu0 %6898
        %6900 = vrot.lane.b32.xlu0 %v6839, 126
        %v6901 = vpop.permute.xlu0 %6900
        %6902 = vrot.lane.b32.xlu0 %v6841, 126
        %v6903 = vpop.permute.xlu0 %6902
        %6904 = vrot.lane.b32.xlu0 %v6843, 126
        %v6905 = vpop.permute.xlu0 %6904
        %6906 = vrot.lane.b32.xlu0 %v6845, 126
        %v6907 = vpop.permute.xlu0 %6906
        %6908 = vrot.lane.b32.xlu0 %v6847, 126
        %v6909 = vpop.permute.xlu0 %6908
        %6910 = vrot.lane.b32.xlu0 %v6849, 126
        %v6911 = vpop.permute.xlu0 %6910
        %6912 = vrot.lane.b32.xlu0 %v6851, 126
        %v6913 = vpop.permute.xlu0 %6912
        %6914 = vrot.lane.b32.xlu0 %v6853, 126
        %v6915 = vpop.permute.xlu0 %6914
        %6916 = vrot.lane.b32.xlu0 %v6855, 126
        %v6917 = vpop.permute.xlu0 %6916
        %6918 = vrot.lane.b32.xlu0 %v6857, 126
        %v6919 = vpop.permute.xlu0 %6918
        %6920 = vrot.lane.b32.xlu0 %v6859, 126
        %v6921 = vpop.permute.xlu0 %6920
        %6922 = vrot.lane.b32.xlu0 %v6861, 126
        %v6923 = vpop.permute.xlu0 %6922
        %6924 = vrot.lane.b32.xlu0 %v6863, 126
        %v6925 = vpop.permute.xlu0 %6924
        %6926 = vrot.lane.b32.xlu0 %v6865, 126
        %v6927 = vpop.permute.xlu0 %6926
        %6928 = vrot.lane.b32.xlu0 %v6867, 126
        %v6929 = vpop.permute.xlu0 %6928
        %6930 = vrot.lane.b32.xlu0 %v6869, 126
        %v6931 = vpop.permute.xlu0 %6930
        %6932 = vrot.lane.b32.xlu0 %v6871, 126
        %v6933 = vpop.permute.xlu0 %6932
        %6934 = vrot.lane.b32.xlu0 %v6873, 126
        %v6935 = vpop.permute.xlu0 %6934
        %6936 = vrot.lane.b32.xlu0 %v6875, 126
        %v6937 = vpop.permute.xlu0 %6936
        %6938 = vrot.lane.b32.xlu0 %v6877, 126
        %v6939 = vpop.permute.xlu0 %6938
        %6940 = vrot.lane.b32.xlu0 %v6879, 126
        %v6941 = vpop.permute.xlu0 %6940
        %6942 = vrot.lane.b32.xlu0 %v6881, 126
        %v6943 = vpop.permute.xlu0 %6942
        %6944 = vrot.lane.b32.xlu0 %v6883, 126
        %v6945 = vpop.permute.xlu0 %6944
        %v6977 = vsel %vm1739, 0.0, %v6885
        %6978 = vrot.lane.b32.xlu0 %v1232, 126
        %v6979 = vpop.permute.xlu0 %6978
        %6980 = vrot.lane.b32.xlu0 %v1233, 126
        %v6981 = vpop.permute.xlu0 %6980
        %6982 = vrot.lane.b32.xlu0 %v1234, 126
        %v6983 = vpop.permute.xlu0 %6982
        %6984 = vrot.lane.b32.xlu0 %v1235, 126
        %v6985 = vpop.permute.xlu0 %6984
        %6986 = vrot.lane.b32.xlu0 %v1236, 126
        %v6987 = vpop.permute.xlu0 %6986
        %6988 = vrot.lane.b32.xlu0 %v1237, 126
        %v6989 = vpop.permute.xlu0 %6988
        %6990 = vrot.lane.b32.xlu0 %v1238, 126
        %v6991 = vpop.permute.xlu0 %6990
        %6992 = vrot.lane.b32.xlu0 %v1239, 126
        %v6993 = vpop.permute.xlu0 %6992
        %6994 = vrot.lane.b32.xlu0 %v1240, 126
        %v6995 = vpop.permute.xlu0 %6994
        %6996 = vrot.lane.b32.xlu0 %v1241, 126
        %v6997 = vpop.permute.xlu0 %6996
        %6998 = vrot.lane.b32.xlu0 %v1242, 126
        %v6999 = vpop.permute.xlu0 %6998
        %7000 = vrot.lane.b32.xlu0 %v1243, 126
        %v7001 = vpop.permute.xlu0 %7000
        %7002 = vrot.lane.b32.xlu0 %v1244, 126
        %v7003 = vpop.permute.xlu0 %7002
        %7004 = vrot.lane.b32.xlu0 %v1245, 126
        %v7005 = vpop.permute.xlu0 %7004
        %7006 = vrot.lane.b32.xlu0 %v1246, 126
        %v7007 = vpop.permute.xlu0 %7006
        %7008 = vrot.lane.b32.xlu0 %v1247, 126
        %v7009 = vpop.permute.xlu0 %7008
        %7010 = vrot.lane.b32.xlu0 %v1248, 126
        %v7011 = vpop.permute.xlu0 %7010
        %7012 = vrot.lane.b32.xlu0 %v1249, 126
        %v7013 = vpop.permute.xlu0 %7012
        %7014 = vrot.lane.b32.xlu0 %v1250, 126
        %v7015 = vpop.permute.xlu0 %7014
        %7016 = vrot.lane.b32.xlu0 %v1251, 126
        %v7017 = vpop.permute.xlu0 %7016
        %7018 = vrot.lane.b32.xlu0 %v1252, 126
        %v7019 = vpop.permute.xlu0 %7018
        %7020 = vrot.lane.b32.xlu0 %v1253, 126
        %v7021 = vpop.permute.xlu0 %7020
        %7022 = vrot.lane.b32.xlu0 %v1254, 126
        %v7023 = vpop.permute.xlu0 %7022
        %7024 = vrot.lane.b32.xlu0 %v1255, 126
        %v7025 = vpop.permute.xlu0 %7024
        %7026 = vrot.lane.b32.xlu0 %v1256, 126
        %v7027 = vpop.permute.xlu0 %7026
        %7028 = vrot.lane.b32.xlu0 %v1257, 126
        %v7029 = vpop.permute.xlu0 %7028
        %7030 = vrot.lane.b32.xlu0 %v1258, 126
        %v7031 = vpop.permute.xlu0 %7030
        %7032 = vrot.lane.b32.xlu0 %v1259, 126
        %v7033 = vpop.permute.xlu0 %7032
        %7034 = vrot.lane.b32.xlu0 %v1260, 126
        %v7035 = vpop.permute.xlu0 %7034
        %7036 = vrot.lane.b32.xlu0 %v1261, 126
        %v7037 = vpop.permute.xlu0 %7036
        %7038 = vrot.lane.b32.xlu0 %v1262, 126
        %v7039 = vpop.permute.xlu0 %7038
        %7040 = vrot.lane.b32.xlu0 %v1263, 126
        %v7041 = vpop.permute.xlu0 %7040
        %v7074 = vmul.f32 %v6979, 0.0
        %v7075 = vmul.f32 %v6977, %v6981
        %v7076 = vmul.f32 %v6887, %v6983
        %v7077 = vmul.f32 %v6889, %v6985
        %v7078 = vmul.f32 %v6891, %v6987
        %v7079 = vmul.f32 %v6893, %v6989
        %v7080 = vmul.f32 %v6895, %v6991
        %v7081 = vmul.f32 %v6897, %v6993
        %v7082 = vmul.f32 %v6899, %v6995
        %v7083 = vmul.f32 %v6901, %v6997
        %v7084 = vmul.f32 %v6903, %v6999
        %v7085 = vmul.f32 %v6905, %v7001
        %v7086 = vmul.f32 %v6907, %v7003
        %v7087 = vmul.f32 %v6909, %v7005
        %v7088 = vmul.f32 %v6911, %v7007
        %v7089 = vmul.f32 %v6913, %v7009
        %v7090 = vmul.f32 %v6915, %v7011
        %v7091 = vmul.f32 %v6917, %v7013
        %v7092 = vmul.f32 %v6919, %v7015
        %v7093 = vmul.f32 %v6921, %v7017
        %v7094 = vmul.f32 %v6923, %v7019
        %v7095 = vmul.f32 %v6925, %v7021
        %v7096 = vmul.f32 %v6927, %v7023
        %v7097 = vmul.f32 %v6929, %v7025
        %v7098 = vmul.f32 %v6931, %v7027
        %v7099 = vmul.f32 %v6933, %v7029
        %v7100 = vmul.f32 %v6935, %v7031
        %v7101 = vmul.f32 %v6937, %v7033
        %v7102 = vmul.f32 %v6939, %v7035
        %v7103 = vmul.f32 %v6941, %v7037
        %v7104 = vmul.f32 %v6943, %v7039
        %v7105 = vmul.f32 %v6945, %v7041
        %v7106 = vadd.f32 %v6790, %v7074
        %v7107 = vadd.f32 %v6791, %v7075
        %v7108 = vadd.f32 %v6792, %v7076
        %v7109 = vadd.f32 %v6793, %v7077
        %v7110 = vadd.f32 %v6794, %v7078
        %v7111 = vadd.f32 %v6795, %v7079
        %v7112 = vadd.f32 %v6796, %v7080
        %v7113 = vadd.f32 %v6797, %v7081
        %v7114 = vadd.f32 %v6798, %v7082
        %v7115 = vadd.f32 %v6799, %v7083
        %v7116 = vadd.f32 %v6800, %v7084
        %v7117 = vadd.f32 %v6801, %v7085
        %v7118 = vadd.f32 %v6802, %v7086
        %v7119 = vadd.f32 %v6803, %v7087
        %v7120 = vadd.f32 %v6804, %v7088
        %v7121 = vadd.f32 %v6805, %v7089
        %v7122 = vadd.f32 %v6806, %v7090
        %v7123 = vadd.f32 %v6807, %v7091
        %v7124 = vadd.f32 %v6808, %v7092
        %v7125 = vadd.f32 %v6809, %v7093
        %v7126 = vadd.f32 %v6810, %v7094
        %v7127 = vadd.f32 %v6811, %v7095
        %v7128 = vadd.f32 %v6812, %v7096
        %v7129 = vadd.f32 %v6813, %v7097
        %v7130 = vadd.f32 %v6814, %v7098
        %v7131 = vadd.f32 %v6815, %v7099
        %v7132 = vadd.f32 %v6816, %v7100
        %v7133 = vadd.f32 %v6817, %v7101
        %v7134 = vadd.f32 %v6818, %v7102
        %v7135 = vadd.f32 %v6819, %v7103
        %v7136 = vadd.f32 %v6820, %v7104
        %v7137 = vadd.f32 %v6821, %v7105
        %v7139 = vrot.slane %v6416, 7
        %v7140 = vsel %vm1141, %v6507, %v7139
        %v7141 = vrot.slane %v6418, 7
        %v7142 = vsel %vm1141, %v7139, %v7141
        %7143 = vrot.lane.b32.xlu0 %v6450, 125
        %v7144 = vpop.permute.xlu0 %7143
        %7145 = vrot.lane.b32.xlu0 %v6452, 125
        %v7146 = vpop.permute.xlu0 %7145
        %7147 = vrot.lane.b32.xlu0 %v6454, 125
        %v7148 = vpop.permute.xlu0 %7147
        %7149 = vrot.lane.b32.xlu0 %v6456, 125
        %v7150 = vpop.permute.xlu0 %7149
        %7151 = vrot.lane.b32.xlu0 %v6458, 125
        %v7152 = vpop.permute.xlu0 %7151
        %7153 = vrot.lane.b32.xlu0 %v6460, 125
        %v7154 = vpop.permute.xlu0 %7153
        %7155 = vrot.lane.b32.xlu0 %v6462, 125
        %v7156 = vpop.permute.xlu0 %7155
        %7157 = vrot.lane.b32.xlu0 %v6464, 125
        %v7158 = vpop.permute.xlu0 %7157
        %7159 = vrot.lane.b32.xlu0 %v6466, 125
        %v7160 = vpop.permute.xlu0 %7159
        %7161 = vrot.lane.b32.xlu0 %v6468, 125
        %v7162 = vpop.permute.xlu0 %7161
        %7163 = vrot.lane.b32.xlu0 %v6470, 125
        %v7164 = vpop.permute.xlu0 %7163
        %7165 = vrot.lane.b32.xlu0 %v6472, 125
        %v7166 = vpop.permute.xlu0 %7165
        %7167 = vrot.lane.b32.xlu0 %v6474, 125
        %v7168 = vpop.permute.xlu0 %7167
        %7169 = vrot.lane.b32.xlu0 %v6476, 125
        %v7170 = vpop.permute.xlu0 %7169
        %7171 = vrot.lane.b32.xlu0 %v6478, 125
        %v7172 = vpop.permute.xlu0 %7171
        %7173 = vrot.lane.b32.xlu0 %v6480, 125
        %v7174 = vpop.permute.xlu0 %7173
        %7175 = vrot.lane.b32.xlu0 %v6482, 125
        %v7176 = vpop.permute.xlu0 %7175
        %7177 = vrot.lane.b32.xlu0 %v6484, 125
        %v7178 = vpop.permute.xlu0 %7177
        %7179 = vrot.lane.b32.xlu0 %v6486, 125
        %v7180 = vpop.permute.xlu0 %7179
        %7181 = vrot.lane.b32.xlu0 %v6488, 125
        %v7182 = vpop.permute.xlu0 %7181
        %7183 = vrot.lane.b32.xlu0 %v6490, 125
        %v7184 = vpop.permute.xlu0 %7183
        %7185 = vrot.lane.b32.xlu0 %v6492, 125
        %v7186 = vpop.permute.xlu0 %7185
        %7187 = vrot.lane.b32.xlu0 %v6494, 125
        %v7188 = vpop.permute.xlu0 %7187
        %7189 = vrot.lane.b32.xlu0 %v6496, 125
        %v7190 = vpop.permute.xlu0 %7189
        %7191 = vrot.lane.b32.xlu0 %v6498, 125
        %v7192 = vpop.permute.xlu0 %7191
        %7193 = vrot.lane.b32.xlu0 %v6500, 125
        %v7194 = vpop.permute.xlu0 %7193
        %7195 = vrot.lane.b32.xlu0 %v6502, 125
        %v7196 = vpop.permute.xlu0 %7195
        %7197 = vrot.lane.b32.xlu0 %v6504, 125
        %v7198 = vpop.permute.xlu0 %7197
        %7199 = vrot.lane.b32.xlu0 %v6506, 125
        %v7200 = vpop.permute.xlu0 %7199
        %7201 = vrot.lane.b32.xlu0 %v6508, 125
        %v7202 = vpop.permute.xlu0 %7201
        %7203 = vrot.lane.b32.xlu0 %v7140, 125
        %v7204 = vpop.permute.xlu0 %7203
        %7205 = vrot.lane.b32.xlu0 %v7142, 125
        %v7206 = vpop.permute.xlu0 %7205
        %v7239 = vsel %vm1141, 0.0, %v7144
        %7240 = vrot.lane.b32.xlu0 %v1232, 125
        %v7241 = vpop.permute.xlu0 %7240
        %7242 = vrot.lane.b32.xlu0 %v1233, 125
        %v7243 = vpop.permute.xlu0 %7242
        %7244 = vrot.lane.b32.xlu0 %v1234, 125
        %v7245 = vpop.permute.xlu0 %7244
        %7246 = vrot.lane.b32.xlu0 %v1235, 125
        %v7247 = vpop.permute.xlu0 %7246
        %7248 = vrot.lane.b32.xlu0 %v1236, 125
        %v7249 = vpop.permute.xlu0 %7248
        %7250 = vrot.lane.b32.xlu0 %v1237, 125
        %v7251 = vpop.permute.xlu0 %7250
        %7252 = vrot.lane.b32.xlu0 %v1238, 125
        %v7253 = vpop.permute.xlu0 %7252
        %7254 = vrot.lane.b32.xlu0 %v1239, 125
        %v7255 = vpop.permute.xlu0 %7254
        %7256 = vrot.lane.b32.xlu0 %v1240, 125
        %v7257 = vpop.permute.xlu0 %7256
        %7258 = vrot.lane.b32.xlu0 %v1241, 125
        %v7259 = vpop.permute.xlu0 %7258
        %7260 = vrot.lane.b32.xlu0 %v1242, 125
        %v7261 = vpop.permute.xlu0 %7260
        %7262 = vrot.lane.b32.xlu0 %v1243, 125
        %v7263 = vpop.permute.xlu0 %7262
        %7264 = vrot.lane.b32.xlu0 %v1244, 125
        %v7265 = vpop.permute.xlu0 %7264
        %7266 = vrot.lane.b32.xlu0 %v1245, 125
        %v7267 = vpop.permute.xlu0 %7266
        %7268 = vrot.lane.b32.xlu0 %v1246, 125
        %v7269 = vpop.permute.xlu0 %7268
        %7270 = vrot.lane.b32.xlu0 %v1247, 125
        %v7271 = vpop.permute.xlu0 %7270
        %7272 = vrot.lane.b32.xlu0 %v1248, 125
        %v7273 = vpop.permute.xlu0 %7272
        %7274 = vrot.lane.b32.xlu0 %v1249, 125
        %v7275 = vpop.permute.xlu0 %7274
        %7276 = vrot.lane.b32.xlu0 %v1250, 125
        %v7277 = vpop.permute.xlu0 %7276
        %7278 = vrot.lane.b32.xlu0 %v1251, 125
        %v7279 = vpop.permute.xlu0 %7278
        %7280 = vrot.lane.b32.xlu0 %v1252, 125
        %v7281 = vpop.permute.xlu0 %7280
        %7282 = vrot.lane.b32.xlu0 %v1253, 125
        %v7283 = vpop.permute.xlu0 %7282
        %7284 = vrot.lane.b32.xlu0 %v1254, 125
        %v7285 = vpop.permute.xlu0 %7284
        %7286 = vrot.lane.b32.xlu0 %v1255, 125
        %v7287 = vpop.permute.xlu0 %7286
        %7288 = vrot.lane.b32.xlu0 %v1256, 125
        %v7289 = vpop.permute.xlu0 %7288
        %7290 = vrot.lane.b32.xlu0 %v1257, 125
        %v7291 = vpop.permute.xlu0 %7290
        %7292 = vrot.lane.b32.xlu0 %v1258, 125
        %v7293 = vpop.permute.xlu0 %7292
        %7294 = vrot.lane.b32.xlu0 %v1259, 125
        %v7295 = vpop.permute.xlu0 %7294
        %7296 = vrot.lane.b32.xlu0 %v1260, 125
        %v7297 = vpop.permute.xlu0 %7296
        %7298 = vrot.lane.b32.xlu0 %v1261, 125
        %v7299 = vpop.permute.xlu0 %7298
        %7300 = vrot.lane.b32.xlu0 %v1262, 125
        %v7301 = vpop.permute.xlu0 %7300
        %7302 = vrot.lane.b32.xlu0 %v1263, 125
        %v7303 = vpop.permute.xlu0 %7302
        %v7336 = vmul.f32 %v7239, %v7241
        %v7337 = vmul.f32 %v7146, %v7243
        %v7338 = vmul.f32 %v7148, %v7245
        %v7339 = vmul.f32 %v7150, %v7247
        %v7340 = vmul.f32 %v7152, %v7249
        %v7341 = vmul.f32 %v7154, %v7251
        %v7342 = vmul.f32 %v7156, %v7253
        %v7343 = vmul.f32 %v7158, %v7255
        %v7344 = vmul.f32 %v7160, %v7257
        %v7345 = vmul.f32 %v7162, %v7259
        %v7346 = vmul.f32 %v7164, %v7261
        %v7347 = vmul.f32 %v7166, %v7263
        %v7348 = vmul.f32 %v7168, %v7265
        %v7349 = vmul.f32 %v7170, %v7267
        %v7350 = vmul.f32 %v7172, %v7269
        %v7351 = vmul.f32 %v7174, %v7271
        %v7352 = vmul.f32 %v7176, %v7273
        %v7353 = vmul.f32 %v7178, %v7275
        %v7354 = vmul.f32 %v7180, %v7277
        %v7355 = vmul.f32 %v7182, %v7279
        %v7356 = vmul.f32 %v7184, %v7281
        %v7357 = vmul.f32 %v7186, %v7283
        %v7358 = vmul.f32 %v7188, %v7285
        %v7359 = vmul.f32 %v7190, %v7287
        %v7360 = vmul.f32 %v7192, %v7289
        %v7361 = vmul.f32 %v7194, %v7291
        %v7362 = vmul.f32 %v7196, %v7293
        %v7363 = vmul.f32 %v7198, %v7295
        %v7364 = vmul.f32 %v7200, %v7297
        %v7365 = vmul.f32 %v7202, %v7299
        %v7366 = vmul.f32 %v7204, %v7301
        %v7367 = vmul.f32 %v7206, %v7303
        %v7368 = vadd.f32 %v7106, %v7336
        %v7369 = vadd.f32 %v7107, %v7337
        %v7370 = vadd.f32 %v7108, %v7338
        %v7371 = vadd.f32 %v7109, %v7339
        %v7372 = vadd.f32 %v7110, %v7340
        %v7373 = vadd.f32 %v7111, %v7341
        %v7374 = vadd.f32 %v7112, %v7342
        %v7375 = vadd.f32 %v7113, %v7343
        %v7376 = vadd.f32 %v7114, %v7344
        %v7377 = vadd.f32 %v7115, %v7345
        %v7378 = vadd.f32 %v7116, %v7346
        %v7379 = vadd.f32 %v7117, %v7347
        %v7380 = vadd.f32 %v7118, %v7348
        %v7381 = vadd.f32 %v7119, %v7349
        %v7382 = vadd.f32 %v7120, %v7350
        %v7383 = vadd.f32 %v7121, %v7351
        %v7384 = vadd.f32 %v7122, %v7352
        %v7385 = vadd.f32 %v7123, %v7353
        %v7386 = vadd.f32 %v7124, %v7354
        %v7387 = vadd.f32 %v7125, %v7355
        %v7388 = vadd.f32 %v7126, %v7356
        %v7389 = vadd.f32 %v7127, %v7357
        %v7390 = vadd.f32 %v7128, %v7358
        %v7391 = vadd.f32 %v7129, %v7359
        %v7392 = vadd.f32 %v7130, %v7360
        %v7393 = vadd.f32 %v7131, %v7361
        %v7394 = vadd.f32 %v7132, %v7362
        %v7395 = vadd.f32 %v7133, %v7363
        %v7396 = vadd.f32 %v7134, %v7364
        %v7397 = vadd.f32 %v7135, %v7365
        %v7398 = vadd.f32 %v7136, %v7366
        %v7399 = vadd.f32 %v7137, %v7367
        %7400 = vrot.lane.b32.xlu0 %v6341, 124
        %v7401 = vpop.permute.xlu0 %7400
        %7402 = vrot.lane.b32.xlu0 %v6343, 124
        %v7403 = vpop.permute.xlu0 %7402
        %7404 = vrot.lane.b32.xlu0 %v6346, 124
        %v7405 = vpop.permute.xlu0 %7404
        %7406 = vrot.lane.b32.xlu0 %v6348, 124
        %v7407 = vpop.permute.xlu0 %7406
        %7408 = vrot.lane.b32.xlu0 %v6351, 124
        %v7409 = vpop.permute.xlu0 %7408
        %7410 = vrot.lane.b32.xlu0 %v6353, 124
        %v7411 = vpop.permute.xlu0 %7410
        %7412 = vrot.lane.b32.xlu0 %v6356, 124
        %v7413 = vpop.permute.xlu0 %7412
        %7414 = vrot.lane.b32.xlu0 %v6358, 124
        %v7415 = vpop.permute.xlu0 %7414
        %7416 = vrot.lane.b32.xlu0 %v6361, 124
        %v7417 = vpop.permute.xlu0 %7416
        %7418 = vrot.lane.b32.xlu0 %v6363, 124
        %v7419 = vpop.permute.xlu0 %7418
        %7420 = vrot.lane.b32.xlu0 %v6366, 124
        %v7421 = vpop.permute.xlu0 %7420
        %7422 = vrot.lane.b32.xlu0 %v6368, 124
        %v7423 = vpop.permute.xlu0 %7422
        %7424 = vrot.lane.b32.xlu0 %v6371, 124
        %v7425 = vpop.permute.xlu0 %7424
        %7426 = vrot.lane.b32.xlu0 %v6373, 124
        %v7427 = vpop.permute.xlu0 %7426
        %7428 = vrot.lane.b32.xlu0 %v6376, 124
        %v7429 = vpop.permute.xlu0 %7428
        %7430 = vrot.lane.b32.xlu0 %v6378, 124
        %v7431 = vpop.permute.xlu0 %7430
        %7432 = vrot.lane.b32.xlu0 %v6381, 124
        %v7433 = vpop.permute.xlu0 %7432
        %7434 = vrot.lane.b32.xlu0 %v6383, 124
        %v7435 = vpop.permute.xlu0 %7434
        %7436 = vrot.lane.b32.xlu0 %v6386, 124
        %v7437 = vpop.permute.xlu0 %7436
        %7438 = vrot.lane.b32.xlu0 %v6388, 124
        %v7439 = vpop.permute.xlu0 %7438
        %7440 = vrot.lane.b32.xlu0 %v6391, 124
        %v7441 = vpop.permute.xlu0 %7440
        %7442 = vrot.lane.b32.xlu0 %v6393, 124
        %v7443 = vpop.permute.xlu0 %7442
        %7444 = vrot.lane.b32.xlu0 %v6396, 124
        %v7445 = vpop.permute.xlu0 %7444
        %7446 = vrot.lane.b32.xlu0 %v6398, 124
        %v7447 = vpop.permute.xlu0 %7446
        %7448 = vrot.lane.b32.xlu0 %v6401, 124
        %v7449 = vpop.permute.xlu0 %7448
        %7450 = vrot.lane.b32.xlu0 %v6403, 124
        %v7451 = vpop.permute.xlu0 %7450
        %7452 = vrot.lane.b32.xlu0 %v6406, 124
        %v7453 = vpop.permute.xlu0 %7452
        %7454 = vrot.lane.b32.xlu0 %v6408, 124
        %v7455 = vpop.permute.xlu0 %7454
        %7456 = vrot.lane.b32.xlu0 %v6411, 124
        %v7457 = vpop.permute.xlu0 %7456
        %7458 = vrot.lane.b32.xlu0 %v6413, 124
        %v7459 = vpop.permute.xlu0 %7458
        %7460 = vrot.lane.b32.xlu0 %v6416, 124
        %v7461 = vpop.permute.xlu0 %7460
        %7462 = vrot.lane.b32.xlu0 %v6418, 124
        %v7463 = vpop.permute.xlu0 %7462
        %v7496 = vadd.f32 %v7368, %v7401
        %v7497 = vadd.f32 %v7369, %v7403
        %v7498 = vadd.f32 %v7370, %v7405
        %v7499 = vadd.f32 %v7371, %v7407
        %v7500 = vadd.f32 %v7372, %v7409
        %v7501 = vadd.f32 %v7373, %v7411
        %v7502 = vadd.f32 %v7374, %v7413
        %v7503 = vadd.f32 %v7375, %v7415
        %v7504 = vadd.f32 %v7376, %v7417
        %v7505 = vadd.f32 %v7377, %v7419
        %v7506 = vadd.f32 %v7378, %v7421
        %v7507 = vadd.f32 %v7379, %v7423
        %v7508 = vadd.f32 %v7380, %v7425
        %v7509 = vadd.f32 %v7381, %v7427
        %v7510 = vadd.f32 %v7382, %v7429
        %v7511 = vadd.f32 %v7383, %v7431
        %v7512 = vadd.f32 %v7384, %v7433
        %v7513 = vadd.f32 %v7385, %v7435
        %v7514 = vadd.f32 %v7386, %v7437
        %v7515 = vadd.f32 %v7387, %v7439
        %v7516 = vadd.f32 %v7388, %v7441
        %v7517 = vadd.f32 %v7389, %v7443
        %v7518 = vadd.f32 %v7390, %v7445
        %v7519 = vadd.f32 %v7391, %v7447
        %v7520 = vadd.f32 %v7392, %v7449
        %v7521 = vadd.f32 %v7393, %v7451
        %v7522 = vadd.f32 %v7394, %v7453
        %v7523 = vadd.f32 %v7395, %v7455
        %v7524 = vadd.f32 %v7396, %v7457
        %v7525 = vadd.f32 %v7397, %v7459
        %v7526 = vadd.f32 %v7398, %v7461
        %v7527 = vadd.f32 %v7399, %v7463
        %v7528 = vrot.slane %v6418, 1
        %v7529 = vsel %vm1739, %v6882, %v7528
        %v7562 = vsel %vm1739, %v7528, 0.0
        %v7563 = vmul.f32 %v6825, %v1232
        %v7564 = vmul.f32 %v6827, %v1233
        %v7565 = vmul.f32 %v6829, %v1234
        %v7566 = vmul.f32 %v6831, %v1235
        %v7567 = vmul.f32 %v6833, %v1236
        %v7568 = vmul.f32 %v6835, %v1237
        %v7569 = vmul.f32 %v6837, %v1238
        %v7570 = vmul.f32 %v6839, %v1239
        %v7571 = vmul.f32 %v6841, %v1240
        %v7572 = vmul.f32 %v6843, %v1241
        %v7573 = vmul.f32 %v6845, %v1242
        %v7574 = vmul.f32 %v6847, %v1243
        %v7575 = vmul.f32 %v6849, %v1244
        %v7576 = vmul.f32 %v6851, %v1245
        %v7577 = vmul.f32 %v6853, %v1246
        %v7578 = vmul.f32 %v6855, %v1247
        %v7579 = vmul.f32 %v6857, %v1248
        %v7580 = vmul.f32 %v6859, %v1249
        %v7581 = vmul.f32 %v6861, %v1250
        %v7582 = vmul.f32 %v6863, %v1251
        %v7583 = vmul.f32 %v6865, %v1252
        %v7584 = vmul.f32 %v6867, %v1253
        %v7585 = vmul.f32 %v6869, %v1254
        %v7586 = vmul.f32 %v6871, %v1255
        %v7587 = vmul.f32 %v6873, %v1256
        %v7588 = vmul.f32 %v6875, %v1257
        %v7589 = vmul.f32 %v6877, %v1258
        %v7590 = vmul.f32 %v6879, %v1259
        %v7591 = vmul.f32 %v6881, %v1260
        %v7592 = vmul.f32 %v6883, %v1261
        %v7593 = vmul.f32 %v7529, %v1262
        %v7594 = vmul.f32 %v7562, %v1263
        %7627 = vrot.lane.b32.xlu0 %v7563, 123
        %v7628 = vpop.permute.xlu0 %7627
        %7629 = vrot.lane.b32.xlu0 %v7564, 123
        %v7630 = vpop.permute.xlu0 %7629
        %7631 = vrot.lane.b32.xlu0 %v7565, 123
        %v7632 = vpop.permute.xlu0 %7631
        %7633 = vrot.lane.b32.xlu0 %v7566, 123
        %v7634 = vpop.permute.xlu0 %7633
        %7635 = vrot.lane.b32.xlu0 %v7567, 123
        %v7636 = vpop.permute.xlu0 %7635
        %7637 = vrot.lane.b32.xlu0 %v7568, 123
        %v7638 = vpop.permute.xlu0 %7637
        %7639 = vrot.lane.b32.xlu0 %v7569, 123
        %v7640 = vpop.permute.xlu0 %7639
        %7641 = vrot.lane.b32.xlu0 %v7570, 123
        %v7642 = vpop.permute.xlu0 %7641
        %7643 = vrot.lane.b32.xlu0 %v7571, 123
        %v7644 = vpop.permute.xlu0 %7643
        %7645 = vrot.lane.b32.xlu0 %v7572, 123
        %v7646 = vpop.permute.xlu0 %7645
        %7647 = vrot.lane.b32.xlu0 %v7573, 123
        %v7648 = vpop.permute.xlu0 %7647
        %7649 = vrot.lane.b32.xlu0 %v7574, 123
        %v7650 = vpop.permute.xlu0 %7649
        %7651 = vrot.lane.b32.xlu0 %v7575, 123
        %v7652 = vpop.permute.xlu0 %7651
        %7653 = vrot.lane.b32.xlu0 %v7576, 123
        %v7654 = vpop.permute.xlu0 %7653
        %7655 = vrot.lane.b32.xlu0 %v7577, 123
        %v7656 = vpop.permute.xlu0 %7655
        %7657 = vrot.lane.b32.xlu0 %v7578, 123
        %v7658 = vpop.permute.xlu0 %7657
        %7659 = vrot.lane.b32.xlu0 %v7579, 123
        %v7660 = vpop.permute.xlu0 %7659
        %7661 = vrot.lane.b32.xlu0 %v7580, 123
        %v7662 = vpop.permute.xlu0 %7661
        %7663 = vrot.lane.b32.xlu0 %v7581, 123
        %v7664 = vpop.permute.xlu0 %7663
        %7665 = vrot.lane.b32.xlu0 %v7582, 123
        %v7666 = vpop.permute.xlu0 %7665
        %7667 = vrot.lane.b32.xlu0 %v7583, 123
        %v7668 = vpop.permute.xlu0 %7667
        %7669 = vrot.lane.b32.xlu0 %v7584, 123
        %v7670 = vpop.permute.xlu0 %7669
        %7671 = vrot.lane.b32.xlu0 %v7585, 123
        %v7672 = vpop.permute.xlu0 %7671
        %7673 = vrot.lane.b32.xlu0 %v7586, 123
        %v7674 = vpop.permute.xlu0 %7673
        %7675 = vrot.lane.b32.xlu0 %v7587, 123
        %v7676 = vpop.permute.xlu0 %7675
        %7677 = vrot.lane.b32.xlu0 %v7588, 123
        %v7678 = vpop.permute.xlu0 %7677
        %7679 = vrot.lane.b32.xlu0 %v7589, 123
        %v7680 = vpop.permute.xlu0 %7679
        %7681 = vrot.lane.b32.xlu0 %v7590, 123
        %v7682 = vpop.permute.xlu0 %7681
        %7683 = vrot.lane.b32.xlu0 %v7591, 123
        %v7684 = vpop.permute.xlu0 %7683
        %7685 = vrot.lane.b32.xlu0 %v7592, 123
        %v7686 = vpop.permute.xlu0 %7685
        %7687 = vrot.lane.b32.xlu0 %v7593, 123
        %v7688 = vpop.permute.xlu0 %7687
        %7689 = vrot.lane.b32.xlu0 %v7594, 123
        %v7690 = vpop.permute.xlu0 %7689
        %v7723 = vadd.f32 %v7496, %v7628
        %v7724 = vadd.f32 %v7497, %v7630
        %v7725 = vadd.f32 %v7498, %v7632
        %v7726 = vadd.f32 %v7499, %v7634
        %v7727 = vadd.f32 %v7500, %v7636
        %v7728 = vadd.f32 %v7501, %v7638
        %v7729 = vadd.f32 %v7502, %v7640
        %v7730 = vadd.f32 %v7503, %v7642
        %v7731 = vadd.f32 %v7504, %v7644
        %v7732 = vadd.f32 %v7505, %v7646
        %v7733 = vadd.f32 %v7506, %v7648
        %v7734 = vadd.f32 %v7507, %v7650
        %v7735 = vadd.f32 %v7508, %v7652
        %v7736 = vadd.f32 %v7509, %v7654
        %v7737 = vadd.f32 %v7510, %v7656
        %v7738 = vadd.f32 %v7511, %v7658
        %v7739 = vadd.f32 %v7512, %v7660
        %v7740 = vadd.f32 %v7513, %v7662
        %v7741 = vadd.f32 %v7514, %v7664
        %v7742 = vadd.f32 %v7515, %v7666
        %v7743 = vadd.f32 %v7516, %v7668
        %v7744 = vadd.f32 %v7517, %v7670
        %v7745 = vadd.f32 %v7518, %v7672
        %v7746 = vadd.f32 %v7519, %v7674
        %v7747 = vadd.f32 %v7520, %v7676
        %v7748 = vadd.f32 %v7521, %v7678
        %v7749 = vadd.f32 %v7522, %v7680
        %v7750 = vadd.f32 %v7523, %v7682
        %v7751 = vadd.f32 %v7524, %v7684
        %v7752 = vadd.f32 %v7525, %v7686
        %v7753 = vadd.f32 %v7526, %v7688
        %v7754 = vadd.f32 %v7527, %v7690
        %v7758 = vsel %vm1141, %v7141, 0.0
        %v7759 = vmul.f32 %v6454, %v1232
        %v7760 = vmul.f32 %v6456, %v1233
        %v7761 = vmul.f32 %v6458, %v1234
        %v7762 = vmul.f32 %v6460, %v1235
        %v7763 = vmul.f32 %v6462, %v1236
        %v7764 = vmul.f32 %v6464, %v1237
        %v7765 = vmul.f32 %v6466, %v1238
        %v7766 = vmul.f32 %v6468, %v1239
        %v7767 = vmul.f32 %v6470, %v1240
        %v7768 = vmul.f32 %v6472, %v1241
        %v7769 = vmul.f32 %v6474, %v1242
        %v7770 = vmul.f32 %v6476, %v1243
        %v7771 = vmul.f32 %v6478, %v1244
        %v7772 = vmul.f32 %v6480, %v1245
        %v7773 = vmul.f32 %v6482, %v1246
        %v7774 = vmul.f32 %v6484, %v1247
        %v7775 = vmul.f32 %v6486, %v1248
        %v7776 = vmul.f32 %v6488, %v1249
        %v7777 = vmul.f32 %v6490, %v1250
        %v7778 = vmul.f32 %v6492, %v1251
        %v7779 = vmul.f32 %v6494, %v1252
        %v7780 = vmul.f32 %v6496, %v1253
        %v7781 = vmul.f32 %v6498, %v1254
        %v7782 = vmul.f32 %v6500, %v1255
        %v7783 = vmul.f32 %v6502, %v1256
        %v7784 = vmul.f32 %v6504, %v1257
        %v7785 = vmul.f32 %v6506, %v1258
        %v7786 = vmul.f32 %v6508, %v1259
        %v7787 = vmul.f32 %v7140, %v1260
        %v7788 = vmul.f32 %v7142, %v1261
        %v7789 = vmul.f32 %v7758, %v1262
        %v7790 = vmul.f32 %v1263, 0.0
        %7823 = vrot.lane.b32.xlu0 %v7759, 122
        %v7824 = vpop.permute.xlu0 %7823
        %7825 = vrot.lane.b32.xlu0 %v7760, 122
        %v7826 = vpop.permute.xlu0 %7825
        %7827 = vrot.lane.b32.xlu0 %v7761, 122
        %v7828 = vpop.permute.xlu0 %7827
        %7829 = vrot.lane.b32.xlu0 %v7762, 122
        %v7830 = vpop.permute.xlu0 %7829
        %7831 = vrot.lane.b32.xlu0 %v7763, 122
        %v7832 = vpop.permute.xlu0 %7831
        %7833 = vrot.lane.b32.xlu0 %v7764, 122
        %v7834 = vpop.permute.xlu0 %7833
        %7835 = vrot.lane.b32.xlu0 %v7765, 122
        %v7836 = vpop.permute.xlu0 %7835
        %7837 = vrot.lane.b32.xlu0 %v7766, 122
        %v7838 = vpop.permute.xlu0 %7837
        %7839 = vrot.lane.b32.xlu0 %v7767, 122
        %v7840 = vpop.permute.xlu0 %7839
        %7841 = vrot.lane.b32.xlu0 %v7768, 122
        %v7842 = vpop.permute.xlu0 %7841
        %7843 = vrot.lane.b32.xlu0 %v7769, 122
        %v7844 = vpop.permute.xlu0 %7843
        %7845 = vrot.lane.b32.xlu0 %v7770, 122
        %v7846 = vpop.permute.xlu0 %7845
        %7847 = vrot.lane.b32.xlu0 %v7771, 122
        %v7848 = vpop.permute.xlu0 %7847
        %7849 = vrot.lane.b32.xlu0 %v7772, 122
        %v7850 = vpop.permute.xlu0 %7849
        %7851 = vrot.lane.b32.xlu0 %v7773, 122
        %v7852 = vpop.permute.xlu0 %7851
        %7853 = vrot.lane.b32.xlu0 %v7774, 122
        %v7854 = vpop.permute.xlu0 %7853
        %7855 = vrot.lane.b32.xlu0 %v7775, 122
        %v7856 = vpop.permute.xlu0 %7855
        %7857 = vrot.lane.b32.xlu0 %v7776, 122
        %v7858 = vpop.permute.xlu0 %7857
        %7859 = vrot.lane.b32.xlu0 %v7777, 122
        %v7860 = vpop.permute.xlu0 %7859
        %7861 = vrot.lane.b32.xlu0 %v7778, 122
        %v7862 = vpop.permute.xlu0 %7861
        %7863 = vrot.lane.b32.xlu0 %v7779, 122
        %v7864 = vpop.permute.xlu0 %7863
        %7865 = vrot.lane.b32.xlu0 %v7780, 122
        %v7866 = vpop.permute.xlu0 %7865
        %7867 = vrot.lane.b32.xlu0 %v7781, 122
        %v7868 = vpop.permute.xlu0 %7867
        %7869 = vrot.lane.b32.xlu0 %v7782, 122
        %v7870 = vpop.permute.xlu0 %7869
        %7871 = vrot.lane.b32.xlu0 %v7783, 122
        %v7872 = vpop.permute.xlu0 %7871
        %7873 = vrot.lane.b32.xlu0 %v7784, 122
        %v7874 = vpop.permute.xlu0 %7873
        %7875 = vrot.lane.b32.xlu0 %v7785, 122
        %v7876 = vpop.permute.xlu0 %7875
        %7877 = vrot.lane.b32.xlu0 %v7786, 122
        %v7878 = vpop.permute.xlu0 %7877
        %7879 = vrot.lane.b32.xlu0 %v7787, 122
        %v7880 = vpop.permute.xlu0 %7879
        %7881 = vrot.lane.b32.xlu0 %v7788, 122
        %v7882 = vpop.permute.xlu0 %7881
        %7883 = vrot.lane.b32.xlu0 %v7789, 122
        %v7884 = vpop.permute.xlu0 %7883
        %7885 = vrot.lane.b32.xlu0 %v7790, 122
        %v7886 = vpop.permute.xlu0 %7885
        %v7919 = vadd.f32 %v7723, %v7824
        %v7920 = vadd.f32 %v7724, %v7826
        %v7921 = vadd.f32 %v7725, %v7828
        %v7922 = vadd.f32 %v7726, %v7830
        %v7923 = vadd.f32 %v7727, %v7832
        %v7924 = vadd.f32 %v7728, %v7834
        %v7925 = vadd.f32 %v7729, %v7836
        %v7926 = vadd.f32 %v7730, %v7838
        %v7927 = vadd.f32 %v7731, %v7840
        %v7928 = vadd.f32 %v7732, %v7842
        %v7929 = vadd.f32 %v7733, %v7844
        %v7930 = vadd.f32 %v7734, %v7846
        %v7931 = vadd.f32 %v7735, %v7848
        %v7932 = vadd.f32 %v7736, %v7850
        %v7933 = vadd.f32 %v7737, %v7852
        %v7934 = vadd.f32 %v7738, %v7854
        %v7935 = vadd.f32 %v7739, %v7856
        %v7936 = vadd.f32 %v7740, %v7858
        %v7937 = vadd.f32 %v7741, %v7860
        %v7938 = vadd.f32 %v7742, %v7862
        %v7939 = vadd.f32 %v7743, %v7864
        %v7940 = vadd.f32 %v7744, %v7866
        %v7941 = vadd.f32 %v7745, %v7868
        %v7942 = vadd.f32 %v7746, %v7870
        %v7943 = vadd.f32 %v7747, %v7872
        %v7944 = vadd.f32 %v7748, %v7874
        %v7945 = vadd.f32 %v7749, %v7876
        %v7946 = vadd.f32 %v7750, %v7878
        %v7947 = vadd.f32 %v7751, %v7880
        %v7948 = vadd.f32 %v7752, %v7882
        %v7949 = vadd.f32 %v7753, %v7884
        %v7950 = vadd.f32 %v7754, %v7886
        %v7951 = vmul.f32 %v6346, %v1232
        %v7952 = vmul.f32 %v6348, %v1233
        %v7953 = vmul.f32 %v6351, %v1234
        %v7954 = vmul.f32 %v6353, %v1235
        %v7955 = vmul.f32 %v6356, %v1236
        %v7956 = vmul.f32 %v6358, %v1237
        %v7957 = vmul.f32 %v6361, %v1238
        %v7958 = vmul.f32 %v6363, %v1239
        %v7959 = vmul.f32 %v6366, %v1240
        %v7960 = vmul.f32 %v6368, %v1241
        %v7961 = vmul.f32 %v6371, %v1242
        %v7962 = vmul.f32 %v6373, %v1243
        %v7963 = vmul.f32 %v6376, %v1244
        %v7964 = vmul.f32 %v6378, %v1245
        %v7965 = vmul.f32 %v6381, %v1246
        %v7966 = vmul.f32 %v6383, %v1247
        %v7967 = vmul.f32 %v6386, %v1248
        %v7968 = vmul.f32 %v6388, %v1249
        %v7969 = vmul.f32 %v6391, %v1250
        %v7970 = vmul.f32 %v6393, %v1251
        %v7971 = vmul.f32 %v6396, %v1252
        %v7972 = vmul.f32 %v6398, %v1253
        %v7973 = vmul.f32 %v6401, %v1254
        %v7974 = vmul.f32 %v6403, %v1255
        %v7975 = vmul.f32 %v6406, %v1256
        %v7976 = vmul.f32 %v6408, %v1257
        %v7977 = vmul.f32 %v6411, %v1258
        %v7978 = vmul.f32 %v6413, %v1259
        %v7979 = vmul.f32 %v6416, %v1260
        %v7980 = vmul.f32 %v6418, %v1261
        %v7981 = vmul.f32 %v1262, 0.0
        %8013 = vrot.lane.b32.xlu0 %v7951, 121
        %v8014 = vpop.permute.xlu0 %8013
        %8015 = vrot.lane.b32.xlu0 %v7952, 121
        %v8016 = vpop.permute.xlu0 %8015
        %8017 = vrot.lane.b32.xlu0 %v7953, 121
        %v8018 = vpop.permute.xlu0 %8017
        %8019 = vrot.lane.b32.xlu0 %v7954, 121
        %v8020 = vpop.permute.xlu0 %8019
        %8021 = vrot.lane.b32.xlu0 %v7955, 121
        %v8022 = vpop.permute.xlu0 %8021
        %8023 = vrot.lane.b32.xlu0 %v7956, 121
        %v8024 = vpop.permute.xlu0 %8023
        %8025 = vrot.lane.b32.xlu0 %v7957, 121
        %v8026 = vpop.permute.xlu0 %8025
        %8027 = vrot.lane.b32.xlu0 %v7958, 121
        %v8028 = vpop.permute.xlu0 %8027
        %8029 = vrot.lane.b32.xlu0 %v7959, 121
        %v8030 = vpop.permute.xlu0 %8029
        %8031 = vrot.lane.b32.xlu0 %v7960, 121
        %v8032 = vpop.permute.xlu0 %8031
        %8033 = vrot.lane.b32.xlu0 %v7961, 121
        %v8034 = vpop.permute.xlu0 %8033
        %8035 = vrot.lane.b32.xlu0 %v7962, 121
        %v8036 = vpop.permute.xlu0 %8035
        %8037 = vrot.lane.b32.xlu0 %v7963, 121
        %v8038 = vpop.permute.xlu0 %8037
        %8039 = vrot.lane.b32.xlu0 %v7964, 121
        %v8040 = vpop.permute.xlu0 %8039
        %8041 = vrot.lane.b32.xlu0 %v7965, 121
        %v8042 = vpop.permute.xlu0 %8041
        %8043 = vrot.lane.b32.xlu0 %v7966, 121
        %v8044 = vpop.permute.xlu0 %8043
        %8045 = vrot.lane.b32.xlu0 %v7967, 121
        %v8046 = vpop.permute.xlu0 %8045
        %8047 = vrot.lane.b32.xlu0 %v7968, 121
        %v8048 = vpop.permute.xlu0 %8047
        %8049 = vrot.lane.b32.xlu0 %v7969, 121
        %v8050 = vpop.permute.xlu0 %8049
        %8051 = vrot.lane.b32.xlu0 %v7970, 121
        %v8052 = vpop.permute.xlu0 %8051
        %8053 = vrot.lane.b32.xlu0 %v7971, 121
        %v8054 = vpop.permute.xlu0 %8053
        %8055 = vrot.lane.b32.xlu0 %v7972, 121
        %v8056 = vpop.permute.xlu0 %8055
        %8057 = vrot.lane.b32.xlu0 %v7973, 121
        %v8058 = vpop.permute.xlu0 %8057
        %8059 = vrot.lane.b32.xlu0 %v7974, 121
        %v8060 = vpop.permute.xlu0 %8059
        %8061 = vrot.lane.b32.xlu0 %v7975, 121
        %v8062 = vpop.permute.xlu0 %8061
        %8063 = vrot.lane.b32.xlu0 %v7976, 121
        %v8064 = vpop.permute.xlu0 %8063
        %8065 = vrot.lane.b32.xlu0 %v7977, 121
        %v8066 = vpop.permute.xlu0 %8065
        %8067 = vrot.lane.b32.xlu0 %v7978, 121
        %v8068 = vpop.permute.xlu0 %8067
        %8069 = vrot.lane.b32.xlu0 %v7979, 121
        %v8070 = vpop.permute.xlu0 %8069
        %8071 = vrot.lane.b32.xlu0 %v7980, 121
        %v8072 = vpop.permute.xlu0 %8071
        %8073 = vrot.lane.b32.xlu0 %v7981, 121
        %v8074 = vpop.permute.xlu0 %8073
        %8075 = vrot.lane.b32.xlu0 %v7790, 121
        %v8076 = vpop.permute.xlu0 %8075
        %v8109 = vadd.f32 %v7919, %v8014
        %v8110 = vadd.f32 %v7920, %v8016
        %v8111 = vadd.f32 %v7921, %v8018
        %v8112 = vadd.f32 %v7922, %v8020
        %v8113 = vadd.f32 %v7923, %v8022
        %v8114 = vadd.f32 %v7924, %v8024
        %v8115 = vadd.f32 %v7925, %v8026
        %v8116 = vadd.f32 %v7926, %v8028
        %v8117 = vadd.f32 %v7927, %v8030
        %v8118 = vadd.f32 %v7928, %v8032
        %v8119 = vadd.f32 %v7929, %v8034
        %v8120 = vadd.f32 %v7930, %v8036
        %v8121 = vadd.f32 %v7931, %v8038
        %v8122 = vadd.f32 %v7932, %v8040
        %v8123 = vadd.f32 %v7933, %v8042
        %v8124 = vadd.f32 %v7934, %v8044
        %v8125 = vadd.f32 %v7935, %v8046
        %v8126 = vadd.f32 %v7936, %v8048
        %v8127 = vadd.f32 %v7937, %v8050
        %v8128 = vadd.f32 %v7938, %v8052
        %v8129 = vadd.f32 %v7939, %v8054
        %v8130 = vadd.f32 %v7940, %v8056
        %v8131 = vadd.f32 %v7941, %v8058
        %v8132 = vadd.f32 %v7942, %v8060
        %v8133 = vadd.f32 %v7943, %v8062
        %v8134 = vadd.f32 %v7944, %v8064
        %v8135 = vadd.f32 %v7945, %v8066
        %v8136 = vadd.f32 %v7946, %v8068
        %v8137 = vadd.f32 %v7947, %v8070
        %v8138 = vadd.f32 %v7948, %v8072
        %v8139 = vadd.f32 %v7949, %v8074
        %v8140 = vadd.f32 %v7950, %v8076
        %v8141 = vmul.f32 %v6829, %v1232
        %v8142 = vmul.f32 %v6831, %v1233
        %v8143 = vmul.f32 %v6833, %v1234
        %v8144 = vmul.f32 %v6835, %v1235
        %v8145 = vmul.f32 %v6837, %v1236
        %v8146 = vmul.f32 %v6839, %v1237
        %v8147 = vmul.f32 %v6841, %v1238
        %v8148 = vmul.f32 %v6843, %v1239
        %v8149 = vmul.f32 %v6845, %v1240
        %v8150 = vmul.f32 %v6847, %v1241
        %v8151 = vmul.f32 %v6849, %v1242
        %v8152 = vmul.f32 %v6851, %v1243
        %v8153 = vmul.f32 %v6853, %v1244
        %v8154 = vmul.f32 %v6855, %v1245
        %v8155 = vmul.f32 %v6857, %v1246
        %v8156 = vmul.f32 %v6859, %v1247
        %v8157 = vmul.f32 %v6861, %v1248
        %v8158 = vmul.f32 %v6863, %v1249
        %v8159 = vmul.f32 %v6865, %v1250
        %v8160 = vmul.f32 %v6867, %v1251
        %v8161 = vmul.f32 %v6869, %v1252
        %v8162 = vmul.f32 %v6871, %v1253
        %v8163 = vmul.f32 %v6873, %v1254
        %v8164 = vmul.f32 %v6875, %v1255
        %v8165 = vmul.f32 %v6877, %v1256
        %v8166 = vmul.f32 %v6879, %v1257
        %v8167 = vmul.f32 %v6881, %v1258
        %v8168 = vmul.f32 %v6883, %v1259
        %v8169 = vmul.f32 %v7529, %v1260
        %v8170 = vmul.f32 %v7562, %v1261
        %8201 = vrot.lane.b32.xlu0 %v8141, 120
        %v8202 = vpop.permute.xlu0 %8201
        %8203 = vrot.lane.b32.xlu0 %v8142, 120
        %v8204 = vpop.permute.xlu0 %8203
        %8205 = vrot.lane.b32.xlu0 %v8143, 120
        %v8206 = vpop.permute.xlu0 %8205
        %8207 = vrot.lane.b32.xlu0 %v8144, 120
        %v8208 = vpop.permute.xlu0 %8207
        %8209 = vrot.lane.b32.xlu0 %v8145, 120
        %v8210 = vpop.permute.xlu0 %8209
        %8211 = vrot.lane.b32.xlu0 %v8146, 120
        %v8212 = vpop.permute.xlu0 %8211
        %8213 = vrot.lane.b32.xlu0 %v8147, 120
        %v8214 = vpop.permute.xlu0 %8213
        %8215 = vrot.lane.b32.xlu0 %v8148, 120
        %v8216 = vpop.permute.xlu0 %8215
        %8217 = vrot.lane.b32.xlu0 %v8149, 120
        %v8218 = vpop.permute.xlu0 %8217
        %8219 = vrot.lane.b32.xlu0 %v8150, 120
        %v8220 = vpop.permute.xlu0 %8219
        %8221 = vrot.lane.b32.xlu0 %v8151, 120
        %v8222 = vpop.permute.xlu0 %8221
        %8223 = vrot.lane.b32.xlu0 %v8152, 120
        %v8224 = vpop.permute.xlu0 %8223
        %8225 = vrot.lane.b32.xlu0 %v8153, 120
        %v8226 = vpop.permute.xlu0 %8225
        %8227 = vrot.lane.b32.xlu0 %v8154, 120
        %v8228 = vpop.permute.xlu0 %8227
        %8229 = vrot.lane.b32.xlu0 %v8155, 120
        %v8230 = vpop.permute.xlu0 %8229
        %8231 = vrot.lane.b32.xlu0 %v8156, 120
        %v8232 = vpop.permute.xlu0 %8231
        %8233 = vrot.lane.b32.xlu0 %v8157, 120
        %v8234 = vpop.permute.xlu0 %8233
        %8235 = vrot.lane.b32.xlu0 %v8158, 120
        %v8236 = vpop.permute.xlu0 %8235
        %8237 = vrot.lane.b32.xlu0 %v8159, 120
        %v8238 = vpop.permute.xlu0 %8237
        %8239 = vrot.lane.b32.xlu0 %v8160, 120
        %v8240 = vpop.permute.xlu0 %8239
        %8241 = vrot.lane.b32.xlu0 %v8161, 120
        %v8242 = vpop.permute.xlu0 %8241
        %8243 = vrot.lane.b32.xlu0 %v8162, 120
        %v8244 = vpop.permute.xlu0 %8243
        %8245 = vrot.lane.b32.xlu0 %v8163, 120
        %v8246 = vpop.permute.xlu0 %8245
        %8247 = vrot.lane.b32.xlu0 %v8164, 120
        %v8248 = vpop.permute.xlu0 %8247
        %8249 = vrot.lane.b32.xlu0 %v8165, 120
        %v8250 = vpop.permute.xlu0 %8249
        %8251 = vrot.lane.b32.xlu0 %v8166, 120
        %v8252 = vpop.permute.xlu0 %8251
        %8253 = vrot.lane.b32.xlu0 %v8167, 120
        %v8254 = vpop.permute.xlu0 %8253
        %8255 = vrot.lane.b32.xlu0 %v8168, 120
        %v8256 = vpop.permute.xlu0 %8255
        %8257 = vrot.lane.b32.xlu0 %v8169, 120
        %v8258 = vpop.permute.xlu0 %8257
        %8259 = vrot.lane.b32.xlu0 %v8170, 120
        %v8260 = vpop.permute.xlu0 %8259
        %8261 = vrot.lane.b32.xlu0 %v7981, 120
        %v8262 = vpop.permute.xlu0 %8261
        %8263 = vrot.lane.b32.xlu0 %v7790, 120
        %v8264 = vpop.permute.xlu0 %8263
        %v8297 = vadd.f32 %v8109, %v8202
        %v8298 = vadd.f32 %v8110, %v8204
        %v8299 = vadd.f32 %v8111, %v8206
        %v8300 = vadd.f32 %v8112, %v8208
        %v8301 = vadd.f32 %v8113, %v8210
        %v8302 = vadd.f32 %v8114, %v8212
        %v8303 = vadd.f32 %v8115, %v8214
        %v8304 = vadd.f32 %v8116, %v8216
        %v8305 = vadd.f32 %v8117, %v8218
        %v8306 = vadd.f32 %v8118, %v8220
        %v8307 = vadd.f32 %v8119, %v8222
        %v8308 = vadd.f32 %v8120, %v8224
        %v8309 = vadd.f32 %v8121, %v8226
        %v8310 = vadd.f32 %v8122, %v8228
        %v8311 = vadd.f32 %v8123, %v8230
        %v8312 = vadd.f32 %v8124, %v8232
        %v8313 = vadd.f32 %v8125, %v8234
        %v8314 = vadd.f32 %v8126, %v8236
        %v8315 = vadd.f32 %v8127, %v8238
        %v8316 = vadd.f32 %v8128, %v8240
        %v8317 = vadd.f32 %v8129, %v8242
        %v8318 = vadd.f32 %v8130, %v8244
        %v8319 = vadd.f32 %v8131, %v8246
        %v8320 = vadd.f32 %v8132, %v8248
        %v8321 = vadd.f32 %v8133, %v8250
        %v8322 = vadd.f32 %v8134, %v8252
        %v8323 = vadd.f32 %v8135, %v8254
        %v8324 = vadd.f32 %v8136, %v8256
        %v8325 = vadd.f32 %v8137, %v8258
        %v8326 = vadd.f32 %v8138, %v8260
        %v8327 = vadd.f32 %v8139, %v8262
        %v8328 = vadd.f32 %v8140, %v8264
        %8361 = vrot.lane.b32.xlu0 %v3796, 126
        %v8362 = vpop.permute.xlu0 %8361
        %8363 = vrot.lane.b32.xlu0 %v3797, 126
        %v8364 = vpop.permute.xlu0 %8363
        %8365 = vrot.lane.b32.xlu0 %v3798, 126
        %v8366 = vpop.permute.xlu0 %8365
        %8367 = vrot.lane.b32.xlu0 %v3799, 126
        %v8368 = vpop.permute.xlu0 %8367
        %8369 = vrot.lane.b32.xlu0 %v3800, 126
        %v8370 = vpop.permute.xlu0 %8369
        %8371 = vrot.lane.b32.xlu0 %v3801, 126
        %v8372 = vpop.permute.xlu0 %8371
        %8373 = vrot.lane.b32.xlu0 %v3802, 126
        %v8374 = vpop.permute.xlu0 %8373
        %8375 = vrot.lane.b32.xlu0 %v3803, 126
        %v8376 = vpop.permute.xlu0 %8375
        %8377 = vrot.lane.b32.xlu0 %v3804, 126
        %v8378 = vpop.permute.xlu0 %8377
        %8379 = vrot.lane.b32.xlu0 %v3805, 126
        %v8380 = vpop.permute.xlu0 %8379
        %8381 = vrot.lane.b32.xlu0 %v3806, 126
        %v8382 = vpop.permute.xlu0 %8381
        %8383 = vrot.lane.b32.xlu0 %v3807, 126
        %v8384 = vpop.permute.xlu0 %8383
        %8385 = vrot.lane.b32.xlu0 %v3808, 126
        %v8386 = vpop.permute.xlu0 %8385
        %8387 = vrot.lane.b32.xlu0 %v3809, 126
        %v8388 = vpop.permute.xlu0 %8387
        %8389 = vrot.lane.b32.xlu0 %v3810, 126
        %v8390 = vpop.permute.xlu0 %8389
        %8391 = vrot.lane.b32.xlu0 %v3811, 126
        %v8392 = vpop.permute.xlu0 %8391
        %8393 = vrot.lane.b32.xlu0 %v3812, 126
        %v8394 = vpop.permute.xlu0 %8393
        %8395 = vrot.lane.b32.xlu0 %v3813, 126
        %v8396 = vpop.permute.xlu0 %8395
        %8397 = vrot.lane.b32.xlu0 %v3814, 126
        %v8398 = vpop.permute.xlu0 %8397
        %8399 = vrot.lane.b32.xlu0 %v3815, 126
        %v8400 = vpop.permute.xlu0 %8399
        %8401 = vrot.lane.b32.xlu0 %v3816, 126
        %v8402 = vpop.permute.xlu0 %8401
        %8403 = vrot.lane.b32.xlu0 %v3817, 126
        %v8404 = vpop.permute.xlu0 %8403
        %8405 = vrot.lane.b32.xlu0 %v3818, 126
        %v8406 = vpop.permute.xlu0 %8405
        %8407 = vrot.lane.b32.xlu0 %v3819, 126
        %v8408 = vpop.permute.xlu0 %8407
        %8409 = vrot.lane.b32.xlu0 %v3820, 126
        %v8410 = vpop.permute.xlu0 %8409
        %8411 = vrot.lane.b32.xlu0 %v3821, 126
        %v8412 = vpop.permute.xlu0 %8411
        %8413 = vrot.lane.b32.xlu0 %v3822, 126
        %v8414 = vpop.permute.xlu0 %8413
        %8415 = vrot.lane.b32.xlu0 %v3823, 126
        %v8416 = vpop.permute.xlu0 %8415
        %8417 = vrot.lane.b32.xlu0 %v3824, 126
        %v8418 = vpop.permute.xlu0 %8417
        %8419 = vrot.lane.b32.xlu0 %v3825, 126
        %v8420 = vpop.permute.xlu0 %8419
        %8421 = vrot.lane.b32.xlu0 %v3826, 126
        %v8422 = vpop.permute.xlu0 %8421
        %8423 = vrot.lane.b32.xlu0 %v3827, 126
        %v8424 = vpop.permute.xlu0 %8423
        %v8457 = vadd.f32 %v8297, %v8362
        %v8458 = vadd.f32 %v8298, %v8364
        %v8459 = vadd.f32 %v8299, %v8366
        %v8460 = vadd.f32 %v8300, %v8368
        %v8461 = vadd.f32 %v8301, %v8370
        %v8462 = vadd.f32 %v8302, %v8372
        %v8463 = vadd.f32 %v8303, %v8374
        %v8464 = vadd.f32 %v8304, %v8376
        %v8465 = vadd.f32 %v8305, %v8378
        %v8466 = vadd.f32 %v8306, %v8380
        %v8467 = vadd.f32 %v8307, %v8382
        %v8468 = vadd.f32 %v8308, %v8384
        %v8469 = vadd.f32 %v8309, %v8386
        %v8470 = vadd.f32 %v8310, %v8388
        %v8471 = vadd.f32 %v8311, %v8390
        %v8472 = vadd.f32 %v8312, %v8392
        %v8473 = vadd.f32 %v8313, %v8394
        %v8474 = vadd.f32 %v8314, %v8396
        %v8475 = vadd.f32 %v8315, %v8398
        %v8476 = vadd.f32 %v8316, %v8400
        %v8477 = vadd.f32 %v8317, %v8402
        %v8478 = vadd.f32 %v8318, %v8404
        %v8479 = vadd.f32 %v8319, %v8406
        %v8480 = vadd.f32 %v8320, %v8408
        %v8481 = vadd.f32 %v8321, %v8410
        %v8482 = vadd.f32 %v8322, %v8412
        %v8483 = vadd.f32 %v8323, %v8414
        %v8484 = vadd.f32 %v8324, %v8416
        %v8485 = vadd.f32 %v8325, %v8418
        %v8486 = vadd.f32 %v8326, %v8420
        %v8487 = vadd.f32 %v8327, %v8422
        %v8488 = vadd.f32 %v8328, %v8424
        %v8489 = vxor.u32 %v8457, 2147483648
        %v8490 = vxor.u32 %v8458, 2147483648
        %v8491 = vxor.u32 %v8459, 2147483648
        %v8492 = vxor.u32 %v8460, 2147483648
        %v8493 = vxor.u32 %v8461, 2147483648
        %v8494 = vxor.u32 %v8462, 2147483648
        %v8495 = vxor.u32 %v8463, 2147483648
        %v8496 = vxor.u32 %v8464, 2147483648
        %v8497 = vxor.u32 %v8465, 2147483648
        %v8498 = vxor.u32 %v8466, 2147483648
        %v8499 = vxor.u32 %v8467, 2147483648
        %v8500 = vxor.u32 %v8468, 2147483648
        %v8501 = vxor.u32 %v8469, 2147483648
        %v8502 = vxor.u32 %v8470, 2147483648
        %v8503 = vxor.u32 %v8471, 2147483648
        %v8504 = vxor.u32 %v8472, 2147483648
        %v8505 = vxor.u32 %v8473, 2147483648
        %v8506 = vxor.u32 %v8474, 2147483648
        %v8507 = vxor.u32 %v8475, 2147483648
        %v8508 = vxor.u32 %v8476, 2147483648
        %v8509 = vxor.u32 %v8477, 2147483648
        %v8510 = vxor.u32 %v8478, 2147483648
        %v8511 = vxor.u32 %v8479, 2147483648
        %v8512 = vxor.u32 %v8480, 2147483648
        %v8513 = vxor.u32 %v8481, 2147483648
        %v8514 = vxor.u32 %v8482, 2147483648
        %v8515 = vxor.u32 %v8483, 2147483648
        %v8516 = vxor.u32 %v8484, 2147483648
        %v8517 = vxor.u32 %v8485, 2147483648
        %v8518 = vxor.u32 %v8486, 2147483648
        %v8519 = vxor.u32 %v8487, 2147483648
        %v8520 = vxor.u32 %v8488, 2147483648
        %v8521 = vmul.f32 %v8489, 1.442695
        %v8522 = vpow.pop %v8521
        %v8523 = vmul.f32 %v8490, 1.442695
        %v8524 = vpow.pop %v8523
        %v8525 = vmul.f32 %v8491, 1.442695
        %v8526 = vpow.pop %v8525
        %v8527 = vmul.f32 %v8492, 1.442695
        %v8528 = vpow.pop %v8527
        %v8529 = vmul.f32 %v8493, 1.442695
        %v8530 = vpow.pop %v8529
        %v8531 = vmul.f32 %v8494, 1.442695
        %v8532 = vpow.pop %v8531
        %v8533 = vmul.f32 %v8495, 1.442695
        %v8534 = vpow.pop %v8533
        %v8535 = vmul.f32 %v8496, 1.442695
        %v8536 = vpow.pop %v8535
        %v8537 = vmul.f32 %v8497, 1.442695
        %v8538 = vpow.pop %v8537
        %v8539 = vmul.f32 %v8498, 1.442695
        %v8540 = vpow.pop %v8539
        %v8541 = vmul.f32 %v8499, 1.442695
        %v8542 = vpow.pop %v8541
        %v8543 = vmul.f32 %v8500, 1.442695
        %v8544 = vpow.pop %v8543
        %v8545 = vmul.f32 %v8501, 1.442695
        %v8546 = vpow.pop %v8545
        %v8547 = vmul.f32 %v8502, 1.442695
        %v8548 = vpow.pop %v8547
        %v8549 = vmul.f32 %v8503, 1.442695
        %v8550 = vpow.pop %v8549
        %v8551 = vmul.f32 %v8504, 1.442695
        %v8552 = vpow.pop %v8551
        %v8553 = vmul.f32 %v8505, 1.442695
        %v8554 = vpow.pop %v8553
        %v8555 = vmul.f32 %v8506, 1.442695
        %v8556 = vpow.pop %v8555
        %v8557 = vmul.f32 %v8507, 1.442695
        %v8558 = vpow.pop %v8557
        %v8559 = vmul.f32 %v8508, 1.442695
        %v8560 = vpow.pop %v8559
        %v8561 = vmul.f32 %v8509, 1.442695
        %v8562 = vpow.pop %v8561
        %v8563 = vmul.f32 %v8510, 1.442695
        %v8564 = vpow.pop %v8563
        %v8565 = vmul.f32 %v8511, 1.442695
        %v8566 = vpow.pop %v8565
        %v8567 = vmul.f32 %v8512, 1.442695
        %v8568 = vpow.pop %v8567
        %v8569 = vmul.f32 %v8513, 1.442695
        %v8570 = vpow.pop %v8569
        %v8571 = vmul.f32 %v8514, 1.442695
        %v8572 = vpow.pop %v8571
        %v8573 = vmul.f32 %v8515, 1.442695
        %v8574 = vpow.pop %v8573
        %v8575 = vmul.f32 %v8516, 1.442695
        %v8576 = vpow.pop %v8575
        %v8577 = vmul.f32 %v8517, 1.442695
        %v8578 = vpow.pop %v8577
        %v8579 = vmul.f32 %v8518, 1.442695
        %v8580 = vpow.pop %v8579
        %v8581 = vmul.f32 %v8519, 1.442695
        %v8582 = vpow.pop %v8581
        %v8583 = vmul.f32 %v8520, 1.442695
        %v8584 = vpow.pop %v8583
        %v8585 = vadd.f32 %v8522, 1.0
        %v8586 = vadd.f32 %v8524, 1.0
        %v8587 = vadd.f32 %v8526, 1.0
        %v8588 = vadd.f32 %v8528, 1.0
        %v8589 = vadd.f32 %v8530, 1.0
        %v8590 = vadd.f32 %v8532, 1.0
        %v8591 = vadd.f32 %v8534, 1.0
        %v8592 = vadd.f32 %v8536, 1.0
        %v8593 = vadd.f32 %v8538, 1.0
        %v8594 = vadd.f32 %v8540, 1.0
        %v8595 = vadd.f32 %v8542, 1.0
        %v8596 = vadd.f32 %v8544, 1.0
        %v8597 = vadd.f32 %v8546, 1.0
        %v8598 = vadd.f32 %v8548, 1.0
        %v8599 = vadd.f32 %v8550, 1.0
        %v8600 = vadd.f32 %v8552, 1.0
        %v8601 = vadd.f32 %v8554, 1.0
        %v8602 = vadd.f32 %v8556, 1.0
        %v8603 = vadd.f32 %v8558, 1.0
        %v8604 = vadd.f32 %v8560, 1.0
        %v8605 = vadd.f32 %v8562, 1.0
        %v8606 = vadd.f32 %v8564, 1.0
        %v8607 = vadd.f32 %v8566, 1.0
        %v8608 = vadd.f32 %v8568, 1.0
        %v8609 = vadd.f32 %v8570, 1.0
        %v8610 = vadd.f32 %v8572, 1.0
        %v8611 = vadd.f32 %v8574, 1.0
        %v8612 = vadd.f32 %v8576, 1.0
        %v8613 = vadd.f32 %v8578, 1.0
        %v8614 = vadd.f32 %v8580, 1.0
        %v8615 = vadd.f32 %v8582, 1.0
        %v8616 = vadd.f32 %v8584, 1.0
        %v8617 = vrcp.pop %v8585
        %v8618 = vmul.f32 %v8585, %v8617
        %v8619 = vsub.f32 1.0, %v8618
        %v8620 = vmul.f32 %v8617, %v8619
        %v8621 = vadd.f32 %v8617, %v8620
        %vm8622 = vweird.f32 %v8585
        %vm8623 = vweird.f32 %v8617
        %vm8624 = vmor %vm8622, %vm8623
        %v8625 = vsel %vm8624, %v8617, %v8621
        %v8626 = vand.u32 2147483647, %v8585
        %vm8627 = vcmp.eq.f32.partialorder %v8626, 8.507059e+37
        %v8628 = vand.u32 %v8585, 2147483648
        %v8629 = vor.u32 1.1754944e-38, %v8628
        %v8630 = vsel %vm8627, %v8629, %v8625
        %v8631 = vmul.f32 1.0, %v8630
        %v8632 = vrcp.pop %v8586
        %v8633 = vmul.f32 %v8586, %v8632
        %v8634 = vsub.f32 1.0, %v8633
        %v8635 = vmul.f32 %v8632, %v8634
        %v8636 = vadd.f32 %v8632, %v8635
        %vm8637 = vweird.f32 %v8586
        %vm8638 = vweird.f32 %v8632
        %vm8639 = vmor %vm8637, %vm8638
        %v8640 = vsel %vm8639, %v8632, %v8636
        %v8641 = vand.u32 2147483647, %v8586
        %vm8642 = vcmp.eq.f32.partialorder %v8641, 8.507059e+37
        %v8643 = vand.u32 %v8586, 2147483648
        %v8644 = vor.u32 1.1754944e-38, %v8643
        %v8645 = vsel %vm8642, %v8644, %v8640
        %v8646 = vmul.f32 1.0, %v8645
        %v8647 = vrcp.pop %v8587
        %v8648 = vmul.f32 %v8587, %v8647
        %v8649 = vsub.f32 1.0, %v8648
        %v8650 = vmul.f32 %v8647, %v8649
        %v8651 = vadd.f32 %v8647, %v8650
        %vm8652 = vweird.f32 %v8587
        %vm8653 = vweird.f32 %v8647
        %vm8654 = vmor %vm8652, %vm8653
        %v8655 = vsel %vm8654, %v8647, %v8651
        %v8656 = vand.u32 2147483647, %v8587
        %vm8657 = vcmp.eq.f32.partialorder %v8656, 8.507059e+37
        %v8658 = vand.u32 %v8587, 2147483648
        %v8659 = vor.u32 1.1754944e-38, %v8658
        %v8660 = vsel %vm8657, %v8659, %v8655
        %v8661 = vmul.f32 1.0, %v8660
        %v8662 = vrcp.pop %v8588
        %v8663 = vmul.f32 %v8588, %v8662
        %v8664 = vsub.f32 1.0, %v8663
        %v8665 = vmul.f32 %v8662, %v8664
        %v8666 = vadd.f32 %v8662, %v8665
        %vm8667 = vweird.f32 %v8588
        %vm8668 = vweird.f32 %v8662
        %vm8669 = vmor %vm8667, %vm8668
        %v8670 = vsel %vm8669, %v8662, %v8666
        %v8671 = vand.u32 2147483647, %v8588
        %vm8672 = vcmp.eq.f32.partialorder %v8671, 8.507059e+37
        %v8673 = vand.u32 %v8588, 2147483648
        %v8674 = vor.u32 1.1754944e-38, %v8673
        %v8675 = vsel %vm8672, %v8674, %v8670
        %v8676 = vmul.f32 1.0, %v8675
        %v8677 = vrcp.pop %v8589
        %v8678 = vmul.f32 %v8589, %v8677
        %v8679 = vsub.f32 1.0, %v8678
        %v8680 = vmul.f32 %v8677, %v8679
        %v8681 = vadd.f32 %v8677, %v8680
        %vm8682 = vweird.f32 %v8589
        %vm8683 = vweird.f32 %v8677
        %vm8684 = vmor %vm8682, %vm8683
        %v8685 = vsel %vm8684, %v8677, %v8681
        %v8686 = vand.u32 2147483647, %v8589
        %vm8687 = vcmp.eq.f32.partialorder %v8686, 8.507059e+37
        %v8688 = vand.u32 %v8589, 2147483648
        %v8689 = vor.u32 1.1754944e-38, %v8688
        %v8690 = vsel %vm8687, %v8689, %v8685
        %v8691 = vmul.f32 1.0, %v8690
        %v8692 = vrcp.pop %v8590
        %v8693 = vmul.f32 %v8590, %v8692
        %v8694 = vsub.f32 1.0, %v8693
        %v8695 = vmul.f32 %v8692, %v8694
        %v8696 = vadd.f32 %v8692, %v8695
        %vm8697 = vweird.f32 %v8590
        %vm8698 = vweird.f32 %v8692
        %vm8699 = vmor %vm8697, %vm8698
        %v8700 = vsel %vm8699, %v8692, %v8696
        %v8701 = vand.u32 2147483647, %v8590
        %vm8702 = vcmp.eq.f32.partialorder %v8701, 8.507059e+37
        %v8703 = vand.u32 %v8590, 2147483648
        %v8704 = vor.u32 1.1754944e-38, %v8703
        %v8705 = vsel %vm8702, %v8704, %v8700
        %v8706 = vmul.f32 1.0, %v8705
        %v8707 = vrcp.pop %v8591
        %v8708 = vmul.f32 %v8591, %v8707
        %v8709 = vsub.f32 1.0, %v8708
        %v8710 = vmul.f32 %v8707, %v8709
        %v8711 = vadd.f32 %v8707, %v8710
        %vm8712 = vweird.f32 %v8591
        %vm8713 = vweird.f32 %v8707
        %vm8714 = vmor %vm8712, %vm8713
        %v8715 = vsel %vm8714, %v8707, %v8711
        %v8716 = vand.u32 2147483647, %v8591
        %vm8717 = vcmp.eq.f32.partialorder %v8716, 8.507059e+37
        %v8718 = vand.u32 %v8591, 2147483648
        %v8719 = vor.u32 1.1754944e-38, %v8718
        %v8720 = vsel %vm8717, %v8719, %v8715
        %v8721 = vmul.f32 1.0, %v8720
        %v8722 = vrcp.pop %v8592
        %v8723 = vmul.f32 %v8592, %v8722
        %v8724 = vsub.f32 1.0, %v8723
        %v8725 = vmul.f32 %v8722, %v8724
        %v8726 = vadd.f32 %v8722, %v8725
        %vm8727 = vweird.f32 %v8592
        %vm8728 = vweird.f32 %v8722
        %vm8729 = vmor %vm8727, %vm8728
        %v8730 = vsel %vm8729, %v8722, %v8726
        %v8731 = vand.u32 2147483647, %v8592
        %vm8732 = vcmp.eq.f32.partialorder %v8731, 8.507059e+37
        %v8733 = vand.u32 %v8592, 2147483648
        %v8734 = vor.u32 1.1754944e-38, %v8733
        %v8735 = vsel %vm8732, %v8734, %v8730
        %v8736 = vmul.f32 1.0, %v8735
        %v8737 = vrcp.pop %v8593
        %v8738 = vmul.f32 %v8593, %v8737
        %v8739 = vsub.f32 1.0, %v8738
        %v8740 = vmul.f32 %v8737, %v8739
        %v8741 = vadd.f32 %v8737, %v8740
        %vm8742 = vweird.f32 %v8593
        %vm8743 = vweird.f32 %v8737
        %vm8744 = vmor %vm8742, %vm8743
        %v8745 = vsel %vm8744, %v8737, %v8741
        %v8746 = vand.u32 2147483647, %v8593
        %vm8747 = vcmp.eq.f32.partialorder %v8746, 8.507059e+37
        %v8748 = vand.u32 %v8593, 2147483648
        %v8749 = vor.u32 1.1754944e-38, %v8748
        %v8750 = vsel %vm8747, %v8749, %v8745
        %v8751 = vmul.f32 1.0, %v8750
        %v8752 = vrcp.pop %v8594
        %v8753 = vmul.f32 %v8594, %v8752
        %v8754 = vsub.f32 1.0, %v8753
        %v8755 = vmul.f32 %v8752, %v8754
        %v8756 = vadd.f32 %v8752, %v8755
        %vm8757 = vweird.f32 %v8594
        %vm8758 = vweird.f32 %v8752
        %vm8759 = vmor %vm8757, %vm8758
        %v8760 = vsel %vm8759, %v8752, %v8756
        %v8761 = vand.u32 2147483647, %v8594
        %vm8762 = vcmp.eq.f32.partialorder %v8761, 8.507059e+37
        %v8763 = vand.u32 %v8594, 2147483648
        %v8764 = vor.u32 1.1754944e-38, %v8763
        %v8765 = vsel %vm8762, %v8764, %v8760
        %v8766 = vmul.f32 1.0, %v8765
        %v8767 = vrcp.pop %v8595
        %v8768 = vmul.f32 %v8595, %v8767
        %v8769 = vsub.f32 1.0, %v8768
        %v8770 = vmul.f32 %v8767, %v8769
        %v8771 = vadd.f32 %v8767, %v8770
        %vm8772 = vweird.f32 %v8595
        %vm8773 = vweird.f32 %v8767
        %vm8774 = vmor %vm8772, %vm8773
        %v8775 = vsel %vm8774, %v8767, %v8771
        %v8776 = vand.u32 2147483647, %v8595
        %vm8777 = vcmp.eq.f32.partialorder %v8776, 8.507059e+37
        %v8778 = vand.u32 %v8595, 2147483648
        %v8779 = vor.u32 1.1754944e-38, %v8778
        %v8780 = vsel %vm8777, %v8779, %v8775
        %v8781 = vmul.f32 1.0, %v8780
        %v8782 = vrcp.pop %v8596
        %v8783 = vmul.f32 %v8596, %v8782
        %v8784 = vsub.f32 1.0, %v8783
        %v8785 = vmul.f32 %v8782, %v8784
        %v8786 = vadd.f32 %v8782, %v8785
        %vm8787 = vweird.f32 %v8596
        %vm8788 = vweird.f32 %v8782
        %vm8789 = vmor %vm8787, %vm8788
        %v8790 = vsel %vm8789, %v8782, %v8786
        %v8791 = vand.u32 2147483647, %v8596
        %vm8792 = vcmp.eq.f32.partialorder %v8791, 8.507059e+37
        %v8793 = vand.u32 %v8596, 2147483648
        %v8794 = vor.u32 1.1754944e-38, %v8793
        %v8795 = vsel %vm8792, %v8794, %v8790
        %v8796 = vmul.f32 1.0, %v8795
        %v8797 = vrcp.pop %v8597
        %v8798 = vmul.f32 %v8597, %v8797
        %v8799 = vsub.f32 1.0, %v8798
        %v8800 = vmul.f32 %v8797, %v8799
        %v8801 = vadd.f32 %v8797, %v8800
        %vm8802 = vweird.f32 %v8597
        %vm8803 = vweird.f32 %v8797
        %vm8804 = vmor %vm8802, %vm8803
        %v8805 = vsel %vm8804, %v8797, %v8801
        %v8806 = vand.u32 2147483647, %v8597
        %vm8807 = vcmp.eq.f32.partialorder %v8806, 8.507059e+37
        %v8808 = vand.u32 %v8597, 2147483648
        %v8809 = vor.u32 1.1754944e-38, %v8808
        %v8810 = vsel %vm8807, %v8809, %v8805
        %v8811 = vmul.f32 1.0, %v8810
        %v8812 = vrcp.pop %v8598
        %v8813 = vmul.f32 %v8598, %v8812
        %v8814 = vsub.f32 1.0, %v8813
        %v8815 = vmul.f32 %v8812, %v8814
        %v8816 = vadd.f32 %v8812, %v8815
        %vm8817 = vweird.f32 %v8598
        %vm8818 = vweird.f32 %v8812
        %vm8819 = vmor %vm8817, %vm8818
        %v8820 = vsel %vm8819, %v8812, %v8816
        %v8821 = vand.u32 2147483647, %v8598
        %vm8822 = vcmp.eq.f32.partialorder %v8821, 8.507059e+37
        %v8823 = vand.u32 %v8598, 2147483648
        %v8824 = vor.u32 1.1754944e-38, %v8823
        %v8825 = vsel %vm8822, %v8824, %v8820
        %v8826 = vmul.f32 1.0, %v8825
        %v8827 = vrcp.pop %v8599
        %v8828 = vmul.f32 %v8599, %v8827
        %v8829 = vsub.f32 1.0, %v8828
        %v8830 = vmul.f32 %v8827, %v8829
        %v8831 = vadd.f32 %v8827, %v8830
        %vm8832 = vweird.f32 %v8599
        %vm8833 = vweird.f32 %v8827
        %vm8834 = vmor %vm8832, %vm8833
        %v8835 = vsel %vm8834, %v8827, %v8831
        %v8836 = vand.u32 2147483647, %v8599
        %vm8837 = vcmp.eq.f32.partialorder %v8836, 8.507059e+37
        %v8838 = vand.u32 %v8599, 2147483648
        %v8839 = vor.u32 1.1754944e-38, %v8838
        %v8840 = vsel %vm8837, %v8839, %v8835
        %v8841 = vmul.f32 1.0, %v8840
        %v8842 = vrcp.pop %v8600
        %v8843 = vmul.f32 %v8600, %v8842
        %v8844 = vsub.f32 1.0, %v8843
        %v8845 = vmul.f32 %v8842, %v8844
        %v8846 = vadd.f32 %v8842, %v8845
        %vm8847 = vweird.f32 %v8600
        %vm8848 = vweird.f32 %v8842
        %vm8849 = vmor %vm8847, %vm8848
        %v8850 = vsel %vm8849, %v8842, %v8846
        %v8851 = vand.u32 2147483647, %v8600
        %vm8852 = vcmp.eq.f32.partialorder %v8851, 8.507059e+37
        %v8853 = vand.u32 %v8600, 2147483648
        %v8854 = vor.u32 1.1754944e-38, %v8853
        %v8855 = vsel %vm8852, %v8854, %v8850
        %v8856 = vmul.f32 1.0, %v8855
        %v8857 = vrcp.pop %v8601
        %v8858 = vmul.f32 %v8601, %v8857
        %v8859 = vsub.f32 1.0, %v8858
        %v8860 = vmul.f32 %v8857, %v8859
        %v8861 = vadd.f32 %v8857, %v8860
        %vm8862 = vweird.f32 %v8601
        %vm8863 = vweird.f32 %v8857
        %vm8864 = vmor %vm8862, %vm8863
        %v8865 = vsel %vm8864, %v8857, %v8861
        %v8866 = vand.u32 2147483647, %v8601
        %vm8867 = vcmp.eq.f32.partialorder %v8866, 8.507059e+37
        %v8868 = vand.u32 %v8601, 2147483648
        %v8869 = vor.u32 1.1754944e-38, %v8868
        %v8870 = vsel %vm8867, %v8869, %v8865
        %v8871 = vmul.f32 1.0, %v8870
        %v8872 = vrcp.pop %v8602
        %v8873 = vmul.f32 %v8602, %v8872
        %v8874 = vsub.f32 1.0, %v8873
        %v8875 = vmul.f32 %v8872, %v8874
        %v8876 = vadd.f32 %v8872, %v8875
        %vm8877 = vweird.f32 %v8602
        %vm8878 = vweird.f32 %v8872
        %vm8879 = vmor %vm8877, %vm8878
        %v8880 = vsel %vm8879, %v8872, %v8876
        %v8881 = vand.u32 2147483647, %v8602
        %vm8882 = vcmp.eq.f32.partialorder %v8881, 8.507059e+37
        %v8883 = vand.u32 %v8602, 2147483648
        %v8884 = vor.u32 1.1754944e-38, %v8883
        %v8885 = vsel %vm8882, %v8884, %v8880
        %v8886 = vmul.f32 1.0, %v8885
        %v8887 = vrcp.pop %v8603
        %v8888 = vmul.f32 %v8603, %v8887
        %v8889 = vsub.f32 1.0, %v8888
        %v8890 = vmul.f32 %v8887, %v8889
        %v8891 = vadd.f32 %v8887, %v8890
        %vm8892 = vweird.f32 %v8603
        %vm8893 = vweird.f32 %v8887
        %vm8894 = vmor %vm8892, %vm8893
        %v8895 = vsel %vm8894, %v8887, %v8891
        %v8896 = vand.u32 2147483647, %v8603
        %vm8897 = vcmp.eq.f32.partialorder %v8896, 8.507059e+37
        %v8898 = vand.u32 %v8603, 2147483648
        %v8899 = vor.u32 1.1754944e-38, %v8898
        %v8900 = vsel %vm8897, %v8899, %v8895
        %v8901 = vmul.f32 1.0, %v8900
        %v8902 = vrcp.pop %v8604
        %v8903 = vmul.f32 %v8604, %v8902
        %v8904 = vsub.f32 1.0, %v8903
        %v8905 = vmul.f32 %v8902, %v8904
        %v8906 = vadd.f32 %v8902, %v8905
        %vm8907 = vweird.f32 %v8604
        %vm8908 = vweird.f32 %v8902
        %vm8909 = vmor %vm8907, %vm8908
        %v8910 = vsel %vm8909, %v8902, %v8906
        %v8911 = vand.u32 2147483647, %v8604
        %vm8912 = vcmp.eq.f32.partialorder %v8911, 8.507059e+37
        %v8913 = vand.u32 %v8604, 2147483648
        %v8914 = vor.u32 1.1754944e-38, %v8913
        %v8915 = vsel %vm8912, %v8914, %v8910
        %v8916 = vmul.f32 1.0, %v8915
        %v8917 = vrcp.pop %v8605
        %v8918 = vmul.f32 %v8605, %v8917
        %v8919 = vsub.f32 1.0, %v8918
        %v8920 = vmul.f32 %v8917, %v8919
        %v8921 = vadd.f32 %v8917, %v8920
        %vm8922 = vweird.f32 %v8605
        %vm8923 = vweird.f32 %v8917
        %vm8924 = vmor %vm8922, %vm8923
        %v8925 = vsel %vm8924, %v8917, %v8921
        %v8926 = vand.u32 2147483647, %v8605
        %vm8927 = vcmp.eq.f32.partialorder %v8926, 8.507059e+37
        %v8928 = vand.u32 %v8605, 2147483648
        %v8929 = vor.u32 1.1754944e-38, %v8928
        %v8930 = vsel %vm8927, %v8929, %v8925
        %v8931 = vmul.f32 1.0, %v8930
        %v8932 = vrcp.pop %v8606
        %v8933 = vmul.f32 %v8606, %v8932
        %v8934 = vsub.f32 1.0, %v8933
        %v8935 = vmul.f32 %v8932, %v8934
        %v8936 = vadd.f32 %v8932, %v8935
        %vm8937 = vweird.f32 %v8606
        %vm8938 = vweird.f32 %v8932
        %vm8939 = vmor %vm8937, %vm8938
        %v8940 = vsel %vm8939, %v8932, %v8936
        %v8941 = vand.u32 2147483647, %v8606
        %vm8942 = vcmp.eq.f32.partialorder %v8941, 8.507059e+37
        %v8943 = vand.u32 %v8606, 2147483648
        %v8944 = vor.u32 1.1754944e-38, %v8943
        %v8945 = vsel %vm8942, %v8944, %v8940
        %v8946 = vmul.f32 1.0, %v8945
        %v8947 = vrcp.pop %v8607
        %v8948 = vmul.f32 %v8607, %v8947
        %v8949 = vsub.f32 1.0, %v8948
        %v8950 = vmul.f32 %v8947, %v8949
        %v8951 = vadd.f32 %v8947, %v8950
        %vm8952 = vweird.f32 %v8607
        %vm8953 = vweird.f32 %v8947
        %vm8954 = vmor %vm8952, %vm8953
        %v8955 = vsel %vm8954, %v8947, %v8951
        %v8956 = vand.u32 2147483647, %v8607
        %vm8957 = vcmp.eq.f32.partialorder %v8956, 8.507059e+37
        %v8958 = vand.u32 %v8607, 2147483648
        %v8959 = vor.u32 1.1754944e-38, %v8958
        %v8960 = vsel %vm8957, %v8959, %v8955
        %v8961 = vmul.f32 1.0, %v8960
        %v8962 = vrcp.pop %v8608
        %v8963 = vmul.f32 %v8608, %v8962
        %v8964 = vsub.f32 1.0, %v8963
        %v8965 = vmul.f32 %v8962, %v8964
        %v8966 = vadd.f32 %v8962, %v8965
        %vm8967 = vweird.f32 %v8608
        %vm8968 = vweird.f32 %v8962
        %vm8969 = vmor %vm8967, %vm8968
        %v8970 = vsel %vm8969, %v8962, %v8966
        %v8971 = vand.u32 2147483647, %v8608
        %vm8972 = vcmp.eq.f32.partialorder %v8971, 8.507059e+37
        %v8973 = vand.u32 %v8608, 2147483648
        %v8974 = vor.u32 1.1754944e-38, %v8973
        %v8975 = vsel %vm8972, %v8974, %v8970
        %v8976 = vmul.f32 1.0, %v8975
        %v8977 = vrcp.pop %v8609
        %v8978 = vmul.f32 %v8609, %v8977
        %v8979 = vsub.f32 1.0, %v8978
        %v8980 = vmul.f32 %v8977, %v8979
        %v8981 = vadd.f32 %v8977, %v8980
        %vm8982 = vweird.f32 %v8609
        %vm8983 = vweird.f32 %v8977
        %vm8984 = vmor %vm8982, %vm8983
        %v8985 = vsel %vm8984, %v8977, %v8981
        %v8986 = vand.u32 2147483647, %v8609
        %vm8987 = vcmp.eq.f32.partialorder %v8986, 8.507059e+37
        %v8988 = vand.u32 %v8609, 2147483648
        %v8989 = vor.u32 1.1754944e-38, %v8988
        %v8990 = vsel %vm8987, %v8989, %v8985
        %v8991 = vmul.f32 1.0, %v8990
        %v8992 = vrcp.pop %v8610
        %v8993 = vmul.f32 %v8610, %v8992
        %v8994 = vsub.f32 1.0, %v8993
        %v8995 = vmul.f32 %v8992, %v8994
        %v8996 = vadd.f32 %v8992, %v8995
        %vm8997 = vweird.f32 %v8610
        %vm8998 = vweird.f32 %v8992
        %vm8999 = vmor %vm8997, %vm8998
        %v9000 = vsel %vm8999, %v8992, %v8996
        %v9001 = vand.u32 2147483647, %v8610
        %vm9002 = vcmp.eq.f32.partialorder %v9001, 8.507059e+37
        %v9003 = vand.u32 %v8610, 2147483648
        %v9004 = vor.u32 1.1754944e-38, %v9003
        %v9005 = vsel %vm9002, %v9004, %v9000
        %v9006 = vmul.f32 1.0, %v9005
        %v9007 = vrcp.pop %v8611
        %v9008 = vmul.f32 %v8611, %v9007
        %v9009 = vsub.f32 1.0, %v9008
        %v9010 = vmul.f32 %v9007, %v9009
        %v9011 = vadd.f32 %v9007, %v9010
        %vm9012 = vweird.f32 %v8611
        %vm9013 = vweird.f32 %v9007
        %vm9014 = vmor %vm9012, %vm9013
        %v9015 = vsel %vm9014, %v9007, %v9011
        %v9016 = vand.u32 2147483647, %v8611
        %vm9017 = vcmp.eq.f32.partialorder %v9016, 8.507059e+37
        %v9018 = vand.u32 %v8611, 2147483648
        %v9019 = vor.u32 1.1754944e-38, %v9018
        %v9020 = vsel %vm9017, %v9019, %v9015
        %v9021 = vmul.f32 1.0, %v9020
        %v9022 = vrcp.pop %v8612
        %v9023 = vmul.f32 %v8612, %v9022
        %v9024 = vsub.f32 1.0, %v9023
        %v9025 = vmul.f32 %v9022, %v9024
        %v9026 = vadd.f32 %v9022, %v9025
        %vm9027 = vweird.f32 %v8612
        %vm9028 = vweird.f32 %v9022
        %vm9029 = vmor %vm9027, %vm9028
        %v9030 = vsel %vm9029, %v9022, %v9026
        %v9031 = vand.u32 2147483647, %v8612
        %vm9032 = vcmp.eq.f32.partialorder %v9031, 8.507059e+37
        %v9033 = vand.u32 %v8612, 2147483648
        %v9034 = vor.u32 1.1754944e-38, %v9033
        %v9035 = vsel %vm9032, %v9034, %v9030
        %v9036 = vmul.f32 1.0, %v9035
        %v9037 = vrcp.pop %v8613
        %v9038 = vmul.f32 %v8613, %v9037
        %v9039 = vsub.f32 1.0, %v9038
        %v9040 = vmul.f32 %v9037, %v9039
        %v9041 = vadd.f32 %v9037, %v9040
        %vm9042 = vweird.f32 %v8613
        %vm9043 = vweird.f32 %v9037
        %vm9044 = vmor %vm9042, %vm9043
        %v9045 = vsel %vm9044, %v9037, %v9041
        %v9046 = vand.u32 2147483647, %v8613
        %vm9047 = vcmp.eq.f32.partialorder %v9046, 8.507059e+37
        %v9048 = vand.u32 %v8613, 2147483648
        %v9049 = vor.u32 1.1754944e-38, %v9048
        %v9050 = vsel %vm9047, %v9049, %v9045
        %v9051 = vmul.f32 1.0, %v9050
        %v9052 = vrcp.pop %v8614
        %v9053 = vmul.f32 %v8614, %v9052
        %v9054 = vsub.f32 1.0, %v9053
        %v9055 = vmul.f32 %v9052, %v9054
        %v9056 = vadd.f32 %v9052, %v9055
        %vm9057 = vweird.f32 %v8614
        %vm9058 = vweird.f32 %v9052
        %vm9059 = vmor %vm9057, %vm9058
        %v9060 = vsel %vm9059, %v9052, %v9056
        %v9061 = vand.u32 2147483647, %v8614
        %vm9062 = vcmp.eq.f32.partialorder %v9061, 8.507059e+37
        %v9063 = vand.u32 %v8614, 2147483648
        %v9064 = vor.u32 1.1754944e-38, %v9063
        %v9065 = vsel %vm9062, %v9064, %v9060
        %v9066 = vmul.f32 1.0, %v9065
        %v9067 = vrcp.pop %v8615
        %v9068 = vmul.f32 %v8615, %v9067
        %v9069 = vsub.f32 1.0, %v9068
        %v9070 = vmul.f32 %v9067, %v9069
        %v9071 = vadd.f32 %v9067, %v9070
        %vm9072 = vweird.f32 %v8615
        %vm9073 = vweird.f32 %v9067
        %vm9074 = vmor %vm9072, %vm9073
        %v9075 = vsel %vm9074, %v9067, %v9071
        %v9076 = vand.u32 2147483647, %v8615
        %vm9077 = vcmp.eq.f32.partialorder %v9076, 8.507059e+37
        %v9078 = vand.u32 %v8615, 2147483648
        %v9079 = vor.u32 1.1754944e-38, %v9078
        %v9080 = vsel %vm9077, %v9079, %v9075
        %v9081 = vmul.f32 1.0, %v9080
        %v9082 = vrcp.pop %v8616
        %v9083 = vmul.f32 %v8616, %v9082
        %v9084 = vsub.f32 1.0, %v9083
        %v9085 = vmul.f32 %v9082, %v9084
        %v9086 = vadd.f32 %v9082, %v9085
        %vm9087 = vweird.f32 %v8616
        %vm9088 = vweird.f32 %v9082
        %vm9089 = vmor %vm9087, %vm9088
        %v9090 = vsel %vm9089, %v9082, %v9086
        %v9091 = vand.u32 2147483647, %v8616
        %vm9092 = vcmp.eq.f32.partialorder %v9091, 8.507059e+37
        %v9093 = vand.u32 %v8616, 2147483648
        %v9094 = vor.u32 1.1754944e-38, %v9093
        %v9095 = vsel %vm9092, %v9094, %v9090
        %v9096 = vmul.f32 1.0, %v9095
        %9098 = vset.pattern.permute.xlu0 0
        %9099 = vperm.xlu0 %9098, %v8631
        %v9100 = vpop.permute.xlu0 %9099
        %9103 = vset.pattern.permute.xlu0 0
        %9104 = vperm.xlu0 %9103, %v8646
        %v9105 = vpop.permute.xlu0 %9104
        %9108 = vset.pattern.permute.xlu0 0
        %9109 = vperm.xlu0 %9108, %v8661
        %v9110 = vpop.permute.xlu0 %9109
        %9113 = vset.pattern.permute.xlu0 0
        %9114 = vperm.xlu0 %9113, %v8676
        %v9115 = vpop.permute.xlu0 %9114
        %9118 = vset.pattern.permute.xlu0 0
        %9119 = vperm.xlu0 %9118, %v8691
        %v9120 = vpop.permute.xlu0 %9119
        %9123 = vset.pattern.permute.xlu0 0
        %9124 = vperm.xlu0 %9123, %v8706
        %v9125 = vpop.permute.xlu0 %9124
        %9128 = vset.pattern.permute.xlu0 0
        %9129 = vperm.xlu0 %9128, %v8721
        %v9130 = vpop.permute.xlu0 %9129
        %9133 = vset.pattern.permute.xlu0 0
        %9134 = vperm.xlu0 %9133, %v8736
        %v9135 = vpop.permute.xlu0 %9134
        %9138 = vset.pattern.permute.xlu0 0
        %9139 = vperm.xlu0 %9138, %v8751
        %v9140 = vpop.permute.xlu0 %9139
        %9143 = vset.pattern.permute.xlu0 0
        %9144 = vperm.xlu0 %9143, %v8766
        %v9145 = vpop.permute.xlu0 %9144
        %9148 = vset.pattern.permute.xlu0 0
        %9149 = vperm.xlu0 %9148, %v8781
        %v9150 = vpop.permute.xlu0 %9149
        %9153 = vset.pattern.permute.xlu0 0
        %9154 = vperm.xlu0 %9153, %v8796
        %v9155 = vpop.permute.xlu0 %9154
        %9158 = vset.pattern.permute.xlu0 0
        %9159 = vperm.xlu0 %9158, %v8811
        %v9160 = vpop.permute.xlu0 %9159
        %9163 = vset.pattern.permute.xlu0 0
        %9164 = vperm.xlu0 %9163, %v8826
        %v9165 = vpop.permute.xlu0 %9164
        %9168 = vset.pattern.permute.xlu0 0
        %9169 = vperm.xlu0 %9168, %v8841
        %v9170 = vpop.permute.xlu0 %9169
        %9173 = vset.pattern.permute.xlu0 0
        %9174 = vperm.xlu0 %9173, %v8856
        %v9175 = vpop.permute.xlu0 %9174
        %9178 = vset.pattern.permute.xlu0 0
        %9179 = vperm.xlu0 %9178, %v8871
        %v9180 = vpop.permute.xlu0 %9179
        %9183 = vset.pattern.permute.xlu0 0
        %9184 = vperm.xlu0 %9183, %v8886
        %v9185 = vpop.permute.xlu0 %9184
        %9188 = vset.pattern.permute.xlu0 0
        %9189 = vperm.xlu0 %9188, %v8901
        %v9190 = vpop.permute.xlu0 %9189
        %9193 = vset.pattern.permute.xlu0 0
        %9194 = vperm.xlu0 %9193, %v8916
        %v9195 = vpop.permute.xlu0 %9194
        %9198 = vset.pattern.permute.xlu0 0
        %9199 = vperm.xlu0 %9198, %v8931
        %v9200 = vpop.permute.xlu0 %9199
        %9203 = vset.pattern.permute.xlu0 0
        %9204 = vperm.xlu0 %9203, %v8946
        %v9205 = vpop.permute.xlu0 %9204
        %9208 = vset.pattern.permute.xlu0 0
        %9209 = vperm.xlu0 %9208, %v8961
        %v9210 = vpop.permute.xlu0 %9209
        %9213 = vset.pattern.permute.xlu0 0
        %9214 = vperm.xlu0 %9213, %v8976
        %v9215 = vpop.permute.xlu0 %9214
        %9218 = vset.pattern.permute.xlu0 0
        %9219 = vperm.xlu0 %9218, %v8991
        %v9220 = vpop.permute.xlu0 %9219
        %9223 = vset.pattern.permute.xlu0 0
        %9224 = vperm.xlu0 %9223, %v9006
        %v9225 = vpop.permute.xlu0 %9224
        %9228 = vset.pattern.permute.xlu0 0
        %9229 = vperm.xlu0 %9228, %v9021
        %v9230 = vpop.permute.xlu0 %9229
        %9233 = vset.pattern.permute.xlu0 0
        %9234 = vperm.xlu0 %9233, %v9036
        %v9235 = vpop.permute.xlu0 %9234
        %9238 = vset.pattern.permute.xlu0 0
        %9239 = vperm.xlu0 %9238, %v9051
        %v9240 = vpop.permute.xlu0 %9239
        %9243 = vset.pattern.permute.xlu0 0
        %9244 = vperm.xlu0 %9243, %v9066
        %v9245 = vpop.permute.xlu0 %9244
        %9248 = vset.pattern.permute.xlu0 0
        %9249 = vperm.xlu0 %9248, %v9081
        %v9250 = vpop.permute.xlu0 %9249
        %9253 = vset.pattern.permute.xlu0 0
        %9254 = vperm.xlu0 %9253, %v9096
        %v9255 = vpop.permute.xlu0 %9254
        %v9257 = vmul.f32 %v9100, %v6172
        %v9258 = vmul.f32 %v9105, %v6174
        %v9259 = vmul.f32 %v9110, %v6177
        %v9260 = vmul.f32 %v9115, %v6179
        %v9261 = vmul.f32 %v9120, %v6182
        %v9262 = vmul.f32 %v9125, %v6184
        %v9263 = vmul.f32 %v9130, %v6187
        %v9264 = vmul.f32 %v9135, %v6189
        %v9265 = vmul.f32 %v9140, %v6192
        %v9266 = vmul.f32 %v9145, %v6194
        %v9267 = vmul.f32 %v9150, %v6197
        %v9268 = vmul.f32 %v9155, %v6199
        %v9269 = vmul.f32 %v9160, %v6202
        %v9270 = vmul.f32 %v9165, %v6204
        %v9271 = vmul.f32 %v9170, %v6207
        %v9272 = vmul.f32 %v9175, %v6209
        %v9273 = vmul.f32 %v9180, %v6212
        %v9274 = vmul.f32 %v9185, %v6214
        %v9275 = vmul.f32 %v9190, %v6217
        %v9276 = vmul.f32 %v9195, %v6219
        %v9277 = vmul.f32 %v9200, %v6222
        %v9278 = vmul.f32 %v9205, %v6224
        %v9279 = vmul.f32 %v9210, %v6227
        %v9280 = vmul.f32 %v9215, %v6229
        %v9281 = vmul.f32 %v9220, %v6232
        %v9282 = vmul.f32 %v9225, %v6234
        %v9283 = vmul.f32 %v9230, %v6237
        %v9284 = vmul.f32 %v9235, %v6239
        %v9285 = vmul.f32 %v9240, %v6242
        %v9286 = vmul.f32 %v9245, %v6244
        %v9287 = vmul.f32 %v9250, %v6247
        %v9288 = vmul.f32 %v9255, %v6249
        %9289 = vst [vmem:[%s367] sm:$0xff] %v9257
        %9290 = vst [vmem:[%s367 + $0x8] sm:$0xff] %v9258
        %9291 = vst [vmem:[%s367 + $0x10] sm:$0xff] %v9259
        %9292 = vst [vmem:[%s367 + $0x18] sm:$0xff] %v9260
        %9293 = vst [vmem:[%s367 + $0x20] sm:$0xff] %v9261
        %9294 = vst [vmem:[%s367 + $0x28] sm:$0xff] %v9262
        %9295 = vst [vmem:[%s367 + $0x30] sm:$0xff] %v9263
        %9296 = vst [vmem:[%s367 + $0x38] sm:$0xff] %v9264
        %9297 = vst [vmem:[%s367 + $0x40] sm:$0xff] %v9265
        %9298 = vst [vmem:[%s367 + $0x48] sm:$0xff] %v9266
        %9299 = vst [vmem:[%s367 + $0x50] sm:$0xff] %v9267
        %9300 = vst [vmem:[%s367 + $0x58] sm:$0xff] %v9268
        %9301 = vst [vmem:[%s367 + $0x60] sm:$0xff] %v9269
        %9302 = vst [vmem:[%s367 + $0x68] sm:$0xff] %v9270
        %9303 = vst [vmem:[%s367 + $0x70] sm:$0xff] %v9271
        %9304 = vst [vmem:[%s367 + $0x78] sm:$0xff] %v9272
        %9305 = vst [vmem:[%s367 + $0x80] sm:$0xff] %v9273
        %9306 = vst [vmem:[%s367 + $0x88] sm:$0xff] %v9274
        %9307 = vst [vmem:[%s367 + $0x90] sm:$0xff] %v9275
        %9308 = vst [vmem:[%s367 + $0x98] sm:$0xff] %v9276
        %9309 = vst [vmem:[%s367 + $0xa0] sm:$0xff] %v9277
        %9310 = vst [vmem:[%s367 + $0xa8] sm:$0xff] %v9278
        %9311 = vst [vmem:[%s367 + $0xb0] sm:$0xff] %v9279
        %9312 = vst [vmem:[%s367 + $0xb8] sm:$0xff] %v9280
        %9313 = vst [vmem:[%s367 + $0xc0] sm:$0xff] %v9281
        %9314 = vst [vmem:[%s367 + $0xc8] sm:$0xff] %v9282
        %9315 = vst [vmem:[%s367 + $0xd0] sm:$0xff] %v9283
        %9316 = vst [vmem:[%s367 + $0xd8] sm:$0xff] %v9284
        %9317 = vst [vmem:[%s367 + $0xe0] sm:$0xff] %v9285
        %9318 = vst [vmem:[%s367 + $0xe8] sm:$0xff] %v9286
        %9319 = vst [vmem:[%s367 + $0xf0] sm:$0xff] %v9287
        %9320 = vst [vmem:[%s367 + $0xf8] sm:$0xff] %v9288
        %s9321 = sand.u32 %s252, 1
        %s9322 = scalar_lea.sflag [#allocation3], %s9321
        %s9323 = sand.u32 %s252, 1
        %s9324 = smul.addr %s9323, 256
        %s9325 = scalar_lea.vmem [#allocation2], %s9324
        // Predicated region
        $region61: #{tpu_custom_call.1} parent=59 // pred_check
          %p9326 = pneg %p262
        $region62: #{tpu_custom_call.1} parent=59 // pred_check_branch
          %9328 = sbr.rel (%p9326) target = $region64
        $region63: #{tpu_custom_call.1} parent=59 // pred_region
          %9330 = vsyncadd %s9322, 0
          %s9331 = smul.addr %s24, 32
          %s9332 = smul.addr %s9331, 8
          %s9333 = scalar_lea.hbm %s10, %s9332
          %s9334 = sshll.u32 %s9325, 4
          %s9335 = int_to_ptr.vmem [resolvable:$true] %s9334
          %s9336 = sshll.u32 %s9333, 4
          %s9337 = int_to_ptr.hbm [resolvable:$true] %s9336
          %9342 = dma.vmem_to_hbm [thread:$0]  %s9335, 4096, %s9337, %s9322, 128, 128, 8
        $region64: #{tpu_custom_call.1} parent=59 // pred_fallthru
          _
      $region60: #{tpu_custom_call.1} parent=5 // pred_fallthru
        _
      %p9343 = scmp.le.s32.totalorder 2, %s19
      // Predicated region
      $region65: #{tpu_custom_call.1} parent=5 // pred_check
        %p9344 = pneg %p9343
      $region66: #{tpu_custom_call.1} parent=5 // pred_check_branch
        %9346 = sbr.rel (%p9344) target = $region68
      $region67: #{tpu_custom_call.1} parent=5 // pred_region
        %s9347 = ssub.s32 %s19, 2
        // Predicated region
        $region69: #{tpu_custom_call.1} parent=67 // pred_check
          %p9348 = pneg %p268
        $region70: #{tpu_custom_call.1} parent=67 // pred_check_branch
          %9350 = sbr.rel (%p9348) target = $region72
        $region71: #{tpu_custom_call.1} parent=67 // pred_region
          %s9351 = sand.u32 %s253, 1
          %s9352 = scalar_lea.sflag [#allocation3], %s9351
          %s9353 = sand.u32 %s253, 1
          %s9354 = smul.addr %s9353, 256
          %s9355 = scalar_lea.vmem [#allocation2], %s9354
          %9357 = dma.done %s9352, 4096
        $region72: #{tpu_custom_call.1} parent=67 // pred_fallthru
          _
      $region68: #{tpu_custom_call.1} parent=5 // pred_fallthru
        _
    $region6: #{tpu_custom_call.1} parent=1 // loop_footer
      %s23 = sadd.s32 1, %s19
    $region7: #{tpu_custom_call.1} parent=1 // loop_footer_branch
      %18 = sbr.rel target = $region3
    $region8: #{tpu_custom_call.1} parent=1 // loop_exit
      _
    %9358 = vsyncpa [#allocation3], 1
    %s9359 = scalar_lea.sflag [#allocation3], 1
    %9360 = vsyncpa %s9359, 1

</llo_original>
